<compile_context>
chip_gen: v6e
topology: v6e:2x2x1
jax: 0.10.0
libtpu: 0.0.40
codegen_flags: <defaults>
</compile_context>

<pallas_src>
import math
import functools

import jax
import jax.numpy as jnp
from jax import lax
from jax.experimental import pallas as pl
from jax.experimental.pallas import tpu as pltpu

_NEG_INF = -1e30      # large finite negative: exp underflows to 0.0, never NaN
_LN_EPS = 1e-5

_VMEM = pl.BlockSpec(memory_space=pltpu.MemorySpace.VMEM)


# --------------------------------------------------------------------------
# In-kernel helpers (operate on traced values inside a kernel body)
# --------------------------------------------------------------------------
def _layernorm(x, g, b, eps=_LN_EPS):
    mu = jnp.mean(x, axis=-1, keepdims=True)
    xc = x - mu
    var = jnp.mean(xc * xc, axis=-1, keepdims=True)
    return xc * lax.rsqrt(var + eps) * g + b


def _mha_core(q, k, v, n_head, bias):
    """Multi-head attention for one batch element.
    q: (Tq, D), k/v: (Tk, D), bias: additive (Tq, Tk) or None -> (Tq, D)."""
    Tq, D = q.shape
    Dh = D // n_head
    scale = 1.0 / math.sqrt(Dh)
    heads = []
    for h in range(n_head):                      # statically unrolled
        lo = h * Dh
        qh = q[:, lo:lo + Dh]
        kh = k[:, lo:lo + Dh]
        vh = v[:, lo:lo + Dh]
        s = jnp.dot(qh, kh.T, preferred_element_type=jnp.float32) * scale
        if bias is not None:
            s = s + bias
        m = jnp.max(s, axis=-1, keepdims=True)
        p = jnp.exp(s - m)
        l = jnp.sum(p, axis=-1, keepdims=True)
        p = p * pl.reciprocal(l, approx=True)    # EUP slot, not VPU divide
        heads.append(jnp.dot(p, vh, preferred_element_type=jnp.float32))
    return jnp.concatenate(heads, axis=-1)


# --------------------------------------------------------------------------
# Pallas kernels
# --------------------------------------------------------------------------
def _input_fc_kernel(x_ref, w_ref, b_ref, pe_ref, o_ref):
    # x: (B, S, d_in) -> o: (B, S, D) = x @ w + b + pe  (PE add fused)
    for bb in range(x_ref.shape[0]):
        y = jnp.dot(x_ref[bb], w_ref[...],
                    preferred_element_type=jnp.float32) + b_ref[...]
        o_ref[bb] = y + pe_ref[...]


def _embed_pe_kernel(tok_ref, emb_ref, pe_ref, o_ref):
    # tokens (B, T, 1) int32 -> one-hot GEMM with (C, D) table, PE add fused
    T = tok_ref.shape[1]
    C = emb_ref.shape[0]
    cls = lax.broadcasted_iota(jnp.int32, (T, C), 1)
    for bb in range(tok_ref.shape[0]):
        onehot = (tok_ref[bb] == cls).astype(jnp.float32)          # (T, C)
        e = jnp.dot(onehot, emb_ref[...], preferred_element_type=jnp.float32)
        o_ref[bb] = e + pe_ref[...]


def _fc_kernel(x_ref, w_ref, b_ref, o_ref):
    for bb in range(x_ref.shape[0]):
        o_ref[bb] = jnp.dot(x_ref[bb], w_ref[...],
                            preferred_element_type=jnp.float32) + b_ref[...]


def _encoder_layer_kernel(x_ref, wqkv_ref, bqkv_ref, wo_ref, bo_ref,
                          g1_ref, b1_ref, w1_ref, c1_ref, w2_ref, c2_ref,
                          g2_ref, b2_ref, o_ref, *, n_head):
    # One batch element per grid step: x (S, D)
    x = x_ref[0]
    D = x.shape[-1]
    qkv = jnp.dot(x, wqkv_ref[...],
                  preferred_element_type=jnp.float32) + bqkv_ref[...]
    a = _mha_core(qkv[:, :D], qkv[:, D:2 * D], qkv[:, 2 * D:3 * D], n_head, None)
    a = jnp.dot(a, wo_ref[...], preferred_element_type=jnp.float32) + bo_ref[...]
    h = _layernorm(x + a, g1_ref[...], b1_ref[...])
    f = jnp.maximum(jnp.dot(h, w1_ref[...],
                            preferred_element_type=jnp.float32) + c1_ref[...], 0.0)
    f = jnp.dot(f, w2_ref[...], preferred_element_type=jnp.float32) + c2_ref[...]
    o_ref[0] = _layernorm(h + f, g2_ref[...], b2_ref[...])


def _decoder_layer_kernel(len_ref, x_ref, mem_ref,
                          wqkv_ref, bqkv_ref, wo1_ref, bo1_ref, g1_ref, b1_ref,
                          wq_ref, bq_ref, wkv_ref, bkv_ref, wo2_ref, bo2_ref,
                          g2_ref, b2_ref,
                          w1_ref, c1_ref, w2_ref, c2_ref, g3_ref, b3_ref,
                          o_ref, *, n_head):
    b = pl.program_id(0)
    x = x_ref[0]            # (T, D)
    mem = mem_ref[0]        # (S, D)
    T, D = x.shape

    # masked self-attention; mask built in-kernel from scalar-prefetched lengths
    qi = lax.broadcasted_iota(jnp.int32, (T, T), 0)
    kj = lax.broadcasted_iota(jnp.int32, (T, T), 1)
    valid = (kj <= qi) & (kj < (len_ref[b] + 2))
    bias = jnp.where(valid, 0.0, _NEG_INF).astype(jnp.float32)

    qkv = jnp.dot(x, wqkv_ref[...],
                  preferred_element_type=jnp.float32) + bqkv_ref[...]
    a = _mha_core(qkv[:, :D], qkv[:, D:2 * D], qkv[:, 2 * D:3 * D], n_head, bias)
    a = jnp.dot(a, wo1_ref[...], preferred_element_type=jnp.float32) + bo1_ref[...]
    h = _layernorm(x + a, g1_ref[...], b1_ref[...])

    # cross attention over encoder memory
    q = jnp.dot(h, wq_ref[...], preferred_element_type=jnp.float32) + bq_ref[...]
    kv = jnp.dot(mem, wkv_ref[...],
                 preferred_element_type=jnp.float32) + bkv_ref[...]
    a = _mha_core(q, kv[:, :D], kv[:, D:2 * D], n_head, None)
    a = jnp.dot(a, wo2_ref[...], preferred_element_type=jnp.float32) + bo2_ref[...]
    h = _layernorm(h + a, g2_ref[...], b2_ref[...])

    # feed-forward
    f = jnp.maximum(jnp.dot(h, w1_ref[...],
                            preferred_element_type=jnp.float32) + c1_ref[...], 0.0)
    f = jnp.dot(f, w2_ref[...], preferred_element_type=jnp.float32) + c2_ref[...]
    o_ref[0] = _layernorm(h + f, g3_ref[...], b3_ref[...])


# --------------------------------------------------------------------------
# pallas_call wrappers
# --------------------------------------------------------------------------
def _rep_spec(shape):
    """Full-array block, same block for every grid step (weights)."""
    n = len(shape)
    return pl.BlockSpec(shape, lambda *_, _n=n: (0,) * _n)


def _call_whole(kernel, out_shape, *args):
    return pl.pallas_call(kernel, out_shape=out_shape,
                          in_specs=[_VMEM] * len(args), out_specs=_VMEM)(*args)


def encoder_layer(x, p, n_head):
    B, S, D = x.shape
    weights = [p["wqkv"], p["bqkv"], p["wo"], p["bo"], p["g1"], p["b1"],
               p["w1"], p["c1"], p["w2"], p["c2"], p["g2"], p["b2"]]
    return pl.pallas_call(
        functools.partial(_encoder_layer_kernel, n_head=n_head),
        out_shape=jax.ShapeDtypeStruct((B, S, D), jnp.float32),
        grid=(B,),
        in_specs=[pl.BlockSpec((1, S, D), lambda b: (b, 0, 0))]
                 + [_rep_spec(w.shape) for w in weights],
        out_specs=pl.BlockSpec((1, S, D), lambda b: (b, 0, 0)),
        compiler_params=pltpu.CompilerParams(dimension_semantics=("parallel",)),
    )(x, *weights)


def decoder_layer(x, memory, tgt_lengths, p, n_head):
    B, T, D = x.shape
    S = memory.shape[1]
    weights = [p["wqkv"], p["bqkv"], p["wo1"], p["bo1"], p["g1"], p["b1"],
               p["wq"], p["bq"], p["wkv"], p["bkv"], p["wo2"], p["bo2"],
               p["g2"], p["b2"],
               p["w1"], p["c1"], p["w2"], p["c2"], p["g3"], p["b3"]]
    grid_spec = pltpu.PrefetchScalarGridSpec(
        num_scalar_prefetch=1,                    # tgt_lengths -> SMEM
        grid=(B,),
        in_specs=[pl.BlockSpec((1, T, D), lambda b, lens: (b, 0, 0)),
                  pl.BlockSpec((1, S, D), lambda b, lens: (b, 0, 0))]
                 + [_rep_spec(w.shape) for w in weights],
        out_specs=pl.BlockSpec((1, T, D), lambda b, lens: (b, 0, 0)),
    )
    return pl.pallas_call(
        functools.partial(_decoder_layer_kernel, n_head=n_head),
        out_shape=jax.ShapeDtypeStruct((B, T, D), jnp.float32),
        grid_spec=grid_spec,
        compiler_params=pltpu.CompilerParams(dimension_semantics=("parallel",)),
    )(tgt_lengths, x, memory, *weights)


# --------------------------------------------------------------------------
# Forward pass (glue; activations kept batch-first internally)
# --------------------------------------------------------------------------
def forward_train(params, src, tgt_tokens, tgt_lengths, *, n_head, pe):
    S, B, _ = src.shape
    T = tgt_tokens.shape[0]
    D = params["input_fc_w"].shape[1]
    C = params["fc_w"].shape[1]
    lengths = tgt_lengths.astype(jnp.int32)

    # encoder input: input_fc + positional encoding (fused)
    src_bf = jnp.transpose(src.astype(jnp.float32), (1, 0, 2))        # (B, S, d_in)
    x = _call_whole(_input_fc_kernel,
                    jax.ShapeDtypeStruct((B, S, D), jnp.float32),
                    src_bf, params["input_fc_w"], params["input_fc_b"], pe[:S])

    # decoder input: char embedding (one-hot GEMM) + positional encoding (fused)
    tok_bf = jnp.transpose(tgt_tokens.astype(jnp.int32), (1, 0))[:, :, None]
    y = _call_whole(_embed_pe_kernel,
                    jax.ShapeDtypeStruct((B, T, D), jnp.float32),
                    tok_bf, params["char_emb"], pe[:T])

    memory = x
    for lp in params["encoder"]:
        memory = encoder_layer(memory, lp, n_head)

    out = y
    for lp in params["decoder"]:
        out = decoder_layer(out, memory, lengths, lp, n_head)

    logits = _call_whole(_fc_kernel,
                         jax.ShapeDtypeStruct((B, T, C), jnp.float32),
                         out, params["fc_w"], params["fc_b"])
    return jnp.transpose(logits, (1, 0, 2))                           # (T, B, C)


# --------------------------------------------------------------------------
# Positional encoding + deterministic parameter init
# (weights stored in kernel-friendly (in, out) layout; a real torch checkpoint
#  would be transposed / concatenated once at load time, outside the jit)
# --------------------------------------------------------------------------
def make_positional_encoding(d_model, max_len=5000):
    position = jnp.arange(max_len, dtype=jnp.float32)[:, None]
    div_term = jnp.exp(jnp.arange(0, d_model, 2, dtype=jnp.float32) *
                       (-math.log(10000.0) / d_model))
    pe = jnp.zeros((max_len, d_model), jnp.float32)
    pe = pe.at[:, 0::2].set(jnp.sin(position * div_term))
    pe = pe.at[:, 1::2].set(jnp.cos(position * div_term))
    return pe


def init_params(key, d_input, d_model, n_head, n_enc, n_dec, d_ff, n_class):
    keys = iter(jax.random.split(key, 512))

    def w(shape):
        return jax.random.normal(next(keys), shape, jnp.float32) * 0.05

    def ln():
        return (jnp.ones((1, d_model), jnp.float32),
                jnp.zeros((1, d_model), jnp.float32))

    def enc_layer():
        g1, b1 = ln(); g2, b2 = ln()
        return {"wqkv": w((d_model, 3 * d_model)), "bqkv": w((1, 3 * d_model)),
                "wo": w((d_model, d_model)), "bo": w((1, d_model)),
                "g1": g1, "b1": b1,
                "w1": w((d_model, d_ff)), "c1": w((1, d_ff)),
                "w2": w((d_ff, d_model)), "c2": w((1, d_model)),
                "g2": g2, "b2": b2}

    def dec_layer():
        g1, b1 = ln(); g2, b2 = ln(); g3, b3 = ln()
        return {"wqkv": w((d_model, 3 * d_model)), "bqkv": w((1, 3 * d_model)),
                "wo1": w((d_model, d_model)), "bo1": w((1, d_model)),
                "g1": g1, "b1": b1,
                "wq": w((d_model, d_model)), "bq": w((1, d_model)),
                "wkv": w((d_model, 2 * d_model)), "bkv": w((1, 2 * d_model)),
                "wo2": w((d_model, d_model)), "bo2": w((1, d_model)),
                "g2": g2, "b2": b2,
                "w1": w((d_model, d_ff)), "c1": w((1, d_ff)),
                "w2": w((d_ff, d_model)), "c2": w((1, d_model)),
                "g3": g3, "b3": b3}

    emb = w((n_class, d_model))
    emb = emb.at[2].set(0.0)                      # padding_idx=2

    return {"char_emb": emb,
            "input_fc_w": w((d_input, d_model)), "input_fc_b": w((1, d_model)),
            "encoder": [enc_layer() for _ in range(n_enc)],
            "decoder": [dec_layer() for _ in range(n_dec)],
            "fc_w": w((d_model, n_class)), "fc_b": w((1, n_class))}


# --------------------------------------------------------------------------
if __name__ == "__main__":
    D_INPUT, D_MODEL, N_HEAD = 16, 32, 4
    N_ENC, N_DEC, D_FF = 2, 2, 64
    OUTPUT_CLASS = 40
    S, T, B = 12, 8, 2

    root = jax.random.PRNGKey(0)
    k_param, k_src, k_tgt = jax.random.split(root, 3)

    params = init_params(k_param, D_INPUT, D_MODEL, N_HEAD,
                         N_ENC, N_DEC, D_FF, OUTPUT_CLASS)
    pe = make_positional_encoding(D_MODEL, max_len=5000)

    src = jax.random.normal(k_src, (S, B, D_INPUT), jnp.float32)
    tgt = jax.random.randint(k_tgt, (T, B), 0, OUTPUT_CLASS, jnp.int32)
    tgt_lengths = jnp.array([5, 3], jnp.int32)

    fwd = jax.jit(functools.partial(forward_train, n_head=N_HEAD, pe=pe))
    logits = fwd(params, src, tgt, tgt_lengths)
    jax.block_until_ready(logits)

    assert logits.shape == (T, B, OUTPUT_CLASS), logits.shape
    assert bool(jnp.all(jnp.isfinite(logits)))
    print("KERNEL_OK")
</pallas_src>

<mosaic_0001>
module attributes {stable_mosaic.version = 11 : i64} {
  func.func @_encoder_layer_kernel(%arg0: i32, %arg1: memref<1x12x32xf32, #tpu.memory_space<vmem>>, %arg2: memref<32x96xf32, #tpu.memory_space<vmem>>, %arg3: memref<1x96xf32, #tpu.memory_space<vmem>>, %arg4: memref<32x32xf32, #tpu.memory_space<vmem>>, %arg5: memref<1x32xf32, #tpu.memory_space<vmem>>, %arg6: memref<1x32xf32, #tpu.memory_space<vmem>>, %arg7: memref<1x32xf32, #tpu.memory_space<vmem>>, %arg8: memref<32x64xf32, #tpu.memory_space<vmem>>, %arg9: memref<1x64xf32, #tpu.memory_space<vmem>>, %arg10: memref<64x32xf32, #tpu.memory_space<vmem>>, %arg11: memref<1x32xf32, #tpu.memory_space<vmem>>, %arg12: memref<1x32xf32, #tpu.memory_space<vmem>>, %arg13: memref<1x32xf32, #tpu.memory_space<vmem>>, %arg14: memref<1x12x32xf32, #tpu.memory_space<vmem>>) attributes {dimension_semantics = [#tpu.dimension_semantics<parallel>], iteration_bounds = array<i64: 2>, scalar_prefetch = 0 : i64, scratch_operands = 0 : i64, tpu.core_type = #tpu.core_type<tc>, window_params = [{transform_indices = @transform_0, window_bounds = array<i64: 1, 12, 32>}, {pipeline_mode = #tpu.pipeline_mode<synchronous>, transform_indices = @transform_1, window_bounds = array<i64: 32, 96>}, {pipeline_mode = #tpu.pipeline_mode<synchronous>, transform_indices = @transform_2, window_bounds = array<i64: 1, 96>}, {pipeline_mode = #tpu.pipeline_mode<synchronous>, transform_indices = @transform_3, window_bounds = array<i64: 32, 32>}, {pipeline_mode = #tpu.pipeline_mode<synchronous>, transform_indices = @transform_4, window_bounds = array<i64: 1, 32>}, {pipeline_mode = #tpu.pipeline_mode<synchronous>, transform_indices = @transform_5, window_bounds = array<i64: 1, 32>}, {pipeline_mode = #tpu.pipeline_mode<synchronous>, transform_indices = @transform_6, window_bounds = array<i64: 1, 32>}, {pipeline_mode = #tpu.pipeline_mode<synchronous>, transform_indices = @transform_7, window_bounds = array<i64: 32, 64>}, {pipeline_mode = #tpu.pipeline_mode<synchronous>, transform_indices = @transform_8, window_bounds = array<i64: 1, 64>}, {pipeline_mode = #tpu.pipeline_mode<synchronous>, transform_indices = @transform_9, window_bounds = array<i64: 64, 32>}, {pipeline_mode = #tpu.pipeline_mode<synchronous>, transform_indices = @transform_10, window_bounds = array<i64: 1, 32>}, {pipeline_mode = #tpu.pipeline_mode<synchronous>, transform_indices = @transform_11, window_bounds = array<i64: 1, 32>}, {pipeline_mode = #tpu.pipeline_mode<synchronous>, transform_indices = @transform_12, window_bounds = array<i64: 1, 32>}, {transform_indices = @transform_13, window_bounds = array<i64: 1, 12, 32>}]} {
    %c0 = arith.constant 0 : index
    %c0_0 = arith.constant 0 : index
    %c0_1 = arith.constant 0 : index
    %0 = vector.load %arg1[%c0, %c0_0, %c0_1] : memref<1x12x32xf32, #tpu.memory_space<vmem>>, vector<1x12x32xf32>
    %1 = vector.shape_cast %0 : vector<1x12x32xf32> to vector<12x32xf32>
    %c0_2 = arith.constant 0 : index
    %c0_3 = arith.constant 0 : index
    %2 = vector.load %arg2[%c0_2, %c0_3] : memref<32x96xf32, #tpu.memory_space<vmem>>, vector<32x96xf32>
    %cst = arith.constant dense<0.000000e+00> : vector<12x96xf32>
    %3 = tpu.matmul %1, %2, %cst {dimension_numbers = #tpu.dot_dimension_numbers<[1], [0], [0], [1], [0, 0, 1, 1], [], []>} : vector<12x32xf32>, vector<32x96xf32>, vector<12x96xf32> -> vector<12x96xf32>
    %c0_4 = arith.constant 0 : index
    %c0_5 = arith.constant 0 : index
    %4 = vector.load %arg3[%c0_4, %c0_5] : memref<1x96xf32, #tpu.memory_space<vmem>>, vector<1x96xf32>
    %5 = vector.broadcast %4 : vector<1x96xf32> to vector<12x96xf32>
    %6 = arith.addf %3, %5 : vector<12x96xf32>
    %7 = vector.extract_strided_slice %6 {offsets = [0, 0], sizes = [12, 32], strides = [1, 1]} : vector<12x96xf32> to vector<12x32xf32>
    %8 = vector.extract_strided_slice %6 {offsets = [0, 32], sizes = [12, 32], strides = [1, 1]} : vector<12x96xf32> to vector<12x32xf32>
    %9 = vector.extract_strided_slice %6 {offsets = [0, 64], sizes = [12, 32], strides = [1, 1]} : vector<12x96xf32> to vector<12x32xf32>
    %10 = vector.extract_strided_slice %7 {offsets = [0, 0], sizes = [12, 8], strides = [1, 1]} : vector<12x32xf32> to vector<12x8xf32>
    %11 = vector.extract_strided_slice %8 {offsets = [0, 0], sizes = [12, 8], strides = [1, 1]} : vector<12x32xf32> to vector<12x8xf32>
    %12 = vector.extract_strided_slice %9 {offsets = [0, 0], sizes = [12, 8], strides = [1, 1]} : vector<12x32xf32> to vector<12x8xf32>
    %13 = tpu.transpose %11, [1, 0] : vector<12x8xf32> -> vector<8x12xf32>
    %cst_6 = arith.constant dense<0.000000e+00> : vector<12x12xf32>
    %14 = tpu.matmul %10, %13, %cst_6 {dimension_numbers = #tpu.dot_dimension_numbers<[1], [0], [0], [1], [0, 0, 1, 1], [], []>} : vector<12x8xf32>, vector<8x12xf32>, vector<12x12xf32> -> vector<12x12xf32>
    %cst_7 = arith.constant 0.353553385 : f32
    %15 = vector.broadcast %cst_7 : f32 to vector<12x12xf32>
    %16 = arith.mulf %14, %15 : vector<12x12xf32>
    %cst_8 = arith.constant dense<0xFF800000> : vector<12xf32>
    %17 = vector.multi_reduction <maximumf>, %16, %cst_8 [1] : vector<12x12xf32> to vector<12xf32>
    %18 = vector.shape_cast %17 : vector<12xf32> to vector<12x1xf32>
    %19 = vector.broadcast %18 : vector<12x1xf32> to vector<12x12xf32>
    %20 = arith.subf %16, %19 : vector<12x12xf32>
    %21 = math.exp %20 : vector<12x12xf32>
    %cst_9 = arith.constant dense<0.000000e+00> : vector<12xf32>
    %22 = vector.multi_reduction <add>, %21, %cst_9 [1] : vector<12x12xf32> to vector<12xf32>
    %23 = vector.shape_cast %22 : vector<12xf32> to vector<12x1xf32>
    %24 = tpu.reciprocal %23 {approx = true} : vector<12x1xf32> -> vector<12x1xf32>
    %25 = vector.broadcast %24 : vector<12x1xf32> to vector<12x12xf32>
    %26 = arith.mulf %21, %25 : vector<12x12xf32>
    %cst_10 = arith.constant dense<0.000000e+00> : vector<12x8xf32>
    %27 = tpu.matmul %26, %12, %cst_10 {dimension_numbers = #tpu.dot_dimension_numbers<[1], [0], [0], [1], [0, 0, 1, 1], [], []>} : vector<12x12xf32>, vector<12x8xf32>, vector<12x8xf32> -> vector<12x8xf32>
    %28 = vector.extract_strided_slice %7 {offsets = [0, 8], sizes = [12, 8], strides = [1, 1]} : vector<12x32xf32> to vector<12x8xf32>
    %29 = vector.extract_strided_slice %8 {offsets = [0, 8], sizes = [12, 8], strides = [1, 1]} : vector<12x32xf32> to vector<12x8xf32>
    %30 = vector.extract_strided_slice %9 {offsets = [0, 8], sizes = [12, 8], strides = [1, 1]} : vector<12x32xf32> to vector<12x8xf32>
    %31 = tpu.transpose %29, [1, 0] : vector<12x8xf32> -> vector<8x12xf32>
    %cst_11 = arith.constant dense<0.000000e+00> : vector<12x12xf32>
    %32 = tpu.matmul %28, %31, %cst_11 {dimension_numbers = #tpu.dot_dimension_numbers<[1], [0], [0], [1], [0, 0, 1, 1], [], []>} : vector<12x8xf32>, vector<8x12xf32>, vector<12x12xf32> -> vector<12x12xf32>
    %cst_12 = arith.constant 0.353553385 : f32
    %33 = vector.broadcast %cst_12 : f32 to vector<12x12xf32>
    %34 = arith.mulf %32, %33 : vector<12x12xf32>
    %cst_13 = arith.constant dense<0xFF800000> : vector<12xf32>
    %35 = vector.multi_reduction <maximumf>, %34, %cst_13 [1] : vector<12x12xf32> to vector<12xf32>
    %36 = vector.shape_cast %35 : vector<12xf32> to vector<12x1xf32>
    %37 = vector.broadcast %36 : vector<12x1xf32> to vector<12x12xf32>
    %38 = arith.subf %34, %37 : vector<12x12xf32>
    %39 = math.exp %38 : vector<12x12xf32>
    %cst_14 = arith.constant dense<0.000000e+00> : vector<12xf32>
    %40 = vector.multi_reduction <add>, %39, %cst_14 [1] : vector<12x12xf32> to vector<12xf32>
    %41 = vector.shape_cast %40 : vector<12xf32> to vector<12x1xf32>
    %42 = tpu.reciprocal %41 {approx = true} : vector<12x1xf32> -> vector<12x1xf32>
    %43 = vector.broadcast %42 : vector<12x1xf32> to vector<12x12xf32>
    %44 = arith.mulf %39, %43 : vector<12x12xf32>
    %cst_15 = arith.constant dense<0.000000e+00> : vector<12x8xf32>
    %45 = tpu.matmul %44, %30, %cst_15 {dimension_numbers = #tpu.dot_dimension_numbers<[1], [0], [0], [1], [0, 0, 1, 1], [], []>} : vector<12x12xf32>, vector<12x8xf32>, vector<12x8xf32> -> vector<12x8xf32>
    %46 = vector.extract_strided_slice %7 {offsets = [0, 16], sizes = [12, 8], strides = [1, 1]} : vector<12x32xf32> to vector<12x8xf32>
    %47 = vector.extract_strided_slice %8 {offsets = [0, 16], sizes = [12, 8], strides = [1, 1]} : vector<12x32xf32> to vector<12x8xf32>
    %48 = vector.extract_strided_slice %9 {offsets = [0, 16], sizes = [12, 8], strides = [1, 1]} : vector<12x32xf32> to vector<12x8xf32>
    %49 = tpu.transpose %47, [1, 0] : vector<12x8xf32> -> vector<8x12xf32>
    %cst_16 = arith.constant dense<0.000000e+00> : vector<12x12xf32>
    %50 = tpu.matmul %46, %49, %cst_16 {dimension_numbers = #tpu.dot_dimension_numbers<[1], [0], [0], [1], [0, 0, 1, 1], [], []>} : vector<12x8xf32>, vector<8x12xf32>, vector<12x12xf32> -> vector<12x12xf32>
    %cst_17 = arith.constant 0.353553385 : f32
    %51 = vector.broadcast %cst_17 : f32 to vector<12x12xf32>
    %52 = arith.mulf %50, %51 : vector<12x12xf32>
    %cst_18 = arith.constant dense<0xFF800000> : vector<12xf32>
    %53 = vector.multi_reduction <maximumf>, %52, %cst_18 [1] : vector<12x12xf32> to vector<12xf32>
    %54 = vector.shape_cast %53 : vector<12xf32> to vector<12x1xf32>
    %55 = vector.broadcast %54 : vector<12x1xf32> to vector<12x12xf32>
    %56 = arith.subf %52, %55 : vector<12x12xf32>
    %57 = math.exp %56 : vector<12x12xf32>
    %cst_19 = arith.constant dense<0.000000e+00> : vector<12xf32>
    %58 = vector.multi_reduction <add>, %57, %cst_19 [1] : vector<12x12xf32> to vector<12xf32>
    %59 = vector.shape_cast %58 : vector<12xf32> to vector<12x1xf32>
    %60 = tpu.reciprocal %59 {approx = true} : vector<12x1xf32> -> vector<12x1xf32>
    %61 = vector.broadcast %60 : vector<12x1xf32> to vector<12x12xf32>
    %62 = arith.mulf %57, %61 : vector<12x12xf32>
    %cst_20 = arith.constant dense<0.000000e+00> : vector<12x8xf32>
    %63 = tpu.matmul %62, %48, %cst_20 {dimension_numbers = #tpu.dot_dimension_numbers<[1], [0], [0], [1], [0, 0, 1, 1], [], []>} : vector<12x12xf32>, vector<12x8xf32>, vector<12x8xf32> -> vector<12x8xf32>
    %64 = vector.extract_strided_slice %7 {offsets = [0, 24], sizes = [12, 8], strides = [1, 1]} : vector<12x32xf32> to vector<12x8xf32>
    %65 = vector.extract_strided_slice %8 {offsets = [0, 24], sizes = [12, 8], strides = [1, 1]} : vector<12x32xf32> to vector<12x8xf32>
    %66 = vector.extract_strided_slice %9 {offsets = [0, 24], sizes = [12, 8], strides = [1, 1]} : vector<12x32xf32> to vector<12x8xf32>
    %67 = tpu.transpose %65, [1, 0] : vector<12x8xf32> -> vector<8x12xf32>
    %cst_21 = arith.constant dense<0.000000e+00> : vector<12x12xf32>
    %68 = tpu.matmul %64, %67, %cst_21 {dimension_numbers = #tpu.dot_dimension_numbers<[1], [0], [0], [1], [0, 0, 1, 1], [], []>} : vector<12x8xf32>, vector<8x12xf32>, vector<12x12xf32> -> vector<12x12xf32>
    %cst_22 = arith.constant 0.353553385 : f32
    %69 = vector.broadcast %cst_22 : f32 to vector<12x12xf32>
    %70 = arith.mulf %68, %69 : vector<12x12xf32>
    %cst_23 = arith.constant dense<0xFF800000> : vector<12xf32>
    %71 = vector.multi_reduction <maximumf>, %70, %cst_23 [1] : vector<12x12xf32> to vector<12xf32>
    %72 = vector.shape_cast %71 : vector<12xf32> to vector<12x1xf32>
    %73 = vector.broadcast %72 : vector<12x1xf32> to vector<12x12xf32>
    %74 = arith.subf %70, %73 : vector<12x12xf32>
    %75 = math.exp %74 : vector<12x12xf32>
    %cst_24 = arith.constant dense<0.000000e+00> : vector<12xf32>
    %76 = vector.multi_reduction <add>, %75, %cst_24 [1] : vector<12x12xf32> to vector<12xf32>
    %77 = vector.shape_cast %76 : vector<12xf32> to vector<12x1xf32>
    %78 = tpu.reciprocal %77 {approx = true} : vector<12x1xf32> -> vector<12x1xf32>
    %79 = vector.broadcast %78 : vector<12x1xf32> to vector<12x12xf32>
    %80 = arith.mulf %75, %79 : vector<12x12xf32>
    %cst_25 = arith.constant dense<0.000000e+00> : vector<12x8xf32>
    %81 = tpu.matmul %80, %66, %cst_25 {dimension_numbers = #tpu.dot_dimension_numbers<[1], [0], [0], [1], [0, 0, 1, 1], [], []>} : vector<12x12xf32>, vector<12x8xf32>, vector<12x8xf32> -> vector<12x8xf32>
    %82 = tpu.concatenate %27, %45, %63, %81 in 1 : vector<12x8xf32>, vector<12x8xf32>, vector<12x8xf32>, vector<12x8xf32> -> vector<12x32xf32>
    %c0_26 = arith.constant 0 : index
    %c0_27 = arith.constant 0 : index
    %83 = vector.load %arg4[%c0_26, %c0_27] : memref<32x32xf32, #tpu.memory_space<vmem>>, vector<32x32xf32>
    %cst_28 = arith.constant dense<0.000000e+00> : vector<12x32xf32>
    %84 = tpu.matmul %82, %83, %cst_28 {dimension_numbers = #tpu.dot_dimension_numbers<[1], [0], [0], [1], [0, 0, 1, 1], [], []>} : vector<12x32xf32>, vector<32x32xf32>, vector<12x32xf32> -> vector<12x32xf32>
    %c0_29 = arith.constant 0 : index
    %c0_30 = arith.constant 0 : index
    %85 = vector.load %arg5[%c0_29, %c0_30] : memref<1x32xf32, #tpu.memory_space<vmem>>, vector<1x32xf32>
    %86 = vector.broadcast %85 : vector<1x32xf32> to vector<12x32xf32>
    %87 = arith.addf %84, %86 : vector<12x32xf32>
    %88 = arith.addf %1, %87 : vector<12x32xf32>
    %c0_31 = arith.constant 0 : index
    %c0_32 = arith.constant 0 : index
    %89 = vector.load %arg6[%c0_31, %c0_32] : memref<1x32xf32, #tpu.memory_space<vmem>>, vector<1x32xf32>
    %c0_33 = arith.constant 0 : index
    %c0_34 = arith.constant 0 : index
    %90 = vector.load %arg7[%c0_33, %c0_34] : memref<1x32xf32, #tpu.memory_space<vmem>>, vector<1x32xf32>
    %cst_35 = arith.constant dense<0.000000e+00> : vector<12xf32>
    %91 = vector.multi_reduction <add>, %88, %cst_35 [1] : vector<12x32xf32> to vector<12xf32>
    %92 = vector.shape_cast %91 : vector<12xf32> to vector<12x1xf32>
    %cst_36 = arith.constant 3.200000e+01 : f32
    %93 = vector.broadcast %cst_36 : f32 to vector<12x1xf32>
    %94 = arith.divf %92, %93 : vector<12x1xf32>
    %95 = vector.broadcast %94 : vector<12x1xf32> to vector<12x32xf32>
    %96 = arith.subf %88, %95 : vector<12x32xf32>
    %97 = arith.mulf %96, %96 : vector<12x32xf32>
    %cst_37 = arith.constant dense<0.000000e+00> : vector<12xf32>
    %98 = vector.multi_reduction <add>, %97, %cst_37 [1] : vector<12x32xf32> to vector<12xf32>
    %99 = vector.shape_cast %98 : vector<12xf32> to vector<12x1xf32>
    %cst_38 = arith.constant 3.200000e+01 : f32
    %100 = vector.broadcast %cst_38 : f32 to vector<12x1xf32>
    %101 = arith.divf %99, %100 : vector<12x1xf32>
    %cst_39 = arith.constant 9.99999974E-6 : f32
    %102 = vector.broadcast %cst_39 : f32 to vector<12x1xf32>
    %103 = arith.addf %101, %102 : vector<12x1xf32>
    %104 = math.rsqrt %103 : vector<12x1xf32>
    %105 = vector.broadcast %104 : vector<12x1xf32> to vector<12x32xf32>
    %106 = arith.mulf %96, %105 : vector<12x32xf32>
    %107 = vector.broadcast %89 : vector<1x32xf32> to vector<12x32xf32>
    %108 = arith.mulf %106, %107 : vector<12x32xf32>
    %109 = vector.broadcast %90 : vector<1x32xf32> to vector<12x32xf32>
    %110 = arith.addf %108, %109 : vector<12x32xf32>
    %c0_40 = arith.constant 0 : index
    %c0_41 = arith.constant 0 : index
    %111 = vector.load %arg8[%c0_40, %c0_41] : memref<32x64xf32, #tpu.memory_space<vmem>>, vector<32x64xf32>
    %cst_42 = arith.constant dense<0.000000e+00> : vector<12x64xf32>
    %112 = tpu.matmul %110, %111, %cst_42 {dimension_numbers = #tpu.dot_dimension_numbers<[1], [0], [0], [1], [0, 0, 1, 1], [], []>} : vector<12x32xf32>, vector<32x64xf32>, vector<12x64xf32> -> vector<12x64xf32>
    %c0_43 = arith.constant 0 : index
    %c0_44 = arith.constant 0 : index
    %113 = vector.load %arg9[%c0_43, %c0_44] : memref<1x64xf32, #tpu.memory_space<vmem>>, vector<1x64xf32>
    %114 = vector.broadcast %113 : vector<1x64xf32> to vector<12x64xf32>
    %115 = arith.addf %112, %114 : vector<12x64xf32>
    %cst_45 = arith.constant 0.000000e+00 : f32
    %116 = vector.broadcast %cst_45 : f32 to vector<12x64xf32>
    %117 = arith.maximumf %115, %116 : vector<12x64xf32>
    %c0_46 = arith.constant 0 : index
    %c0_47 = arith.constant 0 : index
    %118 = vector.load %arg10[%c0_46, %c0_47] : memref<64x32xf32, #tpu.memory_space<vmem>>, vector<64x32xf32>
    %cst_48 = arith.constant dense<0.000000e+00> : vector<12x32xf32>
    %119 = tpu.matmul %117, %118, %cst_48 {dimension_numbers = #tpu.dot_dimension_numbers<[1], [0], [0], [1], [0, 0, 1, 1], [], []>} : vector<12x64xf32>, vector<64x32xf32>, vector<12x32xf32> -> vector<12x32xf32>
    %c0_49 = arith.constant 0 : index
    %c0_50 = arith.constant 0 : index
    %120 = vector.load %arg11[%c0_49, %c0_50] : memref<1x32xf32, #tpu.memory_space<vmem>>, vector<1x32xf32>
    %121 = vector.broadcast %120 : vector<1x32xf32> to vector<12x32xf32>
    %122 = arith.addf %119, %121 : vector<12x32xf32>
    %123 = arith.addf %110, %122 : vector<12x32xf32>
    %c0_51 = arith.constant 0 : index
    %c0_52 = arith.constant 0 : index
    %124 = vector.load %arg12[%c0_51, %c0_52] : memref<1x32xf32, #tpu.memory_space<vmem>>, vector<1x32xf32>
    %c0_53 = arith.constant 0 : index
    %c0_54 = arith.constant 0 : index
    %125 = vector.load %arg13[%c0_53, %c0_54] : memref<1x32xf32, #tpu.memory_space<vmem>>, vector<1x32xf32>
    %cst_55 = arith.constant dense<0.000000e+00> : vector<12xf32>
    %126 = vector.multi_reduction <add>, %123, %cst_55 [1] : vector<12x32xf32> to vector<12xf32>
    %127 = vector.shape_cast %126 : vector<12xf32> to vector<12x1xf32>
    %cst_56 = arith.constant 3.200000e+01 : f32
    %128 = vector.broadcast %cst_56 : f32 to vector<12x1xf32>
    %129 = arith.divf %127, %128 : vector<12x1xf32>
    %130 = vector.broadcast %129 : vector<12x1xf32> to vector<12x32xf32>
    %131 = arith.subf %123, %130 : vector<12x32xf32>
    %132 = arith.mulf %131, %131 : vector<12x32xf32>
    %cst_57 = arith.constant dense<0.000000e+00> : vector<12xf32>
    %133 = vector.multi_reduction <add>, %132, %cst_57 [1] : vector<12x32xf32> to vector<12xf32>
    %134 = vector.shape_cast %133 : vector<12xf32> to vector<12x1xf32>
    %cst_58 = arith.constant 3.200000e+01 : f32
    %135 = vector.broadcast %cst_58 : f32 to vector<12x1xf32>
    %136 = arith.divf %134, %135 : vector<12x1xf32>
    %cst_59 = arith.constant 9.99999974E-6 : f32
    %137 = vector.broadcast %cst_59 : f32 to vector<12x1xf32>
    %138 = arith.addf %136, %137 : vector<12x1xf32>
    %139 = math.rsqrt %138 : vector<12x1xf32>
    %140 = vector.broadcast %139 : vector<12x1xf32> to vector<12x32xf32>
    %141 = arith.mulf %131, %140 : vector<12x32xf32>
    %142 = vector.broadcast %124 : vector<1x32xf32> to vector<12x32xf32>
    %143 = arith.mulf %141, %142 : vector<12x32xf32>
    %144 = vector.broadcast %125 : vector<1x32xf32> to vector<12x32xf32>
    %145 = arith.addf %143, %144 : vector<12x32xf32>
    %c0_60 = arith.constant 0 : index
    %c0_61 = arith.constant 0 : index
    %c0_62 = arith.constant 0 : index
    %146 = vector.load %arg14[%c0_60, %c0_61, %c0_62] : memref<1x12x32xf32, #tpu.memory_space<vmem>>, vector<1x12x32xf32>
    %147 = vector.shape_cast %146 : vector<1x12x32xf32> to vector<12x32xf32>
    %148 = vector.shape_cast %145 : vector<12x32xf32> to vector<1x12x32xf32>
    tpu.vector_store %arg14[%c0_60, %c0_61, %c0_62], %148 {strides = array<i32>} : memref<1x12x32xf32, #tpu.memory_space<vmem>>, vector<1x12x32xf32>,
    return
  }
  func.func @transform_0(%arg0: i32) -> (i32, i32, i32) {
    %c0_i32 = arith.constant 0 : i32
    %c0_i32_0 = arith.constant 0 : i32
    %c0_i32_1 = arith.constant 0 : i32
    return %arg0, %c0_i32, %c0_i32_0 : i32, i32, i32
  }
  func.func @transform_1(%arg0: i32) -> (i32, i32) {
    %c0_i32 = arith.constant 0 : i32
    %c0_i32_0 = arith.constant 0 : i32
    %c0_i32_1 = arith.constant 0 : i32
    return %c0_i32, %c0_i32_0 : i32, i32
  }
  func.func @transform_2(%arg0: i32) -> (i32, i32) {
    %c0_i32 = arith.constant 0 : i32
    %c0_i32_0 = arith.constant 0 : i32
    %c0_i32_1 = arith.constant 0 : i32
    return %c0_i32, %c0_i32_0 : i32, i32
  }
  func.func @transform_3(%arg0: i32) -> (i32, i32) {
    %c0_i32 = arith.constant 0 : i32
    %c0_i32_0 = arith.constant 0 : i32
    %c0_i32_1 = arith.constant 0 : i32
    return %c0_i32, %c0_i32_0 : i32, i32
  }
  func.func @transform_4(%arg0: i32) -> (i32, i32) {
    %c0_i32 = arith.constant 0 : i32
    %c0_i32_0 = arith.constant 0 : i32
    %c0_i32_1 = arith.constant 0 : i32
    return %c0_i32, %c0_i32_0 : i32, i32
  }
  func.func @transform_5(%arg0: i32) -> (i32, i32) {
    %c0_i32 = arith.constant 0 : i32
    %c0_i32_0 = arith.constant 0 : i32
    %c0_i32_1 = arith.constant 0 : i32
    return %c0_i32, %c0_i32_0 : i32, i32
  }
  func.func @transform_6(%arg0: i32) -> (i32, i32) {
    %c0_i32 = arith.constant 0 : i32
    %c0_i32_0 = arith.constant 0 : i32
    %c0_i32_1 = arith.constant 0 : i32
    return %c0_i32, %c0_i32_0 : i32, i32
  }
  func.func @transform_7(%arg0: i32) -> (i32, i32) {
    %c0_i32 = arith.constant 0 : i32
    %c0_i32_0 = arith.constant 0 : i32
    %c0_i32_1 = arith.constant 0 : i32
    return %c0_i32, %c0_i32_0 : i32, i32
  }
  func.func @transform_8(%arg0: i32) -> (i32, i32) {
    %c0_i32 = arith.constant 0 : i32
    %c0_i32_0 = arith.constant 0 : i32
    %c0_i32_1 = arith.constant 0 : i32
    return %c0_i32, %c0_i32_0 : i32, i32
  }
  func.func @transform_9(%arg0: i32) -> (i32, i32) {
    %c0_i32 = arith.constant 0 : i32
    %c0_i32_0 = arith.constant 0 : i32
    %c0_i32_1 = arith.constant 0 : i32
    return %c0_i32, %c0_i32_0 : i32, i32
  }
  func.func @transform_10(%arg0: i32) -> (i32, i32) {
    %c0_i32 = arith.constant 0 : i32
    %c0_i32_0 = arith.constant 0 : i32
    %c0_i32_1 = arith.constant 0 : i32
    return %c0_i32, %c0_i32_0 : i32, i32
  }
  func.func @transform_11(%arg0: i32) -> (i32, i32) {
    %c0_i32 = arith.constant 0 : i32
    %c0_i32_0 = arith.constant 0 : i32
    %c0_i32_1 = arith.constant 0 : i32
    return %c0_i32, %c0_i32_0 : i32, i32
  }
  func.func @transform_12(%arg0: i32) -> (i32, i32) {
    %c0_i32 = arith.constant 0 : i32
    %c0_i32_0 = arith.constant 0 : i32
    %c0_i32_1 = arith.constant 0 : i32
    return %c0_i32, %c0_i32_0 : i32, i32
  }
  func.func @transform_13(%arg0: i32) -> (i32, i32, i32) {
    %c0_i32 = arith.constant 0 : i32
    %c0_i32_0 = arith.constant 0 : i32
    %c0_i32_1 = arith.constant 0 : i32
    return %arg0, %c0_i32, %c0_i32_0 : i32, i32, i32
  }
}

module attributes {stable_mosaic.version = 11 : i64} {
  func.func @_input_fc_kernel(%arg0: memref<2x12x16xf32, #tpu.memory_space<vmem>>, %arg1: memref<16x32xf32, #tpu.memory_space<vmem>>, %arg2: memref<1x32xf32, #tpu.memory_space<vmem>>, %arg3: memref<12x32xf32, #tpu.memory_space<vmem>>, %arg4: memref<2x12x32xf32, #tpu.memory_space<vmem>>) attributes {dimension_semantics = [], scalar_prefetch = 0 : i64, scratch_operands = 0 : i64, tpu.core_type = #tpu.core_type<tc>} {
    %c0 = arith.constant 0 : index
    %c0_0 = arith.constant 0 : index
    %c0_1 = arith.constant 0 : index
    %0 = vector.load %arg0[%c0, %c0_0, %c0_1] : memref<2x12x16xf32, #tpu.memory_space<vmem>>, vector<1x12x16xf32>
    %1 = vector.shape_cast %0 : vector<1x12x16xf32> to vector<12x16xf32>
    %c0_2 = arith.constant 0 : index
    %c0_3 = arith.constant 0 : index
    %2 = vector.load %arg1[%c0_2, %c0_3] : memref<16x32xf32, #tpu.memory_space<vmem>>, vector<16x32xf32>
    %cst = arith.constant dense<0.000000e+00> : vector<12x32xf32>
    %3 = tpu.matmul %1, %2, %cst {dimension_numbers = #tpu.dot_dimension_numbers<[1], [0], [0], [1], [0, 0, 1, 1], [], []>} : vector<12x16xf32>, vector<16x32xf32>, vector<12x32xf32> -> vector<12x32xf32>
    %c0_4 = arith.constant 0 : index
    %c0_5 = arith.constant 0 : index
    %4 = vector.load %arg2[%c0_4, %c0_5] : memref<1x32xf32, #tpu.memory_space<vmem>>, vector<1x32xf32>
    %5 = vector.broadcast %4 : vector<1x32xf32> to vector<12x32xf32>
    %6 = arith.addf %3, %5 : vector<12x32xf32>
    %c0_6 = arith.constant 0 : index
    %c0_7 = arith.constant 0 : index
    %7 = vector.load %arg3[%c0_6, %c0_7] : memref<12x32xf32, #tpu.memory_space<vmem>>, vector<12x32xf32>
    %8 = arith.addf %6, %7 : vector<12x32xf32>
    %c0_8 = arith.constant 0 : index
    %c0_9 = arith.constant 0 : index
    %c0_10 = arith.constant 0 : index
    %9 = vector.load %arg4[%c0_8, %c0_9, %c0_10] : memref<2x12x32xf32, #tpu.memory_space<vmem>>, vector<1x12x32xf32>
    %10 = vector.shape_cast %9 : vector<1x12x32xf32> to vector<12x32xf32>
    %11 = vector.shape_cast %8 : vector<12x32xf32> to vector<1x12x32xf32>
    tpu.vector_store %arg4[%c0_8, %c0_9, %c0_10], %11 {strides = array<i32>} : memref<2x12x32xf32, #tpu.memory_space<vmem>>, vector<1x12x32xf32>,
    %c1 = arith.constant 1 : index
    %c0_11 = arith.constant 0 : index
    %c0_12 = arith.constant 0 : index
    %12 = vector.load %arg0[%c1, %c0_11, %c0_12] : memref<2x12x16xf32, #tpu.memory_space<vmem>>, vector<1x12x16xf32>
    %13 = vector.shape_cast %12 : vector<1x12x16xf32> to vector<12x16xf32>
    %c0_13 = arith.constant 0 : index
    %c0_14 = arith.constant 0 : index
    %14 = vector.load %arg1[%c0_13, %c0_14] : memref<16x32xf32, #tpu.memory_space<vmem>>, vector<16x32xf32>
    %cst_15 = arith.constant dense<0.000000e+00> : vector<12x32xf32>
    %15 = tpu.matmul %13, %14, %cst_15 {dimension_numbers = #tpu.dot_dimension_numbers<[1], [0], [0], [1], [0, 0, 1, 1], [], []>} : vector<12x16xf32>, vector<16x32xf32>, vector<12x32xf32> -> vector<12x32xf32>
    %c0_16 = arith.constant 0 : index
    %c0_17 = arith.constant 0 : index
    %16 = vector.load %arg2[%c0_16, %c0_17] : memref<1x32xf32, #tpu.memory_space<vmem>>, vector<1x32xf32>
    %17 = vector.broadcast %16 : vector<1x32xf32> to vector<12x32xf32>
    %18 = arith.addf %15, %17 : vector<12x32xf32>
    %c0_18 = arith.constant 0 : index
    %c0_19 = arith.constant 0 : index
    %19 = vector.load %arg3[%c0_18, %c0_19] : memref<12x32xf32, #tpu.memory_space<vmem>>, vector<12x32xf32>
    %20 = arith.addf %18, %19 : vector<12x32xf32>
    %c1_20 = arith.constant 1 : index
    %c0_21 = arith.constant 0 : index
    %c0_22 = arith.constant 0 : index
    %21 = vector.load %arg4[%c1_20, %c0_21, %c0_22] : memref<2x12x32xf32, #tpu.memory_space<vmem>>, vector<1x12x32xf32>
    %22 = vector.shape_cast %21 : vector<1x12x32xf32> to vector<12x32xf32>
    %23 = vector.shape_cast %20 : vector<12x32xf32> to vector<1x12x32xf32>
    tpu.vector_store %arg4[%c1_20, %c0_21, %c0_22], %23 {strides = array<i32>} : memref<2x12x32xf32, #tpu.memory_space<vmem>>, vector<1x12x32xf32>,
    return
  }
}

module attributes {stable_mosaic.version = 11 : i64} {
  func.func @_embed_pe_kernel(%arg0: memref<2x8x1xi32, #tpu.memory_space<vmem>>, %arg1: memref<40x32xf32, #tpu.memory_space<vmem>>, %arg2: memref<8x32xf32, #tpu.memory_space<vmem>>, %arg3: memref<2x8x32xf32, #tpu.memory_space<vmem>>) attributes {dimension_semantics = [], scalar_prefetch = 0 : i64, scratch_operands = 0 : i64, tpu.core_type = #tpu.core_type<tc>} {
    %0 = tpu.iota {dimensions = array<i32: 1>} : vector<8x40xi32>
    %c0 = arith.constant 0 : index
    %c0_0 = arith.constant 0 : index
    %c0_1 = arith.constant 0 : index
    %1 = vector.load %arg0[%c0, %c0_0, %c0_1] : memref<2x8x1xi32, #tpu.memory_space<vmem>>, vector<1x8x1xi32>
    %2 = vector.shape_cast %1 : vector<1x8x1xi32> to vector<8x1xi32>
    %3 = vector.broadcast %2 : vector<8x1xi32> to vector<8x40xi32>
    %4 = arith.cmpi eq, %3, %0 : vector<8x40xi32>
    %5 = arith.extui %4 : vector<8x40xi1> to vector<8x40xi32>
    %6 = arith.sitofp %5 : vector<8x40xi32> to vector<8x40xf32>
    %c0_2 = arith.constant 0 : index
    %c0_3 = arith.constant 0 : index
    %7 = vector.load %arg1[%c0_2, %c0_3] : memref<40x32xf32, #tpu.memory_space<vmem>>, vector<40x32xf32>
    %cst = arith.constant dense<0.000000e+00> : vector<8x32xf32>
    %8 = tpu.matmul %6, %7, %cst {dimension_numbers = #tpu.dot_dimension_numbers<[1], [0], [0], [1], [0, 0, 1, 1], [], []>} : vector<8x40xf32>, vector<40x32xf32>, vector<8x32xf32> -> vector<8x32xf32>
    %c0_4 = arith.constant 0 : index
    %c0_5 = arith.constant 0 : index
    %9 = vector.load %arg2[%c0_4, %c0_5] : memref<8x32xf32, #tpu.memory_space<vmem>>, vector<8x32xf32>
    %10 = arith.addf %8, %9 : vector<8x32xf32>
    %c0_6 = arith.constant 0 : index
    %c0_7 = arith.constant 0 : index
    %c0_8 = arith.constant 0 : index
    %11 = vector.load %arg3[%c0_6, %c0_7, %c0_8] : memref<2x8x32xf32, #tpu.memory_space<vmem>>, vector<1x8x32xf32>
    %12 = vector.shape_cast %11 : vector<1x8x32xf32> to vector<8x32xf32>
    %13 = vector.shape_cast %10 : vector<8x32xf32> to vector<1x8x32xf32>
    tpu.vector_store %arg3[%c0_6, %c0_7, %c0_8], %13 {strides = array<i32>} : memref<2x8x32xf32, #tpu.memory_space<vmem>>, vector<1x8x32xf32>,
    %c1 = arith.constant 1 : index
    %c0_9 = arith.constant 0 : index
    %c0_10 = arith.constant 0 : index
    %14 = vector.load %arg0[%c1, %c0_9, %c0_10] : memref<2x8x1xi32, #tpu.memory_space<vmem>>, vector<1x8x1xi32>
    %15 = vector.shape_cast %14 : vector<1x8x1xi32> to vector<8x1xi32>
    %16 = vector.broadcast %15 : vector<8x1xi32> to vector<8x40xi32>
    %17 = arith.cmpi eq, %16, %0 : vector<8x40xi32>
    %18 = arith.extui %17 : vector<8x40xi1> to vector<8x40xi32>
    %19 = arith.sitofp %18 : vector<8x40xi32> to vector<8x40xf32>
    %c0_11 = arith.constant 0 : index
    %c0_12 = arith.constant 0 : index
    %20 = vector.load %arg1[%c0_11, %c0_12] : memref<40x32xf32, #tpu.memory_space<vmem>>, vector<40x32xf32>
    %cst_13 = arith.constant dense<0.000000e+00> : vector<8x32xf32>
    %21 = tpu.matmul %19, %20, %cst_13 {dimension_numbers = #tpu.dot_dimension_numbers<[1], [0], [0], [1], [0, 0, 1, 1], [], []>} : vector<8x40xf32>, vector<40x32xf32>, vector<8x32xf32> -> vector<8x32xf32>
    %c0_14 = arith.constant 0 : index
    %c0_15 = arith.constant 0 : index
    %22 = vector.load %arg2[%c0_14, %c0_15] : memref<8x32xf32, #tpu.memory_space<vmem>>, vector<8x32xf32>
    %23 = arith.addf %21, %22 : vector<8x32xf32>
    %c1_16 = arith.constant 1 : index
    %c0_17 = arith.constant 0 : index
    %c0_18 = arith.constant 0 : index
    %24 = vector.load %arg3[%c1_16, %c0_17, %c0_18] : memref<2x8x32xf32, #tpu.memory_space<vmem>>, vector<1x8x32xf32>
    %25 = vector.shape_cast %24 : vector<1x8x32xf32> to vector<8x32xf32>
    %26 = vector.shape_cast %23 : vector<8x32xf32> to vector<1x8x32xf32>
    tpu.vector_store %arg3[%c1_16, %c0_17, %c0_18], %26 {strides = array<i32>} : memref<2x8x32xf32, #tpu.memory_space<vmem>>, vector<1x8x32xf32>,
    return
  }
}

module attributes {stable_mosaic.version = 11 : i64} {
  func.func @_decoder_layer_kernel(%arg0: i32, %arg1: memref<2xi32, #tpu.memory_space<smem>>, %arg2: memref<1x8x32xf32, #tpu.memory_space<vmem>>, %arg3: memref<1x12x32xf32, #tpu.memory_space<vmem>>, %arg4: memref<32x96xf32, #tpu.memory_space<vmem>>, %arg5: memref<1x96xf32, #tpu.memory_space<vmem>>, %arg6: memref<32x32xf32, #tpu.memory_space<vmem>>, %arg7: memref<1x32xf32, #tpu.memory_space<vmem>>, %arg8: memref<1x32xf32, #tpu.memory_space<vmem>>, %arg9: memref<1x32xf32, #tpu.memory_space<vmem>>, %arg10: memref<32x32xf32, #tpu.memory_space<vmem>>, %arg11: memref<1x32xf32, #tpu.memory_space<vmem>>, %arg12: memref<32x64xf32, #tpu.memory_space<vmem>>, %arg13: memref<1x64xf32, #tpu.memory_space<vmem>>, %arg14: memref<32x32xf32, #tpu.memory_space<vmem>>, %arg15: memref<1x32xf32, #tpu.memory_space<vmem>>, %arg16: memref<1x32xf32, #tpu.memory_space<vmem>>, %arg17: memref<1x32xf32, #tpu.memory_space<vmem>>, %arg18: memref<32x64xf32, #tpu.memory_space<vmem>>, %arg19: memref<1x64xf32, #tpu.memory_space<vmem>>, %arg20: memref<64x32xf32, #tpu.memory_space<vmem>>, %arg21: memref<1x32xf32, #tpu.memory_space<vmem>>, %arg22: memref<1x32xf32, #tpu.memory_space<vmem>>, %arg23: memref<1x32xf32, #tpu.memory_space<vmem>>, %arg24: memref<1x8x32xf32, #tpu.memory_space<vmem>>) attributes {dimension_semantics = [#tpu.dimension_semantics<parallel>], iteration_bounds = array<i64: 2>, scalar_prefetch = 1 : i64, scratch_operands = 0 : i64, tpu.core_type = #tpu.core_type<tc>, window_params = [{transform_indices = @transform_0, window_bounds = array<i64: 1, 8, 32>}, {transform_indices = @transform_1, window_bounds = array<i64: 1, 12, 32>}, {pipeline_mode = #tpu.pipeline_mode<synchronous>, transform_indices = @transform_2, window_bounds = array<i64: 32, 96>}, {pipeline_mode = #tpu.pipeline_mode<synchronous>, transform_indices = @transform_3, window_bounds = array<i64: 1, 96>}, {pipeline_mode = #tpu.pipeline_mode<synchronous>, transform_indices = @transform_4, window_bounds = array<i64: 32, 32>}, {pipeline_mode = #tpu.pipeline_mode<synchronous>, transform_indices = @transform_5, window_bounds = array<i64: 1, 32>}, {pipeline_mode = #tpu.pipeline_mode<synchronous>, transform_indices = @transform_6, window_bounds = array<i64: 1, 32>}, {pipeline_mode = #tpu.pipeline_mode<synchronous>, transform_indices = @transform_7, window_bounds = array<i64: 1, 32>}, {pipeline_mode = #tpu.pipeline_mode<synchronous>, transform_indices = @transform_8, window_bounds = array<i64: 32, 32>}, {pipeline_mode = #tpu.pipeline_mode<synchronous>, transform_indices = @transform_9, window_bounds = array<i64: 1, 32>}, {pipeline_mode = #tpu.pipeline_mode<synchronous>, transform_indices = @transform_10, window_bounds = array<i64: 32, 64>}, {pipeline_mode = #tpu.pipeline_mode<synchronous>, transform_indices = @transform_11, window_bounds = array<i64: 1, 64>}, {pipeline_mode = #tpu.pipeline_mode<synchronous>, transform_indices = @transform_12, window_bounds = array<i64: 32, 32>}, {pipeline_mode = #tpu.pipeline_mode<synchronous>, transform_indices = @transform_13, window_bounds = array<i64: 1, 32>}, {pipeline_mode = #tpu.pipeline_mode<synchronous>, transform_indices = @transform_14, window_bounds = array<i64: 1, 32>}, {pipeline_mode = #tpu.pipeline_mode<synchronous>, transform_indices = @transform_15, window_bounds = array<i64: 1, 32>}, {pipeline_mode = #tpu.pipeline_mode<synchronous>, transform_indices = @transform_16, window_bounds = array<i64: 32, 64>}, {pipeline_mode = #tpu.pipeline_mode<synchronous>, transform_indices = @transform_17, window_bounds = array<i64: 1, 64>}, {pipeline_mode = #tpu.pipeline_mode<synchronous>, transform_indices = @transform_18, window_bounds = array<i64: 64, 32>}, {pipeline_mode = #tpu.pipeline_mode<synchronous>, transform_indices = @transform_19, window_bounds = array<i64: 1, 32>}, {pipeline_mode = #tpu.pipeline_mode<synchronous>, transform_indices = @transform_20, window_bounds = array<i64: 1, 32>}, {pipeline_mode = #tpu.pipeline_mode<synchronous>, transform_indices = @transform_21, window_bounds = array<i64: 1, 32>}, {transform_indices = @transform_22, window_bounds = array<i64: 1, 8, 32>}]} {
    %c0 = arith.constant 0 : index
    %c0_0 = arith.constant 0 : index
    %c0_1 = arith.constant 0 : index
    %0 = vector.load %arg2[%c0, %c0_0, %c0_1] : memref<1x8x32xf32, #tpu.memory_space<vmem>>, vector<1x8x32xf32>
    %1 = vector.shape_cast %0 : vector<1x8x32xf32> to vector<8x32xf32>
    %c0_2 = arith.constant 0 : index
    %c0_3 = arith.constant 0 : index
    %c0_4 = arith.constant 0 : index
    %2 = vector.load %arg3[%c0_2, %c0_3, %c0_4] : memref<1x12x32xf32, #tpu.memory_space<vmem>>, vector<1x12x32xf32>
    %3 = vector.shape_cast %2 : vector<1x12x32xf32> to vector<12x32xf32>
    %4 = tpu.iota {dimensions = array<i32: 0>} : vector<8x8xi32>
    %5 = tpu.iota {dimensions = array<i32: 1>} : vector<8x8xi32>
    %6 = arith.cmpi sle, %5, %4 : vector<8x8xi32>
    %7 = arith.index_cast %arg0 : i32 to index
    %8 = memref.load %arg1[%7] : memref<2xi32, #tpu.memory_space<smem>>
    %c2_i32 = arith.constant 2 : i32
    %9 = arith.addi %8, %c2_i32 : i32
    %10 = vector.broadcast %9 : i32 to vector<8x8xi32>
    %11 = arith.cmpi slt, %5, %10 : vector<8x8xi32>
    %12 = arith.andi %6, %11 : vector<8x8xi1>
    %cst = arith.constant 0.000000e+00 : f32
    %cst_5 = arith.constant -1.000000e+30 : f32
    %13 = vector.broadcast %cst : f32 to vector<8x8xf32>
    %14 = vector.broadcast %cst_5 : f32 to vector<8x8xf32>
    %15 = arith.select %12, %13, %14 : vector<8x8xi1>, vector<8x8xf32>
    %c0_6 = arith.constant 0 : index
    %c0_7 = arith.constant 0 : index
    %16 = vector.load %arg4[%c0_6, %c0_7] : memref<32x96xf32, #tpu.memory_space<vmem>>, vector<32x96xf32>
    %cst_8 = arith.constant dense<0.000000e+00> : vector<8x96xf32>
    %17 = tpu.matmul %1, %16, %cst_8 {dimension_numbers = #tpu.dot_dimension_numbers<[1], [0], [0], [1], [0, 0, 1, 1], [], []>} : vector<8x32xf32>, vector<32x96xf32>, vector<8x96xf32> -> vector<8x96xf32>
    %c0_9 = arith.constant 0 : index
    %c0_10 = arith.constant 0 : index
    %18 = vector.load %arg5[%c0_9, %c0_10] : memref<1x96xf32, #tpu.memory_space<vmem>>, vector<1x96xf32>
    %19 = vector.broadcast %18 : vector<1x96xf32> to vector<8x96xf32>
    %20 = arith.addf %17, %19 : vector<8x96xf32>
    %21 = vector.extract_strided_slice %20 {offsets = [0, 0], sizes = [8, 32], strides = [1, 1]} : vector<8x96xf32> to vector<8x32xf32>
    %22 = vector.extract_strided_slice %20 {offsets = [0, 32], sizes = [8, 32], strides = [1, 1]} : vector<8x96xf32> to vector<8x32xf32>
    %23 = vector.extract_strided_slice %20 {offsets = [0, 64], sizes = [8, 32], strides = [1, 1]} : vector<8x96xf32> to vector<8x32xf32>
    %24 = vector.extract_strided_slice %21 {offsets = [0, 0], sizes = [8, 8], strides = [1, 1]} : vector<8x32xf32> to vector<8x8xf32>
    %25 = vector.extract_strided_slice %22 {offsets = [0, 0], sizes = [8, 8], strides = [1, 1]} : vector<8x32xf32> to vector<8x8xf32>
    %26 = vector.extract_strided_slice %23 {offsets = [0, 0], sizes = [8, 8], strides = [1, 1]} : vector<8x32xf32> to vector<8x8xf32>
    %27 = tpu.transpose %25, [1, 0] : vector<8x8xf32> -> vector<8x8xf32>
    %cst_11 = arith.constant dense<0.000000e+00> : vector<8x8xf32>
    %28 = tpu.matmul %24, %27, %cst_11 {dimension_numbers = #tpu.dot_dimension_numbers<[1], [0], [0], [1], [0, 0, 1, 1], [], []>} : vector<8x8xf32>, vector<8x8xf32>, vector<8x8xf32> -> vector<8x8xf32>
    %cst_12 = arith.constant 0.353553385 : f32
    %29 = vector.broadcast %cst_12 : f32 to vector<8x8xf32>
    %30 = arith.mulf %28, %29 : vector<8x8xf32>
    %31 = arith.addf %30, %15 : vector<8x8xf32>
    %cst_13 = arith.constant dense<0xFF800000> : vector<8xf32>
    %32 = vector.multi_reduction <maximumf>, %31, %cst_13 [1] : vector<8x8xf32> to vector<8xf32>
    %33 = vector.shape_cast %32 : vector<8xf32> to vector<8x1xf32>
    %34 = vector.broadcast %33 : vector<8x1xf32> to vector<8x8xf32>
    %35 = arith.subf %31, %34 : vector<8x8xf32>
    %36 = math.exp %35 : vector<8x8xf32>
    %cst_14 = arith.constant dense<0.000000e+00> : vector<8xf32>
    %37 = vector.multi_reduction <add>, %36, %cst_14 [1] : vector<8x8xf32> to vector<8xf32>
    %38 = vector.shape_cast %37 : vector<8xf32> to vector<8x1xf32>
    %39 = tpu.reciprocal %38 {approx = true} : vector<8x1xf32> -> vector<8x1xf32>
    %40 = vector.broadcast %39 : vector<8x1xf32> to vector<8x8xf32>
    %41 = arith.mulf %36, %40 : vector<8x8xf32>
    %cst_15 = arith.constant dense<0.000000e+00> : vector<8x8xf32>
    %42 = tpu.matmul %41, %26, %cst_15 {dimension_numbers = #tpu.dot_dimension_numbers<[1], [0], [0], [1], [0, 0, 1, 1], [], []>} : vector<8x8xf32>, vector<8x8xf32>, vector<8x8xf32> -> vector<8x8xf32>
    %43 = vector.extract_strided_slice %21 {offsets = [0, 8], sizes = [8, 8], strides = [1, 1]} : vector<8x32xf32> to vector<8x8xf32>
    %44 = vector.extract_strided_slice %22 {offsets = [0, 8], sizes = [8, 8], strides = [1, 1]} : vector<8x32xf32> to vector<8x8xf32>
    %45 = vector.extract_strided_slice %23 {offsets = [0, 8], sizes = [8, 8], strides = [1, 1]} : vector<8x32xf32> to vector<8x8xf32>
    %46 = tpu.transpose %44, [1, 0] : vector<8x8xf32> -> vector<8x8xf32>
    %cst_16 = arith.constant dense<0.000000e+00> : vector<8x8xf32>
    %47 = tpu.matmul %43, %46, %cst_16 {dimension_numbers = #tpu.dot_dimension_numbers<[1], [0], [0], [1], [0, 0, 1, 1], [], []>} : vector<8x8xf32>, vector<8x8xf32>, vector<8x8xf32> -> vector<8x8xf32>
    %cst_17 = arith.constant 0.353553385 : f32
    %48 = vector.broadcast %cst_17 : f32 to vector<8x8xf32>
    %49 = arith.mulf %47, %48 : vector<8x8xf32>
    %50 = arith.addf %49, %15 : vector<8x8xf32>
    %cst_18 = arith.constant dense<0xFF800000> : vector<8xf32>
    %51 = vector.multi_reduction <maximumf>, %50, %cst_18 [1] : vector<8x8xf32> to vector<8xf32>
    %52 = vector.shape_cast %51 : vector<8xf32> to vector<8x1xf32>
    %53 = vector.broadcast %52 : vector<8x1xf32> to vector<8x8xf32>
    %54 = arith.subf %50, %53 : vector<8x8xf32>
    %55 = math.exp %54 : vector<8x8xf32>
    %cst_19 = arith.constant dense<0.000000e+00> : vector<8xf32>
    %56 = vector.multi_reduction <add>, %55, %cst_19 [1] : vector<8x8xf32> to vector<8xf32>
    %57 = vector.shape_cast %56 : vector<8xf32> to vector<8x1xf32>
    %58 = tpu.reciprocal %57 {approx = true} : vector<8x1xf32> -> vector<8x1xf32>
    %59 = vector.broadcast %58 : vector<8x1xf32> to vector<8x8xf32>
    %60 = arith.mulf %55, %59 : vector<8x8xf32>
    %cst_20 = arith.constant dense<0.000000e+00> : vector<8x8xf32>
    %61 = tpu.matmul %60, %45, %cst_20 {dimension_numbers = #tpu.dot_dimension_numbers<[1], [0], [0], [1], [0, 0, 1, 1], [], []>} : vector<8x8xf32>, vector<8x8xf32>, vector<8x8xf32> -> vector<8x8xf32>
    %62 = vector.extract_strided_slice %21 {offsets = [0, 16], sizes = [8, 8], strides = [1, 1]} : vector<8x32xf32> to vector<8x8xf32>
    %63 = vector.extract_strided_slice %22 {offsets = [0, 16], sizes = [8, 8], strides = [1, 1]} : vector<8x32xf32> to vector<8x8xf32>
    %64 = vector.extract_strided_slice %23 {offsets = [0, 16], sizes = [8, 8], strides = [1, 1]} : vector<8x32xf32> to vector<8x8xf32>
    %65 = tpu.transpose %63, [1, 0] : vector<8x8xf32> -> vector<8x8xf32>
    %cst_21 = arith.constant dense<0.000000e+00> : vector<8x8xf32>
    %66 = tpu.matmul %62, %65, %cst_21 {dimension_numbers = #tpu.dot_dimension_numbers<[1], [0], [0], [1], [0, 0, 1, 1], [], []>} : vector<8x8xf32>, vector<8x8xf32>, vector<8x8xf32> -> vector<8x8xf32>
    %cst_22 = arith.constant 0.353553385 : f32
    %67 = vector.broadcast %cst_22 : f32 to vector<8x8xf32>
    %68 = arith.mulf %66, %67 : vector<8x8xf32>
    %69 = arith.addf %68, %15 : vector<8x8xf32>
    %cst_23 = arith.constant dense<0xFF800000> : vector<8xf32>
    %70 = vector.multi_reduction <maximumf>, %69, %cst_23 [1] : vector<8x8xf32> to vector<8xf32>
    %71 = vector.shape_cast %70 : vector<8xf32> to vector<8x1xf32>
    %72 = vector.broadcast %71 : vector<8x1xf32> to vector<8x8xf32>
    %73 = arith.subf %69, %72 : vector<8x8xf32>
    %74 = math.exp %73 : vector<8x8xf32>
    %cst_24 = arith.constant dense<0.000000e+00> : vector<8xf32>
    %75 = vector.multi_reduction <add>, %74, %cst_24 [1] : vector<8x8xf32> to vector<8xf32>
    %76 = vector.shape_cast %75 : vector<8xf32> to vector<8x1xf32>
    %77 = tpu.reciprocal %76 {approx = true} : vector<8x1xf32> -> vector<8x1xf32>
    %78 = vector.broadcast %77 : vector<8x1xf32> to vector<8x8xf32>
    %79 = arith.mulf %74, %78 : vector<8x8xf32>
    %cst_25 = arith.constant dense<0.000000e+00> : vector<8x8xf32>
    %80 = tpu.matmul %79, %64, %cst_25 {dimension_numbers = #tpu.dot_dimension_numbers<[1], [0], [0], [1], [0, 0, 1, 1], [], []>} : vector<8x8xf32>, vector<8x8xf32>, vector<8x8xf32> -> vector<8x8xf32>
    %81 = vector.extract_strided_slice %21 {offsets = [0, 24], sizes = [8, 8], strides = [1, 1]} : vector<8x32xf32> to vector<8x8xf32>
    %82 = vector.extract_strided_slice %22 {offsets = [0, 24], sizes = [8, 8], strides = [1, 1]} : vector<8x32xf32> to vector<8x8xf32>
    %83 = vector.extract_strided_slice %23 {offsets = [0, 24], sizes = [8, 8], strides = [1, 1]} : vector<8x32xf32> to vector<8x8xf32>
    %84 = tpu.transpose %82, [1, 0] : vector<8x8xf32> -> vector<8x8xf32>
    %cst_26 = arith.constant dense<0.000000e+00> : vector<8x8xf32>
    %85 = tpu.matmul %81, %84, %cst_26 {dimension_numbers = #tpu.dot_dimension_numbers<[1], [0], [0], [1], [0, 0, 1, 1], [], []>} : vector<8x8xf32>, vector<8x8xf32>, vector<8x8xf32> -> vector<8x8xf32>
    %cst_27 = arith.constant 0.353553385 : f32
    %86 = vector.broadcast %cst_27 : f32 to vector<8x8xf32>
    %87 = arith.mulf %85, %86 : vector<8x8xf32>
    %88 = arith.addf %87, %15 : vector<8x8xf32>
    %cst_28 = arith.constant dense<0xFF800000> : vector<8xf32>
    %89 = vector.multi_reduction <maximumf>, %88, %cst_28 [1] : vector<8x8xf32> to vector<8xf32>
    %90 = vector.shape_cast %89 : vector<8xf32> to vector<8x1xf32>
    %91 = vector.broadcast %90 : vector<8x1xf32> to vector<8x8xf32>
    %92 = arith.subf %88, %91 : vector<8x8xf32>
    %93 = math.exp %92 : vector<8x8xf32>
    %cst_29 = arith.constant dense<0.000000e+00> : vector<8xf32>
    %94 = vector.multi_reduction <add>, %93, %cst_29 [1] : vector<8x8xf32> to vector<8xf32>
    %95 = vector.shape_cast %94 : vector<8xf32> to vector<8x1xf32>
    %96 = tpu.reciprocal %95 {approx = true} : vector<8x1xf32> -> vector<8x1xf32>
    %97 = vector.broadcast %96 : vector<8x1xf32> to vector<8x8xf32>
    %98 = arith.mulf %93, %97 : vector<8x8xf32>
    %cst_30 = arith.constant dense<0.000000e+00> : vector<8x8xf32>
    %99 = tpu.matmul %98, %83, %cst_30 {dimension_numbers = #tpu.dot_dimension_numbers<[1], [0], [0], [1], [0, 0, 1, 1], [], []>} : vector<8x8xf32>, vector<8x8xf32>, vector<8x8xf32> -> vector<8x8xf32>
    %100 = tpu.concatenate %42, %61, %80, %99 in 1 : vector<8x8xf32>, vector<8x8xf32>, vector<8x8xf32>, vector<8x8xf32> -> vector<8x32xf32>
    %c0_31 = arith.constant 0 : index
    %c0_32 = arith.constant 0 : index
    %101 = vector.load %arg6[%c0_31, %c0_32] : memref<32x32xf32, #tpu.memory_space<vmem>>, vector<32x32xf32>
    %cst_33 = arith.constant dense<0.000000e+00> : vector<8x32xf32>
    %102 = tpu.matmul %100, %101, %cst_33 {dimension_numbers = #tpu.dot_dimension_numbers<[1], [0], [0], [1], [0, 0, 1, 1], [], []>} : vector<8x32xf32>, vector<32x32xf32>, vector<8x32xf32> -> vector<8x32xf32>
    %c0_34 = arith.constant 0 : index
    %c0_35 = arith.constant 0 : index
    %103 = vector.load %arg7[%c0_34, %c0_35] : memref<1x32xf32, #tpu.memory_space<vmem>>, vector<1x32xf32>
    %104 = vector.broadcast %103 : vector<1x32xf32> to vector<8x32xf32>
    %105 = arith.addf %102, %104 : vector<8x32xf32>
    %106 = arith.addf %1, %105 : vector<8x32xf32>
    %c0_36 = arith.constant 0 : index
    %c0_37 = arith.constant 0 : index
    %107 = vector.load %arg8[%c0_36, %c0_37] : memref<1x32xf32, #tpu.memory_space<vmem>>, vector<1x32xf32>
    %c0_38 = arith.constant 0 : index
    %c0_39 = arith.constant 0 : index
    %108 = vector.load %arg9[%c0_38, %c0_39] : memref<1x32xf32, #tpu.memory_space<vmem>>, vector<1x32xf32>
    %cst_40 = arith.constant dense<0.000000e+00> : vector<8xf32>
    %109 = vector.multi_reduction <add>, %106, %cst_40 [1] : vector<8x32xf32> to vector<8xf32>
    %110 = vector.shape_cast %109 : vector<8xf32> to vector<8x1xf32>
    %cst_41 = arith.constant 3.200000e+01 : f32
    %111 = vector.broadcast %cst_41 : f32 to vector<8x1xf32>
    %112 = arith.divf %110, %111 : vector<8x1xf32>
    %113 = vector.broadcast %112 : vector<8x1xf32> to vector<8x32xf32>
    %114 = arith.subf %106, %113 : vector<8x32xf32>
    %115 = arith.mulf %114, %114 : vector<8x32xf32>
    %cst_42 = arith.constant dense<0.000000e+00> : vector<8xf32>
    %116 = vector.multi_reduction <add>, %115, %cst_42 [1] : vector<8x32xf32> to vector<8xf32>
    %117 = vector.shape_cast %116 : vector<8xf32> to vector<8x1xf32>
    %cst_43 = arith.constant 3.200000e+01 : f32
    %118 = vector.broadcast %cst_43 : f32 to vector<8x1xf32>
    %119 = arith.divf %117, %118 : vector<8x1xf32>
    %cst_44 = arith.constant 9.99999974E-6 : f32
    %120 = vector.broadcast %cst_44 : f32 to vector<8x1xf32>
    %121 = arith.addf %119, %120 : vector<8x1xf32>
    %122 = math.rsqrt %121 : vector<8x1xf32>
    %123 = vector.broadcast %122 : vector<8x1xf32> to vector<8x32xf32>
    %124 = arith.mulf %114, %123 : vector<8x32xf32>
    %125 = vector.broadcast %107 : vector<1x32xf32> to vector<8x32xf32>
    %126 = arith.mulf %124, %125 : vector<8x32xf32>
    %127 = vector.broadcast %108 : vector<1x32xf32> to vector<8x32xf32>
    %128 = arith.addf %126, %127 : vector<8x32xf32>
    %c0_45 = arith.constant 0 : index
    %c0_46 = arith.constant 0 : index
    %129 = vector.load %arg10[%c0_45, %c0_46] : memref<32x32xf32, #tpu.memory_space<vmem>>, vector<32x32xf32>
    %cst_47 = arith.constant dense<0.000000e+00> : vector<8x32xf32>
    %130 = tpu.matmul %128, %129, %cst_47 {dimension_numbers = #tpu.dot_dimension_numbers<[1], [0], [0], [1], [0, 0, 1, 1], [], []>} : vector<8x32xf32>, vector<32x32xf32>, vector<8x32xf32> -> vector<8x32xf32>
    %c0_48 = arith.constant 0 : index
    %c0_49 = arith.constant 0 : index
    %131 = vector.load %arg11[%c0_48, %c0_49] : memref<1x32xf32, #tpu.memory_space<vmem>>, vector<1x32xf32>
    %132 = vector.broadcast %131 : vector<1x32xf32> to vector<8x32xf32>
    %133 = arith.addf %130, %132 : vector<8x32xf32>
    %c0_50 = arith.constant 0 : index
    %c0_51 = arith.constant 0 : index
    %134 = vector.load %arg12[%c0_50, %c0_51] : memref<32x64xf32, #tpu.memory_space<vmem>>, vector<32x64xf32>
    %cst_52 = arith.constant dense<0.000000e+00> : vector<12x64xf32>
    %135 = tpu.matmul %3, %134, %cst_52 {dimension_numbers = #tpu.dot_dimension_numbers<[1], [0], [0], [1], [0, 0, 1, 1], [], []>} : vector<12x32xf32>, vector<32x64xf32>, vector<12x64xf32> -> vector<12x64xf32>
    %c0_53 = arith.constant 0 : index
    %c0_54 = arith.constant 0 : index
    %136 = vector.load %arg13[%c0_53, %c0_54] : memref<1x64xf32, #tpu.memory_space<vmem>>, vector<1x64xf32>
    %137 = vector.broadcast %136 : vector<1x64xf32> to vector<12x64xf32>
    %138 = arith.addf %135, %137 : vector<12x64xf32>
    %139 = vector.extract_strided_slice %138 {offsets = [0, 0], sizes = [12, 32], strides = [1, 1]} : vector<12x64xf32> to vector<12x32xf32>
    %140 = vector.extract_strided_slice %138 {offsets = [0, 32], sizes = [12, 32], strides = [1, 1]} : vector<12x64xf32> to vector<12x32xf32>
    %141 = vector.extract_strided_slice %133 {offsets = [0, 0], sizes = [8, 8], strides = [1, 1]} : vector<8x32xf32> to vector<8x8xf32>
    %142 = vector.extract_strided_slice %139 {offsets = [0, 0], sizes = [12, 8], strides = [1, 1]} : vector<12x32xf32> to vector<12x8xf32>
    %143 = vector.extract_strided_slice %140 {offsets = [0, 0], sizes = [12, 8], strides = [1, 1]} : vector<12x32xf32> to vector<12x8xf32>
    %144 = tpu.transpose %142, [1, 0] : vector<12x8xf32> -> vector<8x12xf32>
    %cst_55 = arith.constant dense<0.000000e+00> : vector<8x12xf32>
    %145 = tpu.matmul %141, %144, %cst_55 {dimension_numbers = #tpu.dot_dimension_numbers<[1], [0], [0], [1], [0, 0, 1, 1], [], []>} : vector<8x8xf32>, vector<8x12xf32>, vector<8x12xf32> -> vector<8x12xf32>
    %cst_56 = arith.constant 0.353553385 : f32
    %146 = vector.broadcast %cst_56 : f32 to vector<8x12xf32>
    %147 = arith.mulf %145, %146 : vector<8x12xf32>
    %cst_57 = arith.constant dense<0xFF800000> : vector<8xf32>
    %148 = vector.multi_reduction <maximumf>, %147, %cst_57 [1] : vector<8x12xf32> to vector<8xf32>
    %149 = vector.shape_cast %148 : vector<8xf32> to vector<8x1xf32>
    %150 = vector.broadcast %149 : vector<8x1xf32> to vector<8x12xf32>
    %151 = arith.subf %147, %150 : vector<8x12xf32>
    %152 = math.exp %151 : vector<8x12xf32>
    %cst_58 = arith.constant dense<0.000000e+00> : vector<8xf32>
    %153 = vector.multi_reduction <add>, %152, %cst_58 [1] : vector<8x12xf32> to vector<8xf32>
    %154 = vector.shape_cast %153 : vector<8xf32> to vector<8x1xf32>
    %155 = tpu.reciprocal %154 {approx = true} : vector<8x1xf32> -> vector<8x1xf32>
    %156 = vector.broadcast %155 : vector<8x1xf32> to vector<8x12xf32>
    %157 = arith.mulf %152, %156 : vector<8x12xf32>
    %cst_59 = arith.constant dense<0.000000e+00> : vector<8x8xf32>
    %158 = tpu.matmul %157, %143, %cst_59 {dimension_numbers = #tpu.dot_dimension_numbers<[1], [0], [0], [1], [0, 0, 1, 1], [], []>} : vector<8x12xf32>, vector<12x8xf32>, vector<8x8xf32> -> vector<8x8xf32>
    %159 = vector.extract_strided_slice %133 {offsets = [0, 8], sizes = [8, 8], strides = [1, 1]} : vector<8x32xf32> to vector<8x8xf32>
    %160 = vector.extract_strided_slice %139 {offsets = [0, 8], sizes = [12, 8], strides = [1, 1]} : vector<12x32xf32> to vector<12x8xf32>
    %161 = vector.extract_strided_slice %140 {offsets = [0, 8], sizes = [12, 8], strides = [1, 1]} : vector<12x32xf32> to vector<12x8xf32>
    %162 = tpu.transpose %160, [1, 0] : vector<12x8xf32> -> vector<8x12xf32>
    %cst_60 = arith.constant dense<0.000000e+00> : vector<8x12xf32>
    %163 = tpu.matmul %159, %162, %cst_60 {dimension_numbers = #tpu.dot_dimension_numbers<[1], [0], [0], [1], [0, 0, 1, 1], [], []>} : vector<8x8xf32>, vector<8x12xf32>, vector<8x12xf32> -> vector<8x12xf32>
    %cst_61 = arith.constant 0.353553385 : f32
    %164 = vector.broadcast %cst_61 : f32 to vector<8x12xf32>
    %165 = arith.mulf %163, %164 : vector<8x12xf32>
    %cst_62 = arith.constant dense<0xFF800000> : vector<8xf32>
    %166 = vector.multi_reduction <maximumf>, %165, %cst_62 [1] : vector<8x12xf32> to vector<8xf32>
    %167 = vector.shape_cast %166 : vector<8xf32> to vector<8x1xf32>
    %168 = vector.broadcast %167 : vector<8x1xf32> to vector<8x12xf32>
    %169 = arith.subf %165, %168 : vector<8x12xf32>
    %170 = math.exp %169 : vector<8x12xf32>
    %cst_63 = arith.constant dense<0.000000e+00> : vector<8xf32>
    %171 = vector.multi_reduction <add>, %170, %cst_63 [1] : vector<8x12xf32> to vector<8xf32>
    %172 = vector.shape_cast %171 : vector<8xf32> to vector<8x1xf32>
    %173 = tpu.reciprocal %172 {approx = true} : vector<8x1xf32> -> vector<8x1xf32>
    %174 = vector.broadcast %173 : vector<8x1xf32> to vector<8x12xf32>
    %175 = arith.mulf %170, %174 : vector<8x12xf32>
    %cst_64 = arith.constant dense<0.000000e+00> : vector<8x8xf32>
    %176 = tpu.matmul %175, %161, %cst_64 {dimension_numbers = #tpu.dot_dimension_numbers<[1], [0], [0], [1], [0, 0, 1, 1], [], []>} : vector<8x12xf32>, vector<12x8xf32>, vector<8x8xf32> -> vector<8x8xf32>
    %177 = vector.extract_strided_slice %133 {offsets = [0, 16], sizes = [8, 8], strides = [1, 1]} : vector<8x32xf32> to vector<8x8xf32>
    %178 = vector.extract_strided_slice %139 {offsets = [0, 16], sizes = [12, 8], strides = [1, 1]} : vector<12x32xf32> to vector<12x8xf32>
    %179 = vector.extract_strided_slice %140 {offsets = [0, 16], sizes = [12, 8], strides = [1, 1]} : vector<12x32xf32> to vector<12x8xf32>
    %180 = tpu.transpose %178, [1, 0] : vector<12x8xf32> -> vector<8x12xf32>
    %cst_65 = arith.constant dense<0.000000e+00> : vector<8x12xf32>
    %181 = tpu.matmul %177, %180, %cst_65 {dimension_numbers = #tpu.dot_dimension_numbers<[1], [0], [0], [1], [0, 0, 1, 1], [], []>} : vector<8x8xf32>, vector<8x12xf32>, vector<8x12xf32> -> vector<8x12xf32>
    %cst_66 = arith.constant 0.353553385 : f32
    %182 = vector.broadcast %cst_66 : f32 to vector<8x12xf32>
    %183 = arith.mulf %181, %182 : vector<8x12xf32>
    %cst_67 = arith.constant dense<0xFF800000> : vector<8xf32>
    %184 = vector.multi_reduction <maximumf>, %183, %cst_67 [1] : vector<8x12xf32> to vector<8xf32>
    %185 = vector.shape_cast %184 : vector<8xf32> to vector<8x1xf32>
    %186 = vector.broadcast %185 : vector<8x1xf32> to vector<8x12xf32>
    %187 = arith.subf %183, %186 : vector<8x12xf32>
    %188 = math.exp %187 : vector<8x12xf32>
    %cst_68 = arith.constant dense<0.000000e+00> : vector<8xf32>
    %189 = vector.multi_reduction <add>, %188, %cst_68 [1] : vector<8x12xf32> to vector<8xf32>
    %190 = vector.shape_cast %189 : vector<8xf32> to vector<8x1xf32>
    %191 = tpu.reciprocal %190 {approx = true} : vector<8x1xf32> -> vector<8x1xf32>
    %192 = vector.broadcast %191 : vector<8x1xf32> to vector<8x12xf32>
    %193 = arith.mulf %188, %192 : vector<8x12xf32>
    %cst_69 = arith.constant dense<0.000000e+00> : vector<8x8xf32>
    %194 = tpu.matmul %193, %179, %cst_69 {dimension_numbers = #tpu.dot_dimension_numbers<[1], [0], [0], [1], [0, 0, 1, 1], [], []>} : vector<8x12xf32>, vector<12x8xf32>, vector<8x8xf32> -> vector<8x8xf32>
    %195 = vector.extract_strided_slice %133 {offsets = [0, 24], sizes = [8, 8], strides = [1, 1]} : vector<8x32xf32> to vector<8x8xf32>
    %196 = vector.extract_strided_slice %139 {offsets = [0, 24], sizes = [12, 8], strides = [1, 1]} : vector<12x32xf32> to vector<12x8xf32>
    %197 = vector.extract_strided_slice %140 {offsets = [0, 24], sizes = [12, 8], strides = [1, 1]} : vector<12x32xf32> to vector<12x8xf32>
    %198 = tpu.transpose %196, [1, 0] : vector<12x8xf32> -> vector<8x12xf32>
    %cst_70 = arith.constant dense<0.000000e+00> : vector<8x12xf32>
    %199 = tpu.matmul %195, %198, %cst_70 {dimension_numbers = #tpu.dot_dimension_numbers<[1], [0], [0], [1], [0, 0, 1, 1], [], []>} : vector<8x8xf32>, vector<8x12xf32>, vector<8x12xf32> -> vector<8x12xf32>
    %cst_71 = arith.constant 0.353553385 : f32
    %200 = vector.broadcast %cst_71 : f32 to vector<8x12xf32>
    %201 = arith.mulf %199, %200 : vector<8x12xf32>
    %cst_72 = arith.constant dense<0xFF800000> : vector<8xf32>
    %202 = vector.multi_reduction <maximumf>, %201, %cst_72 [1] : vector<8x12xf32> to vector<8xf32>
    %203 = vector.shape_cast %202 : vector<8xf32> to vector<8x1xf32>
    %204 = vector.broadcast %203 : vector<8x1xf32> to vector<8x12xf32>
    %205 = arith.subf %201, %204 : vector<8x12xf32>
    %206 = math.exp %205 : vector<8x12xf32>
    %cst_73 = arith.constant dense<0.000000e+00> : vector<8xf32>
    %207 = vector.multi_reduction <add>, %206, %cst_73 [1] : vector<8x12xf32> to vector<8xf32>
    %208 = vector.shape_cast %207 : vector<8xf32> to vector<8x1xf32>
    %209 = tpu.reciprocal %208 {approx = true} : vector<8x1xf32> -> vector<8x1xf32>
    %210 = vector.broadcast %209 : vector<8x1xf32> to vector<8x12xf32>
    %211 = arith.mulf %206, %210 : vector<8x12xf32>
    %cst_74 = arith.constant dense<0.000000e+00> : vector<8x8xf32>
    %212 = tpu.matmul %211, %197, %cst_74 {dimension_numbers = #tpu.dot_dimension_numbers<[1], [0], [0], [1], [0, 0, 1, 1], [], []>} : vector<8x12xf32>, vector<12x8xf32>, vector<8x8xf32> -> vector<8x8xf32>
    %213 = tpu.concatenate %158, %176, %194, %212 in 1 : vector<8x8xf32>, vector<8x8xf32>, vector<8x8xf32>, vector<8x8xf32> -> vector<8x32xf32>
    %c0_75 = arith.constant 0 : index
    %c0_76 = arith.constant 0 : index
    %214 = vector.load %arg14[%c0_75, %c0_76] : memref<32x32xf32, #tpu.memory_space<vmem>>, vector<32x32xf32>
    %cst_77 = arith.constant dense<0.000000e+00> : vector<8x32xf32>
    %215 = tpu.matmul %213, %214, %cst_77 {dimension_numbers = #tpu.dot_dimension_numbers<[1], [0], [0], [1], [0, 0, 1, 1], [], []>} : vector<8x32xf32>, vector<32x32xf32>, vector<8x32xf32> -> vector<8x32xf32>
    %c0_78 = arith.constant 0 : index
    %c0_79 = arith.constant 0 : index
    %216 = vector.load %arg15[%c0_78, %c0_79] : memref<1x32xf32, #tpu.memory_space<vmem>>, vector<1x32xf32>
    %217 = vector.broadcast %216 : vector<1x32xf32> to vector<8x32xf32>
    %218 = arith.addf %215, %217 : vector<8x32xf32>
    %219 = arith.addf %128, %218 : vector<8x32xf32>
    %c0_80 = arith.constant 0 : index
    %c0_81 = arith.constant 0 : index
    %220 = vector.load %arg16[%c0_80, %c0_81] : memref<1x32xf32, #tpu.memory_space<vmem>>, vector<1x32xf32>
    %c0_82 = arith.constant 0 : index
    %c0_83 = arith.constant 0 : index
    %221 = vector.load %arg17[%c0_82, %c0_83] : memref<1x32xf32, #tpu.memory_space<vmem>>, vector<1x32xf32>
    %cst_84 = arith.constant dense<0.000000e+00> : vector<8xf32>
    %222 = vector.multi_reduction <add>, %219, %cst_84 [1] : vector<8x32xf32> to vector<8xf32>
    %223 = vector.shape_cast %222 : vector<8xf32> to vector<8x1xf32>
    %cst_85 = arith.constant 3.200000e+01 : f32
    %224 = vector.broadcast %cst_85 : f32 to vector<8x1xf32>
    %225 = arith.divf %223, %224 : vector<8x1xf32>
    %226 = vector.broadcast %225 : vector<8x1xf32> to vector<8x32xf32>
    %227 = arith.subf %219, %226 : vector<8x32xf32>
    %228 = arith.mulf %227, %227 : vector<8x32xf32>
    %cst_86 = arith.constant dense<0.000000e+00> : vector<8xf32>
    %229 = vector.multi_reduction <add>, %228, %cst_86 [1] : vector<8x32xf32> to vector<8xf32>
    %230 = vector.shape_cast %229 : vector<8xf32> to vector<8x1xf32>
    %cst_87 = arith.constant 3.200000e+01 : f32
    %231 = vector.broadcast %cst_87 : f32 to vector<8x1xf32>
    %232 = arith.divf %230, %231 : vector<8x1xf32>
    %cst_88 = arith.constant 9.99999974E-6 : f32
    %233 = vector.broadcast %cst_88 : f32 to vector<8x1xf32>
    %234 = arith.addf %232, %233 : vector<8x1xf32>
    %235 = math.rsqrt %234 : vector<8x1xf32>
    %236 = vector.broadcast %235 : vector<8x1xf32> to vector<8x32xf32>
    %237 = arith.mulf %227, %236 : vector<8x32xf32>
    %238 = vector.broadcast %220 : vector<1x32xf32> to vector<8x32xf32>
    %239 = arith.mulf %237, %238 : vector<8x32xf32>
    %240 = vector.broadcast %221 : vector<1x32xf32> to vector<8x32xf32>
    %241 = arith.addf %239, %240 : vector<8x32xf32>
    %c0_89 = arith.constant 0 : index
    %c0_90 = arith.constant 0 : index
    %242 = vector.load %arg18[%c0_89, %c0_90] : memref<32x64xf32, #tpu.memory_space<vmem>>, vector<32x64xf32>
    %cst_91 = arith.constant dense<0.000000e+00> : vector<8x64xf32>
    %243 = tpu.matmul %241, %242, %cst_91 {dimension_numbers = #tpu.dot_dimension_numbers<[1], [0], [0], [1], [0, 0, 1, 1], [], []>} : vector<8x32xf32>, vector<32x64xf32>, vector<8x64xf32> -> vector<8x64xf32>
    %c0_92 = arith.constant 0 : index
    %c0_93 = arith.constant 0 : index
    %244 = vector.load %arg19[%c0_92, %c0_93] : memref<1x64xf32, #tpu.memory_space<vmem>>, vector<1x64xf32>
    %245 = vector.broadcast %244 : vector<1x64xf32> to vector<8x64xf32>
    %246 = arith.addf %243, %245 : vector<8x64xf32>
    %cst_94 = arith.constant 0.000000e+00 : f32
    %247 = vector.broadcast %cst_94 : f32 to vector<8x64xf32>
    %248 = arith.maximumf %246, %247 : vector<8x64xf32>
    %c0_95 = arith.constant 0 : index
    %c0_96 = arith.constant 0 : index
    %249 = vector.load %arg20[%c0_95, %c0_96] : memref<64x32xf32, #tpu.memory_space<vmem>>, vector<64x32xf32>
    %cst_97 = arith.constant dense<0.000000e+00> : vector<8x32xf32>
    %250 = tpu.matmul %248, %249, %cst_97 {dimension_numbers = #tpu.dot_dimension_numbers<[1], [0], [0], [1], [0, 0, 1, 1], [], []>} : vector<8x64xf32>, vector<64x32xf32>, vector<8x32xf32> -> vector<8x32xf32>
    %c0_98 = arith.constant 0 : index
    %c0_99 = arith.constant 0 : index
    %251 = vector.load %arg21[%c0_98, %c0_99] : memref<1x32xf32, #tpu.memory_space<vmem>>, vector<1x32xf32>
    %252 = vector.broadcast %251 : vector<1x32xf32> to vector<8x32xf32>
    %253 = arith.addf %250, %252 : vector<8x32xf32>
    %254 = arith.addf %241, %253 : vector<8x32xf32>
    %c0_100 = arith.constant 0 : index
    %c0_101 = arith.constant 0 : index
    %255 = vector.load %arg22[%c0_100, %c0_101] : memref<1x32xf32, #tpu.memory_space<vmem>>, vector<1x32xf32>
    %c0_102 = arith.constant 0 : index
    %c0_103 = arith.constant 0 : index
    %256 = vector.load %arg23[%c0_102, %c0_103] : memref<1x32xf32, #tpu.memory_space<vmem>>, vector<1x32xf32>
    %cst_104 = arith.constant dense<0.000000e+00> : vector<8xf32>
    %257 = vector.multi_reduction <add>, %254, %cst_104 [1] : vector<8x32xf32> to vector<8xf32>
    %258 = vector.shape_cast %257 : vector<8xf32> to vector<8x1xf32>
    %cst_105 = arith.constant 3.200000e+01 : f32
    %259 = vector.broadcast %cst_105 : f32 to vector<8x1xf32>
    %260 = arith.divf %258, %259 : vector<8x1xf32>
    %261 = vector.broadcast %260 : vector<8x1xf32> to vector<8x32xf32>
    %262 = arith.subf %254, %261 : vector<8x32xf32>
    %263 = arith.mulf %262, %262 : vector<8x32xf32>
    %cst_106 = arith.constant dense<0.000000e+00> : vector<8xf32>
    %264 = vector.multi_reduction <add>, %263, %cst_106 [1] : vector<8x32xf32> to vector<8xf32>
    %265 = vector.shape_cast %264 : vector<8xf32> to vector<8x1xf32>
    %cst_107 = arith.constant 3.200000e+01 : f32
    %266 = vector.broadcast %cst_107 : f32 to vector<8x1xf32>
    %267 = arith.divf %265, %266 : vector<8x1xf32>
    %cst_108 = arith.constant 9.99999974E-6 : f32
    %268 = vector.broadcast %cst_108 : f32 to vector<8x1xf32>
    %269 = arith.addf %267, %268 : vector<8x1xf32>
    %270 = math.rsqrt %269 : vector<8x1xf32>
    %271 = vector.broadcast %270 : vector<8x1xf32> to vector<8x32xf32>
    %272 = arith.mulf %262, %271 : vector<8x32xf32>
    %273 = vector.broadcast %255 : vector<1x32xf32> to vector<8x32xf32>
    %274 = arith.mulf %272, %273 : vector<8x32xf32>
    %275 = vector.broadcast %256 : vector<1x32xf32> to vector<8x32xf32>
    %276 = arith.addf %274, %275 : vector<8x32xf32>
    %c0_109 = arith.constant 0 : index
    %c0_110 = arith.constant 0 : index
    %c0_111 = arith.constant 0 : index
    %277 = vector.load %arg24[%c0_109, %c0_110, %c0_111] : memref<1x8x32xf32, #tpu.memory_space<vmem>>, vector<1x8x32xf32>
    %278 = vector.shape_cast %277 : vector<1x8x32xf32> to vector<8x32xf32>
    %279 = vector.shape_cast %276 : vector<8x32xf32> to vector<1x8x32xf32>
    tpu.vector_store %arg24[%c0_109, %c0_110, %c0_111], %279 {strides = array<i32>} : memref<1x8x32xf32, #tpu.memory_space<vmem>>, vector<1x8x32xf32>,
    return
  }
  func.func @transform_0(%arg0: i32, %arg1: memref<2xi32, #tpu.memory_space<smem>>) -> (i32, i32, i32) {
    %c0_i32 = arith.constant 0 : i32
    %c0_i32_0 = arith.constant 0 : i32
    %c0_i32_1 = arith.constant 0 : i32
    return %arg0, %c0_i32, %c0_i32_0 : i32, i32, i32
  }
  func.func @transform_1(%arg0: i32, %arg1: memref<2xi32, #tpu.memory_space<smem>>) -> (i32, i32, i32) {
    %c0_i32 = arith.constant 0 : i32
    %c0_i32_0 = arith.constant 0 : i32
    %c0_i32_1 = arith.constant 0 : i32
    return %arg0, %c0_i32, %c0_i32_0 : i32, i32, i32
  }
  func.func @transform_2(%arg0: i32, %arg1: memref<2xi32, #tpu.memory_space<smem>>) -> (i32, i32) {
    %c0_i32 = arith.constant 0 : i32
    %c0_i32_0 = arith.constant 0 : i32
    %c0_i32_1 = arith.constant 0 : i32
    return %c0_i32, %c0_i32_0 : i32, i32
  }
  func.func @transform_3(%arg0: i32, %arg1: memref<2xi32, #tpu.memory_space<smem>>) -> (i32, i32) {
    %c0_i32 = arith.constant 0 : i32
    %c0_i32_0 = arith.constant 0 : i32
    %c0_i32_1 = arith.constant 0 : i32
    return %c0_i32, %c0_i32_0 : i32, i32
  }
  func.func @transform_4(%arg0: i32, %arg1: memref<2xi32, #tpu.memory_space<smem>>) -> (i32, i32) {
    %c0_i32 = arith.constant 0 : i32
    %c0_i32_0 = arith.constant 0 : i32
    %c0_i32_1 = arith.constant 0 : i32
    return %c0_i32, %c0_i32_0 : i32, i32
  }
  func.func @transform_5(%arg0: i32, %arg1: memref<2xi32, #tpu.memory_space<smem>>) -> (i32, i32) {
    %c0_i32 = arith.constant 0 : i32
    %c0_i32_0 = arith.constant 0 : i32
    %c0_i32_1 = arith.constant 0 : i32
    return %c0_i32, %c0_i32_0 : i32, i32
  }
  func.func @transform_6(%arg0: i32, %arg1: memref<2xi32, #tpu.memory_space<smem>>) -> (i32, i32) {
    %c0_i32 = arith.constant 0 : i32
    %c0_i32_0 = arith.constant 0 : i32
    %c0_i32_1 = arith.constant 0 : i32
    return %c0_i32, %c0_i32_0 : i32, i32
  }
  func.func @transform_7(%arg0: i32, %arg1: memref<2xi32, #tpu.memory_space<smem>>) -> (i32, i32) {
    %c0_i32 = arith.constant 0 : i32
    %c0_i32_0 = arith.constant 0 : i32
    %c0_i32_1 = arith.constant 0 : i32
    return %c0_i32, %c0_i32_0 : i32, i32
  }
  func.func @transform_8(%arg0: i32, %arg1: memref<2xi32, #tpu.memory_space<smem>>) -> (i32, i32) {
    %c0_i32 = arith.constant 0 : i32
    %c0_i32_0 = arith.constant 0 : i32
    %c0_i32_1 = arith.constant 0 : i32
    return %c0_i32, %c0_i32_0 : i32, i32
  }
  func.func @transform_9(%arg0: i32, %arg1: memref<2xi32, #tpu.memory_space<smem>>) -> (i32, i32) {
    %c0_i32 = arith.constant 0 : i32
    %c0_i32_0 = arith.constant 0 : i32
    %c0_i32_1 = arith.constant 0 : i32
    return %c0_i32, %c0_i32_0 : i32, i32
  }
  func.func @transform_10(%arg0: i32, %arg1: memref<2xi32, #tpu.memory_space<smem>>) -> (i32, i32) {
    %c0_i32 = arith.constant 0 : i32
    %c0_i32_0 = arith.constant 0 : i32
    %c0_i32_1 = arith.constant 0 : i32
    return %c0_i32, %c0_i32_0 : i32, i32
  }
  func.func @transform_11(%arg0: i32, %arg1: memref<2xi32, #tpu.memory_space<smem>>) -> (i32, i32) {
    %c0_i32 = arith.constant 0 : i32
    %c0_i32_0 = arith.constant 0 : i32
    %c0_i32_1 = arith.constant 0 : i32
    return %c0_i32, %c0_i32_0 : i32, i32
  }
  func.func @transform_12(%arg0: i32, %arg1: memref<2xi32, #tpu.memory_space<smem>>) -> (i32, i32) {
    %c0_i32 = arith.constant 0 : i32
    %c0_i32_0 = arith.constant 0 : i32
    %c0_i32_1 = arith.constant 0 : i32
    return %c0_i32, %c0_i32_0 : i32, i32
  }
  func.func @transform_13(%arg0: i32, %arg1: memref<2xi32, #tpu.memory_space<smem>>) -> (i32, i32) {
    %c0_i32 = arith.constant 0 : i32
    %c0_i32_0 = arith.constant 0 : i32
    %c0_i32_1 = arith.constant 0 : i32
    return %c0_i32, %c0_i32_0 : i32, i32
  }
  func.func @transform_14(%arg0: i32, %arg1: memref<2xi32, #tpu.memory_space<smem>>) -> (i32, i32) {
    %c0_i32 = arith.constant 0 : i32
    %c0_i32_0 = arith.constant 0 : i32
    %c0_i32_1 = arith.constant 0 : i32
    return %c0_i32, %c0_i32_0 : i32, i32
  }
  func.func @transform_15(%arg0: i32, %arg1: memref<2xi32, #tpu.memory_space<smem>>) -> (i32, i32) {
    %c0_i32 = arith.constant 0 : i32
    %c0_i32_0 = arith.constant 0 : i32
    %c0_i32_1 = arith.constant 0 : i32
    return %c0_i32, %c0_i32_0 : i32, i32
  }
  func.func @transform_16(%arg0: i32, %arg1: memref<2xi32, #tpu.memory_space<smem>>) -> (i32, i32) {
    %c0_i32 = arith.constant 0 : i32
    %c0_i32_0 = arith.constant 0 : i32
    %c0_i32_1 = arith.constant 0 : i32
    return %c0_i32, %c0_i32_0 : i32, i32
  }
  func.func @transform_17(%arg0: i32, %arg1: memref<2xi32, #tpu.memory_space<smem>>) -> (i32, i32) {
    %c0_i32 = arith.constant 0 : i32
    %c0_i32_0 = arith.constant 0 : i32
    %c0_i32_1 = arith.constant 0 : i32
    return %c0_i32, %c0_i32_0 : i32, i32
  }
  func.func @transform_18(%arg0: i32, %arg1: memref<2xi32, #tpu.memory_space<smem>>) -> (i32, i32) {
    %c0_i32 = arith.constant 0 : i32
    %c0_i32_0 = arith.constant 0 : i32
    %c0_i32_1 = arith.constant 0 : i32
    return %c0_i32, %c0_i32_0 : i32, i32
  }
  func.func @transform_19(%arg0: i32, %arg1: memref<2xi32, #tpu.memory_space<smem>>) -> (i32, i32) {
    %c0_i32 = arith.constant 0 : i32
    %c0_i32_0 = arith.constant 0 : i32
    %c0_i32_1 = arith.constant 0 : i32
    return %c0_i32, %c0_i32_0 : i32, i32
  }
  func.func @transform_20(%arg0: i32, %arg1: memref<2xi32, #tpu.memory_space<smem>>) -> (i32, i32) {
    %c0_i32 = arith.constant 0 : i32
    %c0_i32_0 = arith.constant 0 : i32
    %c0_i32_1 = arith.constant 0 : i32
    return %c0_i32, %c0_i32_0 : i32, i32
  }
  func.func @transform_21(%arg0: i32, %arg1: memref<2xi32, #tpu.memory_space<smem>>) -> (i32, i32) {
    %c0_i32 = arith.constant 0 : i32
    %c0_i32_0 = arith.constant 0 : i32
    %c0_i32_1 = arith.constant 0 : i32
    return %c0_i32, %c0_i32_0 : i32, i32
  }
  func.func @transform_22(%arg0: i32, %arg1: memref<2xi32, #tpu.memory_space<smem>>) -> (i32, i32, i32) {
    %c0_i32 = arith.constant 0 : i32
    %c0_i32_0 = arith.constant 0 : i32
    %c0_i32_1 = arith.constant 0 : i32
    return %arg0, %c0_i32, %c0_i32_0 : i32, i32, i32
  }
}

module attributes {stable_mosaic.version = 11 : i64} {
  func.func @_fc_kernel(%arg0: memref<2x8x32xf32, #tpu.memory_space<vmem>>, %arg1: memref<32x40xf32, #tpu.memory_space<vmem>>, %arg2: memref<1x40xf32, #tpu.memory_space<vmem>>, %arg3: memref<2x8x40xf32, #tpu.memory_space<vmem>>) attributes {dimension_semantics = [], scalar_prefetch = 0 : i64, scratch_operands = 0 : i64, tpu.core_type = #tpu.core_type<tc>} {
    %c0 = arith.constant 0 : index
    %c0_0 = arith.constant 0 : index
    %c0_1 = arith.constant 0 : index
    %0 = vector.load %arg0[%c0, %c0_0, %c0_1] : memref<2x8x32xf32, #tpu.memory_space<vmem>>, vector<1x8x32xf32>
    %1 = vector.shape_cast %0 : vector<1x8x32xf32> to vector<8x32xf32>
    %c0_2 = arith.constant 0 : index
    %c0_3 = arith.constant 0 : index
    %2 = vector.load %arg1[%c0_2, %c0_3] : memref<32x40xf32, #tpu.memory_space<vmem>>, vector<32x40xf32>
    %cst = arith.constant dense<0.000000e+00> : vector<8x40xf32>
    %3 = tpu.matmul %1, %2, %cst {dimension_numbers = #tpu.dot_dimension_numbers<[1], [0], [0], [1], [0, 0, 1, 1], [], []>} : vector<8x32xf32>, vector<32x40xf32>, vector<8x40xf32> -> vector<8x40xf32>
    %c0_4 = arith.constant 0 : index
    %c0_5 = arith.constant 0 : index
    %4 = vector.load %arg2[%c0_4, %c0_5] : memref<1x40xf32, #tpu.memory_space<vmem>>, vector<1x40xf32>
    %5 = vector.broadcast %4 : vector<1x40xf32> to vector<8x40xf32>
    %6 = arith.addf %3, %5 : vector<8x40xf32>
    %c0_6 = arith.constant 0 : index
    %c0_7 = arith.constant 0 : index
    %c0_8 = arith.constant 0 : index
    %7 = vector.load %arg3[%c0_6, %c0_7, %c0_8] : memref<2x8x40xf32, #tpu.memory_space<vmem>>, vector<1x8x40xf32>
    %8 = vector.shape_cast %7 : vector<1x8x40xf32> to vector<8x40xf32>
    %9 = vector.shape_cast %6 : vector<8x40xf32> to vector<1x8x40xf32>
    tpu.vector_store %arg3[%c0_6, %c0_7, %c0_8], %9 {strides = array<i32>} : memref<2x8x40xf32, #tpu.memory_space<vmem>>, vector<1x8x40xf32>,
    %c1 = arith.constant 1 : index
    %c0_9 = arith.constant 0 : index
    %c0_10 = arith.constant 0 : index
    %10 = vector.load %arg0[%c1, %c0_9, %c0_10] : memref<2x8x32xf32, #tpu.memory_space<vmem>>, vector<1x8x32xf32>
    %11 = vector.shape_cast %10 : vector<1x8x32xf32> to vector<8x32xf32>
    %c0_11 = arith.constant 0 : index
    %c0_12 = arith.constant 0 : index
    %12 = vector.load %arg1[%c0_11, %c0_12] : memref<32x40xf32, #tpu.memory_space<vmem>>, vector<32x40xf32>
    %cst_13 = arith.constant dense<0.000000e+00> : vector<8x40xf32>
    %13 = tpu.matmul %11, %12, %cst_13 {dimension_numbers = #tpu.dot_dimension_numbers<[1], [0], [0], [1], [0, 0, 1, 1], [], []>} : vector<8x32xf32>, vector<32x40xf32>, vector<8x40xf32> -> vector<8x40xf32>
    %c0_14 = arith.constant 0 : index
    %c0_15 = arith.constant 0 : index
    %14 = vector.load %arg2[%c0_14, %c0_15] : memref<1x40xf32, #tpu.memory_space<vmem>>, vector<1x40xf32>
    %15 = vector.broadcast %14 : vector<1x40xf32> to vector<8x40xf32>
    %16 = arith.addf %13, %15 : vector<8x40xf32>
    %c1_16 = arith.constant 1 : index
    %c0_17 = arith.constant 0 : index
    %c0_18 = arith.constant 0 : index
    %17 = vector.load %arg3[%c1_16, %c0_17, %c0_18] : memref<2x8x40xf32, #tpu.memory_space<vmem>>, vector<1x8x40xf32>
    %18 = vector.shape_cast %17 : vector<1x8x40xf32> to vector<8x40xf32>
    %19 = vector.shape_cast %16 : vector<8x40xf32> to vector<1x8x40xf32>
    tpu.vector_store %arg3[%c1_16, %c0_17, %c0_18], %19 {strides = array<i32>} : memref<2x8x40xf32, #tpu.memory_space<vmem>>, vector<1x8x40xf32>,
    return
  }
}

module attributes {stable_mosaic.version = 11 : i64} {
  func.func @_decoder_layer_kernel(%arg0: i32, %arg1: memref<2xi32, #tpu.memory_space<smem>>, %arg2: memref<1x8x32xf32, #tpu.memory_space<vmem>>, %arg3: memref<1x12x32xf32, #tpu.memory_space<vmem>>, %arg4: memref<32x96xf32, #tpu.memory_space<vmem>>, %arg5: memref<1x96xf32, #tpu.memory_space<vmem>>, %arg6: memref<32x32xf32, #tpu.memory_space<vmem>>, %arg7: memref<1x32xf32, #tpu.memory_space<vmem>>, %arg8: memref<1x32xf32, #tpu.memory_space<vmem>>, %arg9: memref<1x32xf32, #tpu.memory_space<vmem>>, %arg10: memref<32x32xf32, #tpu.memory_space<vmem>>, %arg11: memref<1x32xf32, #tpu.memory_space<vmem>>, %arg12: memref<32x64xf32, #tpu.memory_space<vmem>>, %arg13: memref<1x64xf32, #tpu.memory_space<vmem>>, %arg14: memref<32x32xf32, #tpu.memory_space<vmem>>, %arg15: memref<1x32xf32, #tpu.memory_space<vmem>>, %arg16: memref<1x32xf32, #tpu.memory_space<vmem>>, %arg17: memref<1x32xf32, #tpu.memory_space<vmem>>, %arg18: memref<32x64xf32, #tpu.memory_space<vmem>>, %arg19: memref<1x64xf32, #tpu.memory_space<vmem>>, %arg20: memref<64x32xf32, #tpu.memory_space<vmem>>, %arg21: memref<1x32xf32, #tpu.memory_space<vmem>>, %arg22: memref<1x32xf32, #tpu.memory_space<vmem>>, %arg23: memref<1x32xf32, #tpu.memory_space<vmem>>, %arg24: memref<1x8x32xf32, #tpu.memory_space<vmem>>) attributes {dimension_semantics = [#tpu.dimension_semantics<parallel>], iteration_bounds = array<i64: 2>, scalar_prefetch = 1 : i64, scratch_operands = 0 : i64, tpu.core_type = #tpu.core_type<tc>, window_params = [{transform_indices = @transform_0, window_bounds = array<i64: 1, 8, 32>}, {transform_indices = @transform_1, window_bounds = array<i64: 1, 12, 32>}, {pipeline_mode = #tpu.pipeline_mode<synchronous>, transform_indices = @transform_2, window_bounds = array<i64: 32, 96>}, {pipeline_mode = #tpu.pipeline_mode<synchronous>, transform_indices = @transform_3, window_bounds = array<i64: 1, 96>}, {pipeline_mode = #tpu.pipeline_mode<synchronous>, transform_indices = @transform_4, window_bounds = array<i64: 32, 32>}, {pipeline_mode = #tpu.pipeline_mode<synchronous>, transform_indices = @transform_5, window_bounds = array<i64: 1, 32>}, {pipeline_mode = #tpu.pipeline_mode<synchronous>, transform_indices = @transform_6, window_bounds = array<i64: 1, 32>}, {pipeline_mode = #tpu.pipeline_mode<synchronous>, transform_indices = @transform_7, window_bounds = array<i64: 1, 32>}, {pipeline_mode = #tpu.pipeline_mode<synchronous>, transform_indices = @transform_8, window_bounds = array<i64: 32, 32>}, {pipeline_mode = #tpu.pipeline_mode<synchronous>, transform_indices = @transform_9, window_bounds = array<i64: 1, 32>}, {pipeline_mode = #tpu.pipeline_mode<synchronous>, transform_indices = @transform_10, window_bounds = array<i64: 32, 64>}, {pipeline_mode = #tpu.pipeline_mode<synchronous>, transform_indices = @transform_11, window_bounds = array<i64: 1, 64>}, {pipeline_mode = #tpu.pipeline_mode<synchronous>, transform_indices = @transform_12, window_bounds = array<i64: 32, 32>}, {pipeline_mode = #tpu.pipeline_mode<synchronous>, transform_indices = @transform_13, window_bounds = array<i64: 1, 32>}, {pipeline_mode = #tpu.pipeline_mode<synchronous>, transform_indices = @transform_14, window_bounds = array<i64: 1, 32>}, {pipeline_mode = #tpu.pipeline_mode<synchronous>, transform_indices = @transform_15, window_bounds = array<i64: 1, 32>}, {pipeline_mode = #tpu.pipeline_mode<synchronous>, transform_indices = @transform_16, window_bounds = array<i64: 32, 64>}, {pipeline_mode = #tpu.pipeline_mode<synchronous>, transform_indices = @transform_17, window_bounds = array<i64: 1, 64>}, {pipeline_mode = #tpu.pipeline_mode<synchronous>, transform_indices = @transform_18, window_bounds = array<i64: 64, 32>}, {pipeline_mode = #tpu.pipeline_mode<synchronous>, transform_indices = @transform_19, window_bounds = array<i64: 1, 32>}, {pipeline_mode = #tpu.pipeline_mode<synchronous>, transform_indices = @transform_20, window_bounds = array<i64: 1, 32>}, {pipeline_mode = #tpu.pipeline_mode<synchronous>, transform_indices = @transform_21, window_bounds = array<i64: 1, 32>}, {transform_indices = @transform_22, window_bounds = array<i64: 1, 8, 32>}]} {
    %c0 = arith.constant 0 : index
    %c0_0 = arith.constant 0 : index
    %c0_1 = arith.constant 0 : index
    %0 = vector.load %arg2[%c0, %c0_0, %c0_1] : memref<1x8x32xf32, #tpu.memory_space<vmem>>, vector<1x8x32xf32>
    %1 = vector.shape_cast %0 : vector<1x8x32xf32> to vector<8x32xf32>
    %c0_2 = arith.constant 0 : index
    %c0_3 = arith.constant 0 : index
    %c0_4 = arith.constant 0 : index
    %2 = vector.load %arg3[%c0_2, %c0_3, %c0_4] : memref<1x12x32xf32, #tpu.memory_space<vmem>>, vector<1x12x32xf32>
    %3 = vector.shape_cast %2 : vector<1x12x32xf32> to vector<12x32xf32>
    %4 = tpu.iota {dimensions = array<i32: 0>} : vector<8x8xi32>
    %5 = tpu.iota {dimensions = array<i32: 1>} : vector<8x8xi32>
    %6 = arith.cmpi sle, %5, %4 : vector<8x8xi32>
    %7 = arith.index_cast %arg0 : i32 to index
    %8 = memref.load %arg1[%7] : memref<2xi32, #tpu.memory_space<smem>>
    %c2_i32 = arith.constant 2 : i32
    %9 = arith.addi %8, %c2_i32 : i32
    %10 = vector.broadcast %9 : i32 to vector<8x8xi32>
    %11 = arith.cmpi slt, %5, %10 : vector<8x8xi32>
    %12 = arith.andi %6, %11 : vector<8x8xi1>
    %cst = arith.constant 0.000000e+00 : f32
    %cst_5 = arith.constant -1.000000e+30 : f32
    %13 = vector.broadcast %cst : f32 to vector<8x8xf32>
    %14 = vector.broadcast %cst_5 : f32 to vector<8x8xf32>
    %15 = arith.select %12, %13, %14 : vector<8x8xi1>, vector<8x8xf32>
    %c0_6 = arith.constant 0 : index
    %c0_7 = arith.constant 0 : index
    %16 = vector.load %arg4[%c0_6, %c0_7] : memref<32x96xf32, #tpu.memory_space<vmem>>, vector<32x96xf32>
    %cst_8 = arith.constant dense<0.000000e+00> : vector<8x96xf32>
    %17 = tpu.matmul %1, %16, %cst_8 {dimension_numbers = #tpu.dot_dimension_numbers<[1], [0], [0], [1], [0, 0, 1, 1], [], []>} : vector<8x32xf32>, vector<32x96xf32>, vector<8x96xf32> -> vector<8x96xf32>
    %c0_9 = arith.constant 0 : index
    %c0_10 = arith.constant 0 : index
    %18 = vector.load %arg5[%c0_9, %c0_10] : memref<1x96xf32, #tpu.memory_space<vmem>>, vector<1x96xf32>
    %19 = vector.broadcast %18 : vector<1x96xf32> to vector<8x96xf32>
    %20 = arith.addf %17, %19 : vector<8x96xf32>
    %21 = vector.extract_strided_slice %20 {offsets = [0, 0], sizes = [8, 32], strides = [1, 1]} : vector<8x96xf32> to vector<8x32xf32>
    %22 = vector.extract_strided_slice %20 {offsets = [0, 32], sizes = [8, 32], strides = [1, 1]} : vector<8x96xf32> to vector<8x32xf32>
    %23 = vector.extract_strided_slice %20 {offsets = [0, 64], sizes = [8, 32], strides = [1, 1]} : vector<8x96xf32> to vector<8x32xf32>
    %24 = vector.extract_strided_slice %21 {offsets = [0, 0], sizes = [8, 8], strides = [1, 1]} : vector<8x32xf32> to vector<8x8xf32>
    %25 = vector.extract_strided_slice %22 {offsets = [0, 0], sizes = [8, 8], strides = [1, 1]} : vector<8x32xf32> to vector<8x8xf32>
    %26 = vector.extract_strided_slice %23 {offsets = [0, 0], sizes = [8, 8], strides = [1, 1]} : vector<8x32xf32> to vector<8x8xf32>
    %27 = tpu.transpose %25, [1, 0] : vector<8x8xf32> -> vector<8x8xf32>
    %cst_11 = arith.constant dense<0.000000e+00> : vector<8x8xf32>
    %28 = tpu.matmul %24, %27, %cst_11 {dimension_numbers = #tpu.dot_dimension_numbers<[1], [0], [0], [1], [0, 0, 1, 1], [], []>} : vector<8x8xf32>, vector<8x8xf32>, vector<8x8xf32> -> vector<8x8xf32>
    %cst_12 = arith.constant 0.353553385 : f32
    %29 = vector.broadcast %cst_12 : f32 to vector<8x8xf32>
    %30 = arith.mulf %28, %29 : vector<8x8xf32>
    %31 = arith.addf %30, %15 : vector<8x8xf32>
    %cst_13 = arith.constant dense<0xFF800000> : vector<8xf32>
    %32 = vector.multi_reduction <maximumf>, %31, %cst_13 [1] : vector<8x8xf32> to vector<8xf32>
    %33 = vector.shape_cast %32 : vector<8xf32> to vector<8x1xf32>
    %34 = vector.broadcast %33 : vector<8x1xf32> to vector<8x8xf32>
    %35 = arith.subf %31, %34 : vector<8x8xf32>
    %36 = math.exp %35 : vector<8x8xf32>
    %cst_14 = arith.constant dense<0.000000e+00> : vector<8xf32>
    %37 = vector.multi_reduction <add>, %36, %cst_14 [1] : vector<8x8xf32> to vector<8xf32>
    %38 = vector.shape_cast %37 : vector<8xf32> to vector<8x1xf32>
    %39 = tpu.reciprocal %38 {approx = true} : vector<8x1xf32> -> vector<8x1xf32>
    %40 = vector.broadcast %39 : vector<8x1xf32> to vector<8x8xf32>
    %41 = arith.mulf %36, %40 : vector<8x8xf32>
    %cst_15 = arith.constant dense<0.000000e+00> : vector<8x8xf32>
    %42 = tpu.matmul %41, %26, %cst_15 {dimension_numbers = #tpu.dot_dimension_numbers<[1], [0], [0], [1], [0, 0, 1, 1], [], []>} : vector<8x8xf32>, vector<8x8xf32>, vector<8x8xf32> -> vector<8x8xf32>
    %43 = vector.extract_strided_slice %21 {offsets = [0, 8], sizes = [8, 8], strides = [1, 1]} : vector<8x32xf32> to vector<8x8xf32>
    %44 = vector.extract_strided_slice %22 {offsets = [0, 8], sizes = [8, 8], strides = [1, 1]} : vector<8x32xf32> to vector<8x8xf32>
    %45 = vector.extract_strided_slice %23 {offsets = [0, 8], sizes = [8, 8], strides = [1, 1]} : vector<8x32xf32> to vector<8x8xf32>
    %46 = tpu.transpose %44, [1, 0] : vector<8x8xf32> -> vector<8x8xf32>
    %cst_16 = arith.constant dense<0.000000e+00> : vector<8x8xf32>
    %47 = tpu.matmul %43, %46, %cst_16 {dimension_numbers = #tpu.dot_dimension_numbers<[1], [0], [0], [1], [0, 0, 1, 1], [], []>} : vector<8x8xf32>, vector<8x8xf32>, vector<8x8xf32> -> vector<8x8xf32>
    %cst_17 = arith.constant 0.353553385 : f32
    %48 = vector.broadcast %cst_17 : f32 to vector<8x8xf32>
    %49 = arith.mulf %47, %48 : vector<8x8xf32>
    %50 = arith.addf %49, %15 : vector<8x8xf32>
    %cst_18 = arith.constant dense<0xFF800000> : vector<8xf32>
    %51 = vector.multi_reduction <maximumf>, %50, %cst_18 [1] : vector<8x8xf32> to vector<8xf32>
    %52 = vector.shape_cast %51 : vector<8xf32> to vector<8x1xf32>
    %53 = vector.broadcast %52 : vector<8x1xf32> to vector<8x8xf32>
    %54 = arith.subf %50, %53 : vector<8x8xf32>
    %55 = math.exp %54 : vector<8x8xf32>
    %cst_19 = arith.constant dense<0.000000e+00> : vector<8xf32>
    %56 = vector.multi_reduction <add>, %55, %cst_19 [1] : vector<8x8xf32> to vector<8xf32>
    %57 = vector.shape_cast %56 : vector<8xf32> to vector<8x1xf32>
    %58 = tpu.reciprocal %57 {approx = true} : vector<8x1xf32> -> vector<8x1xf32>
    %59 = vector.broadcast %58 : vector<8x1xf32> to vector<8x8xf32>
    %60 = arith.mulf %55, %59 : vector<8x8xf32>
    %cst_20 = arith.constant dense<0.000000e+00> : vector<8x8xf32>
    %61 = tpu.matmul %60, %45, %cst_20 {dimension_numbers = #tpu.dot_dimension_numbers<[1], [0], [0], [1], [0, 0, 1, 1], [], []>} : vector<8x8xf32>, vector<8x8xf32>, vector<8x8xf32> -> vector<8x8xf32>
    %62 = vector.extract_strided_slice %21 {offsets = [0, 16], sizes = [8, 8], strides = [1, 1]} : vector<8x32xf32> to vector<8x8xf32>
    %63 = vector.extract_strided_slice %22 {offsets = [0, 16], sizes = [8, 8], strides = [1, 1]} : vector<8x32xf32> to vector<8x8xf32>
    %64 = vector.extract_strided_slice %23 {offsets = [0, 16], sizes = [8, 8], strides = [1, 1]} : vector<8x32xf32> to vector<8x8xf32>
    %65 = tpu.transpose %63, [1, 0] : vector<8x8xf32> -> vector<8x8xf32>
    %cst_21 = arith.constant dense<0.000000e+00> : vector<8x8xf32>
    %66 = tpu.matmul %62, %65, %cst_21 {dimension_numbers = #tpu.dot_dimension_numbers<[1], [0], [0], [1], [0, 0, 1, 1], [], []>} : vector<8x8xf32>, vector<8x8xf32>, vector<8x8xf32> -> vector<8x8xf32>
    %cst_22 = arith.constant 0.353553385 : f32
    %67 = vector.broadcast %cst_22 : f32 to vector<8x8xf32>
    %68 = arith.mulf %66, %67 : vector<8x8xf32>
    %69 = arith.addf %68, %15 : vector<8x8xf32>
    %cst_23 = arith.constant dense<0xFF800000> : vector<8xf32>
    %70 = vector.multi_reduction <maximumf>, %69, %cst_23 [1] : vector<8x8xf32> to vector<8xf32>
    %71 = vector.shape_cast %70 : vector<8xf32> to vector<8x1xf32>
    %72 = vector.broadcast %71 : vector<8x1xf32> to vector<8x8xf32>
    %73 = arith.subf %69, %72 : vector<8x8xf32>
    %74 = math.exp %73 : vector<8x8xf32>
    %cst_24 = arith.constant dense<0.000000e+00> : vector<8xf32>
    %75 = vector.multi_reduction <add>, %74, %cst_24 [1] : vector<8x8xf32> to vector<8xf32>
    %76 = vector.shape_cast %75 : vector<8xf32> to vector<8x1xf32>
    %77 = tpu.reciprocal %76 {approx = true} : vector<8x1xf32> -> vector<8x1xf32>
    %78 = vector.broadcast %77 : vector<8x1xf32> to vector<8x8xf32>
    %79 = arith.mulf %74, %78 : vector<8x8xf32>
    %cst_25 = arith.constant dense<0.000000e+00> : vector<8x8xf32>
    %80 = tpu.matmul %79, %64, %cst_25 {dimension_numbers = #tpu.dot_dimension_numbers<[1], [0], [0], [1], [0, 0, 1, 1], [], []>} : vector<8x8xf32>, vector<8x8xf32>, vector<8x8xf32> -> vector<8x8xf32>
    %81 = vector.extract_strided_slice %21 {offsets = [0, 24], sizes = [8, 8], strides = [1, 1]} : vector<8x32xf32> to vector<8x8xf32>
    %82 = vector.extract_strided_slice %22 {offsets = [0, 24], sizes = [8, 8], strides = [1, 1]} : vector<8x32xf32> to vector<8x8xf32>
    %83 = vector.extract_strided_slice %23 {offsets = [0, 24], sizes = [8, 8], strides = [1, 1]} : vector<8x32xf32> to vector<8x8xf32>
    %84 = tpu.transpose %82, [1, 0] : vector<8x8xf32> -> vector<8x8xf32>
    %cst_26 = arith.constant dense<0.000000e+00> : vector<8x8xf32>
    %85 = tpu.matmul %81, %84, %cst_26 {dimension_numbers = #tpu.dot_dimension_numbers<[1], [0], [0], [1], [0, 0, 1, 1], [], []>} : vector<8x8xf32>, vector<8x8xf32>, vector<8x8xf32> -> vector<8x8xf32>
    %cst_27 = arith.constant 0.353553385 : f32
    %86 = vector.broadcast %cst_27 : f32 to vector<8x8xf32>
    %87 = arith.mulf %85, %86 : vector<8x8xf32>
    %88 = arith.addf %87, %15 : vector<8x8xf32>
    %cst_28 = arith.constant dense<0xFF800000> : vector<8xf32>
    %89 = vector.multi_reduction <maximumf>, %88, %cst_28 [1] : vector<8x8xf32> to vector<8xf32>
    %90 = vector.shape_cast %89 : vector<8xf32> to vector<8x1xf32>
    %91 = vector.broadcast %90 : vector<8x1xf32> to vector<8x8xf32>
    %92 = arith.subf %88, %91 : vector<8x8xf32>
    %93 = math.exp %92 : vector<8x8xf32>
    %cst_29 = arith.constant dense<0.000000e+00> : vector<8xf32>
    %94 = vector.multi_reduction <add>, %93, %cst_29 [1] : vector<8x8xf32> to vector<8xf32>
    %95 = vector.shape_cast %94 : vector<8xf32> to vector<8x1xf32>
    %96 = tpu.reciprocal %95 {approx = true} : vector<8x1xf32> -> vector<8x1xf32>
    %97 = vector.broadcast %96 : vector<8x1xf32> to vector<8x8xf32>
    %98 = arith.mulf %93, %97 : vector<8x8xf32>
    %cst_30 = arith.constant dense<0.000000e+00> : vector<8x8xf32>
    %99 = tpu.matmul %98, %83, %cst_30 {dimension_numbers = #tpu.dot_dimension_numbers<[1], [0], [0], [1], [0, 0, 1, 1], [], []>} : vector<8x8xf32>, vector<8x8xf32>, vector<8x8xf32> -> vector<8x8xf32>
    %100 = tpu.concatenate %42, %61, %80, %99 in 1 : vector<8x8xf32>, vector<8x8xf32>, vector<8x8xf32>, vector<8x8xf32> -> vector<8x32xf32>
    %c0_31 = arith.constant 0 : index
    %c0_32 = arith.constant 0 : index
    %101 = vector.load %arg6[%c0_31, %c0_32] : memref<32x32xf32, #tpu.memory_space<vmem>>, vector<32x32xf32>
    %cst_33 = arith.constant dense<0.000000e+00> : vector<8x32xf32>
    %102 = tpu.matmul %100, %101, %cst_33 {dimension_numbers = #tpu.dot_dimension_numbers<[1], [0], [0], [1], [0, 0, 1, 1], [], []>} : vector<8x32xf32>, vector<32x32xf32>, vector<8x32xf32> -> vector<8x32xf32>
    %c0_34 = arith.constant 0 : index
    %c0_35 = arith.constant 0 : index
    %103 = vector.load %arg7[%c0_34, %c0_35] : memref<1x32xf32, #tpu.memory_space<vmem>>, vector<1x32xf32>
    %104 = vector.broadcast %103 : vector<1x32xf32> to vector<8x32xf32>
    %105 = arith.addf %102, %104 : vector<8x32xf32>
    %106 = arith.addf %1, %105 : vector<8x32xf32>
    %c0_36 = arith.constant 0 : index
    %c0_37 = arith.constant 0 : index
    %107 = vector.load %arg8[%c0_36, %c0_37] : memref<1x32xf32, #tpu.memory_space<vmem>>, vector<1x32xf32>
    %c0_38 = arith.constant 0 : index
    %c0_39 = arith.constant 0 : index
    %108 = vector.load %arg9[%c0_38, %c0_39] : memref<1x32xf32, #tpu.memory_space<vmem>>, vector<1x32xf32>
    %cst_40 = arith.constant dense<0.000000e+00> : vector<8xf32>
    %109 = vector.multi_reduction <add>, %106, %cst_40 [1] : vector<8x32xf32> to vector<8xf32>
    %110 = vector.shape_cast %109 : vector<8xf32> to vector<8x1xf32>
    %cst_41 = arith.constant 3.200000e+01 : f32
    %111 = vector.broadcast %cst_41 : f32 to vector<8x1xf32>
    %112 = arith.divf %110, %111 : vector<8x1xf32>
    %113 = vector.broadcast %112 : vector<8x1xf32> to vector<8x32xf32>
    %114 = arith.subf %106, %113 : vector<8x32xf32>
    %115 = arith.mulf %114, %114 : vector<8x32xf32>
    %cst_42 = arith.constant dense<0.000000e+00> : vector<8xf32>
    %116 = vector.multi_reduction <add>, %115, %cst_42 [1] : vector<8x32xf32> to vector<8xf32>
    %117 = vector.shape_cast %116 : vector<8xf32> to vector<8x1xf32>
    %cst_43 = arith.constant 3.200000e+01 : f32
    %118 = vector.broadcast %cst_43 : f32 to vector<8x1xf32>
    %119 = arith.divf %117, %118 : vector<8x1xf32>
    %cst_44 = arith.constant 9.99999974E-6 : f32
    %120 = vector.broadcast %cst_44 : f32 to vector<8x1xf32>
    %121 = arith.addf %119, %120 : vector<8x1xf32>
    %122 = math.rsqrt %121 : vector<8x1xf32>
    %123 = vector.broadcast %122 : vector<8x1xf32> to vector<8x32xf32>
    %124 = arith.mulf %114, %123 : vector<8x32xf32>
    %125 = vector.broadcast %107 : vector<1x32xf32> to vector<8x32xf32>
    %126 = arith.mulf %124, %125 : vector<8x32xf32>
    %127 = vector.broadcast %108 : vector<1x32xf32> to vector<8x32xf32>
    %128 = arith.addf %126, %127 : vector<8x32xf32>
    %c0_45 = arith.constant 0 : index
    %c0_46 = arith.constant 0 : index
    %129 = vector.load %arg10[%c0_45, %c0_46] : memref<32x32xf32, #tpu.memory_space<vmem>>, vector<32x32xf32>
    %cst_47 = arith.constant dense<0.000000e+00> : vector<8x32xf32>
    %130 = tpu.matmul %128, %129, %cst_47 {dimension_numbers = #tpu.dot_dimension_numbers<[1], [0], [0], [1], [0, 0, 1, 1], [], []>} : vector<8x32xf32>, vector<32x32xf32>, vector<8x32xf32> -> vector<8x32xf32>
    %c0_48 = arith.constant 0 : index
    %c0_49 = arith.constant 0 : index
    %131 = vector.load %arg11[%c0_48, %c0_49] : memref<1x32xf32, #tpu.memory_space<vmem>>, vector<1x32xf32>
    %132 = vector.broadcast %131 : vector<1x32xf32> to vector<8x32xf32>
    %133 = arith.addf %130, %132 : vector<8x32xf32>
    %c0_50 = arith.constant 0 : index
    %c0_51 = arith.constant 0 : index
    %134 = vector.load %arg12[%c0_50, %c0_51] : memref<32x64xf32, #tpu.memory_space<vmem>>, vector<32x64xf32>
    %cst_52 = arith.constant dense<0.000000e+00> : vector<12x64xf32>
    %135 = tpu.matmul %3, %134, %cst_52 {dimension_numbers = #tpu.dot_dimension_numbers<[1], [0], [0], [1], [0, 0, 1, 1], [], []>} : vector<12x32xf32>, vector<32x64xf32>, vector<12x64xf32> -> vector<12x64xf32>
    %c0_53 = arith.constant 0 : index
    %c0_54 = arith.constant 0 : index
    %136 = vector.load %arg13[%c0_53, %c0_54] : memref<1x64xf32, #tpu.memory_space<vmem>>, vector<1x64xf32>
    %137 = vector.broadcast %136 : vector<1x64xf32> to vector<12x64xf32>
    %138 = arith.addf %135, %137 : vector<12x64xf32>
    %139 = vector.extract_strided_slice %138 {offsets = [0, 0], sizes = [12, 32], strides = [1, 1]} : vector<12x64xf32> to vector<12x32xf32>
    %140 = vector.extract_strided_slice %138 {offsets = [0, 32], sizes = [12, 32], strides = [1, 1]} : vector<12x64xf32> to vector<12x32xf32>
    %141 = vector.extract_strided_slice %133 {offsets = [0, 0], sizes = [8, 8], strides = [1, 1]} : vector<8x32xf32> to vector<8x8xf32>
    %142 = vector.extract_strided_slice %139 {offsets = [0, 0], sizes = [12, 8], strides = [1, 1]} : vector<12x32xf32> to vector<12x8xf32>
    %143 = vector.extract_strided_slice %140 {offsets = [0, 0], sizes = [12, 8], strides = [1, 1]} : vector<12x32xf32> to vector<12x8xf32>
    %144 = tpu.transpose %142, [1, 0] : vector<12x8xf32> -> vector<8x12xf32>
    %cst_55 = arith.constant dense<0.000000e+00> : vector<8x12xf32>
    %145 = tpu.matmul %141, %144, %cst_55 {dimension_numbers = #tpu.dot_dimension_numbers<[1], [0], [0], [1], [0, 0, 1, 1], [], []>} : vector<8x8xf32>, vector<8x12xf32>, vector<8x12xf32> -> vector<8x12xf32>
    %cst_56 = arith.constant 0.353553385 : f32
    %146 = vector.broadcast %cst_56 : f32 to vector<8x12xf32>
    %147 = arith.mulf %145, %146 : vector<8x12xf32>
    %cst_57 = arith.constant dense<0xFF800000> : vector<8xf32>
    %148 = vector.multi_reduction <maximumf>, %147, %cst_57 [1] : vector<8x12xf32> to vector<8xf32>
    %149 = vector.shape_cast %148 : vector<8xf32> to vector<8x1xf32>
    %150 = vector.broadcast %149 : vector<8x1xf32> to vector<8x12xf32>
    %151 = arith.subf %147, %150 : vector<8x12xf32>
    %152 = math.exp %151 : vector<8x12xf32>
    %cst_58 = arith.constant dense<0.000000e+00> : vector<8xf32>
    %153 = vector.multi_reduction <add>, %152, %cst_58 [1] : vector<8x12xf32> to vector<8xf32>
    %154 = vector.shape_cast %153 : vector<8xf32> to vector<8x1xf32>
    %155 = tpu.reciprocal %154 {approx = true} : vector<8x1xf32> -> vector<8x1xf32>
    %156 = vector.broadcast %155 : vector<8x1xf32> to vector<8x12xf32>
    %157 = arith.mulf %152, %156 : vector<8x12xf32>
    %cst_59 = arith.constant dense<0.000000e+00> : vector<8x8xf32>
    %158 = tpu.matmul %157, %143, %cst_59 {dimension_numbers = #tpu.dot_dimension_numbers<[1], [0], [0], [1], [0, 0, 1, 1], [], []>} : vector<8x12xf32>, vector<12x8xf32>, vector<8x8xf32> -> vector<8x8xf32>
    %159 = vector.extract_strided_slice %133 {offsets = [0, 8], sizes = [8, 8], strides = [1, 1]} : vector<8x32xf32> to vector<8x8xf32>
    %160 = vector.extract_strided_slice %139 {offsets = [0, 8], sizes = [12, 8], strides = [1, 1]} : vector<12x32xf32> to vector<12x8xf32>
    %161 = vector.extract_strided_slice %140 {offsets = [0, 8], sizes = [12, 8], strides = [1, 1]} : vector<12x32xf32> to vector<12x8xf32>
    %162 = tpu.transpose %160, [1, 0] : vector<12x8xf32> -> vector<8x12xf32>
    %cst_60 = arith.constant dense<0.000000e+00> : vector<8x12xf32>
    %163 = tpu.matmul %159, %162, %cst_60 {dimension_numbers = #tpu.dot_dimension_numbers<[1], [0], [0], [1], [0, 0, 1, 1], [], []>} : vector<8x8xf32>, vector<8x12xf32>, vector<8x12xf32> -> vector<8x12xf32>
    %cst_61 = arith.constant 0.353553385 : f32
    %164 = vector.broadcast %cst_61 : f32 to vector<8x12xf32>
    %165 = arith.mulf %163, %164 : vector<8x12xf32>
    %cst_62 = arith.constant dense<0xFF800000> : vector<8xf32>
    %166 = vector.multi_reduction <maximumf>, %165, %cst_62 [1] : vector<8x12xf32> to vector<8xf32>
    %167 = vector.shape_cast %166 : vector<8xf32> to vector<8x1xf32>
    %168 = vector.broadcast %167 : vector<8x1xf32> to vector<8x12xf32>
    %169 = arith.subf %165, %168 : vector<8x12xf32>
    %170 = math.exp %169 : vector<8x12xf32>
    %cst_63 = arith.constant dense<0.000000e+00> : vector<8xf32>
    %171 = vector.multi_reduction <add>, %170, %cst_63 [1] : vector<8x12xf32> to vector<8xf32>
    %172 = vector.shape_cast %171 : vector<8xf32> to vector<8x1xf32>
    %173 = tpu.reciprocal %172 {approx = true} : vector<8x1xf32> -> vector<8x1xf32>
    %174 = vector.broadcast %173 : vector<8x1xf32> to vector<8x12xf32>
    %175 = arith.mulf %170, %174 : vector<8x12xf32>
    %cst_64 = arith.constant dense<0.000000e+00> : vector<8x8xf32>
    %176 = tpu.matmul %175, %161, %cst_64 {dimension_numbers = #tpu.dot_dimension_numbers<[1], [0], [0], [1], [0, 0, 1, 1], [], []>} : vector<8x12xf32>, vector<12x8xf32>, vector<8x8xf32> -> vector<8x8xf32>
    %177 = vector.extract_strided_slice %133 {offsets = [0, 16], sizes = [8, 8], strides = [1, 1]} : vector<8x32xf32> to vector<8x8xf32>
    %178 = vector.extract_strided_slice %139 {offsets = [0, 16], sizes = [12, 8], strides = [1, 1]} : vector<12x32xf32> to vector<12x8xf32>
    %179 = vector.extract_strided_slice %140 {offsets = [0, 16], sizes = [12, 8], strides = [1, 1]} : vector<12x32xf32> to vector<12x8xf32>
    %180 = tpu.transpose %178, [1, 0] : vector<12x8xf32> -> vector<8x12xf32>
    %cst_65 = arith.constant dense<0.000000e+00> : vector<8x12xf32>
    %181 = tpu.matmul %177, %180, %cst_65 {dimension_numbers = #tpu.dot_dimension_numbers<[1], [0], [0], [1], [0, 0, 1, 1], [], []>} : vector<8x8xf32>, vector<8x12xf32>, vector<8x12xf32> -> vector<8x12xf32>
    %cst_66 = arith.constant 0.353553385 : f32
    %182 = vector.broadcast %cst_66 : f32 to vector<8x12xf32>
    %183 = arith.mulf %181, %182 : vector<8x12xf32>
    %cst_67 = arith.constant dense<0xFF800000> : vector<8xf32>
    %184 = vector.multi_reduction <maximumf>, %183, %cst_67 [1] : vector<8x12xf32> to vector<8xf32>
    %185 = vector.shape_cast %184 : vector<8xf32> to vector<8x1xf32>
    %186 = vector.broadcast %185 : vector<8x1xf32> to vector<8x12xf32>
    %187 = arith.subf %183, %186 : vector<8x12xf32>
    %188 = math.exp %187 : vector<8x12xf32>
    %cst_68 = arith.constant dense<0.000000e+00> : vector<8xf32>
    %189 = vector.multi_reduction <add>, %188, %cst_68 [1] : vector<8x12xf32> to vector<8xf32>
    %190 = vector.shape_cast %189 : vector<8xf32> to vector<8x1xf32>
    %191 = tpu.reciprocal %190 {approx = true} : vector<8x1xf32> -> vector<8x1xf32>
    %192 = vector.broadcast %191 : vector<8x1xf32> to vector<8x12xf32>
    %193 = arith.mulf %188, %192 : vector<8x12xf32>
    %cst_69 = arith.constant dense<0.000000e+00> : vector<8x8xf32>
    %194 = tpu.matmul %193, %179, %cst_69 {dimension_numbers = #tpu.dot_dimension_numbers<[1], [0], [0], [1], [0, 0, 1, 1], [], []>} : vector<8x12xf32>, vector<12x8xf32>, vector<8x8xf32> -> vector<8x8xf32>
    %195 = vector.extract_strided_slice %133 {offsets = [0, 24], sizes = [8, 8], strides = [1, 1]} : vector<8x32xf32> to vector<8x8xf32>
    %196 = vector.extract_strided_slice %139 {offsets = [0, 24], sizes = [12, 8], strides = [1, 1]} : vector<12x32xf32> to vector<12x8xf32>
    %197 = vector.extract_strided_slice %140 {offsets = [0, 24], sizes = [12, 8], strides = [1, 1]} : vector<12x32xf32> to vector<12x8xf32>
    %198 = tpu.transpose %196, [1, 0] : vector<12x8xf32> -> vector<8x12xf32>
    %cst_70 = arith.constant dense<0.000000e+00> : vector<8x12xf32>
    %199 = tpu.matmul %195, %198, %cst_70 {dimension_numbers = #tpu.dot_dimension_numbers<[1], [0], [0], [1], [0, 0, 1, 1], [], []>} : vector<8x8xf32>, vector<8x12xf32>, vector<8x12xf32> -> vector<8x12xf32>
    %cst_71 = arith.constant 0.353553385 : f32
    %200 = vector.broadcast %cst_71 : f32 to vector<8x12xf32>
    %201 = arith.mulf %199, %200 : vector<8x12xf32>
    %cst_72 = arith.constant dense<0xFF800000> : vector<8xf32>
    %202 = vector.multi_reduction <maximumf>, %201, %cst_72 [1] : vector<8x12xf32> to vector<8xf32>
    %203 = vector.shape_cast %202 : vector<8xf32> to vector<8x1xf32>
    %204 = vector.broadcast %203 : vector<8x1xf32> to vector<8x12xf32>
    %205 = arith.subf %201, %204 : vector<8x12xf32>
    %206 = math.exp %205 : vector<8x12xf32>
    %cst_73 = arith.constant dense<0.000000e+00> : vector<8xf32>
    %207 = vector.multi_reduction <add>, %206, %cst_73 [1] : vector<8x12xf32> to vector<8xf32>
    %208 = vector.shape_cast %207 : vector<8xf32> to vector<8x1xf32>
    %209 = tpu.reciprocal %208 {approx = true} : vector<8x1xf32> -> vector<8x1xf32>
    %210 = vector.broadcast %209 : vector<8x1xf32> to vector<8x12xf32>
    %211 = arith.mulf %206, %210 : vector<8x12xf32>
    %cst_74 = arith.constant dense<0.000000e+00> : vector<8x8xf32>
    %212 = tpu.matmul %211, %197, %cst_74 {dimension_numbers = #tpu.dot_dimension_numbers<[1], [0], [0], [1], [0, 0, 1, 1], [], []>} : vector<8x12xf32>, vector<12x8xf32>, vector<8x8xf32> -> vector<8x8xf32>
    %213 = tpu.concatenate %158, %176, %194, %212 in 1 : vector<8x8xf32>, vector<8x8xf32>, vector<8x8xf32>, vector<8x8xf32> -> vector<8x32xf32>
    %c0_75 = arith.constant 0 : index
    %c0_76 = arith.constant 0 : index
    %214 = vector.load %arg14[%c0_75, %c0_76] : memref<32x32xf32, #tpu.memory_space<vmem>>, vector<32x32xf32>
    %cst_77 = arith.constant dense<0.000000e+00> : vector<8x32xf32>
    %215 = tpu.matmul %213, %214, %cst_77 {dimension_numbers = #tpu.dot_dimension_numbers<[1], [0], [0], [1], [0, 0, 1, 1], [], []>} : vector<8x32xf32>, vector<32x32xf32>, vector<8x32xf32> -> vector<8x32xf32>
    %c0_78 = arith.constant 0 : index
    %c0_79 = arith.constant 0 : index
    %216 = vector.load %arg15[%c0_78, %c0_79] : memref<1x32xf32, #tpu.memory_space<vmem>>, vector<1x32xf32>
    %217 = vector.broadcast %216 : vector<1x32xf32> to vector<8x32xf32>
    %218 = arith.addf %215, %217 : vector<8x32xf32>
    %219 = arith.addf %128, %218 : vector<8x32xf32>
    %c0_80 = arith.constant 0 : index
    %c0_81 = arith.constant 0 : index
    %220 = vector.load %arg16[%c0_80, %c0_81] : memref<1x32xf32, #tpu.memory_space<vmem>>, vector<1x32xf32>
    %c0_82 = arith.constant 0 : index
    %c0_83 = arith.constant 0 : index
    %221 = vector.load %arg17[%c0_82, %c0_83] : memref<1x32xf32, #tpu.memory_space<vmem>>, vector<1x32xf32>
    %cst_84 = arith.constant dense<0.000000e+00> : vector<8xf32>
    %222 = vector.multi_reduction <add>, %219, %cst_84 [1] : vector<8x32xf32> to vector<8xf32>
    %223 = vector.shape_cast %222 : vector<8xf32> to vector<8x1xf32>
    %cst_85 = arith.constant 3.200000e+01 : f32
    %224 = vector.broadcast %cst_85 : f32 to vector<8x1xf32>
    %225 = arith.divf %223, %224 : vector<8x1xf32>
    %226 = vector.broadcast %225 : vector<8x1xf32> to vector<8x32xf32>
    %227 = arith.subf %219, %226 : vector<8x32xf32>
    %228 = arith.mulf %227, %227 : vector<8x32xf32>
    %cst_86 = arith.constant dense<0.000000e+00> : vector<8xf32>
    %229 = vector.multi_reduction <add>, %228, %cst_86 [1] : vector<8x32xf32> to vector<8xf32>
    %230 = vector.shape_cast %229 : vector<8xf32> to vector<8x1xf32>
    %cst_87 = arith.constant 3.200000e+01 : f32
    %231 = vector.broadcast %cst_87 : f32 to vector<8x1xf32>
    %232 = arith.divf %230, %231 : vector<8x1xf32>
    %cst_88 = arith.constant 9.99999974E-6 : f32
    %233 = vector.broadcast %cst_88 : f32 to vector<8x1xf32>
    %234 = arith.addf %232, %233 : vector<8x1xf32>
    %235 = math.rsqrt %234 : vector<8x1xf32>
    %236 = vector.broadcast %235 : vector<8x1xf32> to vector<8x32xf32>
    %237 = arith.mulf %227, %236 : vector<8x32xf32>
    %238 = vector.broadcast %220 : vector<1x32xf32> to vector<8x32xf32>
    %239 = arith.mulf %237, %238 : vector<8x32xf32>
    %240 = vector.broadcast %221 : vector<1x32xf32> to vector<8x32xf32>
    %241 = arith.addf %239, %240 : vector<8x32xf32>
    %c0_89 = arith.constant 0 : index
    %c0_90 = arith.constant 0 : index
    %242 = vector.load %arg18[%c0_89, %c0_90] : memref<32x64xf32, #tpu.memory_space<vmem>>, vector<32x64xf32>
    %cst_91 = arith.constant dense<0.000000e+00> : vector<8x64xf32>
    %243 = tpu.matmul %241, %242, %cst_91 {dimension_numbers = #tpu.dot_dimension_numbers<[1], [0], [0], [1], [0, 0, 1, 1], [], []>} : vector<8x32xf32>, vector<32x64xf32>, vector<8x64xf32> -> vector<8x64xf32>
    %c0_92 = arith.constant 0 : index
    %c0_93 = arith.constant 0 : index
    %244 = vector.load %arg19[%c0_92, %c0_93] : memref<1x64xf32, #tpu.memory_space<vmem>>, vector<1x64xf32>
    %245 = vector.broadcast %244 : vector<1x64xf32> to vector<8x64xf32>
    %246 = arith.addf %243, %245 : vector<8x64xf32>
    %cst_94 = arith.constant 0.000000e+00 : f32
    %247 = vector.broadcast %cst_94 : f32 to vector<8x64xf32>
    %248 = arith.maximumf %246, %247 : vector<8x64xf32>
    %c0_95 = arith.constant 0 : index
    %c0_96 = arith.constant 0 : index
    %249 = vector.load %arg20[%c0_95, %c0_96] : memref<64x32xf32, #tpu.memory_space<vmem>>, vector<64x32xf32>
    %cst_97 = arith.constant dense<0.000000e+00> : vector<8x32xf32>
    %250 = tpu.matmul %248, %249, %cst_97 {dimension_numbers = #tpu.dot_dimension_numbers<[1], [0], [0], [1], [0, 0, 1, 1], [], []>} : vector<8x64xf32>, vector<64x32xf32>, vector<8x32xf32> -> vector<8x32xf32>
    %c0_98 = arith.constant 0 : index
    %c0_99 = arith.constant 0 : index
    %251 = vector.load %arg21[%c0_98, %c0_99] : memref<1x32xf32, #tpu.memory_space<vmem>>, vector<1x32xf32>
    %252 = vector.broadcast %251 : vector<1x32xf32> to vector<8x32xf32>
    %253 = arith.addf %250, %252 : vector<8x32xf32>
    %254 = arith.addf %241, %253 : vector<8x32xf32>
    %c0_100 = arith.constant 0 : index
    %c0_101 = arith.constant 0 : index
    %255 = vector.load %arg22[%c0_100, %c0_101] : memref<1x32xf32, #tpu.memory_space<vmem>>, vector<1x32xf32>
    %c0_102 = arith.constant 0 : index
    %c0_103 = arith.constant 0 : index
    %256 = vector.load %arg23[%c0_102, %c0_103] : memref<1x32xf32, #tpu.memory_space<vmem>>, vector<1x32xf32>
    %cst_104 = arith.constant dense<0.000000e+00> : vector<8xf32>
    %257 = vector.multi_reduction <add>, %254, %cst_104 [1] : vector<8x32xf32> to vector<8xf32>
    %258 = vector.shape_cast %257 : vector<8xf32> to vector<8x1xf32>
    %cst_105 = arith.constant 3.200000e+01 : f32
    %259 = vector.broadcast %cst_105 : f32 to vector<8x1xf32>
    %260 = arith.divf %258, %259 : vector<8x1xf32>
    %261 = vector.broadcast %260 : vector<8x1xf32> to vector<8x32xf32>
    %262 = arith.subf %254, %261 : vector<8x32xf32>
    %263 = arith.mulf %262, %262 : vector<8x32xf32>
    %cst_106 = arith.constant dense<0.000000e+00> : vector<8xf32>
    %264 = vector.multi_reduction <add>, %263, %cst_106 [1] : vector<8x32xf32> to vector<8xf32>
    %265 = vector.shape_cast %264 : vector<8xf32> to vector<8x1xf32>
    %cst_107 = arith.constant 3.200000e+01 : f32
    %266 = vector.broadcast %cst_107 : f32 to vector<8x1xf32>
    %267 = arith.divf %265, %266 : vector<8x1xf32>
    %cst_108 = arith.constant 9.99999974E-6 : f32
    %268 = vector.broadcast %cst_108 : f32 to vector<8x1xf32>
    %269 = arith.addf %267, %268 : vector<8x1xf32>
    %270 = math.rsqrt %269 : vector<8x1xf32>
    %271 = vector.broadcast %270 : vector<8x1xf32> to vector<8x32xf32>
    %272 = arith.mulf %262, %271 : vector<8x32xf32>
    %273 = vector.broadcast %255 : vector<1x32xf32> to vector<8x32xf32>
    %274 = arith.mulf %272, %273 : vector<8x32xf32>
    %275 = vector.broadcast %256 : vector<1x32xf32> to vector<8x32xf32>
    %276 = arith.addf %274, %275 : vector<8x32xf32>
    %c0_109 = arith.constant 0 : index
    %c0_110 = arith.constant 0 : index
    %c0_111 = arith.constant 0 : index
    %277 = vector.load %arg24[%c0_109, %c0_110, %c0_111] : memref<1x8x32xf32, #tpu.memory_space<vmem>>, vector<1x8x32xf32>
    %278 = vector.shape_cast %277 : vector<1x8x32xf32> to vector<8x32xf32>
    %279 = vector.shape_cast %276 : vector<8x32xf32> to vector<1x8x32xf32>
    tpu.vector_store %arg24[%c0_109, %c0_110, %c0_111], %279 {strides = array<i32>} : memref<1x8x32xf32, #tpu.memory_space<vmem>>, vector<1x8x32xf32>,
    return
  }
  func.func @transform_0(%arg0: i32, %arg1: memref<2xi32, #tpu.memory_space<smem>>) -> (i32, i32, i32) {
    %c0_i32 = arith.constant 0 : i32
    %c0_i32_0 = arith.constant 0 : i32
    %c0_i32_1 = arith.constant 0 : i32
    return %arg0, %c0_i32, %c0_i32_0 : i32, i32, i32
  }
  func.func @transform_1(%arg0: i32, %arg1: memref<2xi32, #tpu.memory_space<smem>>) -> (i32, i32, i32) {
    %c0_i32 = arith.constant 0 : i32
    %c0_i32_0 = arith.constant 0 : i32
    %c0_i32_1 = arith.constant 0 : i32
    return %arg0, %c0_i32, %c0_i32_0 : i32, i32, i32
  }
  func.func @transform_2(%arg0: i32, %arg1: memref<2xi32, #tpu.memory_space<smem>>) -> (i32, i32) {
    %c0_i32 = arith.constant 0 : i32
    %c0_i32_0 = arith.constant 0 : i32
    %c0_i32_1 = arith.constant 0 : i32
    return %c0_i32, %c0_i32_0 : i32, i32
  }
  func.func @transform_3(%arg0: i32, %arg1: memref<2xi32, #tpu.memory_space<smem>>) -> (i32, i32) {
    %c0_i32 = arith.constant 0 : i32
    %c0_i32_0 = arith.constant 0 : i32
    %c0_i32_1 = arith.constant 0 : i32
    return %c0_i32, %c0_i32_0 : i32, i32
  }
  func.func @transform_4(%arg0: i32, %arg1: memref<2xi32, #tpu.memory_space<smem>>) -> (i32, i32) {
    %c0_i32 = arith.constant 0 : i32
    %c0_i32_0 = arith.constant 0 : i32
    %c0_i32_1 = arith.constant 0 : i32
    return %c0_i32, %c0_i32_0 : i32, i32
  }
  func.func @transform_5(%arg0: i32, %arg1: memref<2xi32, #tpu.memory_space<smem>>) -> (i32, i32) {
    %c0_i32 = arith.constant 0 : i32
    %c0_i32_0 = arith.constant 0 : i32
    %c0_i32_1 = arith.constant 0 : i32
    return %c0_i32, %c0_i32_0 : i32, i32
  }
  func.func @transform_6(%arg0: i32, %arg1: memref<2xi32, #tpu.memory_space<smem>>) -> (i32, i32) {
    %c0_i32 = arith.constant 0 : i32
    %c0_i32_0 = arith.constant 0 : i32
    %c0_i32_1 = arith.constant 0 : i32
    return %c0_i32, %c0_i32_0 : i32, i32
  }
  func.func @transform_7(%arg0: i32, %arg1: memref<2xi32, #tpu.memory_space<smem>>) -> (i32, i32) {
    %c0_i32 = arith.constant 0 : i32
    %c0_i32_0 = arith.constant 0 : i32
    %c0_i32_1 = arith.constant 0 : i32
    return %c0_i32, %c0_i32_0 : i32, i32
  }
  func.func @transform_8(%arg0: i32, %arg1: memref<2xi32, #tpu.memory_space<smem>>) -> (i32, i32) {
    %c0_i32 = arith.constant 0 : i32
    %c0_i32_0 = arith.constant 0 : i32
    %c0_i32_1 = arith.constant 0 : i32
    return %c0_i32, %c0_i32_0 : i32, i32
  }
  func.func @transform_9(%arg0: i32, %arg1: memref<2xi32, #tpu.memory_space<smem>>) -> (i32, i32) {
    %c0_i32 = arith.constant 0 : i32
    %c0_i32_0 = arith.constant 0 : i32
    %c0_i32_1 = arith.constant 0 : i32
    return %c0_i32, %c0_i32_0 : i32, i32
  }
  func.func @transform_10(%arg0: i32, %arg1: memref<2xi32, #tpu.memory_space<smem>>) -> (i32, i32) {
    %c0_i32 = arith.constant 0 : i32
    %c0_i32_0 = arith.constant 0 : i32
    %c0_i32_1 = arith.constant 0 : i32
    return %c0_i32, %c0_i32_0 : i32, i32
  }
  func.func @transform_11(%arg0: i32, %arg1: memref<2xi32, #tpu.memory_space<smem>>) -> (i32, i32) {
    %c0_i32 = arith.constant 0 : i32
    %c0_i32_0 = arith.constant 0 : i32
    %c0_i32_1 = arith.constant 0 : i32
    return %c0_i32, %c0_i32_0 : i32, i32
  }
  func.func @transform_12(%arg0: i32, %arg1: memref<2xi32, #tpu.memory_space<smem>>) -> (i32, i32) {
    %c0_i32 = arith.constant 0 : i32
    %c0_i32_0 = arith.constant 0 : i32
    %c0_i32_1 = arith.constant 0 : i32
    return %c0_i32, %c0_i32_0 : i32, i32
  }
  func.func @transform_13(%arg0: i32, %arg1: memref<2xi32, #tpu.memory_space<smem>>) -> (i32, i32) {
    %c0_i32 = arith.constant 0 : i32
    %c0_i32_0 = arith.constant 0 : i32
    %c0_i32_1 = arith.constant 0 : i32
    return %c0_i32, %c0_i32_0 : i32, i32
  }
  func.func @transform_14(%arg0: i32, %arg1: memref<2xi32, #tpu.memory_space<smem>>) -> (i32, i32) {
    %c0_i32 = arith.constant 0 : i32
    %c0_i32_0 = arith.constant 0 : i32
    %c0_i32_1 = arith.constant 0 : i32
    return %c0_i32, %c0_i32_0 : i32, i32
  }
  func.func @transform_15(%arg0: i32, %arg1: memref<2xi32, #tpu.memory_space<smem>>) -> (i32, i32) {
    %c0_i32 = arith.constant 0 : i32
    %c0_i32_0 = arith.constant 0 : i32
    %c0_i32_1 = arith.constant 0 : i32
    return %c0_i32, %c0_i32_0 : i32, i32
  }
  func.func @transform_16(%arg0: i32, %arg1: memref<2xi32, #tpu.memory_space<smem>>) -> (i32, i32) {
    %c0_i32 = arith.constant 0 : i32
    %c0_i32_0 = arith.constant 0 : i32
    %c0_i32_1 = arith.constant 0 : i32
    return %c0_i32, %c0_i32_0 : i32, i32
  }
  func.func @transform_17(%arg0: i32, %arg1: memref<2xi32, #tpu.memory_space<smem>>) -> (i32, i32) {
    %c0_i32 = arith.constant 0 : i32
    %c0_i32_0 = arith.constant 0 : i32
    %c0_i32_1 = arith.constant 0 : i32
    return %c0_i32, %c0_i32_0 : i32, i32
  }
  func.func @transform_18(%arg0: i32, %arg1: memref<2xi32, #tpu.memory_space<smem>>) -> (i32, i32) {
    %c0_i32 = arith.constant 0 : i32
    %c0_i32_0 = arith.constant 0 : i32
    %c0_i32_1 = arith.constant 0 : i32
    return %c0_i32, %c0_i32_0 : i32, i32
  }
  func.func @transform_19(%arg0: i32, %arg1: memref<2xi32, #tpu.memory_space<smem>>) -> (i32, i32) {
    %c0_i32 = arith.constant 0 : i32
    %c0_i32_0 = arith.constant 0 : i32
    %c0_i32_1 = arith.constant 0 : i32
    return %c0_i32, %c0_i32_0 : i32, i32
  }
  func.func @transform_20(%arg0: i32, %arg1: memref<2xi32, #tpu.memory_space<smem>>) -> (i32, i32) {
    %c0_i32 = arith.constant 0 : i32
    %c0_i32_0 = arith.constant 0 : i32
    %c0_i32_1 = arith.constant 0 : i32
    return %c0_i32, %c0_i32_0 : i32, i32
  }
  func.func @transform_21(%arg0: i32, %arg1: memref<2xi32, #tpu.memory_space<smem>>) -> (i32, i32) {
    %c0_i32 = arith.constant 0 : i32
    %c0_i32_0 = arith.constant 0 : i32
    %c0_i32_1 = arith.constant 0 : i32
    return %c0_i32, %c0_i32_0 : i32, i32
  }
  func.func @transform_22(%arg0: i32, %arg1: memref<2xi32, #tpu.memory_space<smem>>) -> (i32, i32, i32) {
    %c0_i32 = arith.constant 0 : i32
    %c0_i32_0 = arith.constant 0 : i32
    %c0_i32_1 = arith.constant 0 : i32
    return %arg0, %c0_i32, %c0_i32_0 : i32, i32, i32
  }
}

</mosaic_0001>

<llo_original>
// kernel: forward_train.7
$region0: #{forward_train.7}
  #allocation0 [shape = 'u32[]', space=smem, size = 0x4, offset = 0x4, fixed_abs, tag = 'smem constant byte address 0x4 - core index']
  #allocation1 [shape = 'u32[144,128]{1,0:T(1,128)}', space=vmem, size = 0x12000, scoped, tag = 'internal scratch']
  %s0 = inlined_call_operand.vmem [shape: f32[2,12,16], index: 0, kind: input, shape index: {}]
  %s1 = inlined_call_operand.vmem [shape: f32[16,32], index: 1, kind: input, shape index: {}]
  %s2 = inlined_call_operand.vmem [shape: f32[1,32], index: 2, kind: input, shape index: {}]
  %s3 = inlined_call_operand.vmem [shape: f32[12,32], index: 3, kind: input, shape index: {}]
  %s4 = inlined_call_operand.vmem [shape: f32[2,12,32], index: 4, kind: output, shape index: {}]
  %s5 = sld [smem:[#allocation0]]
  $region26: #{forward_train.7} parent=0
    _
  %s7 = ssub.s32 1, %s5
  %s8 = scalar_select 0, %s7, %s5
  // Predicated region
  $region2: #{forward_train.7} parent=0 // pred_check
    _
  $region3: #{forward_train.7} parent=0 // pred_check_branch
    %10 = sbr.rel (0) target = $region5
  $region4: #{forward_train.7} parent=0 // pred_region
    _
  $region5: #{forward_train.7} parent=0 // pred_fallthru
    _
  // Predicated region
  $region6: #{forward_train.7} parent=0 // pred_check
    _
  $region7: #{forward_train.7} parent=0 // pred_check_branch
    %12 = sbr.rel (0) target = $region9
  $region8: #{forward_train.7} parent=0 // pred_region
    _
  $region9: #{forward_train.7} parent=0 // pred_fallthru
    _
  // Predicated region
  $region10: #{forward_train.7} parent=0 // pred_check
    _
  $region11: #{forward_train.7} parent=0 // pred_check_branch
    %14 = sbr.rel (0) target = $region13
  $region12: #{forward_train.7} parent=0 // pred_region
    _
  $region13: #{forward_train.7} parent=0 // pred_fallthru
    _
  // Predicated region
  $region14: #{forward_train.7} parent=0 // pred_check
    _
  $region15: #{forward_train.7} parent=0 // pred_check_branch
    %16 = sbr.rel (0) target = $region17
  $region16: #{forward_train.7} parent=0 // pred_region
    _
  $region17: #{forward_train.7} parent=0 // pred_fallthru
    _
  %v17 = vld [vmem:[%s0] sm:$0xff]
  %v18 = vld [vmem:[%s0 + $0x8] sm:$0xf]
  %v19 = vld [vmem:[%s1] sm:$0xff]
  %v20 = vld [vmem:[%s1 + $0x8] sm:$0xff]
  %v21 = vld [vmem:[%s2] sm:$0x1]
  %v23 = vlaneseq
  %v24 = vshrl.u32 %v23, 7
  %v25 = vsub.s32 0, %v24
  %v26 = vrot.slane %v21, %v25
  %vm28 = vcmask 130048
  %v30 = vsel %vm28, %v17, 0
  %v33 = vsel %vm28, %v18, 0
  %35 = vmatprep.subr.mxu0 0.0
  %36 = vmatpush1.msra.mxu0 0.0
  %37 = vmatprep.subr.mxu0 0.0
  %38 = vmatpush1.msra.mxu0 0.0
  %39 = vmatprep.subr.mxu0 0.0
  %40 = vmatpush1.msra.mxu0 0.0
  %41 = vmatprep.subr.mxu0 0.0
  %42 = vmatpush1.msra.mxu0 0.0
  %43 = vmatprep.subr.mxu0 0.0
  %44 = vmatpush1.msra.mxu0 0.0
  %45 = vmatprep.subr.mxu0 0.0
  %46 = vmatpush1.msra.mxu0 0.0
  %47 = vmatprep.subr.mxu0 0.0
  %48 = vmatpush1.msra.mxu0 0.0
  %49 = vmatprep.subr.mxu0 0.0
  %50 = vmatpush1.msra.mxu0 0.0
  %51 = vmatprep.subr.mxu0 0.0
  %52 = vmatpush1.msra.mxu0 0.0
  %53 = vmatprep.subr.mxu0 0.0
  %54 = vmatpush1.msra.mxu0 0.0
  %55 = vmatprep.subr.mxu0 0.0
  %56 = vmatpush1.msra.mxu0 0.0
  %57 = vmatprep.subr.mxu0 0.0
  %58 = vmatpush1.msra.mxu0 0.0
  %59 = vmatprep.subr.mxu0 0.0
  %60 = vmatpush1.msra.mxu0 0.0
  %61 = vmatprep.subr.mxu0 0.0
  %62 = vmatpush1.msra.mxu0 0.0
  %63 = vmatprep.subr.mxu0 0.0
  %64 = vmatpush1.msra.mxu0 %v20
  %65 = vmatprep.subr.mxu0 0.0
  %66 = vmatpush1.msra.mxu0 %v19
  %67 = vmatprep.subr.mxu0 0.0
  %68 = vmatpush2.msra.mxu0 0.0
  %69 = vmatprep.subr.mxu0 0.0
  %70 = vmatpush2.msra.mxu0 0.0
  %71 = vmatprep.subr.mxu0 0.0
  %72 = vmatpush2.msra.mxu0 0.0
  %73 = vmatprep.subr.mxu0 0.0
  %74 = vmatpush2.msra.mxu0 0.0
  %75 = vmatprep.subr.mxu0 0.0
  %76 = vmatpush2.msra.mxu0 0.0
  %77 = vmatprep.subr.mxu0 0.0
  %78 = vmatpush2.msra.mxu0 0.0
  %79 = vmatprep.subr.mxu0 0.0
  %80 = vmatpush2.msra.mxu0 0.0
  %81 = vmatprep.subr.mxu0 0.0
  %82 = vmatpush2.msra.mxu0 0.0
  %83 = vmatprep.subr.mxu0 0.0
  %84 = vmatpush2.msra.mxu0 0.0
  %85 = vmatprep.subr.mxu0 0.0
  %86 = vmatpush2.msra.mxu0 0.0
  %87 = vmatprep.subr.mxu0 0.0
  %88 = vmatpush2.msra.mxu0 0.0
  %89 = vmatprep.subr.mxu0 0.0
  %90 = vmatpush2.msra.mxu0 0.0
  %91 = vmatprep.subr.mxu0 0.0
  %92 = vmatpush2.msra.mxu0 0.0
  %93 = vmatprep.subr.mxu0 0.0
  %94 = vmatpush2.msra.mxu0 0.0
  %95 = vmatprep.subr.mxu0 0.0
  %96 = vmatpush2.msra.mxu0 0.0
  %97 = vmatprep.subr.mxu0 0.0
  %98 = vmatpush2.msra.mxu0 0.0
  %99 = vmatprep.mubr.f32.mxu0 0.0
  %100 = vmatmul.mubr.f32.gmra.mxu0 %v30
  %v101 = vpop.f32.mrf.mxu0
  %v102 = vadd.f32 %v26, %v101
  %v103 = vpop.f32.mrf.mxu0
  %104 = vmatprep.mubr.f32.mxu0 0.0
  %105 = vmatmul.mubr.f32.gmra.mxu0 %v33
  %v106 = vpop.f32.mrf.mxu0
  %v107 = vadd.f32 %v26, %v106
  %v108 = vpop.f32.mrf.mxu0
  %109 = vdwg.mxu0
  %v110 = vld [vmem:[%s3] sm:$0xff]
  %v111 = vld [vmem:[%s3 + $0x8] sm:$0xf]
  %v112 = vadd.f32 %v102, %v110
  %v113 = vadd.f32 %v107, %v111
  %vm114 = vcmask 261120
  %115 = vst.msk [vmem:[%s4] sm:$0xff] %vm114, %v112
  %vm116 = vcmask 257024
  %117 = vst.msk [vmem:[%s4 + $0x8] sm:$0xf] %vm116, %v113
  %s118 = scalar_lea.vmem %s0, 16
  %v119 = vld [vmem:[%s118] sm:$0xff]
  %v120 = vld [vmem:[%s118 + $0x8] sm:$0xf]
  %v121 = vld [vmem:[%s1] sm:$0xff]
  %v122 = vld [vmem:[%s1 + $0x8] sm:$0xff]
  %v123 = vld [vmem:[%s2] sm:$0x1]
  %v125 = vlaneseq
  %v126 = vshrl.u32 %v125, 7
  %v127 = vsub.s32 0, %v126
  %v128 = vrot.slane %v123, %v127
  %v131 = vsel %vm28, %v119, 0
  %v134 = vsel %vm28, %v120, 0
  %136 = vmatprep.subr.mxu0 0.0
  %137 = vmatpush1.msra.mxu0 0.0
  %138 = vmatprep.subr.mxu0 0.0
  %139 = vmatpush1.msra.mxu0 0.0
  %140 = vmatprep.subr.mxu0 0.0
  %141 = vmatpush1.msra.mxu0 0.0
  %142 = vmatprep.subr.mxu0 0.0
  %143 = vmatpush1.msra.mxu0 0.0
  %144 = vmatprep.subr.mxu0 0.0
  %145 = vmatpush1.msra.mxu0 0.0
  %146 = vmatprep.subr.mxu0 0.0
  %147 = vmatpush1.msra.mxu0 0.0
  %148 = vmatprep.subr.mxu0 0.0
  %149 = vmatpush1.msra.mxu0 0.0
  %150 = vmatprep.subr.mxu0 0.0
  %151 = vmatpush1.msra.mxu0 0.0
  %152 = vmatprep.subr.mxu0 0.0
  %153 = vmatpush1.msra.mxu0 0.0
  %154 = vmatprep.subr.mxu0 0.0
  %155 = vmatpush1.msra.mxu0 0.0
  %156 = vmatprep.subr.mxu0 0.0
  %157 = vmatpush1.msra.mxu0 0.0
  %158 = vmatprep.subr.mxu0 0.0
  %159 = vmatpush1.msra.mxu0 0.0
  %160 = vmatprep.subr.mxu0 0.0
  %161 = vmatpush1.msra.mxu0 0.0
  %162 = vmatprep.subr.mxu0 0.0
  %163 = vmatpush1.msra.mxu0 0.0
  %164 = vmatprep.subr.mxu0 0.0
  %165 = vmatpush1.msra.mxu0 %v122
  %166 = vmatprep.subr.mxu0 0.0
  %167 = vmatpush1.msra.mxu0 %v121
  %168 = vmatprep.subr.mxu0 0.0
  %169 = vmatpush2.msra.mxu0 0.0
  %170 = vmatprep.subr.mxu0 0.0
  %171 = vmatpush2.msra.mxu0 0.0
  %172 = vmatprep.subr.mxu0 0.0
  %173 = vmatpush2.msra.mxu0 0.0
  %174 = vmatprep.subr.mxu0 0.0
  %175 = vmatpush2.msra.mxu0 0.0
  %176 = vmatprep.subr.mxu0 0.0
  %177 = vmatpush2.msra.mxu0 0.0
  %178 = vmatprep.subr.mxu0 0.0
  %179 = vmatpush2.msra.mxu0 0.0
  %180 = vmatprep.subr.mxu0 0.0
  %181 = vmatpush2.msra.mxu0 0.0
  %182 = vmatprep.subr.mxu0 0.0
  %183 = vmatpush2.msra.mxu0 0.0
  %184 = vmatprep.subr.mxu0 0.0
  %185 = vmatpush2.msra.mxu0 0.0
  %186 = vmatprep.subr.mxu0 0.0
  %187 = vmatpush2.msra.mxu0 0.0
  %188 = vmatprep.subr.mxu0 0.0
  %189 = vmatpush2.msra.mxu0 0.0
  %190 = vmatprep.subr.mxu0 0.0
  %191 = vmatpush2.msra.mxu0 0.0
  %192 = vmatprep.subr.mxu0 0.0
  %193 = vmatpush2.msra.mxu0 0.0
  %194 = vmatprep.subr.mxu0 0.0
  %195 = vmatpush2.msra.mxu0 0.0
  %196 = vmatprep.subr.mxu0 0.0
  %197 = vmatpush2.msra.mxu0 0.0
  %198 = vmatprep.subr.mxu0 0.0
  %199 = vmatpush2.msra.mxu0 0.0
  %200 = vmatprep.mubr.f32.mxu0 0.0
  %201 = vmatmul.mubr.f32.gmra.mxu0 %v131
  %v202 = vpop.f32.mrf.mxu0
  %v203 = vadd.f32 %v128, %v202
  %v204 = vpop.f32.mrf.mxu0
  %205 = vmatprep.mubr.f32.mxu0 0.0
  %206 = vmatmul.mubr.f32.gmra.mxu0 %v134
  %v207 = vpop.f32.mrf.mxu0
  %v208 = vadd.f32 %v128, %v207
  %v209 = vpop.f32.mrf.mxu0
  %210 = vdwg.mxu0
  %v211 = vld [vmem:[%s3] sm:$0xff]
  %v212 = vld [vmem:[%s3 + $0x8] sm:$0xf]
  %v213 = vadd.f32 %v203, %v211
  %v214 = vadd.f32 %v208, %v212
  %s215 = scalar_lea.vmem %s4, 16
  %216 = vst.msk [vmem:[%s215] sm:$0xff] %vm114, %v213
  %217 = vst.msk [vmem:[%s215 + $0x8] sm:$0xf] %vm116, %v214
  // Predicated region
  $region18: #{forward_train.7} parent=0 // pred_check
    _
  $region19: #{forward_train.7} parent=0 // pred_check_branch
    %219 = sbr.rel (0) target = $region21
  $region20: #{forward_train.7} parent=0 // pred_region
    _
  $region21: #{forward_train.7} parent=0 // pred_fallthru
    _
  // Predicated region
  $region22: #{forward_train.7} parent=0 // pred_check
    _
  $region23: #{forward_train.7} parent=0 // pred_check_branch
    %221 = sbr.rel (0) target = $region25
  $region24: #{forward_train.7} parent=0 // pred_region
    _
  $region25: #{forward_train.7} parent=0 // pred_fallthru
    _

// kernel: forward_train.8
$region0: #{forward_train.8}
  #allocation0 [shape = 'u32[]', space=smem, size = 0x4, offset = 0x4, fixed_abs, tag = 'smem constant byte address 0x4 - core index']
  #allocation1 [shape = 'u32[144,128]{1,0:T(1,128)}', space=vmem, size = 0x12000, scoped, tag = 'internal scratch']
  %s0 = inlined_call_operand.vmem [shape: s32[2,8,1], index: 0, kind: input, shape index: {}]
  %s1 = inlined_call_operand.vmem [shape: f32[40,32], index: 1, kind: input, shape index: {}]
  %s2 = inlined_call_operand.vmem [shape: f32[8,32], index: 2, kind: input, shape index: {}]
  %s3 = inlined_call_operand.vmem [shape: f32[2,8,32], index: 3, kind: output, shape index: {}]
  %s4 = sld [smem:[#allocation0]]
  $region22: #{forward_train.8} parent=0
    _
  %s6 = ssub.s32 1, %s4
  %s7 = scalar_select 0, %s6, %s4
  // Predicated region
  $region2: #{forward_train.8} parent=0 // pred_check
    _
  $region3: #{forward_train.8} parent=0 // pred_check_branch
    %9 = sbr.rel (0) target = $region5
  $region4: #{forward_train.8} parent=0 // pred_region
    _
  $region5: #{forward_train.8} parent=0 // pred_fallthru
    _
  // Predicated region
  $region6: #{forward_train.8} parent=0 // pred_check
    _
  $region7: #{forward_train.8} parent=0 // pred_check_branch
    %11 = sbr.rel (0) target = $region9
  $region8: #{forward_train.8} parent=0 // pred_region
    _
  $region9: #{forward_train.8} parent=0 // pred_fallthru
    _
  // Predicated region
  $region10: #{forward_train.8} parent=0 // pred_check
    _
  $region11: #{forward_train.8} parent=0 // pred_check_branch
    %13 = sbr.rel (0) target = $region13
  $region12: #{forward_train.8} parent=0 // pred_region
    _
  $region13: #{forward_train.8} parent=0 // pred_fallthru
    _
  %v14 = vlaneseq
  %v15 = vand.u32 %v14, 127
  %v16 = vld [vmem:[%s0] sm:$0xff]
  %17 = vset.pattern.permute.xlu0 0
  %18 = vperm.xlu0 %17, %v16
  %v19 = vpop.permute.xlu0 %18
  %vm20 = vcmp.eq.s32.totalorder %v19, %v15
  %v21 = vsel %vm20, 1, 0
  %v22 = vcvt.s32.f32 %v21
  %v23 = vld [vmem:[%s1] sm:$0xff]
  %v24 = vld [vmem:[%s1 + $0x8] sm:$0xff]
  %v25 = vld [vmem:[%s1 + $0x10] sm:$0xff]
  %v26 = vld [vmem:[%s1 + $0x18] sm:$0xff]
  %v27 = vld [vmem:[%s1 + $0x20] sm:$0xff]
  %v28 = vld [vmem:[%s2] sm:$0xff]
  %vm29 = vcmask 326656
  %v31 = vsel %vm29, %v22, 0
  %33 = vmatprep.subr.mxu0 0.0
  %34 = vmatpush1.msra.mxu0 0.0
  %35 = vmatprep.subr.mxu0 0.0
  %36 = vmatpush1.msra.mxu0 0.0
  %37 = vmatprep.subr.mxu0 0.0
  %38 = vmatpush1.msra.mxu0 0.0
  %39 = vmatprep.subr.mxu0 0.0
  %40 = vmatpush1.msra.mxu0 0.0
  %41 = vmatprep.subr.mxu0 0.0
  %42 = vmatpush1.msra.mxu0 0.0
  %43 = vmatprep.subr.mxu0 0.0
  %44 = vmatpush1.msra.mxu0 0.0
  %45 = vmatprep.subr.mxu0 0.0
  %46 = vmatpush1.msra.mxu0 0.0
  %47 = vmatprep.subr.mxu0 0.0
  %48 = vmatpush1.msra.mxu0 0.0
  %49 = vmatprep.subr.mxu0 0.0
  %50 = vmatpush1.msra.mxu0 0.0
  %51 = vmatprep.subr.mxu0 0.0
  %52 = vmatpush1.msra.mxu0 0.0
  %53 = vmatprep.subr.mxu0 0.0
  %54 = vmatpush1.msra.mxu0 0.0
  %55 = vmatprep.subr.mxu0 0.0
  %56 = vmatpush1.msra.mxu0 %v27
  %57 = vmatprep.subr.mxu0 0.0
  %58 = vmatpush1.msra.mxu0 %v26
  %59 = vmatprep.subr.mxu0 0.0
  %60 = vmatpush1.msra.mxu0 %v25
  %61 = vmatprep.subr.mxu0 0.0
  %62 = vmatpush1.msra.mxu0 %v24
  %63 = vmatprep.subr.mxu0 0.0
  %64 = vmatpush1.msra.mxu0 %v23
  %65 = vmatprep.subr.mxu0 0.0
  %66 = vmatpush2.msra.mxu0 0.0
  %67 = vmatprep.subr.mxu0 0.0
  %68 = vmatpush2.msra.mxu0 0.0
  %69 = vmatprep.subr.mxu0 0.0
  %70 = vmatpush2.msra.mxu0 0.0
  %71 = vmatprep.subr.mxu0 0.0
  %72 = vmatpush2.msra.mxu0 0.0
  %73 = vmatprep.subr.mxu0 0.0
  %74 = vmatpush2.msra.mxu0 0.0
  %75 = vmatprep.subr.mxu0 0.0
  %76 = vmatpush2.msra.mxu0 0.0
  %77 = vmatprep.subr.mxu0 0.0
  %78 = vmatpush2.msra.mxu0 0.0
  %79 = vmatprep.subr.mxu0 0.0
  %80 = vmatpush2.msra.mxu0 0.0
  %81 = vmatprep.subr.mxu0 0.0
  %82 = vmatpush2.msra.mxu0 0.0
  %83 = vmatprep.subr.mxu0 0.0
  %84 = vmatpush2.msra.mxu0 0.0
  %85 = vmatprep.subr.mxu0 0.0
  %86 = vmatpush2.msra.mxu0 0.0
  %87 = vmatprep.subr.mxu0 0.0
  %88 = vmatpush2.msra.mxu0 0.0
  %89 = vmatprep.subr.mxu0 0.0
  %90 = vmatpush2.msra.mxu0 0.0
  %91 = vmatprep.subr.mxu0 0.0
  %92 = vmatpush2.msra.mxu0 0.0
  %93 = vmatprep.subr.mxu0 0.0
  %94 = vmatpush2.msra.mxu0 0.0
  %95 = vmatprep.subr.mxu0 0.0
  %96 = vmatpush2.msra.mxu0 0.0
  %97 = vmatprep.mubr.f32.mxu0 0.0
  %98 = vmatmul.mubr.f32.gmra.mxu0 %v31
  %v99 = vpop.f32.mrf.mxu0
  %v100 = vadd.f32 %v28, %v99
  %v101 = vpop.f32.mrf.mxu0
  %102 = vdwg.mxu0
  %vm103 = vcmask 261120
  %104 = vst.msk [vmem:[%s3] sm:$0xff] %vm103, %v100
  %s105 = scalar_lea.vmem %s0, 8
  %v106 = vld [vmem:[%s105] sm:$0xff]
  %107 = vset.pattern.permute.xlu0 0
  %108 = vperm.xlu0 %107, %v106
  %v109 = vpop.permute.xlu0 %108
  %vm110 = vcmp.eq.s32.totalorder %v109, %v15
  %v111 = vsel %vm110, 1, 0
  %v112 = vcvt.s32.f32 %v111
  %v113 = vld [vmem:[%s1] sm:$0xff]
  %v114 = vld [vmem:[%s1 + $0x8] sm:$0xff]
  %v115 = vld [vmem:[%s1 + $0x10] sm:$0xff]
  %v116 = vld [vmem:[%s1 + $0x18] sm:$0xff]
  %v117 = vld [vmem:[%s1 + $0x20] sm:$0xff]
  %v118 = vld [vmem:[%s2] sm:$0xff]
  %v120 = vsel %vm29, %v112, 0
  %122 = vmatprep.subr.mxu0 0.0
  %123 = vmatpush1.msra.mxu0 0.0
  %124 = vmatprep.subr.mxu0 0.0
  %125 = vmatpush1.msra.mxu0 0.0
  %126 = vmatprep.subr.mxu0 0.0
  %127 = vmatpush1.msra.mxu0 0.0
  %128 = vmatprep.subr.mxu0 0.0
  %129 = vmatpush1.msra.mxu0 0.0
  %130 = vmatprep.subr.mxu0 0.0
  %131 = vmatpush1.msra.mxu0 0.0
  %132 = vmatprep.subr.mxu0 0.0
  %133 = vmatpush1.msra.mxu0 0.0
  %134 = vmatprep.subr.mxu0 0.0
  %135 = vmatpush1.msra.mxu0 0.0
  %136 = vmatprep.subr.mxu0 0.0
  %137 = vmatpush1.msra.mxu0 0.0
  %138 = vmatprep.subr.mxu0 0.0
  %139 = vmatpush1.msra.mxu0 0.0
  %140 = vmatprep.subr.mxu0 0.0
  %141 = vmatpush1.msra.mxu0 0.0
  %142 = vmatprep.subr.mxu0 0.0
  %143 = vmatpush1.msra.mxu0 0.0
  %144 = vmatprep.subr.mxu0 0.0
  %145 = vmatpush1.msra.mxu0 %v117
  %146 = vmatprep.subr.mxu0 0.0
  %147 = vmatpush1.msra.mxu0 %v116
  %148 = vmatprep.subr.mxu0 0.0
  %149 = vmatpush1.msra.mxu0 %v115
  %150 = vmatprep.subr.mxu0 0.0
  %151 = vmatpush1.msra.mxu0 %v114
  %152 = vmatprep.subr.mxu0 0.0
  %153 = vmatpush1.msra.mxu0 %v113
  %154 = vmatprep.subr.mxu0 0.0
  %155 = vmatpush2.msra.mxu0 0.0
  %156 = vmatprep.subr.mxu0 0.0
  %157 = vmatpush2.msra.mxu0 0.0
  %158 = vmatprep.subr.mxu0 0.0
  %159 = vmatpush2.msra.mxu0 0.0
  %160 = vmatprep.subr.mxu0 0.0
  %161 = vmatpush2.msra.mxu0 0.0
  %162 = vmatprep.subr.mxu0 0.0
  %163 = vmatpush2.msra.mxu0 0.0
  %164 = vmatprep.subr.mxu0 0.0
  %165 = vmatpush2.msra.mxu0 0.0
  %166 = vmatprep.subr.mxu0 0.0
  %167 = vmatpush2.msra.mxu0 0.0
  %168 = vmatprep.subr.mxu0 0.0
  %169 = vmatpush2.msra.mxu0 0.0
  %170 = vmatprep.subr.mxu0 0.0
  %171 = vmatpush2.msra.mxu0 0.0
  %172 = vmatprep.subr.mxu0 0.0
  %173 = vmatpush2.msra.mxu0 0.0
  %174 = vmatprep.subr.mxu0 0.0
  %175 = vmatpush2.msra.mxu0 0.0
  %176 = vmatprep.subr.mxu0 0.0
  %177 = vmatpush2.msra.mxu0 0.0
  %178 = vmatprep.subr.mxu0 0.0
  %179 = vmatpush2.msra.mxu0 0.0
  %180 = vmatprep.subr.mxu0 0.0
  %181 = vmatpush2.msra.mxu0 0.0
  %182 = vmatprep.subr.mxu0 0.0
  %183 = vmatpush2.msra.mxu0 0.0
  %184 = vmatprep.subr.mxu0 0.0
  %185 = vmatpush2.msra.mxu0 0.0
  %186 = vmatprep.mubr.f32.mxu0 0.0
  %187 = vmatmul.mubr.f32.gmra.mxu0 %v120
  %v188 = vpop.f32.mrf.mxu0
  %v189 = vadd.f32 %v118, %v188
  %v190 = vpop.f32.mrf.mxu0
  %191 = vdwg.mxu0
  %s192 = scalar_lea.vmem %s3, 8
  %193 = vst.msk [vmem:[%s192] sm:$0xff] %vm103, %v189
  // Predicated region
  $region14: #{forward_train.8} parent=0 // pred_check
    _
  $region15: #{forward_train.8} parent=0 // pred_check_branch
    %195 = sbr.rel (0) target = $region17
  $region16: #{forward_train.8} parent=0 // pred_region
    _
  $region17: #{forward_train.8} parent=0 // pred_fallthru
    _
  // Predicated region
  $region18: #{forward_train.8} parent=0 // pred_check
    _
  $region19: #{forward_train.8} parent=0 // pred_check_branch
    %197 = sbr.rel (0) target = $region21
  $region20: #{forward_train.8} parent=0 // pred_region
    _
  $region21: #{forward_train.8} parent=0 // pred_fallthru
    _

// kernel: forward_train.9
$region0: #{forward_train.9}
  #allocation0 [shape = 'u32[]', space=smem, size = 0x4, offset = 0x4, fixed_abs, tag = 'smem constant byte address 0x4 - core index']
  #allocation1 [shape = 'u32[144,128]{1,0:T(1,128)}', space=vmem, size = 0x12000, scoped, tag = 'internal scratch']
  %s0 = inlined_call_operand.vmem [shape: f32[2,12,32], index: 0, kind: input, shape index: {}]
  %s1 = inlined_call_operand.vmem [shape: f32[32,96], index: 1, kind: input, shape index: {}]
  %s2 = inlined_call_operand.vmem [shape: f32[1,96], index: 2, kind: input, shape index: {}]
  %s3 = inlined_call_operand.vmem [shape: f32[32,32], index: 3, kind: input, shape index: {}]
  %s4 = inlined_call_operand.vmem [shape: f32[1,32], index: 4, kind: input, shape index: {}]
  %s5 = inlined_call_operand.vmem [shape: f32[1,32], index: 5, kind: input, shape index: {}]
  %s6 = inlined_call_operand.vmem [shape: f32[1,32], index: 6, kind: input, shape index: {}]
  %s7 = inlined_call_operand.vmem [shape: f32[32,64], index: 7, kind: input, shape index: {}]
  %s8 = inlined_call_operand.vmem [shape: f32[1,64], index: 8, kind: input, shape index: {}]
  %s9 = inlined_call_operand.vmem [shape: f32[64,32], index: 9, kind: input, shape index: {}]
  %s10 = inlined_call_operand.vmem [shape: f32[1,32], index: 10, kind: input, shape index: {}]
  %s11 = inlined_call_operand.vmem [shape: f32[1,32], index: 11, kind: input, shape index: {}]
  %s12 = inlined_call_operand.vmem [shape: f32[1,32], index: 12, kind: input, shape index: {}]
  %s13 = inlined_call_operand.vmem [shape: f32[2,12,32], index: 13, kind: output, shape index: {}]
  %s14 = sld [smem:[#allocation0]]
  $region85: #{forward_train.9} parent=0
    _
  %s16 = ssub.s32 1, %s14
  %s17 = scalar_select 0, %s16, %s14
  loop: start=0, step=1, limit=4
  $region2: #{forward_train.9} parent=0 // loop_pre_header
    _
  $region3: #{forward_train.9} parent=0 // loop_header
    %s19 = sphi 0, %s23
    %p20 = scmp.ge.s32.totalorder %s19, 4
    %s29 = sphi 0, %s31
    %s32 = sphi 0, %s29
    %s33 = sphi 0, %s32
    %s49 = sphi 0, %s33
    %s53 = sphi 0, %s53
    %s55 = sphi 0, %s53
    %s56 = sphi 0, %s55
    %s70 = sphi 0, %s56
    %s74 = sphi 0, %s74
    %s76 = sphi 0, %s74
    %s77 = sphi 0, %s76
    %s91 = sphi 0, %s77
    %s95 = sphi 0, %s95
    %s97 = sphi 0, %s95
    %s98 = sphi 0, %s97
    %s112 = sphi 0, %s98
    %s116 = sphi 0, %s116
    %s118 = sphi 0, %s116
    %s119 = sphi 0, %s118
    %s133 = sphi 0, %s119
    %s137 = sphi 0, %s137
    %s139 = sphi 0, %s137
    %s140 = sphi 0, %s139
    %s154 = sphi 0, %s140
    %s158 = sphi 0, %s158
    %s160 = sphi 0, %s158
    %s161 = sphi 0, %s160
    %s175 = sphi 0, %s161
    %s179 = sphi 0, %s179
    %s181 = sphi 0, %s179
    %s182 = sphi 0, %s181
    %s196 = sphi 0, %s182
    %s200 = sphi 0, %s200
    %s202 = sphi 0, %s200
    %s203 = sphi 0, %s202
    %s217 = sphi 0, %s203
    %s221 = sphi 0, %s221
    %s223 = sphi 0, %s221
    %s224 = sphi 0, %s223
    %s238 = sphi 0, %s224
    %s242 = sphi 0, %s242
    %s244 = sphi 0, %s242
    %s245 = sphi 0, %s244
    %s259 = sphi 0, %s245
    %s263 = sphi 0, %s263
    %s265 = sphi 0, %s263
    %s266 = sphi 0, %s265
    %s280 = sphi 0, %s266
    %s284 = sphi 0, %s284
    %s286 = sphi 0, %s284
    %s287 = sphi 0, %s286
    %s301 = sphi 0, %s287
    %s307 = sphi 0, %s309
    %s310 = sphi 0, %s307
    %s311 = sphi 0, %s310
    %s327 = sphi 0, %s311
  $region4: #{forward_train.9} parent=0 // loop_header_branch
    %22 = sbr.rel (%p20) target = $region8
  $region5: #{forward_train.9} parent=0 // loop_body
    %s24 = ssub.s32 %s19, 1
    %s25 = ssub.s32 %s19, 2
    %s26 = sadd.s32 %s19, 1
    %s27 = ssub.s32 %s19, %s26
    %p28 = scmp.eq.s32.totalorder %s27, 0
    %s30 = sadd.s32 %s29, 1
    %s31 = scalar_select %p28, %s29, %s30
    %p34 = pneg %p28
    %p35 = scmp.eq.s32.totalorder %s19, 1
    %p36 = por %p34, %p35
    %p37 = scmp.ne.s32.totalorder %s29, %s32
    %p38 = scmp.eq.s32.totalorder %s19, 0
    %p39 = por %p37, %p38
    %p40 = scmp.ne.s32.totalorder %s29, %s32
    %p41 = scmp.eq.s32.totalorder %s24, 1
    %p42 = por %p40, %p41
    %p43 = scmp.ne.s32.totalorder %s32, %s33
    %p44 = scmp.eq.s32.totalorder %s24, 0
    %p45 = por %p43, %p44
    %p46 = scmp.ne.s32.totalorder %s32, %s33
    %p47 = scmp.eq.s32.totalorder %s25, 1
    %p48 = por %p46, %p47
    %p50 = scmp.ne.s32.totalorder %s33, %s49
    %p51 = scmp.eq.s32.totalorder %s25, 0
    %p52 = por %p50, %p51
    %s54 = sadd.s32 %s53, 1
    %p57 = scmp.eq.s32.totalorder %s19, 1
    %p58 = scmp.ne.s32.totalorder %s53, %s55
    %p59 = scmp.eq.s32.totalorder %s19, 0
    %p60 = por %p58, %p59
    %p61 = scmp.ne.s32.totalorder %s53, %s55
    %p62 = scmp.eq.s32.totalorder %s24, 1
    %p63 = por %p61, %p62
    %p64 = scmp.ne.s32.totalorder %s55, %s56
    %p65 = scmp.eq.s32.totalorder %s24, 0
    %p66 = por %p64, %p65
    %p67 = scmp.ne.s32.totalorder %s55, %s56
    %p68 = scmp.eq.s32.totalorder %s25, 1
    %p69 = por %p67, %p68
    %p71 = scmp.ne.s32.totalorder %s56, %s70
    %p72 = scmp.eq.s32.totalorder %s25, 0
    %p73 = por %p71, %p72
    %s75 = sadd.s32 %s74, 1
    %p78 = scmp.eq.s32.totalorder %s19, 1
    %p79 = scmp.ne.s32.totalorder %s74, %s76
    %p80 = scmp.eq.s32.totalorder %s19, 0
    %p81 = por %p79, %p80
    %p82 = scmp.ne.s32.totalorder %s74, %s76
    %p83 = scmp.eq.s32.totalorder %s24, 1
    %p84 = por %p82, %p83
    %p85 = scmp.ne.s32.totalorder %s76, %s77
    %p86 = scmp.eq.s32.totalorder %s24, 0
    %p87 = por %p85, %p86
    %p88 = scmp.ne.s32.totalorder %s76, %s77
    %p89 = scmp.eq.s32.totalorder %s25, 1
    %p90 = por %p88, %p89
    %p92 = scmp.ne.s32.totalorder %s77, %s91
    %p93 = scmp.eq.s32.totalorder %s25, 0
    %p94 = por %p92, %p93
    %s96 = sadd.s32 %s95, 1
    %p99 = scmp.eq.s32.totalorder %s19, 1
    %p100 = scmp.ne.s32.totalorder %s95, %s97
    %p101 = scmp.eq.s32.totalorder %s19, 0
    %p102 = por %p100, %p101
    %p103 = scmp.ne.s32.totalorder %s95, %s97
    %p104 = scmp.eq.s32.totalorder %s24, 1
    %p105 = por %p103, %p104
    %p106 = scmp.ne.s32.totalorder %s97, %s98
    %p107 = scmp.eq.s32.totalorder %s24, 0
    %p108 = por %p106, %p107
    %p109 = scmp.ne.s32.totalorder %s97, %s98
    %p110 = scmp.eq.s32.totalorder %s25, 1
    %p111 = por %p109, %p110
    %p113 = scmp.ne.s32.totalorder %s98, %s112
    %p114 = scmp.eq.s32.totalorder %s25, 0
    %p115 = por %p113, %p114
    %s117 = sadd.s32 %s116, 1
    %p120 = scmp.eq.s32.totalorder %s19, 1
    %p121 = scmp.ne.s32.totalorder %s116, %s118
    %p122 = scmp.eq.s32.totalorder %s19, 0
    %p123 = por %p121, %p122
    %p124 = scmp.ne.s32.totalorder %s116, %s118
    %p125 = scmp.eq.s32.totalorder %s24, 1
    %p126 = por %p124, %p125
    %p127 = scmp.ne.s32.totalorder %s118, %s119
    %p128 = scmp.eq.s32.totalorder %s24, 0
    %p129 = por %p127, %p128
    %p130 = scmp.ne.s32.totalorder %s118, %s119
    %p131 = scmp.eq.s32.totalorder %s25, 1
    %p132 = por %p130, %p131
    %p134 = scmp.ne.s32.totalorder %s119, %s133
    %p135 = scmp.eq.s32.totalorder %s25, 0
    %p136 = por %p134, %p135
    %s138 = sadd.s32 %s137, 1
    %p141 = scmp.eq.s32.totalorder %s19, 1
    %p142 = scmp.ne.s32.totalorder %s137, %s139
    %p143 = scmp.eq.s32.totalorder %s19, 0
    %p144 = por %p142, %p143
    %p145 = scmp.ne.s32.totalorder %s137, %s139
    %p146 = scmp.eq.s32.totalorder %s24, 1
    %p147 = por %p145, %p146
    %p148 = scmp.ne.s32.totalorder %s139, %s140
    %p149 = scmp.eq.s32.totalorder %s24, 0
    %p150 = por %p148, %p149
    %p151 = scmp.ne.s32.totalorder %s139, %s140
    %p152 = scmp.eq.s32.totalorder %s25, 1
    %p153 = por %p151, %p152
    %p155 = scmp.ne.s32.totalorder %s140, %s154
    %p156 = scmp.eq.s32.totalorder %s25, 0
    %p157 = por %p155, %p156
    %s159 = sadd.s32 %s158, 1
    %p162 = scmp.eq.s32.totalorder %s19, 1
    %p163 = scmp.ne.s32.totalorder %s158, %s160
    %p164 = scmp.eq.s32.totalorder %s19, 0
    %p165 = por %p163, %p164
    %p166 = scmp.ne.s32.totalorder %s158, %s160
    %p167 = scmp.eq.s32.totalorder %s24, 1
    %p168 = por %p166, %p167
    %p169 = scmp.ne.s32.totalorder %s160, %s161
    %p170 = scmp.eq.s32.totalorder %s24, 0
    %p171 = por %p169, %p170
    %p172 = scmp.ne.s32.totalorder %s160, %s161
    %p173 = scmp.eq.s32.totalorder %s25, 1
    %p174 = por %p172, %p173
    %p176 = scmp.ne.s32.totalorder %s161, %s175
    %p177 = scmp.eq.s32.totalorder %s25, 0
    %p178 = por %p176, %p177
    %s180 = sadd.s32 %s179, 1
    %p183 = scmp.eq.s32.totalorder %s19, 1
    %p184 = scmp.ne.s32.totalorder %s179, %s181
    %p185 = scmp.eq.s32.totalorder %s19, 0
    %p186 = por %p184, %p185
    %p187 = scmp.ne.s32.totalorder %s179, %s181
    %p188 = scmp.eq.s32.totalorder %s24, 1
    %p189 = por %p187, %p188
    %p190 = scmp.ne.s32.totalorder %s181, %s182
    %p191 = scmp.eq.s32.totalorder %s24, 0
    %p192 = por %p190, %p191
    %p193 = scmp.ne.s32.totalorder %s181, %s182
    %p194 = scmp.eq.s32.totalorder %s25, 1
    %p195 = por %p193, %p194
    %p197 = scmp.ne.s32.totalorder %s182, %s196
    %p198 = scmp.eq.s32.totalorder %s25, 0
    %p199 = por %p197, %p198
    %s201 = sadd.s32 %s200, 1
    %p204 = scmp.eq.s32.totalorder %s19, 1
    %p205 = scmp.ne.s32.totalorder %s200, %s202
    %p206 = scmp.eq.s32.totalorder %s19, 0
    %p207 = por %p205, %p206
    %p208 = scmp.ne.s32.totalorder %s200, %s202
    %p209 = scmp.eq.s32.totalorder %s24, 1
    %p210 = por %p208, %p209
    %p211 = scmp.ne.s32.totalorder %s202, %s203
    %p212 = scmp.eq.s32.totalorder %s24, 0
    %p213 = por %p211, %p212
    %p214 = scmp.ne.s32.totalorder %s202, %s203
    %p215 = scmp.eq.s32.totalorder %s25, 1
    %p216 = por %p214, %p215
    %p218 = scmp.ne.s32.totalorder %s203, %s217
    %p219 = scmp.eq.s32.totalorder %s25, 0
    %p220 = por %p218, %p219
    %s222 = sadd.s32 %s221, 1
    %p225 = scmp.eq.s32.totalorder %s19, 1
    %p226 = scmp.ne.s32.totalorder %s221, %s223
    %p227 = scmp.eq.s32.totalorder %s19, 0
    %p228 = por %p226, %p227
    %p229 = scmp.ne.s32.totalorder %s221, %s223
    %p230 = scmp.eq.s32.totalorder %s24, 1
    %p231 = por %p229, %p230
    %p232 = scmp.ne.s32.totalorder %s223, %s224
    %p233 = scmp.eq.s32.totalorder %s24, 0
    %p234 = por %p232, %p233
    %p235 = scmp.ne.s32.totalorder %s223, %s224
    %p236 = scmp.eq.s32.totalorder %s25, 1
    %p237 = por %p235, %p236
    %p239 = scmp.ne.s32.totalorder %s224, %s238
    %p240 = scmp.eq.s32.totalorder %s25, 0
    %p241 = por %p239, %p240
    %s243 = sadd.s32 %s242, 1
    %p246 = scmp.eq.s32.totalorder %s19, 1
    %p247 = scmp.ne.s32.totalorder %s242, %s244
    %p248 = scmp.eq.s32.totalorder %s19, 0
    %p249 = por %p247, %p248
    %p250 = scmp.ne.s32.totalorder %s242, %s244
    %p251 = scmp.eq.s32.totalorder %s24, 1
    %p252 = por %p250, %p251
    %p253 = scmp.ne.s32.totalorder %s244, %s245
    %p254 = scmp.eq.s32.totalorder %s24, 0
    %p255 = por %p253, %p254
    %p256 = scmp.ne.s32.totalorder %s244, %s245
    %p257 = scmp.eq.s32.totalorder %s25, 1
    %p258 = por %p256, %p257
    %p260 = scmp.ne.s32.totalorder %s245, %s259
    %p261 = scmp.eq.s32.totalorder %s25, 0
    %p262 = por %p260, %p261
    %s264 = sadd.s32 %s263, 1
    %p267 = scmp.eq.s32.totalorder %s19, 1
    %p268 = scmp.ne.s32.totalorder %s263, %s265
    %p269 = scmp.eq.s32.totalorder %s19, 0
    %p270 = por %p268, %p269
    %p271 = scmp.ne.s32.totalorder %s263, %s265
    %p272 = scmp.eq.s32.totalorder %s24, 1
    %p273 = por %p271, %p272
    %p274 = scmp.ne.s32.totalorder %s265, %s266
    %p275 = scmp.eq.s32.totalorder %s24, 0
    %p276 = por %p274, %p275
    %p277 = scmp.ne.s32.totalorder %s265, %s266
    %p278 = scmp.eq.s32.totalorder %s25, 1
    %p279 = por %p277, %p278
    %p281 = scmp.ne.s32.totalorder %s266, %s280
    %p282 = scmp.eq.s32.totalorder %s25, 0
    %p283 = por %p281, %p282
    %s285 = sadd.s32 %s284, 1
    %p288 = scmp.eq.s32.totalorder %s19, 1
    %p289 = scmp.ne.s32.totalorder %s284, %s286
    %p290 = scmp.eq.s32.totalorder %s19, 0
    %p291 = por %p289, %p290
    %p292 = scmp.ne.s32.totalorder %s284, %s286
    %p293 = scmp.eq.s32.totalorder %s24, 1
    %p294 = por %p292, %p293
    %p295 = scmp.ne.s32.totalorder %s286, %s287
    %p296 = scmp.eq.s32.totalorder %s24, 0
    %p297 = por %p295, %p296
    %p298 = scmp.ne.s32.totalorder %s286, %s287
    %p299 = scmp.eq.s32.totalorder %s25, 1
    %p300 = por %p298, %p299
    %p302 = scmp.ne.s32.totalorder %s287, %s301
    %p303 = scmp.eq.s32.totalorder %s25, 0
    %p304 = por %p302, %p303
    %s305 = ssub.s32 %s19, %s26
    %p306 = scmp.eq.s32.totalorder %s305, 0
    %s308 = sadd.s32 %s307, 1
    %s309 = scalar_select %p306, %s307, %s308
    %p312 = pneg %p306
    %p313 = scmp.eq.s32.totalorder %s19, 1
    %p314 = por %p312, %p313
    %p315 = scmp.ne.s32.totalorder %s307, %s310
    %p316 = scmp.eq.s32.totalorder %s19, 0
    %p317 = por %p315, %p316
    %p318 = scmp.ne.s32.totalorder %s307, %s310
    %p319 = scmp.eq.s32.totalorder %s24, 1
    %p320 = por %p318, %p319
    %p321 = scmp.ne.s32.totalorder %s310, %s311
    %p322 = scmp.eq.s32.totalorder %s24, 0
    %p323 = por %p321, %p322
    %p324 = scmp.ne.s32.totalorder %s310, %s311
    %p325 = scmp.eq.s32.totalorder %s25, 1
    %p326 = por %p324, %p325
    %p328 = scmp.ne.s32.totalorder %s311, %s327
    %p329 = scmp.eq.s32.totalorder %s25, 0
    %p330 = por %p328, %p329
    %p331 = scmp.le.s32.totalorder 1, %s19
    %p332 = scmp.lt.s32.totalorder %s19, 3
    %p333 = pnand %p331, %p332
    %p334 = pneg %p333
    // Predicated region
    $region9: #{forward_train.9} parent=5 // pred_check
      _
    $region10: #{forward_train.9} parent=5 // pred_check_branch
      %336 = sbr.rel (%p333) target = $region12
    $region11: #{forward_train.9} parent=5 // pred_region
      %s337 = ssub.s32 %s19, 1
      // Predicated region
      $region13: #{forward_train.9} parent=11 // pred_check
        %p338 = pneg %p66
      $region14: #{forward_train.9} parent=11 // pred_check_branch
        %340 = sbr.rel (%p338) target = $region16
      $region15: #{forward_train.9} parent=11 // pred_region
        _
      $region16: #{forward_train.9} parent=11 // pred_fallthru
        _
      // Predicated region
      $region17: #{forward_train.9} parent=11 // pred_check
        %p341 = pneg %p87
      $region18: #{forward_train.9} parent=11 // pred_check_branch
        %343 = sbr.rel (%p341) target = $region20
      $region19: #{forward_train.9} parent=11 // pred_region
        _
      $region20: #{forward_train.9} parent=11 // pred_fallthru
        _
      // Predicated region
      $region21: #{forward_train.9} parent=11 // pred_check
        %p344 = pneg %p108
      $region22: #{forward_train.9} parent=11 // pred_check_branch
        %346 = sbr.rel (%p344) target = $region24
      $region23: #{forward_train.9} parent=11 // pred_region
        _
      $region24: #{forward_train.9} parent=11 // pred_fallthru
        _
      // Predicated region
      $region25: #{forward_train.9} parent=11 // pred_check
        %p347 = pneg %p129
      $region26: #{forward_train.9} parent=11 // pred_check_branch
        %349 = sbr.rel (%p347) target = $region28
      $region27: #{forward_train.9} parent=11 // pred_region
        _
      $region28: #{forward_train.9} parent=11 // pred_fallthru
        _
      // Predicated region
      $region29: #{forward_train.9} parent=11 // pred_check
        %p350 = pneg %p150
      $region30: #{forward_train.9} parent=11 // pred_check_branch
        %352 = sbr.rel (%p350) target = $region32
      $region31: #{forward_train.9} parent=11 // pred_region
        _
      $region32: #{forward_train.9} parent=11 // pred_fallthru
        _
      // Predicated region
      $region33: #{forward_train.9} parent=11 // pred_check
        %p353 = pneg %p171
      $region34: #{forward_train.9} parent=11 // pred_check_branch
        %355 = sbr.rel (%p353) target = $region36
      $region35: #{forward_train.9} parent=11 // pred_region
        _
      $region36: #{forward_train.9} parent=11 // pred_fallthru
        _
      // Predicated region
      $region37: #{forward_train.9} parent=11 // pred_check
        %p356 = pneg %p192
      $region38: #{forward_train.9} parent=11 // pred_check_branch
        %358 = sbr.rel (%p356) target = $region40
      $region39: #{forward_train.9} parent=11 // pred_region
        _
      $region40: #{forward_train.9} parent=11 // pred_fallthru
        _
      // Predicated region
      $region41: #{forward_train.9} parent=11 // pred_check
        %p359 = pneg %p213
      $region42: #{forward_train.9} parent=11 // pred_check_branch
        %361 = sbr.rel (%p359) target = $region44
      $region43: #{forward_train.9} parent=11 // pred_region
        _
      $region44: #{forward_train.9} parent=11 // pred_fallthru
        _
      // Predicated region
      $region45: #{forward_train.9} parent=11 // pred_check
        %p362 = pneg %p234
      $region46: #{forward_train.9} parent=11 // pred_check_branch
        %364 = sbr.rel (%p362) target = $region48
      $region47: #{forward_train.9} parent=11 // pred_region
        _
      $region48: #{forward_train.9} parent=11 // pred_fallthru
        _
      // Predicated region
      $region49: #{forward_train.9} parent=11 // pred_check
        %p365 = pneg %p255
      $region50: #{forward_train.9} parent=11 // pred_check_branch
        %367 = sbr.rel (%p365) target = $region52
      $region51: #{forward_train.9} parent=11 // pred_region
        _
      $region52: #{forward_train.9} parent=11 // pred_fallthru
        _
      // Predicated region
      $region53: #{forward_train.9} parent=11 // pred_check
        %p368 = pneg %p276
      $region54: #{forward_train.9} parent=11 // pred_check_branch
        %370 = sbr.rel (%p368) target = $region56
      $region55: #{forward_train.9} parent=11 // pred_region
        _
      $region56: #{forward_train.9} parent=11 // pred_fallthru
        _
      // Predicated region
      $region57: #{forward_train.9} parent=11 // pred_check
        %p371 = pneg %p297
      $region58: #{forward_train.9} parent=11 // pred_check_branch
        %373 = sbr.rel (%p371) target = $region60
      $region59: #{forward_train.9} parent=11 // pred_region
        _
      $region60: #{forward_train.9} parent=11 // pred_fallthru
        _
    $region12: #{forward_train.9} parent=5 // pred_fallthru
      _
    %p374 = scmp.lt.s32.totalorder %s19, 2
    // Predicated region
    $region61: #{forward_train.9} parent=5 // pred_check
      %p375 = pneg %p374
    $region62: #{forward_train.9} parent=5 // pred_check_branch
      %377 = sbr.rel (%p375) target = $region64
    $region63: #{forward_train.9} parent=5 // pred_region
      // Predicated region
      $region65: #{forward_train.9} parent=63 // pred_check
        %p378 = pneg %p39
      $region66: #{forward_train.9} parent=63 // pred_check_branch
        %380 = sbr.rel (%p378) target = $region68
      $region67: #{forward_train.9} parent=63 // pred_region
        %p381 = scmp.lt.s32.totalorder %s19, 1
        %s382 = scalar_select %p381, %s19, 1
        %s383 = smul.addr %s382, 2
        %s384 = smul.addr %s383, 8
        %s385 = scalar_lea.vmem %s0, %s384
      $region68: #{forward_train.9} parent=63 // pred_fallthru
        _
    $region64: #{forward_train.9} parent=5 // pred_fallthru
      _
    %p386 = scmp.le.s32.totalorder 1, %s19
    %p387 = scmp.lt.s32.totalorder %s19, 3
    %p388 = pnand %p386, %p387
    %p389 = pneg %p388
    // Predicated region
    $region69: #{forward_train.9} parent=5 // pred_check
      _
    $region70: #{forward_train.9} parent=5 // pred_check_branch
      %391 = sbr.rel (%p388) target = $region72
    $region71: #{forward_train.9} parent=5 // pred_region
      %s392 = ssub.s32 %s19, 1
      %p393 = scmp.lt.s32.totalorder %s24, 1
      %s394 = scalar_select %p393, %s24, 1
      %s395 = smul.addr %s394, 2
      %s396 = smul.addr %s395, 8
      %s397 = scalar_lea.vmem %s0, %s396
      %p398 = pneg %p45
      %p399 = pneg %p42
      %p400 = pneg %p66
      %p401 = pneg %p63
      %p402 = pneg %p87
      %p403 = pneg %p84
      %p404 = pneg %p108
      %p405 = pneg %p105
      %p406 = pneg %p129
      %p407 = pneg %p126
      %p408 = pneg %p150
      %p409 = pneg %p147
      %p410 = pneg %p171
      %p411 = pneg %p168
      %p412 = pneg %p192
      %p413 = pneg %p189
      %p414 = pneg %p213
      %p415 = pneg %p210
      %p416 = pneg %p234
      %p417 = pneg %p231
      %p418 = pneg %p255
      %p419 = pneg %p252
      %p420 = pneg %p276
      %p421 = pneg %p273
      %p422 = pneg %p297
      %p423 = pneg %p294
      %p424 = pneg %p323
      %p425 = pneg %p320
      %p426 = scmp.lt.s32.totalorder %s24, 1
      %s427 = scalar_select %p426, %s24, 1
      %s428 = smul.addr %s427, 2
      %s429 = smul.addr %s428, 8
      %s430 = scalar_lea.vmem %s13, %s429
      %p431 = scmp.lt.s32.totalorder %s24, 1
      %s432 = scalar_select %p431, %s24, 1
      %s433 = smul.addr %s432, 2
      %s434 = smul.addr %s433, 8
      %s435 = scalar_lea.vmem %s0, %s434
      %p436 = scmp.lt.s32.totalorder %s24, 1
      %s437 = scalar_select %p436, %s24, 1
      %s438 = smul.addr %s437, 2
      %s439 = smul.addr %s438, 8
      %s440 = scalar_lea.vmem %s13, %s439
      %v441 = vld [vmem:[%s435] sm:$0xff]
      %v442 = vld [vmem:[%s435 + $0x8] sm:$0xf]
      %v443 = vld [vmem:[%s1] sm:$0xff]
      %v444 = vld [vmem:[%s1 + $0x8] sm:$0xff]
      %v445 = vld [vmem:[%s1 + $0x10] sm:$0xff]
      %v446 = vld [vmem:[%s1 + $0x18] sm:$0xff]
      %v447 = vld [vmem:[%s2] sm:$0x1]
      %v449 = vlaneseq
      %v450 = vshrl.u32 %v449, 7
      %v451 = vsub.s32 0, %v450
      %v452 = vrot.slane %v447, %v451
      %vm454 = vcmask 261120
      %v456 = vsel %vm454, %v441, 0
      %v459 = vsel %vm454, %v442, 0
      %461 = vmatprep.subr.mxu0 0.0
      %462 = vmatpush1.msra.mxu0 0.0
      %463 = vmatprep.subr.mxu0 0.0
      %464 = vmatpush1.msra.mxu0 0.0
      %465 = vmatprep.subr.mxu0 0.0
      %466 = vmatpush1.msra.mxu0 0.0
      %467 = vmatprep.subr.mxu0 0.0
      %468 = vmatpush1.msra.mxu0 0.0
      %469 = vmatprep.subr.mxu0 0.0
      %470 = vmatpush1.msra.mxu0 0.0
      %471 = vmatprep.subr.mxu0 0.0
      %472 = vmatpush1.msra.mxu0 0.0
      %473 = vmatprep.subr.mxu0 0.0
      %474 = vmatpush1.msra.mxu0 0.0
      %475 = vmatprep.subr.mxu0 0.0
      %476 = vmatpush1.msra.mxu0 0.0
      %477 = vmatprep.subr.mxu0 0.0
      %478 = vmatpush1.msra.mxu0 0.0
      %479 = vmatprep.subr.mxu0 0.0
      %480 = vmatpush1.msra.mxu0 0.0
      %481 = vmatprep.subr.mxu0 0.0
      %482 = vmatpush1.msra.mxu0 0.0
      %483 = vmatprep.subr.mxu0 0.0
      %484 = vmatpush1.msra.mxu0 0.0
      %485 = vmatprep.subr.mxu0 0.0
      %486 = vmatpush1.msra.mxu0 %v446
      %487 = vmatprep.subr.mxu0 0.0
      %488 = vmatpush1.msra.mxu0 %v445
      %489 = vmatprep.subr.mxu0 0.0
      %490 = vmatpush1.msra.mxu0 %v444
      %491 = vmatprep.subr.mxu0 0.0
      %492 = vmatpush1.msra.mxu0 %v443
      %493 = vmatprep.subr.mxu0 0.0
      %494 = vmatpush2.msra.mxu0 0.0
      %495 = vmatprep.subr.mxu0 0.0
      %496 = vmatpush2.msra.mxu0 0.0
      %497 = vmatprep.subr.mxu0 0.0
      %498 = vmatpush2.msra.mxu0 0.0
      %499 = vmatprep.subr.mxu0 0.0
      %500 = vmatpush2.msra.mxu0 0.0
      %501 = vmatprep.subr.mxu0 0.0
      %502 = vmatpush2.msra.mxu0 0.0
      %503 = vmatprep.subr.mxu0 0.0
      %504 = vmatpush2.msra.mxu0 0.0
      %505 = vmatprep.subr.mxu0 0.0
      %506 = vmatpush2.msra.mxu0 0.0
      %507 = vmatprep.subr.mxu0 0.0
      %508 = vmatpush2.msra.mxu0 0.0
      %509 = vmatprep.subr.mxu0 0.0
      %510 = vmatpush2.msra.mxu0 0.0
      %511 = vmatprep.subr.mxu0 0.0
      %512 = vmatpush2.msra.mxu0 0.0
      %513 = vmatprep.subr.mxu0 0.0
      %514 = vmatpush2.msra.mxu0 0.0
      %515 = vmatprep.subr.mxu0 0.0
      %516 = vmatpush2.msra.mxu0 0.0
      %517 = vmatprep.subr.mxu0 0.0
      %518 = vmatpush2.msra.mxu0 0.0
      %519 = vmatprep.subr.mxu0 0.0
      %520 = vmatpush2.msra.mxu0 0.0
      %521 = vmatprep.subr.mxu0 0.0
      %522 = vmatpush2.msra.mxu0 0.0
      %523 = vmatprep.subr.mxu0 0.0
      %524 = vmatpush2.msra.mxu0 0.0
      %525 = vmatprep.mubr.f32.mxu0 0.0
      %526 = vmatmul.mubr.f32.gmra.mxu0 %v456
      %v527 = vpop.f32.mrf.mxu0
      %v528 = vadd.f32 %v452, %v527
      %v529 = vpop.f32.mrf.mxu0
      %530 = vmatprep.mubr.f32.mxu0 0.0
      %531 = vmatmul.mubr.f32.gmra.mxu0 %v459
      %v532 = vpop.f32.mrf.mxu0
      %v533 = vadd.f32 %v452, %v532
      %v534 = vpop.f32.mrf.mxu0
      %535 = vdwg.mxu0
      %538 = vrot.lane.b32.xlu0 %v528, 96
      %v539 = vpop.permute.xlu0 %538
      %540 = vrot.lane.b32.xlu0 %v533, 96
      %v541 = vpop.permute.xlu0 %540
      %vm542 = vcmask 64512
      %v543 = vsel %vm542, %v528, 0
      %v545 = vsel %vm542, %v533, 0
      %v547 = vsel %vm542, %v539, 0
      %v549 = vsel %vm542, %v541, 0
      %551 = vmatprep.subr.mxu0 0.0
      %552 = vmatpush1.xpose.msra.mxu0 0.0
      %553 = vmatprep.subr.mxu0 0.0
      %554 = vmatpush1.xpose.msra.mxu0 0.0
      %555 = vmatprep.subr.mxu0 0.0
      %556 = vmatpush1.xpose.msra.mxu0 0.0
      %557 = vmatprep.subr.mxu0 0.0
      %558 = vmatpush1.xpose.msra.mxu0 0.0
      %559 = vmatprep.subr.mxu0 0.0
      %560 = vmatpush1.xpose.msra.mxu0 0.0
      %561 = vmatprep.subr.mxu0 0.0
      %562 = vmatpush1.xpose.msra.mxu0 0.0
      %563 = vmatprep.subr.mxu0 0.0
      %564 = vmatpush1.xpose.msra.mxu0 0.0
      %565 = vmatprep.subr.mxu0 0.0
      %566 = vmatpush1.xpose.msra.mxu0 0.0
      %567 = vmatprep.subr.mxu0 0.0
      %568 = vmatpush1.xpose.msra.mxu0 0.0
      %569 = vmatprep.subr.mxu0 0.0
      %570 = vmatpush1.xpose.msra.mxu0 0.0
      %571 = vmatprep.subr.mxu0 0.0
      %572 = vmatpush1.xpose.msra.mxu0 0.0
      %573 = vmatprep.subr.mxu0 0.0
      %574 = vmatpush1.xpose.msra.mxu0 0.0
      %575 = vmatprep.subr.mxu0 0.0
      %576 = vmatpush1.xpose.msra.mxu0 0.0
      %577 = vmatprep.subr.mxu0 0.0
      %578 = vmatpush1.xpose.msra.mxu0 0.0
      %579 = vmatprep.subr.mxu0 0.0
      %580 = vmatpush1.xpose.msra.mxu0 %v549
      %581 = vmatprep.subr.mxu0 0.0
      %582 = vmatpush1.xpose.msra.mxu0 %v547
      %583 = vmatprep.subr.mxu0 0.0
      %584 = vmatpush2.xpose.msra.mxu0 0.0
      %585 = vmatprep.subr.mxu0 0.0
      %586 = vmatpush2.xpose.msra.mxu0 0.0
      %587 = vmatprep.subr.mxu0 0.0
      %588 = vmatpush2.xpose.msra.mxu0 0.0
      %589 = vmatprep.subr.mxu0 0.0
      %590 = vmatpush2.xpose.msra.mxu0 0.0
      %591 = vmatprep.subr.mxu0 0.0
      %592 = vmatpush2.xpose.msra.mxu0 0.0
      %593 = vmatprep.subr.mxu0 0.0
      %594 = vmatpush2.xpose.msra.mxu0 0.0
      %595 = vmatprep.subr.mxu0 0.0
      %596 = vmatpush2.xpose.msra.mxu0 0.0
      %597 = vmatprep.subr.mxu0 0.0
      %598 = vmatpush2.xpose.msra.mxu0 0.0
      %599 = vmatprep.subr.mxu0 0.0
      %600 = vmatpush2.xpose.msra.mxu0 0.0
      %601 = vmatprep.subr.mxu0 0.0
      %602 = vmatpush2.xpose.msra.mxu0 0.0
      %603 = vmatprep.subr.mxu0 0.0
      %604 = vmatpush2.xpose.msra.mxu0 0.0
      %605 = vmatprep.subr.mxu0 0.0
      %606 = vmatpush2.xpose.msra.mxu0 0.0
      %607 = vmatprep.subr.mxu0 0.0
      %608 = vmatpush2.xpose.msra.mxu0 0.0
      %609 = vmatprep.subr.mxu0 0.0
      %610 = vmatpush2.xpose.msra.mxu0 0.0
      %611 = vmatprep.subr.mxu0 0.0
      %612 = vmatpush2.xpose.msra.mxu0 0.0
      %613 = vmatprep.subr.mxu0 0.0
      %614 = vmatpush2.xpose.msra.mxu0 0.0
      %615 = vmatprep.mubr.f32.mxu0 0.0
      %616 = vmatmul.mubr.f32.gmra.mxu0 %v543
      %v617 = vpop.f32.mrf.mxu0
      %v618 = vadd.f32 0.0, %v617
      %v619 = vpop.f32.mrf.mxu0
      %620 = vmatprep.mubr.f32.mxu0 0.0
      %621 = vmatmul.mubr.f32.gmra.mxu0 %v545
      %v622 = vpop.f32.mrf.mxu0
      %v623 = vadd.f32 0.0, %v622
      %v624 = vpop.f32.mrf.mxu0
      %625 = vdwg.mxu0
      %v626 = vmul.f32 %v618, 0.35355338
      %v627 = vmul.f32 %v623, 0.35355338
      %vm628 = vcmask 97280
      %v629 = vsel %vm628, %v626, -inf
      %630 = vmax.xlane.f32.xlu0 %v629
      %v631 = vpop.xlane.xlu0 %630
      %vm632 = vcmask 93184
      %v633 = vsel %vm632, %v627, -inf
      %634 = vmax.xlane.f32.xlu0 %v633
      %v635 = vpop.xlane.xlu0 %634
      %v636 = vsub.f32 %v626, %v631
      %v637 = vsub.f32 %v627, %v635
      %v638 = vmul.f32 %v636, 1.442695
      %v639 = vpow.pop %v638
      %v640 = vmul.f32 %v637, 1.442695
      %v641 = vpow.pop %v640
      %v642 = vsel %vm628, %v639, 0.0
      %643 = vadd.xlane.f32.xlu0 %v642
      %v644 = vpop.xlane.xlu0 %643
      %v645 = vsel %vm632, %v641, 0.0
      %646 = vadd.xlane.f32.xlu0 %v645
      %v647 = vpop.xlane.xlu0 %646
      %v648 = vrcp.pop %v644
      %v649 = vrcp.pop %v647
      %v650 = vmul.f32 %v639, %v648
      %v651 = vmul.f32 %v641, %v649
      %652 = vrot.lane.b32.xlu0 %v528, 64
      %v653 = vpop.permute.xlu0 %652
      %654 = vrot.lane.b32.xlu0 %v533, 64
      %v655 = vpop.permute.xlu0 %654
      %v658 = vsel %vm628, %v650, 0
      %v661 = vsel %vm628, %v651, 0
      %vm663 = vcmask 1043456
      %v664 = vsel %vm663, %v655, 0
      %666 = vmatprep.subr.mxu0 0.0
      %667 = vmatpush1.msra.mxu0 0.0
      %668 = vmatprep.subr.mxu0 0.0
      %669 = vmatpush1.msra.mxu0 0.0
      %670 = vmatprep.subr.mxu0 0.0
      %671 = vmatpush1.msra.mxu0 0.0
      %672 = vmatprep.subr.mxu0 0.0
      %673 = vmatpush1.msra.mxu0 0.0
      %674 = vmatprep.subr.mxu0 0.0
      %675 = vmatpush1.msra.mxu0 0.0
      %676 = vmatprep.subr.mxu0 0.0
      %677 = vmatpush1.msra.mxu0 0.0
      %678 = vmatprep.subr.mxu0 0.0
      %679 = vmatpush1.msra.mxu0 0.0
      %680 = vmatprep.subr.mxu0 0.0
      %681 = vmatpush1.msra.mxu0 0.0
      %682 = vmatprep.subr.mxu0 0.0
      %683 = vmatpush1.msra.mxu0 0.0
      %684 = vmatprep.subr.mxu0 0.0
      %685 = vmatpush1.msra.mxu0 0.0
      %686 = vmatprep.subr.mxu0 0.0
      %687 = vmatpush1.msra.mxu0 0.0
      %688 = vmatprep.subr.mxu0 0.0
      %689 = vmatpush1.msra.mxu0 0.0
      %690 = vmatprep.subr.mxu0 0.0
      %691 = vmatpush1.msra.mxu0 0.0
      %692 = vmatprep.subr.mxu0 0.0
      %693 = vmatpush1.msra.mxu0 0.0
      %694 = vmatprep.subr.mxu0 0.0
      %695 = vmatpush1.msra.mxu0 %v664
      %696 = vmatprep.subr.mxu0 0.0
      %697 = vmatpush1.msra.mxu0 %v653
      %698 = vmatprep.subr.mxu0 0.0
      %699 = vmatpush2.msra.mxu0 0.0
      %700 = vmatprep.subr.mxu0 0.0
      %701 = vmatpush2.msra.mxu0 0.0
      %702 = vmatprep.subr.mxu0 0.0
      %703 = vmatpush2.msra.mxu0 0.0
      %704 = vmatprep.subr.mxu0 0.0
      %705 = vmatpush2.msra.mxu0 0.0
      %706 = vmatprep.subr.mxu0 0.0
      %707 = vmatpush2.msra.mxu0 0.0
      %708 = vmatprep.subr.mxu0 0.0
      %709 = vmatpush2.msra.mxu0 0.0
      %710 = vmatprep.subr.mxu0 0.0
      %711 = vmatpush2.msra.mxu0 0.0
      %712 = vmatprep.subr.mxu0 0.0
      %713 = vmatpush2.msra.mxu0 0.0
      %714 = vmatprep.subr.mxu0 0.0
      %715 = vmatpush2.msra.mxu0 0.0
      %716 = vmatprep.subr.mxu0 0.0
      %717 = vmatpush2.msra.mxu0 0.0
      %718 = vmatprep.subr.mxu0 0.0
      %719 = vmatpush2.msra.mxu0 0.0
      %720 = vmatprep.subr.mxu0 0.0
      %721 = vmatpush2.msra.mxu0 0.0
      %722 = vmatprep.subr.mxu0 0.0
      %723 = vmatpush2.msra.mxu0 0.0
      %724 = vmatprep.subr.mxu0 0.0
      %725 = vmatpush2.msra.mxu0 0.0
      %726 = vmatprep.subr.mxu0 0.0
      %727 = vmatpush2.msra.mxu0 0.0
      %728 = vmatprep.subr.mxu0 0.0
      %729 = vmatpush2.msra.mxu0 0.0
      %730 = vmatprep.mubr.f32.mxu0 0.0
      %731 = vmatmul.mubr.f32.gmra.mxu0 %v658
      %v732 = vpop.f32.mrf.mxu0
      %v733 = vadd.f32 0.0, %v732
      %v734 = vpop.f32.mrf.mxu0
      %735 = vmatprep.mubr.f32.mxu0 0.0
      %736 = vmatmul.mubr.f32.gmra.mxu0 %v661
      %v737 = vpop.f32.mrf.mxu0
      %v738 = vadd.f32 0.0, %v737
      %v739 = vpop.f32.mrf.mxu0
      %740 = vdwg.mxu0
      %741 = vrot.lane.b32.xlu0 %v528, 120
      %v742 = vpop.permute.xlu0 %741
      %743 = vrot.lane.b32.xlu0 %v533, 120
      %v744 = vpop.permute.xlu0 %743
      %745 = vrot.lane.b32.xlu0 %v528, 88
      %v746 = vpop.permute.xlu0 %745
      %747 = vrot.lane.b32.xlu0 %v533, 88
      %v748 = vpop.permute.xlu0 %747
      %v749 = vsel %vm542, %v742, 0
      %v751 = vsel %vm542, %v744, 0
      %v753 = vsel %vm542, %v746, 0
      %v755 = vsel %vm542, %v748, 0
      %757 = vmatprep.subr.mxu0 0.0
      %758 = vmatpush1.xpose.msra.mxu0 0.0
      %759 = vmatprep.subr.mxu0 0.0
      %760 = vmatpush1.xpose.msra.mxu0 0.0
      %761 = vmatprep.subr.mxu0 0.0
      %762 = vmatpush1.xpose.msra.mxu0 0.0
      %763 = vmatprep.subr.mxu0 0.0
      %764 = vmatpush1.xpose.msra.mxu0 0.0
      %765 = vmatprep.subr.mxu0 0.0
      %766 = vmatpush1.xpose.msra.mxu0 0.0
      %767 = vmatprep.subr.mxu0 0.0
      %768 = vmatpush1.xpose.msra.mxu0 0.0
      %769 = vmatprep.subr.mxu0 0.0
      %770 = vmatpush1.xpose.msra.mxu0 0.0
      %771 = vmatprep.subr.mxu0 0.0
      %772 = vmatpush1.xpose.msra.mxu0 0.0
      %773 = vmatprep.subr.mxu0 0.0
      %774 = vmatpush1.xpose.msra.mxu0 0.0
      %775 = vmatprep.subr.mxu0 0.0
      %776 = vmatpush1.xpose.msra.mxu0 0.0
      %777 = vmatprep.subr.mxu0 0.0
      %778 = vmatpush1.xpose.msra.mxu0 0.0
      %779 = vmatprep.subr.mxu0 0.0
      %780 = vmatpush1.xpose.msra.mxu0 0.0
      %781 = vmatprep.subr.mxu0 0.0
      %782 = vmatpush1.xpose.msra.mxu0 0.0
      %783 = vmatprep.subr.mxu0 0.0
      %784 = vmatpush1.xpose.msra.mxu0 0.0
      %785 = vmatprep.subr.mxu0 0.0
      %786 = vmatpush1.xpose.msra.mxu0 %v755
      %787 = vmatprep.subr.mxu0 0.0
      %788 = vmatpush1.xpose.msra.mxu0 %v753
      %789 = vmatprep.subr.mxu0 0.0
      %790 = vmatpush2.xpose.msra.mxu0 0.0
      %791 = vmatprep.subr.mxu0 0.0
      %792 = vmatpush2.xpose.msra.mxu0 0.0
      %793 = vmatprep.subr.mxu0 0.0
      %794 = vmatpush2.xpose.msra.mxu0 0.0
      %795 = vmatprep.subr.mxu0 0.0
      %796 = vmatpush2.xpose.msra.mxu0 0.0
      %797 = vmatprep.subr.mxu0 0.0
      %798 = vmatpush2.xpose.msra.mxu0 0.0
      %799 = vmatprep.subr.mxu0 0.0
      %800 = vmatpush2.xpose.msra.mxu0 0.0
      %801 = vmatprep.subr.mxu0 0.0
      %802 = vmatpush2.xpose.msra.mxu0 0.0
      %803 = vmatprep.subr.mxu0 0.0
      %804 = vmatpush2.xpose.msra.mxu0 0.0
      %805 = vmatprep.subr.mxu0 0.0
      %806 = vmatpush2.xpose.msra.mxu0 0.0
      %807 = vmatprep.subr.mxu0 0.0
      %808 = vmatpush2.xpose.msra.mxu0 0.0
      %809 = vmatprep.subr.mxu0 0.0
      %810 = vmatpush2.xpose.msra.mxu0 0.0
      %811 = vmatprep.subr.mxu0 0.0
      %812 = vmatpush2.xpose.msra.mxu0 0.0
      %813 = vmatprep.subr.mxu0 0.0
      %814 = vmatpush2.xpose.msra.mxu0 0.0
      %815 = vmatprep.subr.mxu0 0.0
      %816 = vmatpush2.xpose.msra.mxu0 0.0
      %817 = vmatprep.subr.mxu0 0.0
      %818 = vmatpush2.xpose.msra.mxu0 0.0
      %819 = vmatprep.subr.mxu0 0.0
      %820 = vmatpush2.xpose.msra.mxu0 0.0
      %821 = vmatprep.mubr.f32.mxu0 0.0
      %822 = vmatmul.mubr.f32.gmra.mxu0 %v749
      %v823 = vpop.f32.mrf.mxu0
      %v824 = vadd.f32 0.0, %v823
      %v825 = vpop.f32.mrf.mxu0
      %826 = vmatprep.mubr.f32.mxu0 0.0
      %827 = vmatmul.mubr.f32.gmra.mxu0 %v751
      %v828 = vpop.f32.mrf.mxu0
      %v829 = vadd.f32 0.0, %v828
      %v830 = vpop.f32.mrf.mxu0
      %831 = vdwg.mxu0
      %v832 = vmul.f32 %v824, 0.35355338
      %v833 = vmul.f32 %v829, 0.35355338
      %v834 = vsel %vm628, %v832, -inf
      %835 = vmax.xlane.f32.xlu0 %v834
      %v836 = vpop.xlane.xlu0 %835
      %v837 = vsel %vm632, %v833, -inf
      %838 = vmax.xlane.f32.xlu0 %v837
      %v839 = vpop.xlane.xlu0 %838
      %v840 = vsub.f32 %v832, %v836
      %v841 = vsub.f32 %v833, %v839
      %v842 = vmul.f32 %v840, 1.442695
      %v843 = vpow.pop %v842
      %v844 = vmul.f32 %v841, 1.442695
      %v845 = vpow.pop %v844
      %v846 = vsel %vm628, %v843, 0.0
      %847 = vadd.xlane.f32.xlu0 %v846
      %v848 = vpop.xlane.xlu0 %847
      %v849 = vsel %vm632, %v845, 0.0
      %850 = vadd.xlane.f32.xlu0 %v849
      %v851 = vpop.xlane.xlu0 %850
      %v852 = vrcp.pop %v848
      %v853 = vrcp.pop %v851
      %v854 = vmul.f32 %v843, %v852
      %v855 = vmul.f32 %v845, %v853
      %856 = vrot.lane.b32.xlu0 %v528, 56
      %v857 = vpop.permute.xlu0 %856
      %858 = vrot.lane.b32.xlu0 %v533, 56
      %v859 = vpop.permute.xlu0 %858
      %v862 = vsel %vm628, %v854, 0
      %v865 = vsel %vm628, %v855, 0
      %v867 = vsel %vm663, %v859, 0
      %869 = vmatprep.subr.mxu0 0.0
      %870 = vmatpush1.msra.mxu0 0.0
      %871 = vmatprep.subr.mxu0 0.0
      %872 = vmatpush1.msra.mxu0 0.0
      %873 = vmatprep.subr.mxu0 0.0
      %874 = vmatpush1.msra.mxu0 0.0
      %875 = vmatprep.subr.mxu0 0.0
      %876 = vmatpush1.msra.mxu0 0.0
      %877 = vmatprep.subr.mxu0 0.0
      %878 = vmatpush1.msra.mxu0 0.0
      %879 = vmatprep.subr.mxu0 0.0
      %880 = vmatpush1.msra.mxu0 0.0
      %881 = vmatprep.subr.mxu0 0.0
      %882 = vmatpush1.msra.mxu0 0.0
      %883 = vmatprep.subr.mxu0 0.0
      %884 = vmatpush1.msra.mxu0 0.0
      %885 = vmatprep.subr.mxu0 0.0
      %886 = vmatpush1.msra.mxu0 0.0
      %887 = vmatprep.subr.mxu0 0.0
      %888 = vmatpush1.msra.mxu0 0.0
      %889 = vmatprep.subr.mxu0 0.0
      %890 = vmatpush1.msra.mxu0 0.0
      %891 = vmatprep.subr.mxu0 0.0
      %892 = vmatpush1.msra.mxu0 0.0
      %893 = vmatprep.subr.mxu0 0.0
      %894 = vmatpush1.msra.mxu0 0.0
      %895 = vmatprep.subr.mxu0 0.0
      %896 = vmatpush1.msra.mxu0 0.0
      %897 = vmatprep.subr.mxu0 0.0
      %898 = vmatpush1.msra.mxu0 %v867
      %899 = vmatprep.subr.mxu0 0.0
      %900 = vmatpush1.msra.mxu0 %v857
      %901 = vmatprep.subr.mxu0 0.0
      %902 = vmatpush2.msra.mxu0 0.0
      %903 = vmatprep.subr.mxu0 0.0
      %904 = vmatpush2.msra.mxu0 0.0
      %905 = vmatprep.subr.mxu0 0.0
      %906 = vmatpush2.msra.mxu0 0.0
      %907 = vmatprep.subr.mxu0 0.0
      %908 = vmatpush2.msra.mxu0 0.0
      %909 = vmatprep.subr.mxu0 0.0
      %910 = vmatpush2.msra.mxu0 0.0
      %911 = vmatprep.subr.mxu0 0.0
      %912 = vmatpush2.msra.mxu0 0.0
      %913 = vmatprep.subr.mxu0 0.0
      %914 = vmatpush2.msra.mxu0 0.0
      %915 = vmatprep.subr.mxu0 0.0
      %916 = vmatpush2.msra.mxu0 0.0
      %917 = vmatprep.subr.mxu0 0.0
      %918 = vmatpush2.msra.mxu0 0.0
      %919 = vmatprep.subr.mxu0 0.0
      %920 = vmatpush2.msra.mxu0 0.0
      %921 = vmatprep.subr.mxu0 0.0
      %922 = vmatpush2.msra.mxu0 0.0
      %923 = vmatprep.subr.mxu0 0.0
      %924 = vmatpush2.msra.mxu0 0.0
      %925 = vmatprep.subr.mxu0 0.0
      %926 = vmatpush2.msra.mxu0 0.0
      %927 = vmatprep.subr.mxu0 0.0
      %928 = vmatpush2.msra.mxu0 0.0
      %929 = vmatprep.subr.mxu0 0.0
      %930 = vmatpush2.msra.mxu0 0.0
      %931 = vmatprep.subr.mxu0 0.0
      %932 = vmatpush2.msra.mxu0 0.0
      %933 = vmatprep.mubr.f32.mxu0 0.0
      %934 = vmatmul.mubr.f32.gmra.mxu0 %v862
      %v935 = vpop.f32.mrf.mxu0
      %v936 = vadd.f32 0.0, %v935
      %v937 = vpop.f32.mrf.mxu0
      %938 = vmatprep.mubr.f32.mxu0 0.0
      %939 = vmatmul.mubr.f32.gmra.mxu0 %v865
      %v940 = vpop.f32.mrf.mxu0
      %v941 = vadd.f32 0.0, %v940
      %v942 = vpop.f32.mrf.mxu0
      %943 = vdwg.mxu0
      %944 = vrot.lane.b32.xlu0 %v528, 112
      %v945 = vpop.permute.xlu0 %944
      %946 = vrot.lane.b32.xlu0 %v533, 112
      %v947 = vpop.permute.xlu0 %946
      %948 = vrot.lane.b32.xlu0 %v528, 80
      %v949 = vpop.permute.xlu0 %948
      %950 = vrot.lane.b32.xlu0 %v533, 80
      %v951 = vpop.permute.xlu0 %950
      %v952 = vsel %vm542, %v945, 0
      %v954 = vsel %vm542, %v947, 0
      %v956 = vsel %vm542, %v949, 0
      %v958 = vsel %vm542, %v951, 0
      %960 = vmatprep.subr.mxu0 0.0
      %961 = vmatpush1.xpose.msra.mxu0 0.0
      %962 = vmatprep.subr.mxu0 0.0
      %963 = vmatpush1.xpose.msra.mxu0 0.0
      %964 = vmatprep.subr.mxu0 0.0
      %965 = vmatpush1.xpose.msra.mxu0 0.0
      %966 = vmatprep.subr.mxu0 0.0
      %967 = vmatpush1.xpose.msra.mxu0 0.0
      %968 = vmatprep.subr.mxu0 0.0
      %969 = vmatpush1.xpose.msra.mxu0 0.0
      %970 = vmatprep.subr.mxu0 0.0
      %971 = vmatpush1.xpose.msra.mxu0 0.0
      %972 = vmatprep.subr.mxu0 0.0
      %973 = vmatpush1.xpose.msra.mxu0 0.0
      %974 = vmatprep.subr.mxu0 0.0
      %975 = vmatpush1.xpose.msra.mxu0 0.0
      %976 = vmatprep.subr.mxu0 0.0
      %977 = vmatpush1.xpose.msra.mxu0 0.0
      %978 = vmatprep.subr.mxu0 0.0
      %979 = vmatpush1.xpose.msra.mxu0 0.0
      %980 = vmatprep.subr.mxu0 0.0
      %981 = vmatpush1.xpose.msra.mxu0 0.0
      %982 = vmatprep.subr.mxu0 0.0
      %983 = vmatpush1.xpose.msra.mxu0 0.0
      %984 = vmatprep.subr.mxu0 0.0
      %985 = vmatpush1.xpose.msra.mxu0 0.0
      %986 = vmatprep.subr.mxu0 0.0
      %987 = vmatpush1.xpose.msra.mxu0 0.0
      %988 = vmatprep.subr.mxu0 0.0
      %989 = vmatpush1.xpose.msra.mxu0 %v958
      %990 = vmatprep.subr.mxu0 0.0
      %991 = vmatpush1.xpose.msra.mxu0 %v956
      %992 = vmatprep.subr.mxu0 0.0
      %993 = vmatpush2.xpose.msra.mxu0 0.0
      %994 = vmatprep.subr.mxu0 0.0
      %995 = vmatpush2.xpose.msra.mxu0 0.0
      %996 = vmatprep.subr.mxu0 0.0
      %997 = vmatpush2.xpose.msra.mxu0 0.0
      %998 = vmatprep.subr.mxu0 0.0
      %999 = vmatpush2.xpose.msra.mxu0 0.0
      %1000 = vmatprep.subr.mxu0 0.0
      %1001 = vmatpush2.xpose.msra.mxu0 0.0
      %1002 = vmatprep.subr.mxu0 0.0
      %1003 = vmatpush2.xpose.msra.mxu0 0.0
      %1004 = vmatprep.subr.mxu0 0.0
      %1005 = vmatpush2.xpose.msra.mxu0 0.0
      %1006 = vmatprep.subr.mxu0 0.0
      %1007 = vmatpush2.xpose.msra.mxu0 0.0
      %1008 = vmatprep.subr.mxu0 0.0
      %1009 = vmatpush2.xpose.msra.mxu0 0.0
      %1010 = vmatprep.subr.mxu0 0.0
      %1011 = vmatpush2.xpose.msra.mxu0 0.0
      %1012 = vmatprep.subr.mxu0 0.0
      %1013 = vmatpush2.xpose.msra.mxu0 0.0
      %1014 = vmatprep.subr.mxu0 0.0
      %1015 = vmatpush2.xpose.msra.mxu0 0.0
      %1016 = vmatprep.subr.mxu0 0.0
      %1017 = vmatpush2.xpose.msra.mxu0 0.0
      %1018 = vmatprep.subr.mxu0 0.0
      %1019 = vmatpush2.xpose.msra.mxu0 0.0
      %1020 = vmatprep.subr.mxu0 0.0
      %1021 = vmatpush2.xpose.msra.mxu0 0.0
      %1022 = vmatprep.subr.mxu0 0.0
      %1023 = vmatpush2.xpose.msra.mxu0 0.0
      %1024 = vmatprep.mubr.f32.mxu0 0.0
      %1025 = vmatmul.mubr.f32.gmra.mxu0 %v952
      %v1026 = vpop.f32.mrf.mxu0
      %v1027 = vadd.f32 0.0, %v1026
      %v1028 = vpop.f32.mrf.mxu0
      %1029 = vmatprep.mubr.f32.mxu0 0.0
      %1030 = vmatmul.mubr.f32.gmra.mxu0 %v954
      %v1031 = vpop.f32.mrf.mxu0
      %v1032 = vadd.f32 0.0, %v1031
      %v1033 = vpop.f32.mrf.mxu0
      %1034 = vdwg.mxu0
      %v1035 = vmul.f32 %v1027, 0.35355338
      %v1036 = vmul.f32 %v1032, 0.35355338
      %v1037 = vsel %vm628, %v1035, -inf
      %1038 = vmax.xlane.f32.xlu0 %v1037
      %v1039 = vpop.xlane.xlu0 %1038
      %v1040 = vsel %vm632, %v1036, -inf
      %1041 = vmax.xlane.f32.xlu0 %v1040
      %v1042 = vpop.xlane.xlu0 %1041
      %v1043 = vsub.f32 %v1035, %v1039
      %v1044 = vsub.f32 %v1036, %v1042
      %v1045 = vmul.f32 %v1043, 1.442695
      %v1046 = vpow.pop %v1045
      %v1047 = vmul.f32 %v1044, 1.442695
      %v1048 = vpow.pop %v1047
      %v1049 = vsel %vm628, %v1046, 0.0
      %1050 = vadd.xlane.f32.xlu0 %v1049
      %v1051 = vpop.xlane.xlu0 %1050
      %v1052 = vsel %vm632, %v1048, 0.0
      %1053 = vadd.xlane.f32.xlu0 %v1052
      %v1054 = vpop.xlane.xlu0 %1053
      %v1055 = vrcp.pop %v1051
      %v1056 = vrcp.pop %v1054
      %v1057 = vmul.f32 %v1046, %v1055
      %v1058 = vmul.f32 %v1048, %v1056
      %1059 = vrot.lane.b32.xlu0 %v528, 48
      %v1060 = vpop.permute.xlu0 %1059
      %1061 = vrot.lane.b32.xlu0 %v533, 48
      %v1062 = vpop.permute.xlu0 %1061
      %v1065 = vsel %vm628, %v1057, 0
      %v1068 = vsel %vm628, %v1058, 0
      %v1070 = vsel %vm663, %v1062, 0
      %1072 = vmatprep.subr.mxu0 0.0
      %1073 = vmatpush1.msra.mxu0 0.0
      %1074 = vmatprep.subr.mxu0 0.0
      %1075 = vmatpush1.msra.mxu0 0.0
      %1076 = vmatprep.subr.mxu0 0.0
      %1077 = vmatpush1.msra.mxu0 0.0
      %1078 = vmatprep.subr.mxu0 0.0
      %1079 = vmatpush1.msra.mxu0 0.0
      %1080 = vmatprep.subr.mxu0 0.0
      %1081 = vmatpush1.msra.mxu0 0.0
      %1082 = vmatprep.subr.mxu0 0.0
      %1083 = vmatpush1.msra.mxu0 0.0
      %1084 = vmatprep.subr.mxu0 0.0
      %1085 = vmatpush1.msra.mxu0 0.0
      %1086 = vmatprep.subr.mxu0 0.0
      %1087 = vmatpush1.msra.mxu0 0.0
      %1088 = vmatprep.subr.mxu0 0.0
      %1089 = vmatpush1.msra.mxu0 0.0
      %1090 = vmatprep.subr.mxu0 0.0
      %1091 = vmatpush1.msra.mxu0 0.0
      %1092 = vmatprep.subr.mxu0 0.0
      %1093 = vmatpush1.msra.mxu0 0.0
      %1094 = vmatprep.subr.mxu0 0.0
      %1095 = vmatpush1.msra.mxu0 0.0
      %1096 = vmatprep.subr.mxu0 0.0
      %1097 = vmatpush1.msra.mxu0 0.0
      %1098 = vmatprep.subr.mxu0 0.0
      %1099 = vmatpush1.msra.mxu0 0.0
      %1100 = vmatprep.subr.mxu0 0.0
      %1101 = vmatpush1.msra.mxu0 %v1070
      %1102 = vmatprep.subr.mxu0 0.0
      %1103 = vmatpush1.msra.mxu0 %v1060
      %1104 = vmatprep.subr.mxu0 0.0
      %1105 = vmatpush2.msra.mxu0 0.0
      %1106 = vmatprep.subr.mxu0 0.0
      %1107 = vmatpush2.msra.mxu0 0.0
      %1108 = vmatprep.subr.mxu0 0.0
      %1109 = vmatpush2.msra.mxu0 0.0
      %1110 = vmatprep.subr.mxu0 0.0
      %1111 = vmatpush2.msra.mxu0 0.0
      %1112 = vmatprep.subr.mxu0 0.0
      %1113 = vmatpush2.msra.mxu0 0.0
      %1114 = vmatprep.subr.mxu0 0.0
      %1115 = vmatpush2.msra.mxu0 0.0
      %1116 = vmatprep.subr.mxu0 0.0
      %1117 = vmatpush2.msra.mxu0 0.0
      %1118 = vmatprep.subr.mxu0 0.0
      %1119 = vmatpush2.msra.mxu0 0.0
      %1120 = vmatprep.subr.mxu0 0.0
      %1121 = vmatpush2.msra.mxu0 0.0
      %1122 = vmatprep.subr.mxu0 0.0
      %1123 = vmatpush2.msra.mxu0 0.0
      %1124 = vmatprep.subr.mxu0 0.0
      %1125 = vmatpush2.msra.mxu0 0.0
      %1126 = vmatprep.subr.mxu0 0.0
      %1127 = vmatpush2.msra.mxu0 0.0
      %1128 = vmatprep.subr.mxu0 0.0
      %1129 = vmatpush2.msra.mxu0 0.0
      %1130 = vmatprep.subr.mxu0 0.0
      %1131 = vmatpush2.msra.mxu0 0.0
      %1132 = vmatprep.subr.mxu0 0.0
      %1133 = vmatpush2.msra.mxu0 0.0
      %1134 = vmatprep.subr.mxu0 0.0
      %1135 = vmatpush2.msra.mxu0 0.0
      %1136 = vmatprep.mubr.f32.mxu0 0.0
      %1137 = vmatmul.mubr.f32.gmra.mxu0 %v1065
      %v1138 = vpop.f32.mrf.mxu0
      %v1139 = vadd.f32 0.0, %v1138
      %v1140 = vpop.f32.mrf.mxu0
      %1141 = vmatprep.mubr.f32.mxu0 0.0
      %1142 = vmatmul.mubr.f32.gmra.mxu0 %v1068
      %v1143 = vpop.f32.mrf.mxu0
      %v1144 = vadd.f32 0.0, %v1143
      %v1145 = vpop.f32.mrf.mxu0
      %1146 = vdwg.mxu0
      %1147 = vrot.lane.b32.xlu0 %v528, 104
      %v1148 = vpop.permute.xlu0 %1147
      %1149 = vrot.lane.b32.xlu0 %v533, 104
      %v1150 = vpop.permute.xlu0 %1149
      %1151 = vrot.lane.b32.xlu0 %v528, 72
      %v1152 = vpop.permute.xlu0 %1151
      %1153 = vrot.lane.b32.xlu0 %v533, 72
      %v1154 = vpop.permute.xlu0 %1153
      %v1155 = vsel %vm542, %v1148, 0
      %v1157 = vsel %vm542, %v1150, 0
      %v1159 = vsel %vm542, %v1152, 0
      %v1161 = vsel %vm542, %v1154, 0
      %1163 = vmatprep.subr.mxu0 0.0
      %1164 = vmatpush1.xpose.msra.mxu0 0.0
      %1165 = vmatprep.subr.mxu0 0.0
      %1166 = vmatpush1.xpose.msra.mxu0 0.0
      %1167 = vmatprep.subr.mxu0 0.0
      %1168 = vmatpush1.xpose.msra.mxu0 0.0
      %1169 = vmatprep.subr.mxu0 0.0
      %1170 = vmatpush1.xpose.msra.mxu0 0.0
      %1171 = vmatprep.subr.mxu0 0.0
      %1172 = vmatpush1.xpose.msra.mxu0 0.0
      %1173 = vmatprep.subr.mxu0 0.0
      %1174 = vmatpush1.xpose.msra.mxu0 0.0
      %1175 = vmatprep.subr.mxu0 0.0
      %1176 = vmatpush1.xpose.msra.mxu0 0.0
      %1177 = vmatprep.subr.mxu0 0.0
      %1178 = vmatpush1.xpose.msra.mxu0 0.0
      %1179 = vmatprep.subr.mxu0 0.0
      %1180 = vmatpush1.xpose.msra.mxu0 0.0
      %1181 = vmatprep.subr.mxu0 0.0
      %1182 = vmatpush1.xpose.msra.mxu0 0.0
      %1183 = vmatprep.subr.mxu0 0.0
      %1184 = vmatpush1.xpose.msra.mxu0 0.0
      %1185 = vmatprep.subr.mxu0 0.0
      %1186 = vmatpush1.xpose.msra.mxu0 0.0
      %1187 = vmatprep.subr.mxu0 0.0
      %1188 = vmatpush1.xpose.msra.mxu0 0.0
      %1189 = vmatprep.subr.mxu0 0.0
      %1190 = vmatpush1.xpose.msra.mxu0 0.0
      %1191 = vmatprep.subr.mxu0 0.0
      %1192 = vmatpush1.xpose.msra.mxu0 %v1161
      %1193 = vmatprep.subr.mxu0 0.0
      %1194 = vmatpush1.xpose.msra.mxu0 %v1159
      %1195 = vmatprep.subr.mxu0 0.0
      %1196 = vmatpush2.xpose.msra.mxu0 0.0
      %1197 = vmatprep.subr.mxu0 0.0
      %1198 = vmatpush2.xpose.msra.mxu0 0.0
      %1199 = vmatprep.subr.mxu0 0.0
      %1200 = vmatpush2.xpose.msra.mxu0 0.0
      %1201 = vmatprep.subr.mxu0 0.0
      %1202 = vmatpush2.xpose.msra.mxu0 0.0
      %1203 = vmatprep.subr.mxu0 0.0
      %1204 = vmatpush2.xpose.msra.mxu0 0.0
      %1205 = vmatprep.subr.mxu0 0.0
      %1206 = vmatpush2.xpose.msra.mxu0 0.0
      %1207 = vmatprep.subr.mxu0 0.0
      %1208 = vmatpush2.xpose.msra.mxu0 0.0
      %1209 = vmatprep.subr.mxu0 0.0
      %1210 = vmatpush2.xpose.msra.mxu0 0.0
      %1211 = vmatprep.subr.mxu0 0.0
      %1212 = vmatpush2.xpose.msra.mxu0 0.0
      %1213 = vmatprep.subr.mxu0 0.0
      %1214 = vmatpush2.xpose.msra.mxu0 0.0
      %1215 = vmatprep.subr.mxu0 0.0
      %1216 = vmatpush2.xpose.msra.mxu0 0.0
      %1217 = vmatprep.subr.mxu0 0.0
      %1218 = vmatpush2.xpose.msra.mxu0 0.0
      %1219 = vmatprep.subr.mxu0 0.0
      %1220 = vmatpush2.xpose.msra.mxu0 0.0
      %1221 = vmatprep.subr.mxu0 0.0
      %1222 = vmatpush2.xpose.msra.mxu0 0.0
      %1223 = vmatprep.subr.mxu0 0.0
      %1224 = vmatpush2.xpose.msra.mxu0 0.0
      %1225 = vmatprep.subr.mxu0 0.0
      %1226 = vmatpush2.xpose.msra.mxu0 0.0
      %1227 = vmatprep.mubr.f32.mxu0 0.0
      %1228 = vmatmul.mubr.f32.gmra.mxu0 %v1155
      %v1229 = vpop.f32.mrf.mxu0
      %v1230 = vadd.f32 0.0, %v1229
      %v1231 = vpop.f32.mrf.mxu0
      %1232 = vmatprep.mubr.f32.mxu0 0.0
      %1233 = vmatmul.mubr.f32.gmra.mxu0 %v1157
      %v1234 = vpop.f32.mrf.mxu0
      %v1235 = vadd.f32 0.0, %v1234
      %v1236 = vpop.f32.mrf.mxu0
      %1237 = vdwg.mxu0
      %v1238 = vmul.f32 %v1230, 0.35355338
      %v1239 = vmul.f32 %v1235, 0.35355338
      %v1240 = vsel %vm628, %v1238, -inf
      %1241 = vmax.xlane.f32.xlu0 %v1240
      %v1242 = vpop.xlane.xlu0 %1241
      %v1243 = vsel %vm632, %v1239, -inf
      %1244 = vmax.xlane.f32.xlu0 %v1243
      %v1245 = vpop.xlane.xlu0 %1244
      %v1246 = vsub.f32 %v1238, %v1242
      %v1247 = vsub.f32 %v1239, %v1245
      %v1248 = vmul.f32 %v1246, 1.442695
      %v1249 = vpow.pop %v1248
      %v1250 = vmul.f32 %v1247, 1.442695
      %v1251 = vpow.pop %v1250
      %v1252 = vsel %vm628, %v1249, 0.0
      %1253 = vadd.xlane.f32.xlu0 %v1252
      %v1254 = vpop.xlane.xlu0 %1253
      %v1255 = vsel %vm632, %v1251, 0.0
      %1256 = vadd.xlane.f32.xlu0 %v1255
      %v1257 = vpop.xlane.xlu0 %1256
      %v1258 = vrcp.pop %v1254
      %v1259 = vrcp.pop %v1257
      %v1260 = vmul.f32 %v1249, %v1258
      %v1261 = vmul.f32 %v1251, %v1259
      %1262 = vrot.lane.b32.xlu0 %v528, 40
      %v1263 = vpop.permute.xlu0 %1262
      %1264 = vrot.lane.b32.xlu0 %v533, 40
      %v1265 = vpop.permute.xlu0 %1264
      %v1268 = vsel %vm628, %v1260, 0
      %v1271 = vsel %vm628, %v1261, 0
      %v1273 = vsel %vm663, %v1265, 0
      %1275 = vmatprep.subr.mxu0 0.0
      %1276 = vmatpush1.msra.mxu0 0.0
      %1277 = vmatprep.subr.mxu0 0.0
      %1278 = vmatpush1.msra.mxu0 0.0
      %1279 = vmatprep.subr.mxu0 0.0
      %1280 = vmatpush1.msra.mxu0 0.0
      %1281 = vmatprep.subr.mxu0 0.0
      %1282 = vmatpush1.msra.mxu0 0.0
      %1283 = vmatprep.subr.mxu0 0.0
      %1284 = vmatpush1.msra.mxu0 0.0
      %1285 = vmatprep.subr.mxu0 0.0
      %1286 = vmatpush1.msra.mxu0 0.0
      %1287 = vmatprep.subr.mxu0 0.0
      %1288 = vmatpush1.msra.mxu0 0.0
      %1289 = vmatprep.subr.mxu0 0.0
      %1290 = vmatpush1.msra.mxu0 0.0
      %1291 = vmatprep.subr.mxu0 0.0
      %1292 = vmatpush1.msra.mxu0 0.0
      %1293 = vmatprep.subr.mxu0 0.0
      %1294 = vmatpush1.msra.mxu0 0.0
      %1295 = vmatprep.subr.mxu0 0.0
      %1296 = vmatpush1.msra.mxu0 0.0
      %1297 = vmatprep.subr.mxu0 0.0
      %1298 = vmatpush1.msra.mxu0 0.0
      %1299 = vmatprep.subr.mxu0 0.0
      %1300 = vmatpush1.msra.mxu0 0.0
      %1301 = vmatprep.subr.mxu0 0.0
      %1302 = vmatpush1.msra.mxu0 0.0
      %1303 = vmatprep.subr.mxu0 0.0
      %1304 = vmatpush1.msra.mxu0 %v1273
      %1305 = vmatprep.subr.mxu0 0.0
      %1306 = vmatpush1.msra.mxu0 %v1263
      %1307 = vmatprep.subr.mxu0 0.0
      %1308 = vmatpush2.msra.mxu0 0.0
      %1309 = vmatprep.subr.mxu0 0.0
      %1310 = vmatpush2.msra.mxu0 0.0
      %1311 = vmatprep.subr.mxu0 0.0
      %1312 = vmatpush2.msra.mxu0 0.0
      %1313 = vmatprep.subr.mxu0 0.0
      %1314 = vmatpush2.msra.mxu0 0.0
      %1315 = vmatprep.subr.mxu0 0.0
      %1316 = vmatpush2.msra.mxu0 0.0
      %1317 = vmatprep.subr.mxu0 0.0
      %1318 = vmatpush2.msra.mxu0 0.0
      %1319 = vmatprep.subr.mxu0 0.0
      %1320 = vmatpush2.msra.mxu0 0.0
      %1321 = vmatprep.subr.mxu0 0.0
      %1322 = vmatpush2.msra.mxu0 0.0
      %1323 = vmatprep.subr.mxu0 0.0
      %1324 = vmatpush2.msra.mxu0 0.0
      %1325 = vmatprep.subr.mxu0 0.0
      %1326 = vmatpush2.msra.mxu0 0.0
      %1327 = vmatprep.subr.mxu0 0.0
      %1328 = vmatpush2.msra.mxu0 0.0
      %1329 = vmatprep.subr.mxu0 0.0
      %1330 = vmatpush2.msra.mxu0 0.0
      %1331 = vmatprep.subr.mxu0 0.0
      %1332 = vmatpush2.msra.mxu0 0.0
      %1333 = vmatprep.subr.mxu0 0.0
      %1334 = vmatpush2.msra.mxu0 0.0
      %1335 = vmatprep.subr.mxu0 0.0
      %1336 = vmatpush2.msra.mxu0 0.0
      %1337 = vmatprep.subr.mxu0 0.0
      %1338 = vmatpush2.msra.mxu0 0.0
      %1339 = vmatprep.mubr.f32.mxu0 0.0
      %1340 = vmatmul.mubr.f32.gmra.mxu0 %v1268
      %v1341 = vpop.f32.mrf.mxu0
      %v1342 = vadd.f32 0.0, %v1341
      %v1343 = vpop.f32.mrf.mxu0
      %1344 = vmatprep.mubr.f32.mxu0 0.0
      %1345 = vmatmul.mubr.f32.gmra.mxu0 %v1271
      %v1346 = vpop.f32.mrf.mxu0
      %v1347 = vadd.f32 0.0, %v1346
      %v1348 = vpop.f32.mrf.mxu0
      %1349 = vdwg.mxu0
      %1352 = vrot.lane.b32.xlu0 %v936, 8
      %v1353 = vpop.permute.xlu0 %1352
      %1354 = vrot.lane.b32.xlu0 %v941, 8
      %v1355 = vpop.permute.xlu0 %1354
      %1360 = vrot.lane.b32.xlu0 %v1139, 16
      %v1361 = vpop.permute.xlu0 %1360
      %1362 = vrot.lane.b32.xlu0 %v1144, 16
      %v1363 = vpop.permute.xlu0 %1362
      %1368 = vrot.lane.b32.xlu0 %v1342, 24
      %v1369 = vpop.permute.xlu0 %1368
      %1370 = vrot.lane.b32.xlu0 %v1347, 24
      %v1371 = vpop.permute.xlu0 %1370
      %v1374 = vsel %vm542, %v733, %v1353
      %v1375 = vsel %vm542, %v738, %v1355
      %vm1376 = vcmask 130048
      %v1377 = vsel %vm1376, %v1374, %v1361
      %v1378 = vsel %vm1376, %v1375, %v1363
      %vm1379 = vcmask 195584
      %v1380 = vsel %vm1379, %v1377, %v1369
      %v1381 = vsel %vm1379, %v1378, %v1371
      %v1382 = vld [vmem:[%s3] sm:$0xff]
      %v1383 = vld [vmem:[%s3 + $0x8] sm:$0xff]
      %v1384 = vld [vmem:[%s3 + $0x10] sm:$0xff]
      %v1385 = vld [vmem:[%s3 + $0x18] sm:$0xff]
      %v1386 = vld [vmem:[%s4] sm:$0x1]
      %v1388 = vlaneseq
      %v1389 = vshrl.u32 %v1388, 7
      %v1390 = vsub.s32 0, %v1389
      %v1391 = vrot.slane %v1386, %v1390
      %v1394 = vsel %vm454, %v1380, 0
      %v1397 = vsel %vm454, %v1381, 0
      %1399 = vmatprep.subr.mxu0 0.0
      %1400 = vmatpush1.msra.mxu0 0.0
      %1401 = vmatprep.subr.mxu0 0.0
      %1402 = vmatpush1.msra.mxu0 0.0
      %1403 = vmatprep.subr.mxu0 0.0
      %1404 = vmatpush1.msra.mxu0 0.0
      %1405 = vmatprep.subr.mxu0 0.0
      %1406 = vmatpush1.msra.mxu0 0.0
      %1407 = vmatprep.subr.mxu0 0.0
      %1408 = vmatpush1.msra.mxu0 0.0
      %1409 = vmatprep.subr.mxu0 0.0
      %1410 = vmatpush1.msra.mxu0 0.0
      %1411 = vmatprep.subr.mxu0 0.0
      %1412 = vmatpush1.msra.mxu0 0.0
      %1413 = vmatprep.subr.mxu0 0.0
      %1414 = vmatpush1.msra.mxu0 0.0
      %1415 = vmatprep.subr.mxu0 0.0
      %1416 = vmatpush1.msra.mxu0 0.0
      %1417 = vmatprep.subr.mxu0 0.0
      %1418 = vmatpush1.msra.mxu0 0.0
      %1419 = vmatprep.subr.mxu0 0.0
      %1420 = vmatpush1.msra.mxu0 0.0
      %1421 = vmatprep.subr.mxu0 0.0
      %1422 = vmatpush1.msra.mxu0 0.0
      %1423 = vmatprep.subr.mxu0 0.0
      %1424 = vmatpush1.msra.mxu0 %v1385
      %1425 = vmatprep.subr.mxu0 0.0
      %1426 = vmatpush1.msra.mxu0 %v1384
      %1427 = vmatprep.subr.mxu0 0.0
      %1428 = vmatpush1.msra.mxu0 %v1383
      %1429 = vmatprep.subr.mxu0 0.0
      %1430 = vmatpush1.msra.mxu0 %v1382
      %1431 = vmatprep.subr.mxu0 0.0
      %1432 = vmatpush2.msra.mxu0 0.0
      %1433 = vmatprep.subr.mxu0 0.0
      %1434 = vmatpush2.msra.mxu0 0.0
      %1435 = vmatprep.subr.mxu0 0.0
      %1436 = vmatpush2.msra.mxu0 0.0
      %1437 = vmatprep.subr.mxu0 0.0
      %1438 = vmatpush2.msra.mxu0 0.0
      %1439 = vmatprep.subr.mxu0 0.0
      %1440 = vmatpush2.msra.mxu0 0.0
      %1441 = vmatprep.subr.mxu0 0.0
      %1442 = vmatpush2.msra.mxu0 0.0
      %1443 = vmatprep.subr.mxu0 0.0
      %1444 = vmatpush2.msra.mxu0 0.0
      %1445 = vmatprep.subr.mxu0 0.0
      %1446 = vmatpush2.msra.mxu0 0.0
      %1447 = vmatprep.subr.mxu0 0.0
      %1448 = vmatpush2.msra.mxu0 0.0
      %1449 = vmatprep.subr.mxu0 0.0
      %1450 = vmatpush2.msra.mxu0 0.0
      %1451 = vmatprep.subr.mxu0 0.0
      %1452 = vmatpush2.msra.mxu0 0.0
      %1453 = vmatprep.subr.mxu0 0.0
      %1454 = vmatpush2.msra.mxu0 0.0
      %1455 = vmatprep.subr.mxu0 0.0
      %1456 = vmatpush2.msra.mxu0 0.0
      %1457 = vmatprep.subr.mxu0 0.0
      %1458 = vmatpush2.msra.mxu0 0.0
      %1459 = vmatprep.subr.mxu0 0.0
      %1460 = vmatpush2.msra.mxu0 0.0
      %1461 = vmatprep.subr.mxu0 0.0
      %1462 = vmatpush2.msra.mxu0 0.0
      %1463 = vmatprep.mubr.f32.mxu0 0.0
      %1464 = vmatmul.mubr.f32.gmra.mxu0 %v1394
      %v1465 = vpop.f32.mrf.mxu0
      %v1466 = vadd.f32 %v1391, %v1465
      %v1467 = vpop.f32.mrf.mxu0
      %1468 = vmatprep.mubr.f32.mxu0 0.0
      %1469 = vmatmul.mubr.f32.gmra.mxu0 %v1397
      %v1470 = vpop.f32.mrf.mxu0
      %v1471 = vadd.f32 %v1391, %v1470
      %v1472 = vpop.f32.mrf.mxu0
      %1473 = vdwg.mxu0
      %v1474 = vadd.f32 %v441, %v1466
      %v1475 = vadd.f32 %v442, %v1471
      %v1476 = vld [vmem:[%s5] sm:$0x1]
      %v1477 = vld [vmem:[%s6] sm:$0x1]
      %v1478 = vsel %vm454, %v1474, 0.0
      %1479 = vadd.xlane.f32.xlu0 %v1478
      %v1480 = vpop.xlane.xlu0 %1479
      %vm1481 = vcmask 257024
      %v1482 = vsel %vm1481, %v1475, 0.0
      %1483 = vadd.xlane.f32.xlu0 %v1482
      %v1484 = vpop.xlane.xlu0 %1483
      %v1485 = vrcp.pop 32.0
      %v1486 = vmul.f32 %v1480, %v1485
      %v1487 = vmul.f32 %v1484, %v1485
      %v1488 = vsub.f32 %v1474, %v1486
      %v1489 = vsub.f32 %v1475, %v1487
      %v1490 = vmul.f32 %v1488, %v1488
      %v1491 = vmul.f32 %v1489, %v1489
      %v1492 = vsel %vm454, %v1490, 0.0
      %1493 = vadd.xlane.f32.xlu0 %v1492
      %v1494 = vpop.xlane.xlu0 %1493
      %v1495 = vsel %vm1481, %v1491, 0.0
      %1496 = vadd.xlane.f32.xlu0 %v1495
      %v1497 = vpop.xlane.xlu0 %1496
      %v1498 = vmul.f32 %v1494, %v1485
      %v1499 = vmul.f32 %v1497, %v1485
      %v1500 = vadd.f32 %v1498, 1e-05
      %v1501 = vadd.f32 %v1499, 1e-05
      %v1502 = vrsqrt.pop %v1500
      %v1503 = vrsqrt.pop %v1501
      %v1504 = vmul.f32 %v1488, %v1502
      %v1505 = vmul.f32 %v1489, %v1503
      %v1507 = vlaneseq
      %v1508 = vshrl.u32 %v1507, 7
      %v1509 = vsub.s32 0, %v1508
      %v1510 = vrot.slane %v1476, %v1509
      %v1512 = vmul.f32 %v1504, %v1510
      %v1513 = vmul.f32 %v1505, %v1510
      %v1515 = vlaneseq
      %v1516 = vshrl.u32 %v1515, 7
      %v1517 = vsub.s32 0, %v1516
      %v1518 = vrot.slane %v1477, %v1517
      %v1520 = vadd.f32 %v1512, %v1518
      %v1521 = vadd.f32 %v1513, %v1518
      %v1522 = vld [vmem:[%s7] sm:$0xff]
      %v1523 = vld [vmem:[%s7 + $0x8] sm:$0xff]
      %v1524 = vld [vmem:[%s7 + $0x10] sm:$0xff]
      %v1525 = vld [vmem:[%s7 + $0x18] sm:$0xff]
      %v1526 = vld [vmem:[%s8] sm:$0x1]
      %v1528 = vlaneseq
      %v1529 = vshrl.u32 %v1528, 7
      %v1530 = vsub.s32 0, %v1529
      %v1531 = vrot.slane %v1526, %v1530
      %v1534 = vsel %vm454, %v1520, 0
      %v1537 = vsel %vm454, %v1521, 0
      %1539 = vmatprep.subr.mxu0 0.0
      %1540 = vmatpush1.msra.mxu0 0.0
      %1541 = vmatprep.subr.mxu0 0.0
      %1542 = vmatpush1.msra.mxu0 0.0
      %1543 = vmatprep.subr.mxu0 0.0
      %1544 = vmatpush1.msra.mxu0 0.0
      %1545 = vmatprep.subr.mxu0 0.0
      %1546 = vmatpush1.msra.mxu0 0.0
      %1547 = vmatprep.subr.mxu0 0.0
      %1548 = vmatpush1.msra.mxu0 0.0
      %1549 = vmatprep.subr.mxu0 0.0
      %1550 = vmatpush1.msra.mxu0 0.0
      %1551 = vmatprep.subr.mxu0 0.0
      %1552 = vmatpush1.msra.mxu0 0.0
      %1553 = vmatprep.subr.mxu0 0.0
      %1554 = vmatpush1.msra.mxu0 0.0
      %1555 = vmatprep.subr.mxu0 0.0
      %1556 = vmatpush1.msra.mxu0 0.0
      %1557 = vmatprep.subr.mxu0 0.0
      %1558 = vmatpush1.msra.mxu0 0.0
      %1559 = vmatprep.subr.mxu0 0.0
      %1560 = vmatpush1.msra.mxu0 0.0
      %1561 = vmatprep.subr.mxu0 0.0
      %1562 = vmatpush1.msra.mxu0 0.0
      %1563 = vmatprep.subr.mxu0 0.0
      %1564 = vmatpush1.msra.mxu0 %v1525
      %1565 = vmatprep.subr.mxu0 0.0
      %1566 = vmatpush1.msra.mxu0 %v1524
      %1567 = vmatprep.subr.mxu0 0.0
      %1568 = vmatpush1.msra.mxu0 %v1523
      %1569 = vmatprep.subr.mxu0 0.0
      %1570 = vmatpush1.msra.mxu0 %v1522
      %1571 = vmatprep.subr.mxu0 0.0
      %1572 = vmatpush2.msra.mxu0 0.0
      %1573 = vmatprep.subr.mxu0 0.0
      %1574 = vmatpush2.msra.mxu0 0.0
      %1575 = vmatprep.subr.mxu0 0.0
      %1576 = vmatpush2.msra.mxu0 0.0
      %1577 = vmatprep.subr.mxu0 0.0
      %1578 = vmatpush2.msra.mxu0 0.0
      %1579 = vmatprep.subr.mxu0 0.0
      %1580 = vmatpush2.msra.mxu0 0.0
      %1581 = vmatprep.subr.mxu0 0.0
      %1582 = vmatpush2.msra.mxu0 0.0
      %1583 = vmatprep.subr.mxu0 0.0
      %1584 = vmatpush2.msra.mxu0 0.0
      %1585 = vmatprep.subr.mxu0 0.0
      %1586 = vmatpush2.msra.mxu0 0.0
      %1587 = vmatprep.subr.mxu0 0.0
      %1588 = vmatpush2.msra.mxu0 0.0
      %1589 = vmatprep.subr.mxu0 0.0
      %1590 = vmatpush2.msra.mxu0 0.0
      %1591 = vmatprep.subr.mxu0 0.0
      %1592 = vmatpush2.msra.mxu0 0.0
      %1593 = vmatprep.subr.mxu0 0.0
      %1594 = vmatpush2.msra.mxu0 0.0
      %1595 = vmatprep.subr.mxu0 0.0
      %1596 = vmatpush2.msra.mxu0 0.0
      %1597 = vmatprep.subr.mxu0 0.0
      %1598 = vmatpush2.msra.mxu0 0.0
      %1599 = vmatprep.subr.mxu0 0.0
      %1600 = vmatpush2.msra.mxu0 0.0
      %1601 = vmatprep.subr.mxu0 0.0
      %1602 = vmatpush2.msra.mxu0 0.0
      %1603 = vmatprep.mubr.f32.mxu0 0.0
      %1604 = vmatmul.mubr.f32.gmra.mxu0 %v1534
      %v1605 = vpop.f32.mrf.mxu0
      %v1606 = vadd.f32 %v1531, %v1605
      %v1607 = vpop.f32.mrf.mxu0
      %1608 = vmatprep.mubr.f32.mxu0 0.0
      %1609 = vmatmul.mubr.f32.gmra.mxu0 %v1537
      %v1610 = vpop.f32.mrf.mxu0
      %v1611 = vadd.f32 %v1531, %v1610
      %v1612 = vpop.f32.mrf.mxu0
      %1613 = vdwg.mxu0
      %v1614 = vmax.f32 %v1606, 0.0
      %v1615 = vmax.f32 %v1611, 0.0
      %v1616 = vld [vmem:[%s9] sm:$0xff]
      %v1617 = vld [vmem:[%s9 + $0x8] sm:$0xff]
      %v1618 = vld [vmem:[%s9 + $0x10] sm:$0xff]
      %v1619 = vld [vmem:[%s9 + $0x18] sm:$0xff]
      %v1620 = vld [vmem:[%s9 + $0x20] sm:$0xff]
      %v1621 = vld [vmem:[%s9 + $0x28] sm:$0xff]
      %v1622 = vld [vmem:[%s9 + $0x30] sm:$0xff]
      %v1623 = vld [vmem:[%s9 + $0x38] sm:$0xff]
      %v1624 = vld [vmem:[%s10] sm:$0x1]
      %v1626 = vlaneseq
      %v1627 = vshrl.u32 %v1626, 7
      %v1628 = vsub.s32 0, %v1627
      %v1629 = vrot.slane %v1624, %v1628
      %vm1631 = vcmask 523264
      %v1633 = vsel %vm1631, %v1614, 0
      %v1636 = vsel %vm1631, %v1615, 0
      %1638 = vmatprep.subr.mxu0 0.0
      %1639 = vmatpush1.msra.mxu0 0.0
      %1640 = vmatprep.subr.mxu0 0.0
      %1641 = vmatpush1.msra.mxu0 0.0
      %1642 = vmatprep.subr.mxu0 0.0
      %1643 = vmatpush1.msra.mxu0 0.0
      %1644 = vmatprep.subr.mxu0 0.0
      %1645 = vmatpush1.msra.mxu0 0.0
      %1646 = vmatprep.subr.mxu0 0.0
      %1647 = vmatpush1.msra.mxu0 0.0
      %1648 = vmatprep.subr.mxu0 0.0
      %1649 = vmatpush1.msra.mxu0 0.0
      %1650 = vmatprep.subr.mxu0 0.0
      %1651 = vmatpush1.msra.mxu0 0.0
      %1652 = vmatprep.subr.mxu0 0.0
      %1653 = vmatpush1.msra.mxu0 0.0
      %1654 = vmatprep.subr.mxu0 0.0
      %1655 = vmatpush1.msra.mxu0 %v1623
      %1656 = vmatprep.subr.mxu0 0.0
      %1657 = vmatpush1.msra.mxu0 %v1622
      %1658 = vmatprep.subr.mxu0 0.0
      %1659 = vmatpush1.msra.mxu0 %v1621
      %1660 = vmatprep.subr.mxu0 0.0
      %1661 = vmatpush1.msra.mxu0 %v1620
      %1662 = vmatprep.subr.mxu0 0.0
      %1663 = vmatpush1.msra.mxu0 %v1619
      %1664 = vmatprep.subr.mxu0 0.0
      %1665 = vmatpush1.msra.mxu0 %v1618
      %1666 = vmatprep.subr.mxu0 0.0
      %1667 = vmatpush1.msra.mxu0 %v1617
      %1668 = vmatprep.subr.mxu0 0.0
      %1669 = vmatpush1.msra.mxu0 %v1616
      %1670 = vmatprep.subr.mxu0 0.0
      %1671 = vmatpush2.msra.mxu0 0.0
      %1672 = vmatprep.subr.mxu0 0.0
      %1673 = vmatpush2.msra.mxu0 0.0
      %1674 = vmatprep.subr.mxu0 0.0
      %1675 = vmatpush2.msra.mxu0 0.0
      %1676 = vmatprep.subr.mxu0 0.0
      %1677 = vmatpush2.msra.mxu0 0.0
      %1678 = vmatprep.subr.mxu0 0.0
      %1679 = vmatpush2.msra.mxu0 0.0
      %1680 = vmatprep.subr.mxu0 0.0
      %1681 = vmatpush2.msra.mxu0 0.0
      %1682 = vmatprep.subr.mxu0 0.0
      %1683 = vmatpush2.msra.mxu0 0.0
      %1684 = vmatprep.subr.mxu0 0.0
      %1685 = vmatpush2.msra.mxu0 0.0
      %1686 = vmatprep.subr.mxu0 0.0
      %1687 = vmatpush2.msra.mxu0 0.0
      %1688 = vmatprep.subr.mxu0 0.0
      %1689 = vmatpush2.msra.mxu0 0.0
      %1690 = vmatprep.subr.mxu0 0.0
      %1691 = vmatpush2.msra.mxu0 0.0
      %1692 = vmatprep.subr.mxu0 0.0
      %1693 = vmatpush2.msra.mxu0 0.0
      %1694 = vmatprep.subr.mxu0 0.0
      %1695 = vmatpush2.msra.mxu0 0.0
      %1696 = vmatprep.subr.mxu0 0.0
      %1697 = vmatpush2.msra.mxu0 0.0
      %1698 = vmatprep.subr.mxu0 0.0
      %1699 = vmatpush2.msra.mxu0 0.0
      %1700 = vmatprep.subr.mxu0 0.0
      %1701 = vmatpush2.msra.mxu0 0.0
      %1702 = vmatprep.mubr.f32.mxu0 0.0
      %1703 = vmatmul.mubr.f32.gmra.mxu0 %v1633
      %v1704 = vpop.f32.mrf.mxu0
      %v1705 = vadd.f32 %v1629, %v1704
      %v1706 = vpop.f32.mrf.mxu0
      %1707 = vmatprep.mubr.f32.mxu0 0.0
      %1708 = vmatmul.mubr.f32.gmra.mxu0 %v1636
      %v1709 = vpop.f32.mrf.mxu0
      %v1710 = vadd.f32 %v1629, %v1709
      %v1711 = vpop.f32.mrf.mxu0
      %1712 = vdwg.mxu0
      %v1713 = vadd.f32 %v1520, %v1705
      %v1714 = vadd.f32 %v1521, %v1710
      %v1715 = vld [vmem:[%s11] sm:$0x1]
      %v1716 = vld [vmem:[%s12] sm:$0x1]
      %v1717 = vsel %vm454, %v1713, 0.0
      %1718 = vadd.xlane.f32.xlu0 %v1717
      %v1719 = vpop.xlane.xlu0 %1718
      %v1720 = vsel %vm1481, %v1714, 0.0
      %1721 = vadd.xlane.f32.xlu0 %v1720
      %v1722 = vpop.xlane.xlu0 %1721
      %v1723 = vmul.f32 %v1719, %v1485
      %v1724 = vmul.f32 %v1722, %v1485
      %v1725 = vsub.f32 %v1713, %v1723
      %v1726 = vsub.f32 %v1714, %v1724
      %v1727 = vmul.f32 %v1725, %v1725
      %v1728 = vmul.f32 %v1726, %v1726
      %v1729 = vsel %vm454, %v1727, 0.0
      %1730 = vadd.xlane.f32.xlu0 %v1729
      %v1731 = vpop.xlane.xlu0 %1730
      %v1732 = vsel %vm1481, %v1728, 0.0
      %1733 = vadd.xlane.f32.xlu0 %v1732
      %v1734 = vpop.xlane.xlu0 %1733
      %v1735 = vmul.f32 %v1731, %v1485
      %v1736 = vmul.f32 %v1734, %v1485
      %v1737 = vadd.f32 %v1735, 1e-05
      %v1738 = vadd.f32 %v1736, 1e-05
      %v1739 = vrsqrt.pop %v1737
      %v1740 = vrsqrt.pop %v1738
      %v1741 = vmul.f32 %v1725, %v1739
      %v1742 = vmul.f32 %v1726, %v1740
      %v1744 = vlaneseq
      %v1745 = vshrl.u32 %v1744, 7
      %v1746 = vsub.s32 0, %v1745
      %v1747 = vrot.slane %v1715, %v1746
      %v1749 = vmul.f32 %v1741, %v1747
      %v1750 = vmul.f32 %v1742, %v1747
      %v1752 = vlaneseq
      %v1753 = vshrl.u32 %v1752, 7
      %v1754 = vsub.s32 0, %v1753
      %v1755 = vrot.slane %v1716, %v1754
      %v1757 = vadd.f32 %v1749, %v1755
      %v1758 = vadd.f32 %v1750, %v1755
      %1759 = vst.msk [vmem:[%s440] sm:$0xff] %vm454, %v1757
      %1760 = vst.msk [vmem:[%s440 + $0x8] sm:$0xf] %vm1481, %v1758
      %p1761 = scmp.lt.s32.totalorder %s24, 1
      %s1762 = scalar_select %p1761, %s24, 1
      %s1763 = smul.addr %s1762, 2
      %s1764 = smul.addr %s1763, 8
      %s1765 = scalar_lea.vmem %s13, %s1764
      // Predicated region
      $region73: #{forward_train.9} parent=71 // pred_check
        %p1766 = pneg %p320
      $region74: #{forward_train.9} parent=71 // pred_check_branch
        %1768 = sbr.rel (%p1766) target = $region76
      $region75: #{forward_train.9} parent=71 // pred_region
        _
      $region76: #{forward_train.9} parent=71 // pred_fallthru
        _
    $region72: #{forward_train.9} parent=5 // pred_fallthru
      _
    %p1769 = scmp.le.s32.totalorder 2, %s19
    // Predicated region
    $region77: #{forward_train.9} parent=5 // pred_check
      %p1770 = pneg %p1769
    $region78: #{forward_train.9} parent=5 // pred_check_branch
      %1772 = sbr.rel (%p1770) target = $region80
    $region79: #{forward_train.9} parent=5 // pred_region
      %s1773 = ssub.s32 %s19, 2
      // Predicated region
      $region81: #{forward_train.9} parent=79 // pred_check
        %p1774 = pneg %p326
      $region82: #{forward_train.9} parent=79 // pred_check_branch
        %1776 = sbr.rel (%p1774) target = $region84
      $region83: #{forward_train.9} parent=79 // pred_region
        %p1777 = scmp.lt.s32.totalorder %s25, 1
        %s1778 = scalar_select %p1777, %s25, 1
        %s1779 = smul.addr %s1778, 2
        %s1780 = smul.addr %s1779, 8
        %s1781 = scalar_lea.vmem %s13, %s1780
      $region84: #{forward_train.9} parent=79 // pred_fallthru
        _
    $region80: #{forward_train.9} parent=5 // pred_fallthru
      _
  $region6: #{forward_train.9} parent=0 // loop_footer
    %s23 = sadd.s32 1, %s19
  $region7: #{forward_train.9} parent=0 // loop_footer_branch
    %18 = sbr.rel target = $region3
  $region8: #{forward_train.9} parent=0 // loop_exit
    _

// kernel: forward_train.13
$region0: #{forward_train.13}
  #allocation0 [shape = 'u32[]', space=smem, size = 0x4, offset = 0x4, fixed_abs, tag = 'smem constant byte address 0x4 - core index']
  #allocation1 [shape = 'u32[144,128]{1,0:T(1,128)}', space=vmem, size = 0x12000, scoped, tag = 'internal scratch']
  %s0 = inlined_call_operand.vmem [shape: f32[2,8,32], index: 0, kind: input, shape index: {}]
  %s1 = inlined_call_operand.vmem [shape: f32[32,40], index: 1, kind: input, shape index: {}]
  %s2 = inlined_call_operand.vmem [shape: f32[1,40], index: 2, kind: input, shape index: {}]
  %s3 = inlined_call_operand.vmem [shape: f32[2,8,40], index: 3, kind: output, shape index: {}]
  %s4 = sld [smem:[#allocation0]]
  $region22: #{forward_train.13} parent=0
    _
  %s6 = ssub.s32 1, %s4
  %s7 = scalar_select 0, %s6, %s4
  // Predicated region
  $region2: #{forward_train.13} parent=0 // pred_check
    _
  $region3: #{forward_train.13} parent=0 // pred_check_branch
    %9 = sbr.rel (0) target = $region5
  $region4: #{forward_train.13} parent=0 // pred_region
    _
  $region5: #{forward_train.13} parent=0 // pred_fallthru
    _
  // Predicated region
  $region6: #{forward_train.13} parent=0 // pred_check
    _
  $region7: #{forward_train.13} parent=0 // pred_check_branch
    %11 = sbr.rel (0) target = $region9
  $region8: #{forward_train.13} parent=0 // pred_region
    _
  $region9: #{forward_train.13} parent=0 // pred_fallthru
    _
  // Predicated region
  $region10: #{forward_train.13} parent=0 // pred_check
    _
  $region11: #{forward_train.13} parent=0 // pred_check_branch
    %13 = sbr.rel (0) target = $region13
  $region12: #{forward_train.13} parent=0 // pred_region
    _
  $region13: #{forward_train.13} parent=0 // pred_fallthru
    _
  %v14 = vld [vmem:[%s0] sm:$0xff]
  %v15 = vld [vmem:[%s1] sm:$0xff]
  %v16 = vld [vmem:[%s1 + $0x8] sm:$0xff]
  %v17 = vld [vmem:[%s1 + $0x10] sm:$0xff]
  %v18 = vld [vmem:[%s1 + $0x18] sm:$0xff]
  %v19 = vld [vmem:[%s2] sm:$0x1]
  %v21 = vlaneseq
  %v22 = vshrl.u32 %v21, 7
  %v23 = vsub.s32 0, %v22
  %v24 = vrot.slane %v19, %v23
  %vm26 = vcmask 261120
  %v28 = vsel %vm26, %v14, 0
  %30 = vmatprep.subr.mxu0 0.0
  %31 = vmatpush1.msra.mxu0 0.0
  %32 = vmatprep.subr.mxu0 0.0
  %33 = vmatpush1.msra.mxu0 0.0
  %34 = vmatprep.subr.mxu0 0.0
  %35 = vmatpush1.msra.mxu0 0.0
  %36 = vmatprep.subr.mxu0 0.0
  %37 = vmatpush1.msra.mxu0 0.0
  %38 = vmatprep.subr.mxu0 0.0
  %39 = vmatpush1.msra.mxu0 0.0
  %40 = vmatprep.subr.mxu0 0.0
  %41 = vmatpush1.msra.mxu0 0.0
  %42 = vmatprep.subr.mxu0 0.0
  %43 = vmatpush1.msra.mxu0 0.0
  %44 = vmatprep.subr.mxu0 0.0
  %45 = vmatpush1.msra.mxu0 0.0
  %46 = vmatprep.subr.mxu0 0.0
  %47 = vmatpush1.msra.mxu0 0.0
  %48 = vmatprep.subr.mxu0 0.0
  %49 = vmatpush1.msra.mxu0 0.0
  %50 = vmatprep.subr.mxu0 0.0
  %51 = vmatpush1.msra.mxu0 0.0
  %52 = vmatprep.subr.mxu0 0.0
  %53 = vmatpush1.msra.mxu0 0.0
  %54 = vmatprep.subr.mxu0 0.0
  %55 = vmatpush1.msra.mxu0 %v18
  %56 = vmatprep.subr.mxu0 0.0
  %57 = vmatpush1.msra.mxu0 %v17
  %58 = vmatprep.subr.mxu0 0.0
  %59 = vmatpush1.msra.mxu0 %v16
  %60 = vmatprep.subr.mxu0 0.0
  %61 = vmatpush1.msra.mxu0 %v15
  %62 = vmatprep.subr.mxu0 0.0
  %63 = vmatpush2.msra.mxu0 0.0
  %64 = vmatprep.subr.mxu0 0.0
  %65 = vmatpush2.msra.mxu0 0.0
  %66 = vmatprep.subr.mxu0 0.0
  %67 = vmatpush2.msra.mxu0 0.0
  %68 = vmatprep.subr.mxu0 0.0
  %69 = vmatpush2.msra.mxu0 0.0
  %70 = vmatprep.subr.mxu0 0.0
  %71 = vmatpush2.msra.mxu0 0.0
  %72 = vmatprep.subr.mxu0 0.0
  %73 = vmatpush2.msra.mxu0 0.0
  %74 = vmatprep.subr.mxu0 0.0
  %75 = vmatpush2.msra.mxu0 0.0
  %76 = vmatprep.subr.mxu0 0.0
  %77 = vmatpush2.msra.mxu0 0.0
  %78 = vmatprep.subr.mxu0 0.0
  %79 = vmatpush2.msra.mxu0 0.0
  %80 = vmatprep.subr.mxu0 0.0
  %81 = vmatpush2.msra.mxu0 0.0
  %82 = vmatprep.subr.mxu0 0.0
  %83 = vmatpush2.msra.mxu0 0.0
  %84 = vmatprep.subr.mxu0 0.0
  %85 = vmatpush2.msra.mxu0 0.0
  %86 = vmatprep.subr.mxu0 0.0
  %87 = vmatpush2.msra.mxu0 0.0
  %88 = vmatprep.subr.mxu0 0.0
  %89 = vmatpush2.msra.mxu0 0.0
  %90 = vmatprep.subr.mxu0 0.0
  %91 = vmatpush2.msra.mxu0 0.0
  %92 = vmatprep.subr.mxu0 0.0
  %93 = vmatpush2.msra.mxu0 0.0
  %94 = vmatprep.mubr.f32.mxu0 0.0
  %95 = vmatmul.mubr.f32.gmra.mxu0 %v28
  %v96 = vpop.f32.mrf.mxu0
  %v97 = vadd.f32 %v24, %v96
  %v98 = vpop.f32.mrf.mxu0
  %99 = vdwg.mxu0
  %vm100 = vcmask 326656
  %101 = vst.msk [vmem:[%s3] sm:$0xff] %vm100, %v97
  %s102 = scalar_lea.vmem %s0, 8
  %v103 = vld [vmem:[%s102] sm:$0xff]
  %v104 = vld [vmem:[%s1] sm:$0xff]
  %v105 = vld [vmem:[%s1 + $0x8] sm:$0xff]
  %v106 = vld [vmem:[%s1 + $0x10] sm:$0xff]
  %v107 = vld [vmem:[%s1 + $0x18] sm:$0xff]
  %v108 = vld [vmem:[%s2] sm:$0x1]
  %v110 = vlaneseq
  %v111 = vshrl.u32 %v110, 7
  %v112 = vsub.s32 0, %v111
  %v113 = vrot.slane %v108, %v112
  %v116 = vsel %vm26, %v103, 0
  %118 = vmatprep.subr.mxu0 0.0
  %119 = vmatpush1.msra.mxu0 0.0
  %120 = vmatprep.subr.mxu0 0.0
  %121 = vmatpush1.msra.mxu0 0.0
  %122 = vmatprep.subr.mxu0 0.0
  %123 = vmatpush1.msra.mxu0 0.0
  %124 = vmatprep.subr.mxu0 0.0
  %125 = vmatpush1.msra.mxu0 0.0
  %126 = vmatprep.subr.mxu0 0.0
  %127 = vmatpush1.msra.mxu0 0.0
  %128 = vmatprep.subr.mxu0 0.0
  %129 = vmatpush1.msra.mxu0 0.0
  %130 = vmatprep.subr.mxu0 0.0
  %131 = vmatpush1.msra.mxu0 0.0
  %132 = vmatprep.subr.mxu0 0.0
  %133 = vmatpush1.msra.mxu0 0.0
  %134 = vmatprep.subr.mxu0 0.0
  %135 = vmatpush1.msra.mxu0 0.0
  %136 = vmatprep.subr.mxu0 0.0
  %137 = vmatpush1.msra.mxu0 0.0
  %138 = vmatprep.subr.mxu0 0.0
  %139 = vmatpush1.msra.mxu0 0.0
  %140 = vmatprep.subr.mxu0 0.0
  %141 = vmatpush1.msra.mxu0 0.0
  %142 = vmatprep.subr.mxu0 0.0
  %143 = vmatpush1.msra.mxu0 %v107
  %144 = vmatprep.subr.mxu0 0.0
  %145 = vmatpush1.msra.mxu0 %v106
  %146 = vmatprep.subr.mxu0 0.0
  %147 = vmatpush1.msra.mxu0 %v105
  %148 = vmatprep.subr.mxu0 0.0
  %149 = vmatpush1.msra.mxu0 %v104
  %150 = vmatprep.subr.mxu0 0.0
  %151 = vmatpush2.msra.mxu0 0.0
  %152 = vmatprep.subr.mxu0 0.0
  %153 = vmatpush2.msra.mxu0 0.0
  %154 = vmatprep.subr.mxu0 0.0
  %155 = vmatpush2.msra.mxu0 0.0
  %156 = vmatprep.subr.mxu0 0.0
  %157 = vmatpush2.msra.mxu0 0.0
  %158 = vmatprep.subr.mxu0 0.0
  %159 = vmatpush2.msra.mxu0 0.0
  %160 = vmatprep.subr.mxu0 0.0
  %161 = vmatpush2.msra.mxu0 0.0
  %162 = vmatprep.subr.mxu0 0.0
  %163 = vmatpush2.msra.mxu0 0.0
  %164 = vmatprep.subr.mxu0 0.0
  %165 = vmatpush2.msra.mxu0 0.0
  %166 = vmatprep.subr.mxu0 0.0
  %167 = vmatpush2.msra.mxu0 0.0
  %168 = vmatprep.subr.mxu0 0.0
  %169 = vmatpush2.msra.mxu0 0.0
  %170 = vmatprep.subr.mxu0 0.0
  %171 = vmatpush2.msra.mxu0 0.0
  %172 = vmatprep.subr.mxu0 0.0
  %173 = vmatpush2.msra.mxu0 0.0
  %174 = vmatprep.subr.mxu0 0.0
  %175 = vmatpush2.msra.mxu0 0.0
  %176 = vmatprep.subr.mxu0 0.0
  %177 = vmatpush2.msra.mxu0 0.0
  %178 = vmatprep.subr.mxu0 0.0
  %179 = vmatpush2.msra.mxu0 0.0
  %180 = vmatprep.subr.mxu0 0.0
  %181 = vmatpush2.msra.mxu0 0.0
  %182 = vmatprep.mubr.f32.mxu0 0.0
  %183 = vmatmul.mubr.f32.gmra.mxu0 %v116
  %v184 = vpop.f32.mrf.mxu0
  %v185 = vadd.f32 %v113, %v184
  %v186 = vpop.f32.mrf.mxu0
  %187 = vdwg.mxu0
  %s188 = scalar_lea.vmem %s3, 8
  %189 = vst.msk [vmem:[%s188] sm:$0xff] %vm100, %v185
  // Predicated region
  $region14: #{forward_train.13} parent=0 // pred_check
    _
  $region15: #{forward_train.13} parent=0 // pred_check_branch
    %191 = sbr.rel (0) target = $region17
  $region16: #{forward_train.13} parent=0 // pred_region
    _
  $region17: #{forward_train.13} parent=0 // pred_fallthru
    _
  // Predicated region
  $region18: #{forward_train.13} parent=0 // pred_check
    _
  $region19: #{forward_train.13} parent=0 // pred_check_branch
    %193 = sbr.rel (0) target = $region21
  $region20: #{forward_train.13} parent=0 // pred_region
    _
  $region21: #{forward_train.13} parent=0 // pred_fallthru
    _

// kernel: forward_train.11
$region0: #{forward_train.11}
  #allocation0 [shape = 'u32[]', space=smem, size = 0x4, offset = 0x4, fixed_abs, tag = 'smem constant byte address 0x4 - core index']
  #allocation1 [shape = 'u32[144,128]{1,0:T(1,128)}', space=vmem, size = 0x12000, scoped, tag = 'internal scratch']
  #allocation2 [shape = 's32[1]{0}', space=sflag, size = 0x4, scoped, tag = 'scoped memory for forward_train.11']
  #allocation3 [shape = 'u8[512]{0}', space=smem, size = 0x200, scoped, tag = 'prefetched SMEM operand 0']
  %s0 = inlined_call_operand.vmem [shape: s32[2], index: 0, kind: input, shape index: {}]
  %s1 = inlined_call_operand.vmem [shape: f32[2,8,32], index: 1, kind: input, shape index: {}]
  %s2 = inlined_call_operand.vmem [shape: f32[2,12,32], index: 2, kind: input, shape index: {}]
  %s3 = inlined_call_operand.vmem [shape: f32[32,96], index: 3, kind: input, shape index: {}]
  %s4 = inlined_call_operand.vmem [shape: f32[1,96], index: 4, kind: input, shape index: {}]
  %s5 = inlined_call_operand.vmem [shape: f32[32,32], index: 5, kind: input, shape index: {}]
  %s6 = inlined_call_operand.vmem [shape: f32[1,32], index: 6, kind: input, shape index: {}]
  %s7 = inlined_call_operand.vmem [shape: f32[1,32], index: 7, kind: input, shape index: {}]
  %s8 = inlined_call_operand.vmem [shape: f32[1,32], index: 8, kind: input, shape index: {}]
  %s9 = inlined_call_operand.vmem [shape: f32[32,32], index: 9, kind: input, shape index: {}]
  %s10 = inlined_call_operand.vmem [shape: f32[1,32], index: 10, kind: input, shape index: {}]
  %s11 = inlined_call_operand.vmem [shape: f32[32,64], index: 11, kind: input, shape index: {}]
  %s12 = inlined_call_operand.vmem [shape: f32[1,64], index: 12, kind: input, shape index: {}]
  %s13 = inlined_call_operand.vmem [shape: f32[32,32], index: 13, kind: input, shape index: {}]
  %s14 = inlined_call_operand.vmem [shape: f32[1,32], index: 14, kind: input, shape index: {}]
  %s15 = inlined_call_operand.vmem [shape: f32[1,32], index: 15, kind: input, shape index: {}]
  %s16 = inlined_call_operand.vmem [shape: f32[1,32], index: 16, kind: input, shape index: {}]
  %s17 = inlined_call_operand.vmem [shape: f32[32,64], index: 17, kind: input, shape index: {}]
  %s18 = inlined_call_operand.vmem [shape: f32[1,64], index: 18, kind: input, shape index: {}]
  %s19 = inlined_call_operand.vmem [shape: f32[64,32], index: 19, kind: input, shape index: {}]
  %s20 = inlined_call_operand.vmem [shape: f32[1,32], index: 20, kind: input, shape index: {}]
  %s21 = inlined_call_operand.vmem [shape: f32[1,32], index: 21, kind: input, shape index: {}]
  %s22 = inlined_call_operand.vmem [shape: f32[1,32], index: 22, kind: input, shape index: {}]
  %s23 = inlined_call_operand.vmem [shape: f32[2,8,32], index: 23, kind: output, shape index: {}]
  %s24 = sld [smem:[#allocation0]]
  $region121: #{forward_train.11} parent=0
    _
  %s26 = ssub.s32 1, %s24
  %s27 = scalar_select 0, %s26, %s24
  %s28 = sshll.u32 %s0, 4
  %s29 = int_to_ptr.vmem [resolvable:$true] %s28
  %31 = dma.vmem_to_smem %s29, 16, [#allocation3], [#allocation2]
  %32 = dma.done [#allocation2], 16
  %33 = sfence
  loop: start=0, step=1, limit=4
  $region2: #{forward_train.11} parent=0 // loop_pre_header
    _
  $region3: #{forward_train.11} parent=0 // loop_header
    %s35 = sphi 0, %s39
    %p36 = scmp.ge.s32.totalorder %s35, 4
    %s45 = sphi 0, %s47
    %s48 = sphi 0, %s45
    %s49 = sphi 0, %s48
    %s65 = sphi 0, %s49
    %s71 = sphi 0, %s73
    %s74 = sphi 0, %s71
    %s75 = sphi 0, %s74
    %s91 = sphi 0, %s75
    %s95 = sphi 0, %s95
    %s97 = sphi 0, %s95
    %s98 = sphi 0, %s97
    %s112 = sphi 0, %s98
    %s116 = sphi 0, %s116
    %s118 = sphi 0, %s116
    %s119 = sphi 0, %s118
    %s133 = sphi 0, %s119
    %s137 = sphi 0, %s137
    %s139 = sphi 0, %s137
    %s140 = sphi 0, %s139
    %s154 = sphi 0, %s140
    %s158 = sphi 0, %s158
    %s160 = sphi 0, %s158
    %s161 = sphi 0, %s160
    %s175 = sphi 0, %s161
    %s179 = sphi 0, %s179
    %s181 = sphi 0, %s179
    %s182 = sphi 0, %s181
    %s196 = sphi 0, %s182
    %s200 = sphi 0, %s200
    %s202 = sphi 0, %s200
    %s203 = sphi 0, %s202
    %s217 = sphi 0, %s203
    %s221 = sphi 0, %s221
    %s223 = sphi 0, %s221
    %s224 = sphi 0, %s223
    %s238 = sphi 0, %s224
    %s242 = sphi 0, %s242
    %s244 = sphi 0, %s242
    %s245 = sphi 0, %s244
    %s259 = sphi 0, %s245
    %s263 = sphi 0, %s263
    %s265 = sphi 0, %s263
    %s266 = sphi 0, %s265
    %s280 = sphi 0, %s266
    %s284 = sphi 0, %s284
    %s286 = sphi 0, %s284
    %s287 = sphi 0, %s286
    %s301 = sphi 0, %s287
    %s305 = sphi 0, %s305
    %s307 = sphi 0, %s305
    %s308 = sphi 0, %s307
    %s322 = sphi 0, %s308
    %s326 = sphi 0, %s326
    %s328 = sphi 0, %s326
    %s329 = sphi 0, %s328
    %s343 = sphi 0, %s329
    %s347 = sphi 0, %s347
    %s349 = sphi 0, %s347
    %s350 = sphi 0, %s349
    %s364 = sphi 0, %s350
    %s368 = sphi 0, %s368
    %s370 = sphi 0, %s368
    %s371 = sphi 0, %s370
    %s385 = sphi 0, %s371
    %s389 = sphi 0, %s389
    %s391 = sphi 0, %s389
    %s392 = sphi 0, %s391
    %s406 = sphi 0, %s392
    %s410 = sphi 0, %s410
    %s412 = sphi 0, %s410
    %s413 = sphi 0, %s412
    %s427 = sphi 0, %s413
    %s431 = sphi 0, %s431
    %s433 = sphi 0, %s431
    %s434 = sphi 0, %s433
    %s448 = sphi 0, %s434
    %s452 = sphi 0, %s452
    %s454 = sphi 0, %s452
    %s455 = sphi 0, %s454
    %s469 = sphi 0, %s455
    %s473 = sphi 0, %s473
    %s475 = sphi 0, %s473
    %s476 = sphi 0, %s475
    %s490 = sphi 0, %s476
    %s494 = sphi 0, %s494
    %s496 = sphi 0, %s494
    %s497 = sphi 0, %s496
    %s511 = sphi 0, %s497
    %s517 = sphi 0, %s519
    %s520 = sphi 0, %s517
    %s521 = sphi 0, %s520
    %s537 = sphi 0, %s521
  $region4: #{forward_train.11} parent=0 // loop_header_branch
    %38 = sbr.rel (%p36) target = $region8
  $region5: #{forward_train.11} parent=0 // loop_body
    %s40 = ssub.s32 %s35, 1
    %s41 = ssub.s32 %s35, 2
    %s42 = sadd.s32 %s35, 1
    %s43 = ssub.s32 %s35, %s42
    %p44 = scmp.eq.s32.totalorder %s43, 0
    %s46 = sadd.s32 %s45, 1
    %s47 = scalar_select %p44, %s45, %s46
    %p50 = pneg %p44
    %p51 = scmp.eq.s32.totalorder %s35, 1
    %p52 = por %p50, %p51
    %p53 = scmp.ne.s32.totalorder %s45, %s48
    %p54 = scmp.eq.s32.totalorder %s35, 0
    %p55 = por %p53, %p54
    %p56 = scmp.ne.s32.totalorder %s45, %s48
    %p57 = scmp.eq.s32.totalorder %s40, 1
    %p58 = por %p56, %p57
    %p59 = scmp.ne.s32.totalorder %s48, %s49
    %p60 = scmp.eq.s32.totalorder %s40, 0
    %p61 = por %p59, %p60
    %p62 = scmp.ne.s32.totalorder %s48, %s49
    %p63 = scmp.eq.s32.totalorder %s41, 1
    %p64 = por %p62, %p63
    %p66 = scmp.ne.s32.totalorder %s49, %s65
    %p67 = scmp.eq.s32.totalorder %s41, 0
    %p68 = por %p66, %p67
    %s69 = ssub.s32 %s35, %s42
    %p70 = scmp.eq.s32.totalorder %s69, 0
    %s72 = sadd.s32 %s71, 1
    %s73 = scalar_select %p70, %s71, %s72
    %p76 = pneg %p70
    %p77 = scmp.eq.s32.totalorder %s35, 1
    %p78 = por %p76, %p77
    %p79 = scmp.ne.s32.totalorder %s71, %s74
    %p80 = scmp.eq.s32.totalorder %s35, 0
    %p81 = por %p79, %p80
    %p82 = scmp.ne.s32.totalorder %s71, %s74
    %p83 = scmp.eq.s32.totalorder %s40, 1
    %p84 = por %p82, %p83
    %p85 = scmp.ne.s32.totalorder %s74, %s75
    %p86 = scmp.eq.s32.totalorder %s40, 0
    %p87 = por %p85, %p86
    %p88 = scmp.ne.s32.totalorder %s74, %s75
    %p89 = scmp.eq.s32.totalorder %s41, 1
    %p90 = por %p88, %p89
    %p92 = scmp.ne.s32.totalorder %s75, %s91
    %p93 = scmp.eq.s32.totalorder %s41, 0
    %p94 = por %p92, %p93
    %s96 = sadd.s32 %s95, 1
    %p99 = scmp.eq.s32.totalorder %s35, 1
    %p100 = scmp.ne.s32.totalorder %s95, %s97
    %p101 = scmp.eq.s32.totalorder %s35, 0
    %p102 = por %p100, %p101
    %p103 = scmp.ne.s32.totalorder %s95, %s97
    %p104 = scmp.eq.s32.totalorder %s40, 1
    %p105 = por %p103, %p104
    %p106 = scmp.ne.s32.totalorder %s97, %s98
    %p107 = scmp.eq.s32.totalorder %s40, 0
    %p108 = por %p106, %p107
    %p109 = scmp.ne.s32.totalorder %s97, %s98
    %p110 = scmp.eq.s32.totalorder %s41, 1
    %p111 = por %p109, %p110
    %p113 = scmp.ne.s32.totalorder %s98, %s112
    %p114 = scmp.eq.s32.totalorder %s41, 0
    %p115 = por %p113, %p114
    %s117 = sadd.s32 %s116, 1
    %p120 = scmp.eq.s32.totalorder %s35, 1
    %p121 = scmp.ne.s32.totalorder %s116, %s118
    %p122 = scmp.eq.s32.totalorder %s35, 0
    %p123 = por %p121, %p122
    %p124 = scmp.ne.s32.totalorder %s116, %s118
    %p125 = scmp.eq.s32.totalorder %s40, 1
    %p126 = por %p124, %p125
    %p127 = scmp.ne.s32.totalorder %s118, %s119
    %p128 = scmp.eq.s32.totalorder %s40, 0
    %p129 = por %p127, %p128
    %p130 = scmp.ne.s32.totalorder %s118, %s119
    %p131 = scmp.eq.s32.totalorder %s41, 1
    %p132 = por %p130, %p131
    %p134 = scmp.ne.s32.totalorder %s119, %s133
    %p135 = scmp.eq.s32.totalorder %s41, 0
    %p136 = por %p134, %p135
    %s138 = sadd.s32 %s137, 1
    %p141 = scmp.eq.s32.totalorder %s35, 1
    %p142 = scmp.ne.s32.totalorder %s137, %s139
    %p143 = scmp.eq.s32.totalorder %s35, 0
    %p144 = por %p142, %p143
    %p145 = scmp.ne.s32.totalorder %s137, %s139
    %p146 = scmp.eq.s32.totalorder %s40, 1
    %p147 = por %p145, %p146
    %p148 = scmp.ne.s32.totalorder %s139, %s140
    %p149 = scmp.eq.s32.totalorder %s40, 0
    %p150 = por %p148, %p149
    %p151 = scmp.ne.s32.totalorder %s139, %s140
    %p152 = scmp.eq.s32.totalorder %s41, 1
    %p153 = por %p151, %p152
    %p155 = scmp.ne.s32.totalorder %s140, %s154
    %p156 = scmp.eq.s32.totalorder %s41, 0
    %p157 = por %p155, %p156
    %s159 = sadd.s32 %s158, 1
    %p162 = scmp.eq.s32.totalorder %s35, 1
    %p163 = scmp.ne.s32.totalorder %s158, %s160
    %p164 = scmp.eq.s32.totalorder %s35, 0
    %p165 = por %p163, %p164
    %p166 = scmp.ne.s32.totalorder %s158, %s160
    %p167 = scmp.eq.s32.totalorder %s40, 1
    %p168 = por %p166, %p167
    %p169 = scmp.ne.s32.totalorder %s160, %s161
    %p170 = scmp.eq.s32.totalorder %s40, 0
    %p171 = por %p169, %p170
    %p172 = scmp.ne.s32.totalorder %s160, %s161
    %p173 = scmp.eq.s32.totalorder %s41, 1
    %p174 = por %p172, %p173
    %p176 = scmp.ne.s32.totalorder %s161, %s175
    %p177 = scmp.eq.s32.totalorder %s41, 0
    %p178 = por %p176, %p177
    %s180 = sadd.s32 %s179, 1
    %p183 = scmp.eq.s32.totalorder %s35, 1
    %p184 = scmp.ne.s32.totalorder %s179, %s181
    %p185 = scmp.eq.s32.totalorder %s35, 0
    %p186 = por %p184, %p185
    %p187 = scmp.ne.s32.totalorder %s179, %s181
    %p188 = scmp.eq.s32.totalorder %s40, 1
    %p189 = por %p187, %p188
    %p190 = scmp.ne.s32.totalorder %s181, %s182
    %p191 = scmp.eq.s32.totalorder %s40, 0
    %p192 = por %p190, %p191
    %p193 = scmp.ne.s32.totalorder %s181, %s182
    %p194 = scmp.eq.s32.totalorder %s41, 1
    %p195 = por %p193, %p194
    %p197 = scmp.ne.s32.totalorder %s182, %s196
    %p198 = scmp.eq.s32.totalorder %s41, 0
    %p199 = por %p197, %p198
    %s201 = sadd.s32 %s200, 1
    %p204 = scmp.eq.s32.totalorder %s35, 1
    %p205 = scmp.ne.s32.totalorder %s200, %s202
    %p206 = scmp.eq.s32.totalorder %s35, 0
    %p207 = por %p205, %p206
    %p208 = scmp.ne.s32.totalorder %s200, %s202
    %p209 = scmp.eq.s32.totalorder %s40, 1
    %p210 = por %p208, %p209
    %p211 = scmp.ne.s32.totalorder %s202, %s203
    %p212 = scmp.eq.s32.totalorder %s40, 0
    %p213 = por %p211, %p212
    %p214 = scmp.ne.s32.totalorder %s202, %s203
    %p215 = scmp.eq.s32.totalorder %s41, 1
    %p216 = por %p214, %p215
    %p218 = scmp.ne.s32.totalorder %s203, %s217
    %p219 = scmp.eq.s32.totalorder %s41, 0
    %p220 = por %p218, %p219
    %s222 = sadd.s32 %s221, 1
    %p225 = scmp.eq.s32.totalorder %s35, 1
    %p226 = scmp.ne.s32.totalorder %s221, %s223
    %p227 = scmp.eq.s32.totalorder %s35, 0
    %p228 = por %p226, %p227
    %p229 = scmp.ne.s32.totalorder %s221, %s223
    %p230 = scmp.eq.s32.totalorder %s40, 1
    %p231 = por %p229, %p230
    %p232 = scmp.ne.s32.totalorder %s223, %s224
    %p233 = scmp.eq.s32.totalorder %s40, 0
    %p234 = por %p232, %p233
    %p235 = scmp.ne.s32.totalorder %s223, %s224
    %p236 = scmp.eq.s32.totalorder %s41, 1
    %p237 = por %p235, %p236
    %p239 = scmp.ne.s32.totalorder %s224, %s238
    %p240 = scmp.eq.s32.totalorder %s41, 0
    %p241 = por %p239, %p240
    %s243 = sadd.s32 %s242, 1
    %p246 = scmp.eq.s32.totalorder %s35, 1
    %p247 = scmp.ne.s32.totalorder %s242, %s244
    %p248 = scmp.eq.s32.totalorder %s35, 0
    %p249 = por %p247, %p248
    %p250 = scmp.ne.s32.totalorder %s242, %s244
    %p251 = scmp.eq.s32.totalorder %s40, 1
    %p252 = por %p250, %p251
    %p253 = scmp.ne.s32.totalorder %s244, %s245
    %p254 = scmp.eq.s32.totalorder %s40, 0
    %p255 = por %p253, %p254
    %p256 = scmp.ne.s32.totalorder %s244, %s245
    %p257 = scmp.eq.s32.totalorder %s41, 1
    %p258 = por %p256, %p257
    %p260 = scmp.ne.s32.totalorder %s245, %s259
    %p261 = scmp.eq.s32.totalorder %s41, 0
    %p262 = por %p260, %p261
    %s264 = sadd.s32 %s263, 1
    %p267 = scmp.eq.s32.totalorder %s35, 1
    %p268 = scmp.ne.s32.totalorder %s263, %s265
    %p269 = scmp.eq.s32.totalorder %s35, 0
    %p270 = por %p268, %p269
    %p271 = scmp.ne.s32.totalorder %s263, %s265
    %p272 = scmp.eq.s32.totalorder %s40, 1
    %p273 = por %p271, %p272
    %p274 = scmp.ne.s32.totalorder %s265, %s266
    %p275 = scmp.eq.s32.totalorder %s40, 0
    %p276 = por %p274, %p275
    %p277 = scmp.ne.s32.totalorder %s265, %s266
    %p278 = scmp.eq.s32.totalorder %s41, 1
    %p279 = por %p277, %p278
    %p281 = scmp.ne.s32.totalorder %s266, %s280
    %p282 = scmp.eq.s32.totalorder %s41, 0
    %p283 = por %p281, %p282
    %s285 = sadd.s32 %s284, 1
    %p288 = scmp.eq.s32.totalorder %s35, 1
    %p289 = scmp.ne.s32.totalorder %s284, %s286
    %p290 = scmp.eq.s32.totalorder %s35, 0
    %p291 = por %p289, %p290
    %p292 = scmp.ne.s32.totalorder %s284, %s286
    %p293 = scmp.eq.s32.totalorder %s40, 1
    %p294 = por %p292, %p293
    %p295 = scmp.ne.s32.totalorder %s286, %s287
    %p296 = scmp.eq.s32.totalorder %s40, 0
    %p297 = por %p295, %p296
    %p298 = scmp.ne.s32.totalorder %s286, %s287
    %p299 = scmp.eq.s32.totalorder %s41, 1
    %p300 = por %p298, %p299
    %p302 = scmp.ne.s32.totalorder %s287, %s301
    %p303 = scmp.eq.s32.totalorder %s41, 0
    %p304 = por %p302, %p303
    %s306 = sadd.s32 %s305, 1
    %p309 = scmp.eq.s32.totalorder %s35, 1
    %p310 = scmp.ne.s32.totalorder %s305, %s307
    %p311 = scmp.eq.s32.totalorder %s35, 0
    %p312 = por %p310, %p311
    %p313 = scmp.ne.s32.totalorder %s305, %s307
    %p314 = scmp.eq.s32.totalorder %s40, 1
    %p315 = por %p313, %p314
    %p316 = scmp.ne.s32.totalorder %s307, %s308
    %p317 = scmp.eq.s32.totalorder %s40, 0
    %p318 = por %p316, %p317
    %p319 = scmp.ne.s32.totalorder %s307, %s308
    %p320 = scmp.eq.s32.totalorder %s41, 1
    %p321 = por %p319, %p320
    %p323 = scmp.ne.s32.totalorder %s308, %s322
    %p324 = scmp.eq.s32.totalorder %s41, 0
    %p325 = por %p323, %p324
    %s327 = sadd.s32 %s326, 1
    %p330 = scmp.eq.s32.totalorder %s35, 1
    %p331 = scmp.ne.s32.totalorder %s326, %s328
    %p332 = scmp.eq.s32.totalorder %s35, 0
    %p333 = por %p331, %p332
    %p334 = scmp.ne.s32.totalorder %s326, %s328
    %p335 = scmp.eq.s32.totalorder %s40, 1
    %p336 = por %p334, %p335
    %p337 = scmp.ne.s32.totalorder %s328, %s329
    %p338 = scmp.eq.s32.totalorder %s40, 0
    %p339 = por %p337, %p338
    %p340 = scmp.ne.s32.totalorder %s328, %s329
    %p341 = scmp.eq.s32.totalorder %s41, 1
    %p342 = por %p340, %p341
    %p344 = scmp.ne.s32.totalorder %s329, %s343
    %p345 = scmp.eq.s32.totalorder %s41, 0
    %p346 = por %p344, %p345
    %s348 = sadd.s32 %s347, 1
    %p351 = scmp.eq.s32.totalorder %s35, 1
    %p352 = scmp.ne.s32.totalorder %s347, %s349
    %p353 = scmp.eq.s32.totalorder %s35, 0
    %p354 = por %p352, %p353
    %p355 = scmp.ne.s32.totalorder %s347, %s349
    %p356 = scmp.eq.s32.totalorder %s40, 1
    %p357 = por %p355, %p356
    %p358 = scmp.ne.s32.totalorder %s349, %s350
    %p359 = scmp.eq.s32.totalorder %s40, 0
    %p360 = por %p358, %p359
    %p361 = scmp.ne.s32.totalorder %s349, %s350
    %p362 = scmp.eq.s32.totalorder %s41, 1
    %p363 = por %p361, %p362
    %p365 = scmp.ne.s32.totalorder %s350, %s364
    %p366 = scmp.eq.s32.totalorder %s41, 0
    %p367 = por %p365, %p366
    %s369 = sadd.s32 %s368, 1
    %p372 = scmp.eq.s32.totalorder %s35, 1
    %p373 = scmp.ne.s32.totalorder %s368, %s370
    %p374 = scmp.eq.s32.totalorder %s35, 0
    %p375 = por %p373, %p374
    %p376 = scmp.ne.s32.totalorder %s368, %s370
    %p377 = scmp.eq.s32.totalorder %s40, 1
    %p378 = por %p376, %p377
    %p379 = scmp.ne.s32.totalorder %s370, %s371
    %p380 = scmp.eq.s32.totalorder %s40, 0
    %p381 = por %p379, %p380
    %p382 = scmp.ne.s32.totalorder %s370, %s371
    %p383 = scmp.eq.s32.totalorder %s41, 1
    %p384 = por %p382, %p383
    %p386 = scmp.ne.s32.totalorder %s371, %s385
    %p387 = scmp.eq.s32.totalorder %s41, 0
    %p388 = por %p386, %p387
    %s390 = sadd.s32 %s389, 1
    %p393 = scmp.eq.s32.totalorder %s35, 1
    %p394 = scmp.ne.s32.totalorder %s389, %s391
    %p395 = scmp.eq.s32.totalorder %s35, 0
    %p396 = por %p394, %p395
    %p397 = scmp.ne.s32.totalorder %s389, %s391
    %p398 = scmp.eq.s32.totalorder %s40, 1
    %p399 = por %p397, %p398
    %p400 = scmp.ne.s32.totalorder %s391, %s392
    %p401 = scmp.eq.s32.totalorder %s40, 0
    %p402 = por %p400, %p401
    %p403 = scmp.ne.s32.totalorder %s391, %s392
    %p404 = scmp.eq.s32.totalorder %s41, 1
    %p405 = por %p403, %p404
    %p407 = scmp.ne.s32.totalorder %s392, %s406
    %p408 = scmp.eq.s32.totalorder %s41, 0
    %p409 = por %p407, %p408
    %s411 = sadd.s32 %s410, 1
    %p414 = scmp.eq.s32.totalorder %s35, 1
    %p415 = scmp.ne.s32.totalorder %s410, %s412
    %p416 = scmp.eq.s32.totalorder %s35, 0
    %p417 = por %p415, %p416
    %p418 = scmp.ne.s32.totalorder %s410, %s412
    %p419 = scmp.eq.s32.totalorder %s40, 1
    %p420 = por %p418, %p419
    %p421 = scmp.ne.s32.totalorder %s412, %s413
    %p422 = scmp.eq.s32.totalorder %s40, 0
    %p423 = por %p421, %p422
    %p424 = scmp.ne.s32.totalorder %s412, %s413
    %p425 = scmp.eq.s32.totalorder %s41, 1
    %p426 = por %p424, %p425
    %p428 = scmp.ne.s32.totalorder %s413, %s427
    %p429 = scmp.eq.s32.totalorder %s41, 0
    %p430 = por %p428, %p429
    %s432 = sadd.s32 %s431, 1
    %p435 = scmp.eq.s32.totalorder %s35, 1
    %p436 = scmp.ne.s32.totalorder %s431, %s433
    %p437 = scmp.eq.s32.totalorder %s35, 0
    %p438 = por %p436, %p437
    %p439 = scmp.ne.s32.totalorder %s431, %s433
    %p440 = scmp.eq.s32.totalorder %s40, 1
    %p441 = por %p439, %p440
    %p442 = scmp.ne.s32.totalorder %s433, %s434
    %p443 = scmp.eq.s32.totalorder %s40, 0
    %p444 = por %p442, %p443
    %p445 = scmp.ne.s32.totalorder %s433, %s434
    %p446 = scmp.eq.s32.totalorder %s41, 1
    %p447 = por %p445, %p446
    %p449 = scmp.ne.s32.totalorder %s434, %s448
    %p450 = scmp.eq.s32.totalorder %s41, 0
    %p451 = por %p449, %p450
    %s453 = sadd.s32 %s452, 1
    %p456 = scmp.eq.s32.totalorder %s35, 1
    %p457 = scmp.ne.s32.totalorder %s452, %s454
    %p458 = scmp.eq.s32.totalorder %s35, 0
    %p459 = por %p457, %p458
    %p460 = scmp.ne.s32.totalorder %s452, %s454
    %p461 = scmp.eq.s32.totalorder %s40, 1
    %p462 = por %p460, %p461
    %p463 = scmp.ne.s32.totalorder %s454, %s455
    %p464 = scmp.eq.s32.totalorder %s40, 0
    %p465 = por %p463, %p464
    %p466 = scmp.ne.s32.totalorder %s454, %s455
    %p467 = scmp.eq.s32.totalorder %s41, 1
    %p468 = por %p466, %p467
    %p470 = scmp.ne.s32.totalorder %s455, %s469
    %p471 = scmp.eq.s32.totalorder %s41, 0
    %p472 = por %p470, %p471
    %s474 = sadd.s32 %s473, 1
    %p477 = scmp.eq.s32.totalorder %s35, 1
    %p478 = scmp.ne.s32.totalorder %s473, %s475
    %p479 = scmp.eq.s32.totalorder %s35, 0
    %p480 = por %p478, %p479
    %p481 = scmp.ne.s32.totalorder %s473, %s475
    %p482 = scmp.eq.s32.totalorder %s40, 1
    %p483 = por %p481, %p482
    %p484 = scmp.ne.s32.totalorder %s475, %s476
    %p485 = scmp.eq.s32.totalorder %s40, 0
    %p486 = por %p484, %p485
    %p487 = scmp.ne.s32.totalorder %s475, %s476
    %p488 = scmp.eq.s32.totalorder %s41, 1
    %p489 = por %p487, %p488
    %p491 = scmp.ne.s32.totalorder %s476, %s490
    %p492 = scmp.eq.s32.totalorder %s41, 0
    %p493 = por %p491, %p492
    %s495 = sadd.s32 %s494, 1
    %p498 = scmp.eq.s32.totalorder %s35, 1
    %p499 = scmp.ne.s32.totalorder %s494, %s496
    %p500 = scmp.eq.s32.totalorder %s35, 0
    %p501 = por %p499, %p500
    %p502 = scmp.ne.s32.totalorder %s494, %s496
    %p503 = scmp.eq.s32.totalorder %s40, 1
    %p504 = por %p502, %p503
    %p505 = scmp.ne.s32.totalorder %s496, %s497
    %p506 = scmp.eq.s32.totalorder %s40, 0
    %p507 = por %p505, %p506
    %p508 = scmp.ne.s32.totalorder %s496, %s497
    %p509 = scmp.eq.s32.totalorder %s41, 1
    %p510 = por %p508, %p509
    %p512 = scmp.ne.s32.totalorder %s497, %s511
    %p513 = scmp.eq.s32.totalorder %s41, 0
    %p514 = por %p512, %p513
    %s515 = ssub.s32 %s35, %s42
    %p516 = scmp.eq.s32.totalorder %s515, 0
    %s518 = sadd.s32 %s517, 1
    %s519 = scalar_select %p516, %s517, %s518
    %p522 = pneg %p516
    %p523 = scmp.eq.s32.totalorder %s35, 1
    %p524 = por %p522, %p523
    %p525 = scmp.ne.s32.totalorder %s517, %s520
    %p526 = scmp.eq.s32.totalorder %s35, 0
    %p527 = por %p525, %p526
    %p528 = scmp.ne.s32.totalorder %s517, %s520
    %p529 = scmp.eq.s32.totalorder %s40, 1
    %p530 = por %p528, %p529
    %p531 = scmp.ne.s32.totalorder %s520, %s521
    %p532 = scmp.eq.s32.totalorder %s40, 0
    %p533 = por %p531, %p532
    %p534 = scmp.ne.s32.totalorder %s520, %s521
    %p535 = scmp.eq.s32.totalorder %s41, 1
    %p536 = por %p534, %p535
    %p538 = scmp.ne.s32.totalorder %s521, %s537
    %p539 = scmp.eq.s32.totalorder %s41, 0
    %p540 = por %p538, %p539
    %p541 = scmp.le.s32.totalorder 1, %s35
    %p542 = scmp.lt.s32.totalorder %s35, 3
    %p543 = pnand %p541, %p542
    %p544 = pneg %p543
    // Predicated region
    $region9: #{forward_train.11} parent=5 // pred_check
      _
    $region10: #{forward_train.11} parent=5 // pred_check_branch
      %546 = sbr.rel (%p543) target = $region12
    $region11: #{forward_train.11} parent=5 // pred_region
      %s547 = ssub.s32 %s35, 1
      // Predicated region
      $region13: #{forward_train.11} parent=11 // pred_check
        %p548 = pneg %p108
      $region14: #{forward_train.11} parent=11 // pred_check_branch
        %550 = sbr.rel (%p548) target = $region16
      $region15: #{forward_train.11} parent=11 // pred_region
        _
      $region16: #{forward_train.11} parent=11 // pred_fallthru
        _
      // Predicated region
      $region17: #{forward_train.11} parent=11 // pred_check
        %p551 = pneg %p129
      $region18: #{forward_train.11} parent=11 // pred_check_branch
        %553 = sbr.rel (%p551) target = $region20
      $region19: #{forward_train.11} parent=11 // pred_region
        _
      $region20: #{forward_train.11} parent=11 // pred_fallthru
        _
      // Predicated region
      $region21: #{forward_train.11} parent=11 // pred_check
        %p554 = pneg %p150
      $region22: #{forward_train.11} parent=11 // pred_check_branch
        %556 = sbr.rel (%p554) target = $region24
      $region23: #{forward_train.11} parent=11 // pred_region
        _
      $region24: #{forward_train.11} parent=11 // pred_fallthru
        _
      // Predicated region
      $region25: #{forward_train.11} parent=11 // pred_check
        %p557 = pneg %p171
      $region26: #{forward_train.11} parent=11 // pred_check_branch
        %559 = sbr.rel (%p557) target = $region28
      $region27: #{forward_train.11} parent=11 // pred_region
        _
      $region28: #{forward_train.11} parent=11 // pred_fallthru
        _
      // Predicated region
      $region29: #{forward_train.11} parent=11 // pred_check
        %p560 = pneg %p192
      $region30: #{forward_train.11} parent=11 // pred_check_branch
        %562 = sbr.rel (%p560) target = $region32
      $region31: #{forward_train.11} parent=11 // pred_region
        _
      $region32: #{forward_train.11} parent=11 // pred_fallthru
        _
      // Predicated region
      $region33: #{forward_train.11} parent=11 // pred_check
        %p563 = pneg %p213
      $region34: #{forward_train.11} parent=11 // pred_check_branch
        %565 = sbr.rel (%p563) target = $region36
      $region35: #{forward_train.11} parent=11 // pred_region
        _
      $region36: #{forward_train.11} parent=11 // pred_fallthru
        _
      // Predicated region
      $region37: #{forward_train.11} parent=11 // pred_check
        %p566 = pneg %p234
      $region38: #{forward_train.11} parent=11 // pred_check_branch
        %568 = sbr.rel (%p566) target = $region40
      $region39: #{forward_train.11} parent=11 // pred_region
        _
      $region40: #{forward_train.11} parent=11 // pred_fallthru
        _
      // Predicated region
      $region41: #{forward_train.11} parent=11 // pred_check
        %p569 = pneg %p255
      $region42: #{forward_train.11} parent=11 // pred_check_branch
        %571 = sbr.rel (%p569) target = $region44
      $region43: #{forward_train.11} parent=11 // pred_region
        _
      $region44: #{forward_train.11} parent=11 // pred_fallthru
        _
      // Predicated region
      $region45: #{forward_train.11} parent=11 // pred_check
        %p572 = pneg %p276
      $region46: #{forward_train.11} parent=11 // pred_check_branch
        %574 = sbr.rel (%p572) target = $region48
      $region47: #{forward_train.11} parent=11 // pred_region
        _
      $region48: #{forward_train.11} parent=11 // pred_fallthru
        _
      // Predicated region
      $region49: #{forward_train.11} parent=11 // pred_check
        %p575 = pneg %p297
      $region50: #{forward_train.11} parent=11 // pred_check_branch
        %577 = sbr.rel (%p575) target = $region52
      $region51: #{forward_train.11} parent=11 // pred_region
        _
      $region52: #{forward_train.11} parent=11 // pred_fallthru
        _
      // Predicated region
      $region53: #{forward_train.11} parent=11 // pred_check
        %p578 = pneg %p318
      $region54: #{forward_train.11} parent=11 // pred_check_branch
        %580 = sbr.rel (%p578) target = $region56
      $region55: #{forward_train.11} parent=11 // pred_region
        _
      $region56: #{forward_train.11} parent=11 // pred_fallthru
        _
      // Predicated region
      $region57: #{forward_train.11} parent=11 // pred_check
        %p581 = pneg %p339
      $region58: #{forward_train.11} parent=11 // pred_check_branch
        %583 = sbr.rel (%p581) target = $region60
      $region59: #{forward_train.11} parent=11 // pred_region
        _
      $region60: #{forward_train.11} parent=11 // pred_fallthru
        _
      // Predicated region
      $region61: #{forward_train.11} parent=11 // pred_check
        %p584 = pneg %p360
      $region62: #{forward_train.11} parent=11 // pred_check_branch
        %586 = sbr.rel (%p584) target = $region64
      $region63: #{forward_train.11} parent=11 // pred_region
        _
      $region64: #{forward_train.11} parent=11 // pred_fallthru
        _
      // Predicated region
      $region65: #{forward_train.11} parent=11 // pred_check
        %p587 = pneg %p381
      $region66: #{forward_train.11} parent=11 // pred_check_branch
        %589 = sbr.rel (%p587) target = $region68
      $region67: #{forward_train.11} parent=11 // pred_region
        _
      $region68: #{forward_train.11} parent=11 // pred_fallthru
        _
      // Predicated region
      $region69: #{forward_train.11} parent=11 // pred_check
        %p590 = pneg %p402
      $region70: #{forward_train.11} parent=11 // pred_check_branch
        %592 = sbr.rel (%p590) target = $region72
      $region71: #{forward_train.11} parent=11 // pred_region
        _
      $region72: #{forward_train.11} parent=11 // pred_fallthru
        _
      // Predicated region
      $region73: #{forward_train.11} parent=11 // pred_check
        %p593 = pneg %p423
      $region74: #{forward_train.11} parent=11 // pred_check_branch
        %595 = sbr.rel (%p593) target = $region76
      $region75: #{forward_train.11} parent=11 // pred_region
        _
      $region76: #{forward_train.11} parent=11 // pred_fallthru
        _
      // Predicated region
      $region77: #{forward_train.11} parent=11 // pred_check
        %p596 = pneg %p444
      $region78: #{forward_train.11} parent=11 // pred_check_branch
        %598 = sbr.rel (%p596) target = $region80
      $region79: #{forward_train.11} parent=11 // pred_region
        _
      $region80: #{forward_train.11} parent=11 // pred_fallthru
        _
      // Predicated region
      $region81: #{forward_train.11} parent=11 // pred_check
        %p599 = pneg %p465
      $region82: #{forward_train.11} parent=11 // pred_check_branch
        %601 = sbr.rel (%p599) target = $region84
      $region83: #{forward_train.11} parent=11 // pred_region
        _
      $region84: #{forward_train.11} parent=11 // pred_fallthru
        _
      // Predicated region
      $region85: #{forward_train.11} parent=11 // pred_check
        %p602 = pneg %p486
      $region86: #{forward_train.11} parent=11 // pred_check_branch
        %604 = sbr.rel (%p602) target = $region88
      $region87: #{forward_train.11} parent=11 // pred_region
        _
      $region88: #{forward_train.11} parent=11 // pred_fallthru
        _
      // Predicated region
      $region89: #{forward_train.11} parent=11 // pred_check
        %p605 = pneg %p507
      $region90: #{forward_train.11} parent=11 // pred_check_branch
        %607 = sbr.rel (%p605) target = $region92
      $region91: #{forward_train.11} parent=11 // pred_region
        _
      $region92: #{forward_train.11} parent=11 // pred_fallthru
        _
    $region12: #{forward_train.11} parent=5 // pred_fallthru
      _
    %p608 = scmp.lt.s32.totalorder %s35, 2
    // Predicated region
    $region93: #{forward_train.11} parent=5 // pred_check
      %p609 = pneg %p608
    $region94: #{forward_train.11} parent=5 // pred_check_branch
      %611 = sbr.rel (%p609) target = $region96
    $region95: #{forward_train.11} parent=5 // pred_region
      // Predicated region
      $region97: #{forward_train.11} parent=95 // pred_check
        %p612 = pneg %p55
      $region98: #{forward_train.11} parent=95 // pred_check_branch
        %614 = sbr.rel (%p612) target = $region100
      $region99: #{forward_train.11} parent=95 // pred_region
        %p615 = scmp.lt.s32.totalorder %s35, 1
        %s616 = scalar_select %p615, %s35, 1
        %s617 = smul.addr %s616, 8
        %s618 = scalar_lea.vmem %s1, %s617
      $region100: #{forward_train.11} parent=95 // pred_fallthru
        _
      // Predicated region
      $region101: #{forward_train.11} parent=95 // pred_check
        %p619 = pneg %p81
      $region102: #{forward_train.11} parent=95 // pred_check_branch
        %621 = sbr.rel (%p619) target = $region104
      $region103: #{forward_train.11} parent=95 // pred_region
        %p622 = scmp.lt.s32.totalorder %s35, 1
        %s623 = scalar_select %p622, %s35, 1
        %s624 = smul.addr %s623, 2
        %s625 = smul.addr %s624, 8
        %s626 = scalar_lea.vmem %s2, %s625
      $region104: #{forward_train.11} parent=95 // pred_fallthru
        _
    $region96: #{forward_train.11} parent=5 // pred_fallthru
      _
    %p627 = scmp.le.s32.totalorder 1, %s35
    %p628 = scmp.lt.s32.totalorder %s35, 3
    %p629 = pnand %p627, %p628
    %p630 = pneg %p629
    // Predicated region
    $region105: #{forward_train.11} parent=5 // pred_check
      _
    $region106: #{forward_train.11} parent=5 // pred_check_branch
      %632 = sbr.rel (%p629) target = $region108
    $region107: #{forward_train.11} parent=5 // pred_region
      %s633 = ssub.s32 %s35, 1
      %p634 = scmp.lt.s32.totalorder %s40, 1
      %s635 = scalar_select %p634, %s40, 1
      %s636 = smul.addr %s635, 8
      %s637 = scalar_lea.vmem %s1, %s636
      %p638 = pneg %p61
      %p639 = pneg %p58
      %p640 = scmp.lt.s32.totalorder %s40, 1
      %s641 = scalar_select %p640, %s40, 1
      %s642 = smul.addr %s641, 2
      %s643 = smul.addr %s642, 8
      %s644 = scalar_lea.vmem %s2, %s643
      %p645 = pneg %p87
      %p646 = pneg %p84
      %p647 = pneg %p108
      %p648 = pneg %p105
      %p649 = pneg %p129
      %p650 = pneg %p126
      %p651 = pneg %p150
      %p652 = pneg %p147
      %p653 = pneg %p171
      %p654 = pneg %p168
      %p655 = pneg %p192
      %p656 = pneg %p189
      %p657 = pneg %p213
      %p658 = pneg %p210
      %p659 = pneg %p234
      %p660 = pneg %p231
      %p661 = pneg %p255
      %p662 = pneg %p252
      %p663 = pneg %p276
      %p664 = pneg %p273
      %p665 = pneg %p297
      %p666 = pneg %p294
      %p667 = pneg %p318
      %p668 = pneg %p315
      %p669 = pneg %p339
      %p670 = pneg %p336
      %p671 = pneg %p360
      %p672 = pneg %p357
      %p673 = pneg %p381
      %p674 = pneg %p378
      %p675 = pneg %p402
      %p676 = pneg %p399
      %p677 = pneg %p423
      %p678 = pneg %p420
      %p679 = pneg %p444
      %p680 = pneg %p441
      %p681 = pneg %p465
      %p682 = pneg %p462
      %p683 = pneg %p486
      %p684 = pneg %p483
      %p685 = pneg %p507
      %p686 = pneg %p504
      %p687 = pneg %p533
      %p688 = pneg %p530
      %p689 = scmp.lt.s32.totalorder %s40, 1
      %s690 = scalar_select %p689, %s40, 1
      %s691 = smul.addr %s690, 8
      %s692 = scalar_lea.vmem %s23, %s691
      %p693 = scmp.lt.s32.totalorder %s40, 1
      %s694 = scalar_select %p693, %s40, 1
      %s695 = smul.addr %s694, 8
      %s696 = scalar_lea.vmem %s1, %s695
      %p697 = scmp.lt.s32.totalorder %s40, 1
      %s698 = scalar_select %p697, %s40, 1
      %s699 = smul.addr %s698, 2
      %s700 = smul.addr %s699, 8
      %s701 = scalar_lea.vmem %s2, %s700
      %p702 = scmp.lt.s32.totalorder %s40, 1
      %s703 = scalar_select %p702, %s40, 1
      %s704 = smul.addr %s703, 8
      %s705 = scalar_lea.vmem %s23, %s704
      %v706 = vld [vmem:[%s696] sm:$0xff]
      %v707 = vld [vmem:[%s701] sm:$0xff]
      %v708 = vld [vmem:[%s701 + $0x8] sm:$0xf]
      %v709 = vlaneseq
      %v710 = vshrl.u32 %v709, 7
      %v711 = vlaneseq
      %v712 = vand.u32 %v711, 127
      %vm713 = vcmp.le.s32.totalorder %v712, %v710
      %s714 = sld [smem:[#allocation3 + %s40]]
      %s715 = sadd.s32 %s714, 2
      %v716 = vstv %s715
      %vm717 = vcmp.lt.s32.totalorder %v712, %v716
      %vm718 = vmand %vm713, %vm717
      %v719 = vsel %vm718, 0.0, -1e+30
      %v720 = vld [vmem:[%s3] sm:$0xff]
      %v721 = vld [vmem:[%s3 + $0x8] sm:$0xff]
      %v722 = vld [vmem:[%s3 + $0x10] sm:$0xff]
      %v723 = vld [vmem:[%s3 + $0x18] sm:$0xff]
      %v724 = vld [vmem:[%s4] sm:$0x1]
      %v726 = vlaneseq
      %v727 = vshrl.u32 %v726, 7
      %v728 = vsub.s32 0, %v727
      %v729 = vrot.slane %v724, %v728
      %vm731 = vcmask 261120
      %v733 = vsel %vm731, %v706, 0
      %735 = vmatprep.subr.mxu0 0.0
      %736 = vmatpush1.msra.mxu0 0.0
      %737 = vmatprep.subr.mxu0 0.0
      %738 = vmatpush1.msra.mxu0 0.0
      %739 = vmatprep.subr.mxu0 0.0
      %740 = vmatpush1.msra.mxu0 0.0
      %741 = vmatprep.subr.mxu0 0.0
      %742 = vmatpush1.msra.mxu0 0.0
      %743 = vmatprep.subr.mxu0 0.0
      %744 = vmatpush1.msra.mxu0 0.0
      %745 = vmatprep.subr.mxu0 0.0
      %746 = vmatpush1.msra.mxu0 0.0
      %747 = vmatprep.subr.mxu0 0.0
      %748 = vmatpush1.msra.mxu0 0.0
      %749 = vmatprep.subr.mxu0 0.0
      %750 = vmatpush1.msra.mxu0 0.0
      %751 = vmatprep.subr.mxu0 0.0
      %752 = vmatpush1.msra.mxu0 0.0
      %753 = vmatprep.subr.mxu0 0.0
      %754 = vmatpush1.msra.mxu0 0.0
      %755 = vmatprep.subr.mxu0 0.0
      %756 = vmatpush1.msra.mxu0 0.0
      %757 = vmatprep.subr.mxu0 0.0
      %758 = vmatpush1.msra.mxu0 0.0
      %759 = vmatprep.subr.mxu0 0.0
      %760 = vmatpush1.msra.mxu0 %v723
      %761 = vmatprep.subr.mxu0 0.0
      %762 = vmatpush1.msra.mxu0 %v722
      %763 = vmatprep.subr.mxu0 0.0
      %764 = vmatpush1.msra.mxu0 %v721
      %765 = vmatprep.subr.mxu0 0.0
      %766 = vmatpush1.msra.mxu0 %v720
      %767 = vmatprep.subr.mxu0 0.0
      %768 = vmatpush2.msra.mxu0 0.0
      %769 = vmatprep.subr.mxu0 0.0
      %770 = vmatpush2.msra.mxu0 0.0
      %771 = vmatprep.subr.mxu0 0.0
      %772 = vmatpush2.msra.mxu0 0.0
      %773 = vmatprep.subr.mxu0 0.0
      %774 = vmatpush2.msra.mxu0 0.0
      %775 = vmatprep.subr.mxu0 0.0
      %776 = vmatpush2.msra.mxu0 0.0
      %777 = vmatprep.subr.mxu0 0.0
      %778 = vmatpush2.msra.mxu0 0.0
      %779 = vmatprep.subr.mxu0 0.0
      %780 = vmatpush2.msra.mxu0 0.0
      %781 = vmatprep.subr.mxu0 0.0
      %782 = vmatpush2.msra.mxu0 0.0
      %783 = vmatprep.subr.mxu0 0.0
      %784 = vmatpush2.msra.mxu0 0.0
      %785 = vmatprep.subr.mxu0 0.0
      %786 = vmatpush2.msra.mxu0 0.0
      %787 = vmatprep.subr.mxu0 0.0
      %788 = vmatpush2.msra.mxu0 0.0
      %789 = vmatprep.subr.mxu0 0.0
      %790 = vmatpush2.msra.mxu0 0.0
      %791 = vmatprep.subr.mxu0 0.0
      %792 = vmatpush2.msra.mxu0 0.0
      %793 = vmatprep.subr.mxu0 0.0
      %794 = vmatpush2.msra.mxu0 0.0
      %795 = vmatprep.subr.mxu0 0.0
      %796 = vmatpush2.msra.mxu0 0.0
      %797 = vmatprep.subr.mxu0 0.0
      %798 = vmatpush2.msra.mxu0 0.0
      %799 = vmatprep.mubr.f32.mxu0 0.0
      %800 = vmatmul.mubr.f32.gmra.mxu0 %v733
      %v801 = vpop.f32.mrf.mxu0
      %v802 = vadd.f32 %v729, %v801
      %v803 = vpop.f32.mrf.mxu0
      %804 = vdwg.mxu0
      %806 = vrot.lane.b32.xlu0 %v802, 96
      %v807 = vpop.permute.xlu0 %806
      %vm808 = vcmask 64512
      %v809 = vsel %vm808, %v802, 0
      %v811 = vsel %vm808, %v807, 0
      %813 = vmatprep.subr.mxu0 0.0
      %814 = vmatpush1.xpose.msra.mxu0 0.0
      %815 = vmatprep.subr.mxu0 0.0
      %816 = vmatpush1.xpose.msra.mxu0 0.0
      %817 = vmatprep.subr.mxu0 0.0
      %818 = vmatpush1.xpose.msra.mxu0 0.0
      %819 = vmatprep.subr.mxu0 0.0
      %820 = vmatpush1.xpose.msra.mxu0 0.0
      %821 = vmatprep.subr.mxu0 0.0
      %822 = vmatpush1.xpose.msra.mxu0 0.0
      %823 = vmatprep.subr.mxu0 0.0
      %824 = vmatpush1.xpose.msra.mxu0 0.0
      %825 = vmatprep.subr.mxu0 0.0
      %826 = vmatpush1.xpose.msra.mxu0 0.0
      %827 = vmatprep.subr.mxu0 0.0
      %828 = vmatpush1.xpose.msra.mxu0 0.0
      %829 = vmatprep.subr.mxu0 0.0
      %830 = vmatpush1.xpose.msra.mxu0 0.0
      %831 = vmatprep.subr.mxu0 0.0
      %832 = vmatpush1.xpose.msra.mxu0 0.0
      %833 = vmatprep.subr.mxu0 0.0
      %834 = vmatpush1.xpose.msra.mxu0 0.0
      %835 = vmatprep.subr.mxu0 0.0
      %836 = vmatpush1.xpose.msra.mxu0 0.0
      %837 = vmatprep.subr.mxu0 0.0
      %838 = vmatpush1.xpose.msra.mxu0 0.0
      %839 = vmatprep.subr.mxu0 0.0
      %840 = vmatpush1.xpose.msra.mxu0 0.0
      %841 = vmatprep.subr.mxu0 0.0
      %842 = vmatpush1.xpose.msra.mxu0 0.0
      %843 = vmatprep.subr.mxu0 0.0
      %844 = vmatpush1.xpose.msra.mxu0 %v811
      %845 = vmatprep.subr.mxu0 0.0
      %846 = vmatpush2.xpose.msra.mxu0 0.0
      %847 = vmatprep.subr.mxu0 0.0
      %848 = vmatpush2.xpose.msra.mxu0 0.0
      %849 = vmatprep.subr.mxu0 0.0
      %850 = vmatpush2.xpose.msra.mxu0 0.0
      %851 = vmatprep.subr.mxu0 0.0
      %852 = vmatpush2.xpose.msra.mxu0 0.0
      %853 = vmatprep.subr.mxu0 0.0
      %854 = vmatpush2.xpose.msra.mxu0 0.0
      %855 = vmatprep.subr.mxu0 0.0
      %856 = vmatpush2.xpose.msra.mxu0 0.0
      %857 = vmatprep.subr.mxu0 0.0
      %858 = vmatpush2.xpose.msra.mxu0 0.0
      %859 = vmatprep.subr.mxu0 0.0
      %860 = vmatpush2.xpose.msra.mxu0 0.0
      %861 = vmatprep.subr.mxu0 0.0
      %862 = vmatpush2.xpose.msra.mxu0 0.0
      %863 = vmatprep.subr.mxu0 0.0
      %864 = vmatpush2.xpose.msra.mxu0 0.0
      %865 = vmatprep.subr.mxu0 0.0
      %866 = vmatpush2.xpose.msra.mxu0 0.0
      %867 = vmatprep.subr.mxu0 0.0
      %868 = vmatpush2.xpose.msra.mxu0 0.0
      %869 = vmatprep.subr.mxu0 0.0
      %870 = vmatpush2.xpose.msra.mxu0 0.0
      %871 = vmatprep.subr.mxu0 0.0
      %872 = vmatpush2.xpose.msra.mxu0 0.0
      %873 = vmatprep.subr.mxu0 0.0
      %874 = vmatpush2.xpose.msra.mxu0 0.0
      %875 = vmatprep.subr.mxu0 0.0
      %876 = vmatpush2.xpose.msra.mxu0 0.0
      %877 = vmatprep.mubr.f32.mxu0 0.0
      %878 = vmatmul.mubr.f32.gmra.mxu0 %v809
      %v879 = vpop.f32.mrf.mxu0
      %v880 = vadd.f32 0.0, %v879
      %v881 = vpop.f32.mrf.mxu0
      %882 = vdwg.mxu0
      %v883 = vmul.f32 %v880, 0.35355338
      %v884 = vadd.f32 %v883, %v719
      %v885 = vsel %vm808, %v884, -inf
      %886 = vmax.xlane.f32.xlu0 %v885
      %v887 = vpop.xlane.xlu0 %886
      %v888 = vsub.f32 %v884, %v887
      %v889 = vmul.f32 %v888, 1.442695
      %v890 = vpow.pop %v889
      %v891 = vsel %vm808, %v890, 0.0
      %892 = vadd.xlane.f32.xlu0 %v891
      %v893 = vpop.xlane.xlu0 %892
      %v894 = vrcp.pop %v893
      %v895 = vmul.f32 %v890, %v894
      %896 = vrot.lane.b32.xlu0 %v802, 64
      %v897 = vpop.permute.xlu0 %896
      %v900 = vsel %vm808, %v895, 0
      %902 = vmatprep.subr.mxu0 0.0
      %903 = vmatpush1.msra.mxu0 0.0
      %904 = vmatprep.subr.mxu0 0.0
      %905 = vmatpush1.msra.mxu0 0.0
      %906 = vmatprep.subr.mxu0 0.0
      %907 = vmatpush1.msra.mxu0 0.0
      %908 = vmatprep.subr.mxu0 0.0
      %909 = vmatpush1.msra.mxu0 0.0
      %910 = vmatprep.subr.mxu0 0.0
      %911 = vmatpush1.msra.mxu0 0.0
      %912 = vmatprep.subr.mxu0 0.0
      %913 = vmatpush1.msra.mxu0 0.0
      %914 = vmatprep.subr.mxu0 0.0
      %915 = vmatpush1.msra.mxu0 0.0
      %916 = vmatprep.subr.mxu0 0.0
      %917 = vmatpush1.msra.mxu0 0.0
      %918 = vmatprep.subr.mxu0 0.0
      %919 = vmatpush1.msra.mxu0 0.0
      %920 = vmatprep.subr.mxu0 0.0
      %921 = vmatpush1.msra.mxu0 0.0
      %922 = vmatprep.subr.mxu0 0.0
      %923 = vmatpush1.msra.mxu0 0.0
      %924 = vmatprep.subr.mxu0 0.0
      %925 = vmatpush1.msra.mxu0 0.0
      %926 = vmatprep.subr.mxu0 0.0
      %927 = vmatpush1.msra.mxu0 0.0
      %928 = vmatprep.subr.mxu0 0.0
      %929 = vmatpush1.msra.mxu0 0.0
      %930 = vmatprep.subr.mxu0 0.0
      %931 = vmatpush1.msra.mxu0 0.0
      %932 = vmatprep.subr.mxu0 0.0
      %933 = vmatpush1.msra.mxu0 %v897
      %934 = vmatprep.subr.mxu0 0.0
      %935 = vmatpush2.msra.mxu0 0.0
      %936 = vmatprep.subr.mxu0 0.0
      %937 = vmatpush2.msra.mxu0 0.0
      %938 = vmatprep.subr.mxu0 0.0
      %939 = vmatpush2.msra.mxu0 0.0
      %940 = vmatprep.subr.mxu0 0.0
      %941 = vmatpush2.msra.mxu0 0.0
      %942 = vmatprep.subr.mxu0 0.0
      %943 = vmatpush2.msra.mxu0 0.0
      %944 = vmatprep.subr.mxu0 0.0
      %945 = vmatpush2.msra.mxu0 0.0
      %946 = vmatprep.subr.mxu0 0.0
      %947 = vmatpush2.msra.mxu0 0.0
      %948 = vmatprep.subr.mxu0 0.0
      %949 = vmatpush2.msra.mxu0 0.0
      %950 = vmatprep.subr.mxu0 0.0
      %951 = vmatpush2.msra.mxu0 0.0
      %952 = vmatprep.subr.mxu0 0.0
      %953 = vmatpush2.msra.mxu0 0.0
      %954 = vmatprep.subr.mxu0 0.0
      %955 = vmatpush2.msra.mxu0 0.0
      %956 = vmatprep.subr.mxu0 0.0
      %957 = vmatpush2.msra.mxu0 0.0
      %958 = vmatprep.subr.mxu0 0.0
      %959 = vmatpush2.msra.mxu0 0.0
      %960 = vmatprep.subr.mxu0 0.0
      %961 = vmatpush2.msra.mxu0 0.0
      %962 = vmatprep.subr.mxu0 0.0
      %963 = vmatpush2.msra.mxu0 0.0
      %964 = vmatprep.subr.mxu0 0.0
      %965 = vmatpush2.msra.mxu0 0.0
      %966 = vmatprep.mubr.f32.mxu0 0.0
      %967 = vmatmul.mubr.f32.gmra.mxu0 %v900
      %v968 = vpop.f32.mrf.mxu0
      %v969 = vadd.f32 0.0, %v968
      %v970 = vpop.f32.mrf.mxu0
      %971 = vdwg.mxu0
      %972 = vrot.lane.b32.xlu0 %v802, 120
      %v973 = vpop.permute.xlu0 %972
      %974 = vrot.lane.b32.xlu0 %v802, 88
      %v975 = vpop.permute.xlu0 %974
      %v976 = vsel %vm808, %v973, 0
      %v978 = vsel %vm808, %v975, 0
      %980 = vmatprep.subr.mxu0 0.0
      %981 = vmatpush1.xpose.msra.mxu0 0.0
      %982 = vmatprep.subr.mxu0 0.0
      %983 = vmatpush1.xpose.msra.mxu0 0.0
      %984 = vmatprep.subr.mxu0 0.0
      %985 = vmatpush1.xpose.msra.mxu0 0.0
      %986 = vmatprep.subr.mxu0 0.0
      %987 = vmatpush1.xpose.msra.mxu0 0.0
      %988 = vmatprep.subr.mxu0 0.0
      %989 = vmatpush1.xpose.msra.mxu0 0.0
      %990 = vmatprep.subr.mxu0 0.0
      %991 = vmatpush1.xpose.msra.mxu0 0.0
      %992 = vmatprep.subr.mxu0 0.0
      %993 = vmatpush1.xpose.msra.mxu0 0.0
      %994 = vmatprep.subr.mxu0 0.0
      %995 = vmatpush1.xpose.msra.mxu0 0.0
      %996 = vmatprep.subr.mxu0 0.0
      %997 = vmatpush1.xpose.msra.mxu0 0.0
      %998 = vmatprep.subr.mxu0 0.0
      %999 = vmatpush1.xpose.msra.mxu0 0.0
      %1000 = vmatprep.subr.mxu0 0.0
      %1001 = vmatpush1.xpose.msra.mxu0 0.0
      %1002 = vmatprep.subr.mxu0 0.0
      %1003 = vmatpush1.xpose.msra.mxu0 0.0
      %1004 = vmatprep.subr.mxu0 0.0
      %1005 = vmatpush1.xpose.msra.mxu0 0.0
      %1006 = vmatprep.subr.mxu0 0.0
      %1007 = vmatpush1.xpose.msra.mxu0 0.0
      %1008 = vmatprep.subr.mxu0 0.0
      %1009 = vmatpush1.xpose.msra.mxu0 0.0
      %1010 = vmatprep.subr.mxu0 0.0
      %1011 = vmatpush1.xpose.msra.mxu0 %v978
      %1012 = vmatprep.subr.mxu0 0.0
      %1013 = vmatpush2.xpose.msra.mxu0 0.0
      %1014 = vmatprep.subr.mxu0 0.0
      %1015 = vmatpush2.xpose.msra.mxu0 0.0
      %1016 = vmatprep.subr.mxu0 0.0
      %1017 = vmatpush2.xpose.msra.mxu0 0.0
      %1018 = vmatprep.subr.mxu0 0.0
      %1019 = vmatpush2.xpose.msra.mxu0 0.0
      %1020 = vmatprep.subr.mxu0 0.0
      %1021 = vmatpush2.xpose.msra.mxu0 0.0
      %1022 = vmatprep.subr.mxu0 0.0
      %1023 = vmatpush2.xpose.msra.mxu0 0.0
      %1024 = vmatprep.subr.mxu0 0.0
      %1025 = vmatpush2.xpose.msra.mxu0 0.0
      %1026 = vmatprep.subr.mxu0 0.0
      %1027 = vmatpush2.xpose.msra.mxu0 0.0
      %1028 = vmatprep.subr.mxu0 0.0
      %1029 = vmatpush2.xpose.msra.mxu0 0.0
      %1030 = vmatprep.subr.mxu0 0.0
      %1031 = vmatpush2.xpose.msra.mxu0 0.0
      %1032 = vmatprep.subr.mxu0 0.0
      %1033 = vmatpush2.xpose.msra.mxu0 0.0
      %1034 = vmatprep.subr.mxu0 0.0
      %1035 = vmatpush2.xpose.msra.mxu0 0.0
      %1036 = vmatprep.subr.mxu0 0.0
      %1037 = vmatpush2.xpose.msra.mxu0 0.0
      %1038 = vmatprep.subr.mxu0 0.0
      %1039 = vmatpush2.xpose.msra.mxu0 0.0
      %1040 = vmatprep.subr.mxu0 0.0
      %1041 = vmatpush2.xpose.msra.mxu0 0.0
      %1042 = vmatprep.subr.mxu0 0.0
      %1043 = vmatpush2.xpose.msra.mxu0 0.0
      %1044 = vmatprep.mubr.f32.mxu0 0.0
      %1045 = vmatmul.mubr.f32.gmra.mxu0 %v976
      %v1046 = vpop.f32.mrf.mxu0
      %v1047 = vadd.f32 0.0, %v1046
      %v1048 = vpop.f32.mrf.mxu0
      %1049 = vdwg.mxu0
      %v1050 = vmul.f32 %v1047, 0.35355338
      %v1051 = vadd.f32 %v1050, %v719
      %v1052 = vsel %vm808, %v1051, -inf
      %1053 = vmax.xlane.f32.xlu0 %v1052
      %v1054 = vpop.xlane.xlu0 %1053
      %v1055 = vsub.f32 %v1051, %v1054
      %v1056 = vmul.f32 %v1055, 1.442695
      %v1057 = vpow.pop %v1056
      %v1058 = vsel %vm808, %v1057, 0.0
      %1059 = vadd.xlane.f32.xlu0 %v1058
      %v1060 = vpop.xlane.xlu0 %1059
      %v1061 = vrcp.pop %v1060
      %v1062 = vmul.f32 %v1057, %v1061
      %1063 = vrot.lane.b32.xlu0 %v802, 56
      %v1064 = vpop.permute.xlu0 %1063
      %v1067 = vsel %vm808, %v1062, 0
      %1069 = vmatprep.subr.mxu0 0.0
      %1070 = vmatpush1.msra.mxu0 0.0
      %1071 = vmatprep.subr.mxu0 0.0
      %1072 = vmatpush1.msra.mxu0 0.0
      %1073 = vmatprep.subr.mxu0 0.0
      %1074 = vmatpush1.msra.mxu0 0.0
      %1075 = vmatprep.subr.mxu0 0.0
      %1076 = vmatpush1.msra.mxu0 0.0
      %1077 = vmatprep.subr.mxu0 0.0
      %1078 = vmatpush1.msra.mxu0 0.0
      %1079 = vmatprep.subr.mxu0 0.0
      %1080 = vmatpush1.msra.mxu0 0.0
      %1081 = vmatprep.subr.mxu0 0.0
      %1082 = vmatpush1.msra.mxu0 0.0
      %1083 = vmatprep.subr.mxu0 0.0
      %1084 = vmatpush1.msra.mxu0 0.0
      %1085 = vmatprep.subr.mxu0 0.0
      %1086 = vmatpush1.msra.mxu0 0.0
      %1087 = vmatprep.subr.mxu0 0.0
      %1088 = vmatpush1.msra.mxu0 0.0
      %1089 = vmatprep.subr.mxu0 0.0
      %1090 = vmatpush1.msra.mxu0 0.0
      %1091 = vmatprep.subr.mxu0 0.0
      %1092 = vmatpush1.msra.mxu0 0.0
      %1093 = vmatprep.subr.mxu0 0.0
      %1094 = vmatpush1.msra.mxu0 0.0
      %1095 = vmatprep.subr.mxu0 0.0
      %1096 = vmatpush1.msra.mxu0 0.0
      %1097 = vmatprep.subr.mxu0 0.0
      %1098 = vmatpush1.msra.mxu0 0.0
      %1099 = vmatprep.subr.mxu0 0.0
      %1100 = vmatpush1.msra.mxu0 %v1064
      %1101 = vmatprep.subr.mxu0 0.0
      %1102 = vmatpush2.msra.mxu0 0.0
      %1103 = vmatprep.subr.mxu0 0.0
      %1104 = vmatpush2.msra.mxu0 0.0
      %1105 = vmatprep.subr.mxu0 0.0
      %1106 = vmatpush2.msra.mxu0 0.0
      %1107 = vmatprep.subr.mxu0 0.0
      %1108 = vmatpush2.msra.mxu0 0.0
      %1109 = vmatprep.subr.mxu0 0.0
      %1110 = vmatpush2.msra.mxu0 0.0
      %1111 = vmatprep.subr.mxu0 0.0
      %1112 = vmatpush2.msra.mxu0 0.0
      %1113 = vmatprep.subr.mxu0 0.0
      %1114 = vmatpush2.msra.mxu0 0.0
      %1115 = vmatprep.subr.mxu0 0.0
      %1116 = vmatpush2.msra.mxu0 0.0
      %1117 = vmatprep.subr.mxu0 0.0
      %1118 = vmatpush2.msra.mxu0 0.0
      %1119 = vmatprep.subr.mxu0 0.0
      %1120 = vmatpush2.msra.mxu0 0.0
      %1121 = vmatprep.subr.mxu0 0.0
      %1122 = vmatpush2.msra.mxu0 0.0
      %1123 = vmatprep.subr.mxu0 0.0
      %1124 = vmatpush2.msra.mxu0 0.0
      %1125 = vmatprep.subr.mxu0 0.0
      %1126 = vmatpush2.msra.mxu0 0.0
      %1127 = vmatprep.subr.mxu0 0.0
      %1128 = vmatpush2.msra.mxu0 0.0
      %1129 = vmatprep.subr.mxu0 0.0
      %1130 = vmatpush2.msra.mxu0 0.0
      %1131 = vmatprep.subr.mxu0 0.0
      %1132 = vmatpush2.msra.mxu0 0.0
      %1133 = vmatprep.mubr.f32.mxu0 0.0
      %1134 = vmatmul.mubr.f32.gmra.mxu0 %v1067
      %v1135 = vpop.f32.mrf.mxu0
      %v1136 = vadd.f32 0.0, %v1135
      %v1137 = vpop.f32.mrf.mxu0
      %1138 = vdwg.mxu0
      %1139 = vrot.lane.b32.xlu0 %v802, 112
      %v1140 = vpop.permute.xlu0 %1139
      %1141 = vrot.lane.b32.xlu0 %v802, 80
      %v1142 = vpop.permute.xlu0 %1141
      %v1143 = vsel %vm808, %v1140, 0
      %v1145 = vsel %vm808, %v1142, 0
      %1147 = vmatprep.subr.mxu0 0.0
      %1148 = vmatpush1.xpose.msra.mxu0 0.0
      %1149 = vmatprep.subr.mxu0 0.0
      %1150 = vmatpush1.xpose.msra.mxu0 0.0
      %1151 = vmatprep.subr.mxu0 0.0
      %1152 = vmatpush1.xpose.msra.mxu0 0.0
      %1153 = vmatprep.subr.mxu0 0.0
      %1154 = vmatpush1.xpose.msra.mxu0 0.0
      %1155 = vmatprep.subr.mxu0 0.0
      %1156 = vmatpush1.xpose.msra.mxu0 0.0
      %1157 = vmatprep.subr.mxu0 0.0
      %1158 = vmatpush1.xpose.msra.mxu0 0.0
      %1159 = vmatprep.subr.mxu0 0.0
      %1160 = vmatpush1.xpose.msra.mxu0 0.0
      %1161 = vmatprep.subr.mxu0 0.0
      %1162 = vmatpush1.xpose.msra.mxu0 0.0
      %1163 = vmatprep.subr.mxu0 0.0
      %1164 = vmatpush1.xpose.msra.mxu0 0.0
      %1165 = vmatprep.subr.mxu0 0.0
      %1166 = vmatpush1.xpose.msra.mxu0 0.0
      %1167 = vmatprep.subr.mxu0 0.0
      %1168 = vmatpush1.xpose.msra.mxu0 0.0
      %1169 = vmatprep.subr.mxu0 0.0
      %1170 = vmatpush1.xpose.msra.mxu0 0.0
      %1171 = vmatprep.subr.mxu0 0.0
      %1172 = vmatpush1.xpose.msra.mxu0 0.0
      %1173 = vmatprep.subr.mxu0 0.0
      %1174 = vmatpush1.xpose.msra.mxu0 0.0
      %1175 = vmatprep.subr.mxu0 0.0
      %1176 = vmatpush1.xpose.msra.mxu0 0.0
      %1177 = vmatprep.subr.mxu0 0.0
      %1178 = vmatpush1.xpose.msra.mxu0 %v1145
      %1179 = vmatprep.subr.mxu0 0.0
      %1180 = vmatpush2.xpose.msra.mxu0 0.0
      %1181 = vmatprep.subr.mxu0 0.0
      %1182 = vmatpush2.xpose.msra.mxu0 0.0
      %1183 = vmatprep.subr.mxu0 0.0
      %1184 = vmatpush2.xpose.msra.mxu0 0.0
      %1185 = vmatprep.subr.mxu0 0.0
      %1186 = vmatpush2.xpose.msra.mxu0 0.0
      %1187 = vmatprep.subr.mxu0 0.0
      %1188 = vmatpush2.xpose.msra.mxu0 0.0
      %1189 = vmatprep.subr.mxu0 0.0
      %1190 = vmatpush2.xpose.msra.mxu0 0.0
      %1191 = vmatprep.subr.mxu0 0.0
      %1192 = vmatpush2.xpose.msra.mxu0 0.0
      %1193 = vmatprep.subr.mxu0 0.0
      %1194 = vmatpush2.xpose.msra.mxu0 0.0
      %1195 = vmatprep.subr.mxu0 0.0
      %1196 = vmatpush2.xpose.msra.mxu0 0.0
      %1197 = vmatprep.subr.mxu0 0.0
      %1198 = vmatpush2.xpose.msra.mxu0 0.0
      %1199 = vmatprep.subr.mxu0 0.0
      %1200 = vmatpush2.xpose.msra.mxu0 0.0
      %1201 = vmatprep.subr.mxu0 0.0
      %1202 = vmatpush2.xpose.msra.mxu0 0.0
      %1203 = vmatprep.subr.mxu0 0.0
      %1204 = vmatpush2.xpose.msra.mxu0 0.0
      %1205 = vmatprep.subr.mxu0 0.0
      %1206 = vmatpush2.xpose.msra.mxu0 0.0
      %1207 = vmatprep.subr.mxu0 0.0
      %1208 = vmatpush2.xpose.msra.mxu0 0.0
      %1209 = vmatprep.subr.mxu0 0.0
      %1210 = vmatpush2.xpose.msra.mxu0 0.0
      %1211 = vmatprep.mubr.f32.mxu0 0.0
      %1212 = vmatmul.mubr.f32.gmra.mxu0 %v1143
      %v1213 = vpop.f32.mrf.mxu0
      %v1214 = vadd.f32 0.0, %v1213
      %v1215 = vpop.f32.mrf.mxu0
      %1216 = vdwg.mxu0
      %v1217 = vmul.f32 %v1214, 0.35355338
      %v1218 = vadd.f32 %v1217, %v719
      %v1219 = vsel %vm808, %v1218, -inf
      %1220 = vmax.xlane.f32.xlu0 %v1219
      %v1221 = vpop.xlane.xlu0 %1220
      %v1222 = vsub.f32 %v1218, %v1221
      %v1223 = vmul.f32 %v1222, 1.442695
      %v1224 = vpow.pop %v1223
      %v1225 = vsel %vm808, %v1224, 0.0
      %1226 = vadd.xlane.f32.xlu0 %v1225
      %v1227 = vpop.xlane.xlu0 %1226
      %v1228 = vrcp.pop %v1227
      %v1229 = vmul.f32 %v1224, %v1228
      %1230 = vrot.lane.b32.xlu0 %v802, 48
      %v1231 = vpop.permute.xlu0 %1230
      %v1234 = vsel %vm808, %v1229, 0
      %1236 = vmatprep.subr.mxu0 0.0
      %1237 = vmatpush1.msra.mxu0 0.0
      %1238 = vmatprep.subr.mxu0 0.0
      %1239 = vmatpush1.msra.mxu0 0.0
      %1240 = vmatprep.subr.mxu0 0.0
      %1241 = vmatpush1.msra.mxu0 0.0
      %1242 = vmatprep.subr.mxu0 0.0
      %1243 = vmatpush1.msra.mxu0 0.0
      %1244 = vmatprep.subr.mxu0 0.0
      %1245 = vmatpush1.msra.mxu0 0.0
      %1246 = vmatprep.subr.mxu0 0.0
      %1247 = vmatpush1.msra.mxu0 0.0
      %1248 = vmatprep.subr.mxu0 0.0
      %1249 = vmatpush1.msra.mxu0 0.0
      %1250 = vmatprep.subr.mxu0 0.0
      %1251 = vmatpush1.msra.mxu0 0.0
      %1252 = vmatprep.subr.mxu0 0.0
      %1253 = vmatpush1.msra.mxu0 0.0
      %1254 = vmatprep.subr.mxu0 0.0
      %1255 = vmatpush1.msra.mxu0 0.0
      %1256 = vmatprep.subr.mxu0 0.0
      %1257 = vmatpush1.msra.mxu0 0.0
      %1258 = vmatprep.subr.mxu0 0.0
      %1259 = vmatpush1.msra.mxu0 0.0
      %1260 = vmatprep.subr.mxu0 0.0
      %1261 = vmatpush1.msra.mxu0 0.0
      %1262 = vmatprep.subr.mxu0 0.0
      %1263 = vmatpush1.msra.mxu0 0.0
      %1264 = vmatprep.subr.mxu0 0.0
      %1265 = vmatpush1.msra.mxu0 0.0
      %1266 = vmatprep.subr.mxu0 0.0
      %1267 = vmatpush1.msra.mxu0 %v1231
      %1268 = vmatprep.subr.mxu0 0.0
      %1269 = vmatpush2.msra.mxu0 0.0
      %1270 = vmatprep.subr.mxu0 0.0
      %1271 = vmatpush2.msra.mxu0 0.0
      %1272 = vmatprep.subr.mxu0 0.0
      %1273 = vmatpush2.msra.mxu0 0.0
      %1274 = vmatprep.subr.mxu0 0.0
      %1275 = vmatpush2.msra.mxu0 0.0
      %1276 = vmatprep.subr.mxu0 0.0
      %1277 = vmatpush2.msra.mxu0 0.0
      %1278 = vmatprep.subr.mxu0 0.0
      %1279 = vmatpush2.msra.mxu0 0.0
      %1280 = vmatprep.subr.mxu0 0.0
      %1281 = vmatpush2.msra.mxu0 0.0
      %1282 = vmatprep.subr.mxu0 0.0
      %1283 = vmatpush2.msra.mxu0 0.0
      %1284 = vmatprep.subr.mxu0 0.0
      %1285 = vmatpush2.msra.mxu0 0.0
      %1286 = vmatprep.subr.mxu0 0.0
      %1287 = vmatpush2.msra.mxu0 0.0
      %1288 = vmatprep.subr.mxu0 0.0
      %1289 = vmatpush2.msra.mxu0 0.0
      %1290 = vmatprep.subr.mxu0 0.0
      %1291 = vmatpush2.msra.mxu0 0.0
      %1292 = vmatprep.subr.mxu0 0.0
      %1293 = vmatpush2.msra.mxu0 0.0
      %1294 = vmatprep.subr.mxu0 0.0
      %1295 = vmatpush2.msra.mxu0 0.0
      %1296 = vmatprep.subr.mxu0 0.0
      %1297 = vmatpush2.msra.mxu0 0.0
      %1298 = vmatprep.subr.mxu0 0.0
      %1299 = vmatpush2.msra.mxu0 0.0
      %1300 = vmatprep.mubr.f32.mxu0 0.0
      %1301 = vmatmul.mubr.f32.gmra.mxu0 %v1234
      %v1302 = vpop.f32.mrf.mxu0
      %v1303 = vadd.f32 0.0, %v1302
      %v1304 = vpop.f32.mrf.mxu0
      %1305 = vdwg.mxu0
      %1306 = vrot.lane.b32.xlu0 %v802, 104
      %v1307 = vpop.permute.xlu0 %1306
      %1308 = vrot.lane.b32.xlu0 %v802, 72
      %v1309 = vpop.permute.xlu0 %1308
      %v1310 = vsel %vm808, %v1307, 0
      %v1312 = vsel %vm808, %v1309, 0
      %1314 = vmatprep.subr.mxu0 0.0
      %1315 = vmatpush1.xpose.msra.mxu0 0.0
      %1316 = vmatprep.subr.mxu0 0.0
      %1317 = vmatpush1.xpose.msra.mxu0 0.0
      %1318 = vmatprep.subr.mxu0 0.0
      %1319 = vmatpush1.xpose.msra.mxu0 0.0
      %1320 = vmatprep.subr.mxu0 0.0
      %1321 = vmatpush1.xpose.msra.mxu0 0.0
      %1322 = vmatprep.subr.mxu0 0.0
      %1323 = vmatpush1.xpose.msra.mxu0 0.0
      %1324 = vmatprep.subr.mxu0 0.0
      %1325 = vmatpush1.xpose.msra.mxu0 0.0
      %1326 = vmatprep.subr.mxu0 0.0
      %1327 = vmatpush1.xpose.msra.mxu0 0.0
      %1328 = vmatprep.subr.mxu0 0.0
      %1329 = vmatpush1.xpose.msra.mxu0 0.0
      %1330 = vmatprep.subr.mxu0 0.0
      %1331 = vmatpush1.xpose.msra.mxu0 0.0
      %1332 = vmatprep.subr.mxu0 0.0
      %1333 = vmatpush1.xpose.msra.mxu0 0.0
      %1334 = vmatprep.subr.mxu0 0.0
      %1335 = vmatpush1.xpose.msra.mxu0 0.0
      %1336 = vmatprep.subr.mxu0 0.0
      %1337 = vmatpush1.xpose.msra.mxu0 0.0
      %1338 = vmatprep.subr.mxu0 0.0
      %1339 = vmatpush1.xpose.msra.mxu0 0.0
      %1340 = vmatprep.subr.mxu0 0.0
      %1341 = vmatpush1.xpose.msra.mxu0 0.0
      %1342 = vmatprep.subr.mxu0 0.0
      %1343 = vmatpush1.xpose.msra.mxu0 0.0
      %1344 = vmatprep.subr.mxu0 0.0
      %1345 = vmatpush1.xpose.msra.mxu0 %v1312
      %1346 = vmatprep.subr.mxu0 0.0
      %1347 = vmatpush2.xpose.msra.mxu0 0.0
      %1348 = vmatprep.subr.mxu0 0.0
      %1349 = vmatpush2.xpose.msra.mxu0 0.0
      %1350 = vmatprep.subr.mxu0 0.0
      %1351 = vmatpush2.xpose.msra.mxu0 0.0
      %1352 = vmatprep.subr.mxu0 0.0
      %1353 = vmatpush2.xpose.msra.mxu0 0.0
      %1354 = vmatprep.subr.mxu0 0.0
      %1355 = vmatpush2.xpose.msra.mxu0 0.0
      %1356 = vmatprep.subr.mxu0 0.0
      %1357 = vmatpush2.xpose.msra.mxu0 0.0
      %1358 = vmatprep.subr.mxu0 0.0
      %1359 = vmatpush2.xpose.msra.mxu0 0.0
      %1360 = vmatprep.subr.mxu0 0.0
      %1361 = vmatpush2.xpose.msra.mxu0 0.0
      %1362 = vmatprep.subr.mxu0 0.0
      %1363 = vmatpush2.xpose.msra.mxu0 0.0
      %1364 = vmatprep.subr.mxu0 0.0
      %1365 = vmatpush2.xpose.msra.mxu0 0.0
      %1366 = vmatprep.subr.mxu0 0.0
      %1367 = vmatpush2.xpose.msra.mxu0 0.0
      %1368 = vmatprep.subr.mxu0 0.0
      %1369 = vmatpush2.xpose.msra.mxu0 0.0
      %1370 = vmatprep.subr.mxu0 0.0
      %1371 = vmatpush2.xpose.msra.mxu0 0.0
      %1372 = vmatprep.subr.mxu0 0.0
      %1373 = vmatpush2.xpose.msra.mxu0 0.0
      %1374 = vmatprep.subr.mxu0 0.0
      %1375 = vmatpush2.xpose.msra.mxu0 0.0
      %1376 = vmatprep.subr.mxu0 0.0
      %1377 = vmatpush2.xpose.msra.mxu0 0.0
      %1378 = vmatprep.mubr.f32.mxu0 0.0
      %1379 = vmatmul.mubr.f32.gmra.mxu0 %v1310
      %v1380 = vpop.f32.mrf.mxu0
      %v1381 = vadd.f32 0.0, %v1380
      %v1382 = vpop.f32.mrf.mxu0
      %1383 = vdwg.mxu0
      %v1384 = vmul.f32 %v1381, 0.35355338
      %v1385 = vadd.f32 %v1384, %v719
      %v1386 = vsel %vm808, %v1385, -inf
      %1387 = vmax.xlane.f32.xlu0 %v1386
      %v1388 = vpop.xlane.xlu0 %1387
      %v1389 = vsub.f32 %v1385, %v1388
      %v1390 = vmul.f32 %v1389, 1.442695
      %v1391 = vpow.pop %v1390
      %v1392 = vsel %vm808, %v1391, 0.0
      %1393 = vadd.xlane.f32.xlu0 %v1392
      %v1394 = vpop.xlane.xlu0 %1393
      %v1395 = vrcp.pop %v1394
      %v1396 = vmul.f32 %v1391, %v1395
      %1397 = vrot.lane.b32.xlu0 %v802, 40
      %v1398 = vpop.permute.xlu0 %1397
      %v1401 = vsel %vm808, %v1396, 0
      %1403 = vmatprep.subr.mxu0 0.0
      %1404 = vmatpush1.msra.mxu0 0.0
      %1405 = vmatprep.subr.mxu0 0.0
      %1406 = vmatpush1.msra.mxu0 0.0
      %1407 = vmatprep.subr.mxu0 0.0
      %1408 = vmatpush1.msra.mxu0 0.0
      %1409 = vmatprep.subr.mxu0 0.0
      %1410 = vmatpush1.msra.mxu0 0.0
      %1411 = vmatprep.subr.mxu0 0.0
      %1412 = vmatpush1.msra.mxu0 0.0
      %1413 = vmatprep.subr.mxu0 0.0
      %1414 = vmatpush1.msra.mxu0 0.0
      %1415 = vmatprep.subr.mxu0 0.0
      %1416 = vmatpush1.msra.mxu0 0.0
      %1417 = vmatprep.subr.mxu0 0.0
      %1418 = vmatpush1.msra.mxu0 0.0
      %1419 = vmatprep.subr.mxu0 0.0
      %1420 = vmatpush1.msra.mxu0 0.0
      %1421 = vmatprep.subr.mxu0 0.0
      %1422 = vmatpush1.msra.mxu0 0.0
      %1423 = vmatprep.subr.mxu0 0.0
      %1424 = vmatpush1.msra.mxu0 0.0
      %1425 = vmatprep.subr.mxu0 0.0
      %1426 = vmatpush1.msra.mxu0 0.0
      %1427 = vmatprep.subr.mxu0 0.0
      %1428 = vmatpush1.msra.mxu0 0.0
      %1429 = vmatprep.subr.mxu0 0.0
      %1430 = vmatpush1.msra.mxu0 0.0
      %1431 = vmatprep.subr.mxu0 0.0
      %1432 = vmatpush1.msra.mxu0 0.0
      %1433 = vmatprep.subr.mxu0 0.0
      %1434 = vmatpush1.msra.mxu0 %v1398
      %1435 = vmatprep.subr.mxu0 0.0
      %1436 = vmatpush2.msra.mxu0 0.0
      %1437 = vmatprep.subr.mxu0 0.0
      %1438 = vmatpush2.msra.mxu0 0.0
      %1439 = vmatprep.subr.mxu0 0.0
      %1440 = vmatpush2.msra.mxu0 0.0
      %1441 = vmatprep.subr.mxu0 0.0
      %1442 = vmatpush2.msra.mxu0 0.0
      %1443 = vmatprep.subr.mxu0 0.0
      %1444 = vmatpush2.msra.mxu0 0.0
      %1445 = vmatprep.subr.mxu0 0.0
      %1446 = vmatpush2.msra.mxu0 0.0
      %1447 = vmatprep.subr.mxu0 0.0
      %1448 = vmatpush2.msra.mxu0 0.0
      %1449 = vmatprep.subr.mxu0 0.0
      %1450 = vmatpush2.msra.mxu0 0.0
      %1451 = vmatprep.subr.mxu0 0.0
      %1452 = vmatpush2.msra.mxu0 0.0
      %1453 = vmatprep.subr.mxu0 0.0
      %1454 = vmatpush2.msra.mxu0 0.0
      %1455 = vmatprep.subr.mxu0 0.0
      %1456 = vmatpush2.msra.mxu0 0.0
      %1457 = vmatprep.subr.mxu0 0.0
      %1458 = vmatpush2.msra.mxu0 0.0
      %1459 = vmatprep.subr.mxu0 0.0
      %1460 = vmatpush2.msra.mxu0 0.0
      %1461 = vmatprep.subr.mxu0 0.0
      %1462 = vmatpush2.msra.mxu0 0.0
      %1463 = vmatprep.subr.mxu0 0.0
      %1464 = vmatpush2.msra.mxu0 0.0
      %1465 = vmatprep.subr.mxu0 0.0
      %1466 = vmatpush2.msra.mxu0 0.0
      %1467 = vmatprep.mubr.f32.mxu0 0.0
      %1468 = vmatmul.mubr.f32.gmra.mxu0 %v1401
      %v1469 = vpop.f32.mrf.mxu0
      %v1470 = vadd.f32 0.0, %v1469
      %v1471 = vpop.f32.mrf.mxu0
      %1472 = vdwg.mxu0
      %1474 = vrot.lane.b32.xlu0 %v1136, 8
      %v1475 = vpop.permute.xlu0 %1474
      %1478 = vrot.lane.b32.xlu0 %v1303, 16
      %v1479 = vpop.permute.xlu0 %1478
      %1482 = vrot.lane.b32.xlu0 %v1470, 24
      %v1483 = vpop.permute.xlu0 %1482
      %v1485 = vsel %vm808, %v969, %v1475
      %vm1486 = vcmask 130048
      %v1487 = vsel %vm1486, %v1485, %v1479
      %vm1488 = vcmask 195584
      %v1489 = vsel %vm1488, %v1487, %v1483
      %v1490 = vld [vmem:[%s5] sm:$0xff]
      %v1491 = vld [vmem:[%s5 + $0x8] sm:$0xff]
      %v1492 = vld [vmem:[%s5 + $0x10] sm:$0xff]
      %v1493 = vld [vmem:[%s5 + $0x18] sm:$0xff]
      %v1494 = vld [vmem:[%s6] sm:$0x1]
      %v1496 = vlaneseq
      %v1497 = vshrl.u32 %v1496, 7
      %v1498 = vsub.s32 0, %v1497
      %v1499 = vrot.slane %v1494, %v1498
      %v1502 = vsel %vm731, %v1489, 0
      %1504 = vmatprep.subr.mxu0 0.0
      %1505 = vmatpush1.msra.mxu0 0.0
      %1506 = vmatprep.subr.mxu0 0.0
      %1507 = vmatpush1.msra.mxu0 0.0
      %1508 = vmatprep.subr.mxu0 0.0
      %1509 = vmatpush1.msra.mxu0 0.0
      %1510 = vmatprep.subr.mxu0 0.0
      %1511 = vmatpush1.msra.mxu0 0.0
      %1512 = vmatprep.subr.mxu0 0.0
      %1513 = vmatpush1.msra.mxu0 0.0
      %1514 = vmatprep.subr.mxu0 0.0
      %1515 = vmatpush1.msra.mxu0 0.0
      %1516 = vmatprep.subr.mxu0 0.0
      %1517 = vmatpush1.msra.mxu0 0.0
      %1518 = vmatprep.subr.mxu0 0.0
      %1519 = vmatpush1.msra.mxu0 0.0
      %1520 = vmatprep.subr.mxu0 0.0
      %1521 = vmatpush1.msra.mxu0 0.0
      %1522 = vmatprep.subr.mxu0 0.0
      %1523 = vmatpush1.msra.mxu0 0.0
      %1524 = vmatprep.subr.mxu0 0.0
      %1525 = vmatpush1.msra.mxu0 0.0
      %1526 = vmatprep.subr.mxu0 0.0
      %1527 = vmatpush1.msra.mxu0 0.0
      %1528 = vmatprep.subr.mxu0 0.0
      %1529 = vmatpush1.msra.mxu0 %v1493
      %1530 = vmatprep.subr.mxu0 0.0
      %1531 = vmatpush1.msra.mxu0 %v1492
      %1532 = vmatprep.subr.mxu0 0.0
      %1533 = vmatpush1.msra.mxu0 %v1491
      %1534 = vmatprep.subr.mxu0 0.0
      %1535 = vmatpush1.msra.mxu0 %v1490
      %1536 = vmatprep.subr.mxu0 0.0
      %1537 = vmatpush2.msra.mxu0 0.0
      %1538 = vmatprep.subr.mxu0 0.0
      %1539 = vmatpush2.msra.mxu0 0.0
      %1540 = vmatprep.subr.mxu0 0.0
      %1541 = vmatpush2.msra.mxu0 0.0
      %1542 = vmatprep.subr.mxu0 0.0
      %1543 = vmatpush2.msra.mxu0 0.0
      %1544 = vmatprep.subr.mxu0 0.0
      %1545 = vmatpush2.msra.mxu0 0.0
      %1546 = vmatprep.subr.mxu0 0.0
      %1547 = vmatpush2.msra.mxu0 0.0
      %1548 = vmatprep.subr.mxu0 0.0
      %1549 = vmatpush2.msra.mxu0 0.0
      %1550 = vmatprep.subr.mxu0 0.0
      %1551 = vmatpush2.msra.mxu0 0.0
      %1552 = vmatprep.subr.mxu0 0.0
      %1553 = vmatpush2.msra.mxu0 0.0
      %1554 = vmatprep.subr.mxu0 0.0
      %1555 = vmatpush2.msra.mxu0 0.0
      %1556 = vmatprep.subr.mxu0 0.0
      %1557 = vmatpush2.msra.mxu0 0.0
      %1558 = vmatprep.subr.mxu0 0.0
      %1559 = vmatpush2.msra.mxu0 0.0
      %1560 = vmatprep.subr.mxu0 0.0
      %1561 = vmatpush2.msra.mxu0 0.0
      %1562 = vmatprep.subr.mxu0 0.0
      %1563 = vmatpush2.msra.mxu0 0.0
      %1564 = vmatprep.subr.mxu0 0.0
      %1565 = vmatpush2.msra.mxu0 0.0
      %1566 = vmatprep.subr.mxu0 0.0
      %1567 = vmatpush2.msra.mxu0 0.0
      %1568 = vmatprep.mubr.f32.mxu0 0.0
      %1569 = vmatmul.mubr.f32.gmra.mxu0 %v1502
      %v1570 = vpop.f32.mrf.mxu0
      %v1571 = vadd.f32 %v1499, %v1570
      %v1572 = vpop.f32.mrf.mxu0
      %1573 = vdwg.mxu0
      %v1574 = vadd.f32 %v706, %v1571
      %v1575 = vld [vmem:[%s7] sm:$0x1]
      %v1576 = vld [vmem:[%s8] sm:$0x1]
      %v1577 = vsel %vm731, %v1574, 0.0
      %1578 = vadd.xlane.f32.xlu0 %v1577
      %v1579 = vpop.xlane.xlu0 %1578
      %v1580 = vrcp.pop 32.0
      %v1581 = vmul.f32 %v1579, %v1580
      %v1582 = vsub.f32 %v1574, %v1581
      %v1583 = vmul.f32 %v1582, %v1582
      %v1584 = vsel %vm731, %v1583, 0.0
      %1585 = vadd.xlane.f32.xlu0 %v1584
      %v1586 = vpop.xlane.xlu0 %1585
      %v1587 = vmul.f32 %v1586, %v1580
      %v1588 = vadd.f32 %v1587, 1e-05
      %v1589 = vrsqrt.pop %v1588
      %v1590 = vmul.f32 %v1582, %v1589
      %v1592 = vlaneseq
      %v1593 = vshrl.u32 %v1592, 7
      %v1594 = vsub.s32 0, %v1593
      %v1595 = vrot.slane %v1575, %v1594
      %v1597 = vmul.f32 %v1590, %v1595
      %v1599 = vlaneseq
      %v1600 = vshrl.u32 %v1599, 7
      %v1601 = vsub.s32 0, %v1600
      %v1602 = vrot.slane %v1576, %v1601
      %v1604 = vadd.f32 %v1597, %v1602
      %v1605 = vld [vmem:[%s9] sm:$0xff]
      %v1606 = vld [vmem:[%s9 + $0x8] sm:$0xff]
      %v1607 = vld [vmem:[%s9 + $0x10] sm:$0xff]
      %v1608 = vld [vmem:[%s9 + $0x18] sm:$0xff]
      %v1609 = vld [vmem:[%s10] sm:$0x1]
      %v1611 = vlaneseq
      %v1612 = vshrl.u32 %v1611, 7
      %v1613 = vsub.s32 0, %v1612
      %v1614 = vrot.slane %v1609, %v1613
      %v1617 = vsel %vm731, %v1604, 0
      %1619 = vmatprep.subr.mxu0 0.0
      %1620 = vmatpush1.msra.mxu0 0.0
      %1621 = vmatprep.subr.mxu0 0.0
      %1622 = vmatpush1.msra.mxu0 0.0
      %1623 = vmatprep.subr.mxu0 0.0
      %1624 = vmatpush1.msra.mxu0 0.0
      %1625 = vmatprep.subr.mxu0 0.0
      %1626 = vmatpush1.msra.mxu0 0.0
      %1627 = vmatprep.subr.mxu0 0.0
      %1628 = vmatpush1.msra.mxu0 0.0
      %1629 = vmatprep.subr.mxu0 0.0
      %1630 = vmatpush1.msra.mxu0 0.0
      %1631 = vmatprep.subr.mxu0 0.0
      %1632 = vmatpush1.msra.mxu0 0.0
      %1633 = vmatprep.subr.mxu0 0.0
      %1634 = vmatpush1.msra.mxu0 0.0
      %1635 = vmatprep.subr.mxu0 0.0
      %1636 = vmatpush1.msra.mxu0 0.0
      %1637 = vmatprep.subr.mxu0 0.0
      %1638 = vmatpush1.msra.mxu0 0.0
      %1639 = vmatprep.subr.mxu0 0.0
      %1640 = vmatpush1.msra.mxu0 0.0
      %1641 = vmatprep.subr.mxu0 0.0
      %1642 = vmatpush1.msra.mxu0 0.0
      %1643 = vmatprep.subr.mxu0 0.0
      %1644 = vmatpush1.msra.mxu0 %v1608
      %1645 = vmatprep.subr.mxu0 0.0
      %1646 = vmatpush1.msra.mxu0 %v1607
      %1647 = vmatprep.subr.mxu0 0.0
      %1648 = vmatpush1.msra.mxu0 %v1606
      %1649 = vmatprep.subr.mxu0 0.0
      %1650 = vmatpush1.msra.mxu0 %v1605
      %1651 = vmatprep.subr.mxu0 0.0
      %1652 = vmatpush2.msra.mxu0 0.0
      %1653 = vmatprep.subr.mxu0 0.0
      %1654 = vmatpush2.msra.mxu0 0.0
      %1655 = vmatprep.subr.mxu0 0.0
      %1656 = vmatpush2.msra.mxu0 0.0
      %1657 = vmatprep.subr.mxu0 0.0
      %1658 = vmatpush2.msra.mxu0 0.0
      %1659 = vmatprep.subr.mxu0 0.0
      %1660 = vmatpush2.msra.mxu0 0.0
      %1661 = vmatprep.subr.mxu0 0.0
      %1662 = vmatpush2.msra.mxu0 0.0
      %1663 = vmatprep.subr.mxu0 0.0
      %1664 = vmatpush2.msra.mxu0 0.0
      %1665 = vmatprep.subr.mxu0 0.0
      %1666 = vmatpush2.msra.mxu0 0.0
      %1667 = vmatprep.subr.mxu0 0.0
      %1668 = vmatpush2.msra.mxu0 0.0
      %1669 = vmatprep.subr.mxu0 0.0
      %1670 = vmatpush2.msra.mxu0 0.0
      %1671 = vmatprep.subr.mxu0 0.0
      %1672 = vmatpush2.msra.mxu0 0.0
      %1673 = vmatprep.subr.mxu0 0.0
      %1674 = vmatpush2.msra.mxu0 0.0
      %1675 = vmatprep.subr.mxu0 0.0
      %1676 = vmatpush2.msra.mxu0 0.0
      %1677 = vmatprep.subr.mxu0 0.0
      %1678 = vmatpush2.msra.mxu0 0.0
      %1679 = vmatprep.subr.mxu0 0.0
      %1680 = vmatpush2.msra.mxu0 0.0
      %1681 = vmatprep.subr.mxu0 0.0
      %1682 = vmatpush2.msra.mxu0 0.0
      %1683 = vmatprep.mubr.f32.mxu0 0.0
      %1684 = vmatmul.mubr.f32.gmra.mxu0 %v1617
      %v1685 = vpop.f32.mrf.mxu0
      %v1686 = vadd.f32 %v1614, %v1685
      %v1687 = vpop.f32.mrf.mxu0
      %1688 = vdwg.mxu0
      %v1689 = vld [vmem:[%s11] sm:$0xff]
      %v1690 = vld [vmem:[%s11 + $0x8] sm:$0xff]
      %v1691 = vld [vmem:[%s11 + $0x10] sm:$0xff]
      %v1692 = vld [vmem:[%s11 + $0x18] sm:$0xff]
      %v1693 = vld [vmem:[%s12] sm:$0x1]
      %v1695 = vlaneseq
      %v1696 = vshrl.u32 %v1695, 7
      %v1697 = vsub.s32 0, %v1696
      %v1698 = vrot.slane %v1693, %v1697
      %v1701 = vsel %vm731, %v707, 0
      %v1704 = vsel %vm731, %v708, 0
      %1706 = vmatprep.subr.mxu0 0.0
      %1707 = vmatpush1.msra.mxu0 0.0
      %1708 = vmatprep.subr.mxu0 0.0
      %1709 = vmatpush1.msra.mxu0 0.0
      %1710 = vmatprep.subr.mxu0 0.0
      %1711 = vmatpush1.msra.mxu0 0.0
      %1712 = vmatprep.subr.mxu0 0.0
      %1713 = vmatpush1.msra.mxu0 0.0
      %1714 = vmatprep.subr.mxu0 0.0
      %1715 = vmatpush1.msra.mxu0 0.0
      %1716 = vmatprep.subr.mxu0 0.0
      %1717 = vmatpush1.msra.mxu0 0.0
      %1718 = vmatprep.subr.mxu0 0.0
      %1719 = vmatpush1.msra.mxu0 0.0
      %1720 = vmatprep.subr.mxu0 0.0
      %1721 = vmatpush1.msra.mxu0 0.0
      %1722 = vmatprep.subr.mxu0 0.0
      %1723 = vmatpush1.msra.mxu0 0.0
      %1724 = vmatprep.subr.mxu0 0.0
      %1725 = vmatpush1.msra.mxu0 0.0
      %1726 = vmatprep.subr.mxu0 0.0
      %1727 = vmatpush1.msra.mxu0 0.0
      %1728 = vmatprep.subr.mxu0 0.0
      %1729 = vmatpush1.msra.mxu0 0.0
      %1730 = vmatprep.subr.mxu0 0.0
      %1731 = vmatpush1.msra.mxu0 %v1692
      %1732 = vmatprep.subr.mxu0 0.0
      %1733 = vmatpush1.msra.mxu0 %v1691
      %1734 = vmatprep.subr.mxu0 0.0
      %1735 = vmatpush1.msra.mxu0 %v1690
      %1736 = vmatprep.subr.mxu0 0.0
      %1737 = vmatpush1.msra.mxu0 %v1689
      %1738 = vmatprep.subr.mxu0 0.0
      %1739 = vmatpush2.msra.mxu0 0.0
      %1740 = vmatprep.subr.mxu0 0.0
      %1741 = vmatpush2.msra.mxu0 0.0
      %1742 = vmatprep.subr.mxu0 0.0
      %1743 = vmatpush2.msra.mxu0 0.0
      %1744 = vmatprep.subr.mxu0 0.0
      %1745 = vmatpush2.msra.mxu0 0.0
      %1746 = vmatprep.subr.mxu0 0.0
      %1747 = vmatpush2.msra.mxu0 0.0
      %1748 = vmatprep.subr.mxu0 0.0
      %1749 = vmatpush2.msra.mxu0 0.0
      %1750 = vmatprep.subr.mxu0 0.0
      %1751 = vmatpush2.msra.mxu0 0.0
      %1752 = vmatprep.subr.mxu0 0.0
      %1753 = vmatpush2.msra.mxu0 0.0
      %1754 = vmatprep.subr.mxu0 0.0
      %1755 = vmatpush2.msra.mxu0 0.0
      %1756 = vmatprep.subr.mxu0 0.0
      %1757 = vmatpush2.msra.mxu0 0.0
      %1758 = vmatprep.subr.mxu0 0.0
      %1759 = vmatpush2.msra.mxu0 0.0
      %1760 = vmatprep.subr.mxu0 0.0
      %1761 = vmatpush2.msra.mxu0 0.0
      %1762 = vmatprep.subr.mxu0 0.0
      %1763 = vmatpush2.msra.mxu0 0.0
      %1764 = vmatprep.subr.mxu0 0.0
      %1765 = vmatpush2.msra.mxu0 0.0
      %1766 = vmatprep.subr.mxu0 0.0
      %1767 = vmatpush2.msra.mxu0 0.0
      %1768 = vmatprep.subr.mxu0 0.0
      %1769 = vmatpush2.msra.mxu0 0.0
      %1770 = vmatprep.mubr.f32.mxu0 0.0
      %1771 = vmatmul.mubr.f32.gmra.mxu0 %v1701
      %v1772 = vpop.f32.mrf.mxu0
      %v1773 = vadd.f32 %v1698, %v1772
      %v1774 = vpop.f32.mrf.mxu0
      %1775 = vmatprep.mubr.f32.mxu0 0.0
      %1776 = vmatmul.mubr.f32.gmra.mxu0 %v1704
      %v1777 = vpop.f32.mrf.mxu0
      %v1778 = vadd.f32 %v1698, %v1777
      %v1779 = vpop.f32.mrf.mxu0
      %1780 = vdwg.mxu0
      %v1782 = vsel %vm808, %v1686, 0
      %v1785 = vsel %vm808, %v1773, 0
      %v1788 = vsel %vm808, %v1778, 0
      %1790 = vmatprep.subr.mxu0 0.0
      %1791 = vmatpush1.xpose.msra.mxu0 0.0
      %1792 = vmatprep.subr.mxu0 0.0
      %1793 = vmatpush1.xpose.msra.mxu0 0.0
      %1794 = vmatprep.subr.mxu0 0.0
      %1795 = vmatpush1.xpose.msra.mxu0 0.0
      %1796 = vmatprep.subr.mxu0 0.0
      %1797 = vmatpush1.xpose.msra.mxu0 0.0
      %1798 = vmatprep.subr.mxu0 0.0
      %1799 = vmatpush1.xpose.msra.mxu0 0.0
      %1800 = vmatprep.subr.mxu0 0.0
      %1801 = vmatpush1.xpose.msra.mxu0 0.0
      %1802 = vmatprep.subr.mxu0 0.0
      %1803 = vmatpush1.xpose.msra.mxu0 0.0
      %1804 = vmatprep.subr.mxu0 0.0
      %1805 = vmatpush1.xpose.msra.mxu0 0.0
      %1806 = vmatprep.subr.mxu0 0.0
      %1807 = vmatpush1.xpose.msra.mxu0 0.0
      %1808 = vmatprep.subr.mxu0 0.0
      %1809 = vmatpush1.xpose.msra.mxu0 0.0
      %1810 = vmatprep.subr.mxu0 0.0
      %1811 = vmatpush1.xpose.msra.mxu0 0.0
      %1812 = vmatprep.subr.mxu0 0.0
      %1813 = vmatpush1.xpose.msra.mxu0 0.0
      %1814 = vmatprep.subr.mxu0 0.0
      %1815 = vmatpush1.xpose.msra.mxu0 0.0
      %1816 = vmatprep.subr.mxu0 0.0
      %1817 = vmatpush1.xpose.msra.mxu0 0.0
      %1818 = vmatprep.subr.mxu0 0.0
      %1819 = vmatpush1.xpose.msra.mxu0 %v1788
      %1820 = vmatprep.subr.mxu0 0.0
      %1821 = vmatpush1.xpose.msra.mxu0 %v1785
      %1822 = vmatprep.subr.mxu0 0.0
      %1823 = vmatpush2.xpose.msra.mxu0 0.0
      %1824 = vmatprep.subr.mxu0 0.0
      %1825 = vmatpush2.xpose.msra.mxu0 0.0
      %1826 = vmatprep.subr.mxu0 0.0
      %1827 = vmatpush2.xpose.msra.mxu0 0.0
      %1828 = vmatprep.subr.mxu0 0.0
      %1829 = vmatpush2.xpose.msra.mxu0 0.0
      %1830 = vmatprep.subr.mxu0 0.0
      %1831 = vmatpush2.xpose.msra.mxu0 0.0
      %1832 = vmatprep.subr.mxu0 0.0
      %1833 = vmatpush2.xpose.msra.mxu0 0.0
      %1834 = vmatprep.subr.mxu0 0.0
      %1835 = vmatpush2.xpose.msra.mxu0 0.0
      %1836 = vmatprep.subr.mxu0 0.0
      %1837 = vmatpush2.xpose.msra.mxu0 0.0
      %1838 = vmatprep.subr.mxu0 0.0
      %1839 = vmatpush2.xpose.msra.mxu0 0.0
      %1840 = vmatprep.subr.mxu0 0.0
      %1841 = vmatpush2.xpose.msra.mxu0 0.0
      %1842 = vmatprep.subr.mxu0 0.0
      %1843 = vmatpush2.xpose.msra.mxu0 0.0
      %1844 = vmatprep.subr.mxu0 0.0
      %1845 = vmatpush2.xpose.msra.mxu0 0.0
      %1846 = vmatprep.subr.mxu0 0.0
      %1847 = vmatpush2.xpose.msra.mxu0 0.0
      %1848 = vmatprep.subr.mxu0 0.0
      %1849 = vmatpush2.xpose.msra.mxu0 0.0
      %1850 = vmatprep.subr.mxu0 0.0
      %1851 = vmatpush2.xpose.msra.mxu0 0.0
      %1852 = vmatprep.subr.mxu0 0.0
      %1853 = vmatpush2.xpose.msra.mxu0 0.0
      %1854 = vmatprep.mubr.f32.mxu0 0.0
      %1855 = vmatmul.mubr.f32.gmra.mxu0 %v1782
      %v1856 = vpop.f32.mrf.mxu0
      %v1857 = vadd.f32 0.0, %v1856
      %v1858 = vpop.f32.mrf.mxu0
      %1859 = vdwg.mxu0
      %v1860 = vmul.f32 %v1857, 0.35355338
      %vm1861 = vcmask 97280
      %v1862 = vsel %vm1861, %v1860, -inf
      %1863 = vmax.xlane.f32.xlu0 %v1862
      %v1864 = vpop.xlane.xlu0 %1863
      %v1865 = vsub.f32 %v1860, %v1864
      %v1866 = vmul.f32 %v1865, 1.442695
      %v1867 = vpow.pop %v1866
      %v1868 = vsel %vm1861, %v1867, 0.0
      %1869 = vadd.xlane.f32.xlu0 %v1868
      %v1870 = vpop.xlane.xlu0 %1869
      %v1871 = vrcp.pop %v1870
      %v1872 = vmul.f32 %v1867, %v1871
      %1873 = vrot.lane.b32.xlu0 %v1773, 96
      %v1874 = vpop.permute.xlu0 %1873
      %1875 = vrot.lane.b32.xlu0 %v1778, 96
      %v1876 = vpop.permute.xlu0 %1875
      %v1879 = vsel %vm1861, %v1872, 0
      %vm1881 = vcmask 1043456
      %v1882 = vsel %vm1881, %v1876, 0
      %1884 = vmatprep.subr.mxu0 0.0
      %1885 = vmatpush1.msra.mxu0 0.0
      %1886 = vmatprep.subr.mxu0 0.0
      %1887 = vmatpush1.msra.mxu0 0.0
      %1888 = vmatprep.subr.mxu0 0.0
      %1889 = vmatpush1.msra.mxu0 0.0
      %1890 = vmatprep.subr.mxu0 0.0
      %1891 = vmatpush1.msra.mxu0 0.0
      %1892 = vmatprep.subr.mxu0 0.0
      %1893 = vmatpush1.msra.mxu0 0.0
      %1894 = vmatprep.subr.mxu0 0.0
      %1895 = vmatpush1.msra.mxu0 0.0
      %1896 = vmatprep.subr.mxu0 0.0
      %1897 = vmatpush1.msra.mxu0 0.0
      %1898 = vmatprep.subr.mxu0 0.0
      %1899 = vmatpush1.msra.mxu0 0.0
      %1900 = vmatprep.subr.mxu0 0.0
      %1901 = vmatpush1.msra.mxu0 0.0
      %1902 = vmatprep.subr.mxu0 0.0
      %1903 = vmatpush1.msra.mxu0 0.0
      %1904 = vmatprep.subr.mxu0 0.0
      %1905 = vmatpush1.msra.mxu0 0.0
      %1906 = vmatprep.subr.mxu0 0.0
      %1907 = vmatpush1.msra.mxu0 0.0
      %1908 = vmatprep.subr.mxu0 0.0
      %1909 = vmatpush1.msra.mxu0 0.0
      %1910 = vmatprep.subr.mxu0 0.0
      %1911 = vmatpush1.msra.mxu0 0.0
      %1912 = vmatprep.subr.mxu0 0.0
      %1913 = vmatpush1.msra.mxu0 %v1882
      %1914 = vmatprep.subr.mxu0 0.0
      %1915 = vmatpush1.msra.mxu0 %v1874
      %1916 = vmatprep.subr.mxu0 0.0
      %1917 = vmatpush2.msra.mxu0 0.0
      %1918 = vmatprep.subr.mxu0 0.0
      %1919 = vmatpush2.msra.mxu0 0.0
      %1920 = vmatprep.subr.mxu0 0.0
      %1921 = vmatpush2.msra.mxu0 0.0
      %1922 = vmatprep.subr.mxu0 0.0
      %1923 = vmatpush2.msra.mxu0 0.0
      %1924 = vmatprep.subr.mxu0 0.0
      %1925 = vmatpush2.msra.mxu0 0.0
      %1926 = vmatprep.subr.mxu0 0.0
      %1927 = vmatpush2.msra.mxu0 0.0
      %1928 = vmatprep.subr.mxu0 0.0
      %1929 = vmatpush2.msra.mxu0 0.0
      %1930 = vmatprep.subr.mxu0 0.0
      %1931 = vmatpush2.msra.mxu0 0.0
      %1932 = vmatprep.subr.mxu0 0.0
      %1933 = vmatpush2.msra.mxu0 0.0
      %1934 = vmatprep.subr.mxu0 0.0
      %1935 = vmatpush2.msra.mxu0 0.0
      %1936 = vmatprep.subr.mxu0 0.0
      %1937 = vmatpush2.msra.mxu0 0.0
      %1938 = vmatprep.subr.mxu0 0.0
      %1939 = vmatpush2.msra.mxu0 0.0
      %1940 = vmatprep.subr.mxu0 0.0
      %1941 = vmatpush2.msra.mxu0 0.0
      %1942 = vmatprep.subr.mxu0 0.0
      %1943 = vmatpush2.msra.mxu0 0.0
      %1944 = vmatprep.subr.mxu0 0.0
      %1945 = vmatpush2.msra.mxu0 0.0
      %1946 = vmatprep.subr.mxu0 0.0
      %1947 = vmatpush2.msra.mxu0 0.0
      %1948 = vmatprep.mubr.f32.mxu0 0.0
      %1949 = vmatmul.mubr.f32.gmra.mxu0 %v1879
      %v1950 = vpop.f32.mrf.mxu0
      %v1951 = vadd.f32 0.0, %v1950
      %v1952 = vpop.f32.mrf.mxu0
      %1953 = vdwg.mxu0
      %1954 = vrot.lane.b32.xlu0 %v1686, 120
      %v1955 = vpop.permute.xlu0 %1954
      %1956 = vrot.lane.b32.xlu0 %v1773, 120
      %v1957 = vpop.permute.xlu0 %1956
      %1958 = vrot.lane.b32.xlu0 %v1778, 120
      %v1959 = vpop.permute.xlu0 %1958
      %v1960 = vsel %vm808, %v1955, 0
      %v1962 = vsel %vm808, %v1957, 0
      %v1964 = vsel %vm808, %v1959, 0
      %1966 = vmatprep.subr.mxu0 0.0
      %1967 = vmatpush1.xpose.msra.mxu0 0.0
      %1968 = vmatprep.subr.mxu0 0.0
      %1969 = vmatpush1.xpose.msra.mxu0 0.0
      %1970 = vmatprep.subr.mxu0 0.0
      %1971 = vmatpush1.xpose.msra.mxu0 0.0
      %1972 = vmatprep.subr.mxu0 0.0
      %1973 = vmatpush1.xpose.msra.mxu0 0.0
      %1974 = vmatprep.subr.mxu0 0.0
      %1975 = vmatpush1.xpose.msra.mxu0 0.0
      %1976 = vmatprep.subr.mxu0 0.0
      %1977 = vmatpush1.xpose.msra.mxu0 0.0
      %1978 = vmatprep.subr.mxu0 0.0
      %1979 = vmatpush1.xpose.msra.mxu0 0.0
      %1980 = vmatprep.subr.mxu0 0.0
      %1981 = vmatpush1.xpose.msra.mxu0 0.0
      %1982 = vmatprep.subr.mxu0 0.0
      %1983 = vmatpush1.xpose.msra.mxu0 0.0
      %1984 = vmatprep.subr.mxu0 0.0
      %1985 = vmatpush1.xpose.msra.mxu0 0.0
      %1986 = vmatprep.subr.mxu0 0.0
      %1987 = vmatpush1.xpose.msra.mxu0 0.0
      %1988 = vmatprep.subr.mxu0 0.0
      %1989 = vmatpush1.xpose.msra.mxu0 0.0
      %1990 = vmatprep.subr.mxu0 0.0
      %1991 = vmatpush1.xpose.msra.mxu0 0.0
      %1992 = vmatprep.subr.mxu0 0.0
      %1993 = vmatpush1.xpose.msra.mxu0 0.0
      %1994 = vmatprep.subr.mxu0 0.0
      %1995 = vmatpush1.xpose.msra.mxu0 %v1964
      %1996 = vmatprep.subr.mxu0 0.0
      %1997 = vmatpush1.xpose.msra.mxu0 %v1962
      %1998 = vmatprep.subr.mxu0 0.0
      %1999 = vmatpush2.xpose.msra.mxu0 0.0
      %2000 = vmatprep.subr.mxu0 0.0
      %2001 = vmatpush2.xpose.msra.mxu0 0.0
      %2002 = vmatprep.subr.mxu0 0.0
      %2003 = vmatpush2.xpose.msra.mxu0 0.0
      %2004 = vmatprep.subr.mxu0 0.0
      %2005 = vmatpush2.xpose.msra.mxu0 0.0
      %2006 = vmatprep.subr.mxu0 0.0
      %2007 = vmatpush2.xpose.msra.mxu0 0.0
      %2008 = vmatprep.subr.mxu0 0.0
      %2009 = vmatpush2.xpose.msra.mxu0 0.0
      %2010 = vmatprep.subr.mxu0 0.0
      %2011 = vmatpush2.xpose.msra.mxu0 0.0
      %2012 = vmatprep.subr.mxu0 0.0
      %2013 = vmatpush2.xpose.msra.mxu0 0.0
      %2014 = vmatprep.subr.mxu0 0.0
      %2015 = vmatpush2.xpose.msra.mxu0 0.0
      %2016 = vmatprep.subr.mxu0 0.0
      %2017 = vmatpush2.xpose.msra.mxu0 0.0
      %2018 = vmatprep.subr.mxu0 0.0
      %2019 = vmatpush2.xpose.msra.mxu0 0.0
      %2020 = vmatprep.subr.mxu0 0.0
      %2021 = vmatpush2.xpose.msra.mxu0 0.0
      %2022 = vmatprep.subr.mxu0 0.0
      %2023 = vmatpush2.xpose.msra.mxu0 0.0
      %2024 = vmatprep.subr.mxu0 0.0
      %2025 = vmatpush2.xpose.msra.mxu0 0.0
      %2026 = vmatprep.subr.mxu0 0.0
      %2027 = vmatpush2.xpose.msra.mxu0 0.0
      %2028 = vmatprep.subr.mxu0 0.0
      %2029 = vmatpush2.xpose.msra.mxu0 0.0
      %2030 = vmatprep.mubr.f32.mxu0 0.0
      %2031 = vmatmul.mubr.f32.gmra.mxu0 %v1960
      %v2032 = vpop.f32.mrf.mxu0
      %v2033 = vadd.f32 0.0, %v2032
      %v2034 = vpop.f32.mrf.mxu0
      %2035 = vdwg.mxu0
      %v2036 = vmul.f32 %v2033, 0.35355338
      %v2037 = vsel %vm1861, %v2036, -inf
      %2038 = vmax.xlane.f32.xlu0 %v2037
      %v2039 = vpop.xlane.xlu0 %2038
      %v2040 = vsub.f32 %v2036, %v2039
      %v2041 = vmul.f32 %v2040, 1.442695
      %v2042 = vpow.pop %v2041
      %v2043 = vsel %vm1861, %v2042, 0.0
      %2044 = vadd.xlane.f32.xlu0 %v2043
      %v2045 = vpop.xlane.xlu0 %2044
      %v2046 = vrcp.pop %v2045
      %v2047 = vmul.f32 %v2042, %v2046
      %2048 = vrot.lane.b32.xlu0 %v1773, 88
      %v2049 = vpop.permute.xlu0 %2048
      %2050 = vrot.lane.b32.xlu0 %v1778, 88
      %v2051 = vpop.permute.xlu0 %2050
      %v2054 = vsel %vm1861, %v2047, 0
      %v2056 = vsel %vm1881, %v2051, 0
      %2058 = vmatprep.subr.mxu0 0.0
      %2059 = vmatpush1.msra.mxu0 0.0
      %2060 = vmatprep.subr.mxu0 0.0
      %2061 = vmatpush1.msra.mxu0 0.0
      %2062 = vmatprep.subr.mxu0 0.0
      %2063 = vmatpush1.msra.mxu0 0.0
      %2064 = vmatprep.subr.mxu0 0.0
      %2065 = vmatpush1.msra.mxu0 0.0
      %2066 = vmatprep.subr.mxu0 0.0
      %2067 = vmatpush1.msra.mxu0 0.0
      %2068 = vmatprep.subr.mxu0 0.0
      %2069 = vmatpush1.msra.mxu0 0.0
      %2070 = vmatprep.subr.mxu0 0.0
      %2071 = vmatpush1.msra.mxu0 0.0
      %2072 = vmatprep.subr.mxu0 0.0
      %2073 = vmatpush1.msra.mxu0 0.0
      %2074 = vmatprep.subr.mxu0 0.0
      %2075 = vmatpush1.msra.mxu0 0.0
      %2076 = vmatprep.subr.mxu0 0.0
      %2077 = vmatpush1.msra.mxu0 0.0
      %2078 = vmatprep.subr.mxu0 0.0
      %2079 = vmatpush1.msra.mxu0 0.0
      %2080 = vmatprep.subr.mxu0 0.0
      %2081 = vmatpush1.msra.mxu0 0.0
      %2082 = vmatprep.subr.mxu0 0.0
      %2083 = vmatpush1.msra.mxu0 0.0
      %2084 = vmatprep.subr.mxu0 0.0
      %2085 = vmatpush1.msra.mxu0 0.0
      %2086 = vmatprep.subr.mxu0 0.0
      %2087 = vmatpush1.msra.mxu0 %v2056
      %2088 = vmatprep.subr.mxu0 0.0
      %2089 = vmatpush1.msra.mxu0 %v2049
      %2090 = vmatprep.subr.mxu0 0.0
      %2091 = vmatpush2.msra.mxu0 0.0
      %2092 = vmatprep.subr.mxu0 0.0
      %2093 = vmatpush2.msra.mxu0 0.0
      %2094 = vmatprep.subr.mxu0 0.0
      %2095 = vmatpush2.msra.mxu0 0.0
      %2096 = vmatprep.subr.mxu0 0.0
      %2097 = vmatpush2.msra.mxu0 0.0
      %2098 = vmatprep.subr.mxu0 0.0
      %2099 = vmatpush2.msra.mxu0 0.0
      %2100 = vmatprep.subr.mxu0 0.0
      %2101 = vmatpush2.msra.mxu0 0.0
      %2102 = vmatprep.subr.mxu0 0.0
      %2103 = vmatpush2.msra.mxu0 0.0
      %2104 = vmatprep.subr.mxu0 0.0
      %2105 = vmatpush2.msra.mxu0 0.0
      %2106 = vmatprep.subr.mxu0 0.0
      %2107 = vmatpush2.msra.mxu0 0.0
      %2108 = vmatprep.subr.mxu0 0.0
      %2109 = vmatpush2.msra.mxu0 0.0
      %2110 = vmatprep.subr.mxu0 0.0
      %2111 = vmatpush2.msra.mxu0 0.0
      %2112 = vmatprep.subr.mxu0 0.0
      %2113 = vmatpush2.msra.mxu0 0.0
      %2114 = vmatprep.subr.mxu0 0.0
      %2115 = vmatpush2.msra.mxu0 0.0
      %2116 = vmatprep.subr.mxu0 0.0
      %2117 = vmatpush2.msra.mxu0 0.0
      %2118 = vmatprep.subr.mxu0 0.0
      %2119 = vmatpush2.msra.mxu0 0.0
      %2120 = vmatprep.subr.mxu0 0.0
      %2121 = vmatpush2.msra.mxu0 0.0
      %2122 = vmatprep.mubr.f32.mxu0 0.0
      %2123 = vmatmul.mubr.f32.gmra.mxu0 %v2054
      %v2124 = vpop.f32.mrf.mxu0
      %v2125 = vadd.f32 0.0, %v2124
      %v2126 = vpop.f32.mrf.mxu0
      %2127 = vdwg.mxu0
      %2128 = vrot.lane.b32.xlu0 %v1686, 112
      %v2129 = vpop.permute.xlu0 %2128
      %2130 = vrot.lane.b32.xlu0 %v1773, 112
      %v2131 = vpop.permute.xlu0 %2130
      %2132 = vrot.lane.b32.xlu0 %v1778, 112
      %v2133 = vpop.permute.xlu0 %2132
      %v2134 = vsel %vm808, %v2129, 0
      %v2136 = vsel %vm808, %v2131, 0
      %v2138 = vsel %vm808, %v2133, 0
      %2140 = vmatprep.subr.mxu0 0.0
      %2141 = vmatpush1.xpose.msra.mxu0 0.0
      %2142 = vmatprep.subr.mxu0 0.0
      %2143 = vmatpush1.xpose.msra.mxu0 0.0
      %2144 = vmatprep.subr.mxu0 0.0
      %2145 = vmatpush1.xpose.msra.mxu0 0.0
      %2146 = vmatprep.subr.mxu0 0.0
      %2147 = vmatpush1.xpose.msra.mxu0 0.0
      %2148 = vmatprep.subr.mxu0 0.0
      %2149 = vmatpush1.xpose.msra.mxu0 0.0
      %2150 = vmatprep.subr.mxu0 0.0
      %2151 = vmatpush1.xpose.msra.mxu0 0.0
      %2152 = vmatprep.subr.mxu0 0.0
      %2153 = vmatpush1.xpose.msra.mxu0 0.0
      %2154 = vmatprep.subr.mxu0 0.0
      %2155 = vmatpush1.xpose.msra.mxu0 0.0
      %2156 = vmatprep.subr.mxu0 0.0
      %2157 = vmatpush1.xpose.msra.mxu0 0.0
      %2158 = vmatprep.subr.mxu0 0.0
      %2159 = vmatpush1.xpose.msra.mxu0 0.0
      %2160 = vmatprep.subr.mxu0 0.0
      %2161 = vmatpush1.xpose.msra.mxu0 0.0
      %2162 = vmatprep.subr.mxu0 0.0
      %2163 = vmatpush1.xpose.msra.mxu0 0.0
      %2164 = vmatprep.subr.mxu0 0.0
      %2165 = vmatpush1.xpose.msra.mxu0 0.0
      %2166 = vmatprep.subr.mxu0 0.0
      %2167 = vmatpush1.xpose.msra.mxu0 0.0
      %2168 = vmatprep.subr.mxu0 0.0
      %2169 = vmatpush1.xpose.msra.mxu0 %v2138
      %2170 = vmatprep.subr.mxu0 0.0
      %2171 = vmatpush1.xpose.msra.mxu0 %v2136
      %2172 = vmatprep.subr.mxu0 0.0
      %2173 = vmatpush2.xpose.msra.mxu0 0.0
      %2174 = vmatprep.subr.mxu0 0.0
      %2175 = vmatpush2.xpose.msra.mxu0 0.0
      %2176 = vmatprep.subr.mxu0 0.0
      %2177 = vmatpush2.xpose.msra.mxu0 0.0
      %2178 = vmatprep.subr.mxu0 0.0
      %2179 = vmatpush2.xpose.msra.mxu0 0.0
      %2180 = vmatprep.subr.mxu0 0.0
      %2181 = vmatpush2.xpose.msra.mxu0 0.0
      %2182 = vmatprep.subr.mxu0 0.0
      %2183 = vmatpush2.xpose.msra.mxu0 0.0
      %2184 = vmatprep.subr.mxu0 0.0
      %2185 = vmatpush2.xpose.msra.mxu0 0.0
      %2186 = vmatprep.subr.mxu0 0.0
      %2187 = vmatpush2.xpose.msra.mxu0 0.0
      %2188 = vmatprep.subr.mxu0 0.0
      %2189 = vmatpush2.xpose.msra.mxu0 0.0
      %2190 = vmatprep.subr.mxu0 0.0
      %2191 = vmatpush2.xpose.msra.mxu0 0.0
      %2192 = vmatprep.subr.mxu0 0.0
      %2193 = vmatpush2.xpose.msra.mxu0 0.0
      %2194 = vmatprep.subr.mxu0 0.0
      %2195 = vmatpush2.xpose.msra.mxu0 0.0
      %2196 = vmatprep.subr.mxu0 0.0
      %2197 = vmatpush2.xpose.msra.mxu0 0.0
      %2198 = vmatprep.subr.mxu0 0.0
      %2199 = vmatpush2.xpose.msra.mxu0 0.0
      %2200 = vmatprep.subr.mxu0 0.0
      %2201 = vmatpush2.xpose.msra.mxu0 0.0
      %2202 = vmatprep.subr.mxu0 0.0
      %2203 = vmatpush2.xpose.msra.mxu0 0.0
      %2204 = vmatprep.mubr.f32.mxu0 0.0
      %2205 = vmatmul.mubr.f32.gmra.mxu0 %v2134
      %v2206 = vpop.f32.mrf.mxu0
      %v2207 = vadd.f32 0.0, %v2206
      %v2208 = vpop.f32.mrf.mxu0
      %2209 = vdwg.mxu0
      %v2210 = vmul.f32 %v2207, 0.35355338
      %v2211 = vsel %vm1861, %v2210, -inf
      %2212 = vmax.xlane.f32.xlu0 %v2211
      %v2213 = vpop.xlane.xlu0 %2212
      %v2214 = vsub.f32 %v2210, %v2213
      %v2215 = vmul.f32 %v2214, 1.442695
      %v2216 = vpow.pop %v2215
      %v2217 = vsel %vm1861, %v2216, 0.0
      %2218 = vadd.xlane.f32.xlu0 %v2217
      %v2219 = vpop.xlane.xlu0 %2218
      %v2220 = vrcp.pop %v2219
      %v2221 = vmul.f32 %v2216, %v2220
      %2222 = vrot.lane.b32.xlu0 %v1773, 80
      %v2223 = vpop.permute.xlu0 %2222
      %2224 = vrot.lane.b32.xlu0 %v1778, 80
      %v2225 = vpop.permute.xlu0 %2224
      %v2228 = vsel %vm1861, %v2221, 0
      %v2230 = vsel %vm1881, %v2225, 0
      %2232 = vmatprep.subr.mxu0 0.0
      %2233 = vmatpush1.msra.mxu0 0.0
      %2234 = vmatprep.subr.mxu0 0.0
      %2235 = vmatpush1.msra.mxu0 0.0
      %2236 = vmatprep.subr.mxu0 0.0
      %2237 = vmatpush1.msra.mxu0 0.0
      %2238 = vmatprep.subr.mxu0 0.0
      %2239 = vmatpush1.msra.mxu0 0.0
      %2240 = vmatprep.subr.mxu0 0.0
      %2241 = vmatpush1.msra.mxu0 0.0
      %2242 = vmatprep.subr.mxu0 0.0
      %2243 = vmatpush1.msra.mxu0 0.0
      %2244 = vmatprep.subr.mxu0 0.0
      %2245 = vmatpush1.msra.mxu0 0.0
      %2246 = vmatprep.subr.mxu0 0.0
      %2247 = vmatpush1.msra.mxu0 0.0
      %2248 = vmatprep.subr.mxu0 0.0
      %2249 = vmatpush1.msra.mxu0 0.0
      %2250 = vmatprep.subr.mxu0 0.0
      %2251 = vmatpush1.msra.mxu0 0.0
      %2252 = vmatprep.subr.mxu0 0.0
      %2253 = vmatpush1.msra.mxu0 0.0
      %2254 = vmatprep.subr.mxu0 0.0
      %2255 = vmatpush1.msra.mxu0 0.0
      %2256 = vmatprep.subr.mxu0 0.0
      %2257 = vmatpush1.msra.mxu0 0.0
      %2258 = vmatprep.subr.mxu0 0.0
      %2259 = vmatpush1.msra.mxu0 0.0
      %2260 = vmatprep.subr.mxu0 0.0
      %2261 = vmatpush1.msra.mxu0 %v2230
      %2262 = vmatprep.subr.mxu0 0.0
      %2263 = vmatpush1.msra.mxu0 %v2223
      %2264 = vmatprep.subr.mxu0 0.0
      %2265 = vmatpush2.msra.mxu0 0.0
      %2266 = vmatprep.subr.mxu0 0.0
      %2267 = vmatpush2.msra.mxu0 0.0
      %2268 = vmatprep.subr.mxu0 0.0
      %2269 = vmatpush2.msra.mxu0 0.0
      %2270 = vmatprep.subr.mxu0 0.0
      %2271 = vmatpush2.msra.mxu0 0.0
      %2272 = vmatprep.subr.mxu0 0.0
      %2273 = vmatpush2.msra.mxu0 0.0
      %2274 = vmatprep.subr.mxu0 0.0
      %2275 = vmatpush2.msra.mxu0 0.0
      %2276 = vmatprep.subr.mxu0 0.0
      %2277 = vmatpush2.msra.mxu0 0.0
      %2278 = vmatprep.subr.mxu0 0.0
      %2279 = vmatpush2.msra.mxu0 0.0
      %2280 = vmatprep.subr.mxu0 0.0
      %2281 = vmatpush2.msra.mxu0 0.0
      %2282 = vmatprep.subr.mxu0 0.0
      %2283 = vmatpush2.msra.mxu0 0.0
      %2284 = vmatprep.subr.mxu0 0.0
      %2285 = vmatpush2.msra.mxu0 0.0
      %2286 = vmatprep.subr.mxu0 0.0
      %2287 = vmatpush2.msra.mxu0 0.0
      %2288 = vmatprep.subr.mxu0 0.0
      %2289 = vmatpush2.msra.mxu0 0.0
      %2290 = vmatprep.subr.mxu0 0.0
      %2291 = vmatpush2.msra.mxu0 0.0
      %2292 = vmatprep.subr.mxu0 0.0
      %2293 = vmatpush2.msra.mxu0 0.0
      %2294 = vmatprep.subr.mxu0 0.0
      %2295 = vmatpush2.msra.mxu0 0.0
      %2296 = vmatprep.mubr.f32.mxu0 0.0
      %2297 = vmatmul.mubr.f32.gmra.mxu0 %v2228
      %v2298 = vpop.f32.mrf.mxu0
      %v2299 = vadd.f32 0.0, %v2298
      %v2300 = vpop.f32.mrf.mxu0
      %2301 = vdwg.mxu0
      %2302 = vrot.lane.b32.xlu0 %v1686, 104
      %v2303 = vpop.permute.xlu0 %2302
      %2304 = vrot.lane.b32.xlu0 %v1773, 104
      %v2305 = vpop.permute.xlu0 %2304
      %2306 = vrot.lane.b32.xlu0 %v1778, 104
      %v2307 = vpop.permute.xlu0 %2306
      %v2308 = vsel %vm808, %v2303, 0
      %v2310 = vsel %vm808, %v2305, 0
      %v2312 = vsel %vm808, %v2307, 0
      %2314 = vmatprep.subr.mxu0 0.0
      %2315 = vmatpush1.xpose.msra.mxu0 0.0
      %2316 = vmatprep.subr.mxu0 0.0
      %2317 = vmatpush1.xpose.msra.mxu0 0.0
      %2318 = vmatprep.subr.mxu0 0.0
      %2319 = vmatpush1.xpose.msra.mxu0 0.0
      %2320 = vmatprep.subr.mxu0 0.0
      %2321 = vmatpush1.xpose.msra.mxu0 0.0
      %2322 = vmatprep.subr.mxu0 0.0
      %2323 = vmatpush1.xpose.msra.mxu0 0.0
      %2324 = vmatprep.subr.mxu0 0.0
      %2325 = vmatpush1.xpose.msra.mxu0 0.0
      %2326 = vmatprep.subr.mxu0 0.0
      %2327 = vmatpush1.xpose.msra.mxu0 0.0
      %2328 = vmatprep.subr.mxu0 0.0
      %2329 = vmatpush1.xpose.msra.mxu0 0.0
      %2330 = vmatprep.subr.mxu0 0.0
      %2331 = vmatpush1.xpose.msra.mxu0 0.0
      %2332 = vmatprep.subr.mxu0 0.0
      %2333 = vmatpush1.xpose.msra.mxu0 0.0
      %2334 = vmatprep.subr.mxu0 0.0
      %2335 = vmatpush1.xpose.msra.mxu0 0.0
      %2336 = vmatprep.subr.mxu0 0.0
      %2337 = vmatpush1.xpose.msra.mxu0 0.0
      %2338 = vmatprep.subr.mxu0 0.0
      %2339 = vmatpush1.xpose.msra.mxu0 0.0
      %2340 = vmatprep.subr.mxu0 0.0
      %2341 = vmatpush1.xpose.msra.mxu0 0.0
      %2342 = vmatprep.subr.mxu0 0.0
      %2343 = vmatpush1.xpose.msra.mxu0 %v2312
      %2344 = vmatprep.subr.mxu0 0.0
      %2345 = vmatpush1.xpose.msra.mxu0 %v2310
      %2346 = vmatprep.subr.mxu0 0.0
      %2347 = vmatpush2.xpose.msra.mxu0 0.0
      %2348 = vmatprep.subr.mxu0 0.0
      %2349 = vmatpush2.xpose.msra.mxu0 0.0
      %2350 = vmatprep.subr.mxu0 0.0
      %2351 = vmatpush2.xpose.msra.mxu0 0.0
      %2352 = vmatprep.subr.mxu0 0.0
      %2353 = vmatpush2.xpose.msra.mxu0 0.0
      %2354 = vmatprep.subr.mxu0 0.0
      %2355 = vmatpush2.xpose.msra.mxu0 0.0
      %2356 = vmatprep.subr.mxu0 0.0
      %2357 = vmatpush2.xpose.msra.mxu0 0.0
      %2358 = vmatprep.subr.mxu0 0.0
      %2359 = vmatpush2.xpose.msra.mxu0 0.0
      %2360 = vmatprep.subr.mxu0 0.0
      %2361 = vmatpush2.xpose.msra.mxu0 0.0
      %2362 = vmatprep.subr.mxu0 0.0
      %2363 = vmatpush2.xpose.msra.mxu0 0.0
      %2364 = vmatprep.subr.mxu0 0.0
      %2365 = vmatpush2.xpose.msra.mxu0 0.0
      %2366 = vmatprep.subr.mxu0 0.0
      %2367 = vmatpush2.xpose.msra.mxu0 0.0
      %2368 = vmatprep.subr.mxu0 0.0
      %2369 = vmatpush2.xpose.msra.mxu0 0.0
      %2370 = vmatprep.subr.mxu0 0.0
      %2371 = vmatpush2.xpose.msra.mxu0 0.0
      %2372 = vmatprep.subr.mxu0 0.0
      %2373 = vmatpush2.xpose.msra.mxu0 0.0
      %2374 = vmatprep.subr.mxu0 0.0
      %2375 = vmatpush2.xpose.msra.mxu0 0.0
      %2376 = vmatprep.subr.mxu0 0.0
      %2377 = vmatpush2.xpose.msra.mxu0 0.0
      %2378 = vmatprep.mubr.f32.mxu0 0.0
      %2379 = vmatmul.mubr.f32.gmra.mxu0 %v2308
      %v2380 = vpop.f32.mrf.mxu0
      %v2381 = vadd.f32 0.0, %v2380
      %v2382 = vpop.f32.mrf.mxu0
      %2383 = vdwg.mxu0
      %v2384 = vmul.f32 %v2381, 0.35355338
      %v2385 = vsel %vm1861, %v2384, -inf
      %2386 = vmax.xlane.f32.xlu0 %v2385
      %v2387 = vpop.xlane.xlu0 %2386
      %v2388 = vsub.f32 %v2384, %v2387
      %v2389 = vmul.f32 %v2388, 1.442695
      %v2390 = vpow.pop %v2389
      %v2391 = vsel %vm1861, %v2390, 0.0
      %2392 = vadd.xlane.f32.xlu0 %v2391
      %v2393 = vpop.xlane.xlu0 %2392
      %v2394 = vrcp.pop %v2393
      %v2395 = vmul.f32 %v2390, %v2394
      %2396 = vrot.lane.b32.xlu0 %v1773, 72
      %v2397 = vpop.permute.xlu0 %2396
      %2398 = vrot.lane.b32.xlu0 %v1778, 72
      %v2399 = vpop.permute.xlu0 %2398
      %v2402 = vsel %vm1861, %v2395, 0
      %v2404 = vsel %vm1881, %v2399, 0
      %2406 = vmatprep.subr.mxu0 0.0
      %2407 = vmatpush1.msra.mxu0 0.0
      %2408 = vmatprep.subr.mxu0 0.0
      %2409 = vmatpush1.msra.mxu0 0.0
      %2410 = vmatprep.subr.mxu0 0.0
      %2411 = vmatpush1.msra.mxu0 0.0
      %2412 = vmatprep.subr.mxu0 0.0
      %2413 = vmatpush1.msra.mxu0 0.0
      %2414 = vmatprep.subr.mxu0 0.0
      %2415 = vmatpush1.msra.mxu0 0.0
      %2416 = vmatprep.subr.mxu0 0.0
      %2417 = vmatpush1.msra.mxu0 0.0
      %2418 = vmatprep.subr.mxu0 0.0
      %2419 = vmatpush1.msra.mxu0 0.0
      %2420 = vmatprep.subr.mxu0 0.0
      %2421 = vmatpush1.msra.mxu0 0.0
      %2422 = vmatprep.subr.mxu0 0.0
      %2423 = vmatpush1.msra.mxu0 0.0
      %2424 = vmatprep.subr.mxu0 0.0
      %2425 = vmatpush1.msra.mxu0 0.0
      %2426 = vmatprep.subr.mxu0 0.0
      %2427 = vmatpush1.msra.mxu0 0.0
      %2428 = vmatprep.subr.mxu0 0.0
      %2429 = vmatpush1.msra.mxu0 0.0
      %2430 = vmatprep.subr.mxu0 0.0
      %2431 = vmatpush1.msra.mxu0 0.0
      %2432 = vmatprep.subr.mxu0 0.0
      %2433 = vmatpush1.msra.mxu0 0.0
      %2434 = vmatprep.subr.mxu0 0.0
      %2435 = vmatpush1.msra.mxu0 %v2404
      %2436 = vmatprep.subr.mxu0 0.0
      %2437 = vmatpush1.msra.mxu0 %v2397
      %2438 = vmatprep.subr.mxu0 0.0
      %2439 = vmatpush2.msra.mxu0 0.0
      %2440 = vmatprep.subr.mxu0 0.0
      %2441 = vmatpush2.msra.mxu0 0.0
      %2442 = vmatprep.subr.mxu0 0.0
      %2443 = vmatpush2.msra.mxu0 0.0
      %2444 = vmatprep.subr.mxu0 0.0
      %2445 = vmatpush2.msra.mxu0 0.0
      %2446 = vmatprep.subr.mxu0 0.0
      %2447 = vmatpush2.msra.mxu0 0.0
      %2448 = vmatprep.subr.mxu0 0.0
      %2449 = vmatpush2.msra.mxu0 0.0
      %2450 = vmatprep.subr.mxu0 0.0
      %2451 = vmatpush2.msra.mxu0 0.0
      %2452 = vmatprep.subr.mxu0 0.0
      %2453 = vmatpush2.msra.mxu0 0.0
      %2454 = vmatprep.subr.mxu0 0.0
      %2455 = vmatpush2.msra.mxu0 0.0
      %2456 = vmatprep.subr.mxu0 0.0
      %2457 = vmatpush2.msra.mxu0 0.0
      %2458 = vmatprep.subr.mxu0 0.0
      %2459 = vmatpush2.msra.mxu0 0.0
      %2460 = vmatprep.subr.mxu0 0.0
      %2461 = vmatpush2.msra.mxu0 0.0
      %2462 = vmatprep.subr.mxu0 0.0
      %2463 = vmatpush2.msra.mxu0 0.0
      %2464 = vmatprep.subr.mxu0 0.0
      %2465 = vmatpush2.msra.mxu0 0.0
      %2466 = vmatprep.subr.mxu0 0.0
      %2467 = vmatpush2.msra.mxu0 0.0
      %2468 = vmatprep.subr.mxu0 0.0
      %2469 = vmatpush2.msra.mxu0 0.0
      %2470 = vmatprep.mubr.f32.mxu0 0.0
      %2471 = vmatmul.mubr.f32.gmra.mxu0 %v2402
      %v2472 = vpop.f32.mrf.mxu0
      %v2473 = vadd.f32 0.0, %v2472
      %v2474 = vpop.f32.mrf.mxu0
      %2475 = vdwg.mxu0
      %2477 = vrot.lane.b32.xlu0 %v2125, 8
      %v2478 = vpop.permute.xlu0 %2477
      %2481 = vrot.lane.b32.xlu0 %v2299, 16
      %v2482 = vpop.permute.xlu0 %2481
      %2485 = vrot.lane.b32.xlu0 %v2473, 24
      %v2486 = vpop.permute.xlu0 %2485
      %v2488 = vsel %vm808, %v1951, %v2478
      %v2489 = vsel %vm1486, %v2488, %v2482
      %v2490 = vsel %vm1488, %v2489, %v2486
      %v2491 = vld [vmem:[%s13] sm:$0xff]
      %v2492 = vld [vmem:[%s13 + $0x8] sm:$0xff]
      %v2493 = vld [vmem:[%s13 + $0x10] sm:$0xff]
      %v2494 = vld [vmem:[%s13 + $0x18] sm:$0xff]
      %v2495 = vld [vmem:[%s14] sm:$0x1]
      %v2497 = vlaneseq
      %v2498 = vshrl.u32 %v2497, 7
      %v2499 = vsub.s32 0, %v2498
      %v2500 = vrot.slane %v2495, %v2499
      %v2503 = vsel %vm731, %v2490, 0
      %2505 = vmatprep.subr.mxu0 0.0
      %2506 = vmatpush1.msra.mxu0 0.0
      %2507 = vmatprep.subr.mxu0 0.0
      %2508 = vmatpush1.msra.mxu0 0.0
      %2509 = vmatprep.subr.mxu0 0.0
      %2510 = vmatpush1.msra.mxu0 0.0
      %2511 = vmatprep.subr.mxu0 0.0
      %2512 = vmatpush1.msra.mxu0 0.0
      %2513 = vmatprep.subr.mxu0 0.0
      %2514 = vmatpush1.msra.mxu0 0.0
      %2515 = vmatprep.subr.mxu0 0.0
      %2516 = vmatpush1.msra.mxu0 0.0
      %2517 = vmatprep.subr.mxu0 0.0
      %2518 = vmatpush1.msra.mxu0 0.0
      %2519 = vmatprep.subr.mxu0 0.0
      %2520 = vmatpush1.msra.mxu0 0.0
      %2521 = vmatprep.subr.mxu0 0.0
      %2522 = vmatpush1.msra.mxu0 0.0
      %2523 = vmatprep.subr.mxu0 0.0
      %2524 = vmatpush1.msra.mxu0 0.0
      %2525 = vmatprep.subr.mxu0 0.0
      %2526 = vmatpush1.msra.mxu0 0.0
      %2527 = vmatprep.subr.mxu0 0.0
      %2528 = vmatpush1.msra.mxu0 0.0
      %2529 = vmatprep.subr.mxu0 0.0
      %2530 = vmatpush1.msra.mxu0 %v2494
      %2531 = vmatprep.subr.mxu0 0.0
      %2532 = vmatpush1.msra.mxu0 %v2493
      %2533 = vmatprep.subr.mxu0 0.0
      %2534 = vmatpush1.msra.mxu0 %v2492
      %2535 = vmatprep.subr.mxu0 0.0
      %2536 = vmatpush1.msra.mxu0 %v2491
      %2537 = vmatprep.subr.mxu0 0.0
      %2538 = vmatpush2.msra.mxu0 0.0
      %2539 = vmatprep.subr.mxu0 0.0
      %2540 = vmatpush2.msra.mxu0 0.0
      %2541 = vmatprep.subr.mxu0 0.0
      %2542 = vmatpush2.msra.mxu0 0.0
      %2543 = vmatprep.subr.mxu0 0.0
      %2544 = vmatpush2.msra.mxu0 0.0
      %2545 = vmatprep.subr.mxu0 0.0
      %2546 = vmatpush2.msra.mxu0 0.0
      %2547 = vmatprep.subr.mxu0 0.0
      %2548 = vmatpush2.msra.mxu0 0.0
      %2549 = vmatprep.subr.mxu0 0.0
      %2550 = vmatpush2.msra.mxu0 0.0
      %2551 = vmatprep.subr.mxu0 0.0
      %2552 = vmatpush2.msra.mxu0 0.0
      %2553 = vmatprep.subr.mxu0 0.0
      %2554 = vmatpush2.msra.mxu0 0.0
      %2555 = vmatprep.subr.mxu0 0.0
      %2556 = vmatpush2.msra.mxu0 0.0
      %2557 = vmatprep.subr.mxu0 0.0
      %2558 = vmatpush2.msra.mxu0 0.0
      %2559 = vmatprep.subr.mxu0 0.0
      %2560 = vmatpush2.msra.mxu0 0.0
      %2561 = vmatprep.subr.mxu0 0.0
      %2562 = vmatpush2.msra.mxu0 0.0
      %2563 = vmatprep.subr.mxu0 0.0
      %2564 = vmatpush2.msra.mxu0 0.0
      %2565 = vmatprep.subr.mxu0 0.0
      %2566 = vmatpush2.msra.mxu0 0.0
      %2567 = vmatprep.subr.mxu0 0.0
      %2568 = vmatpush2.msra.mxu0 0.0
      %2569 = vmatprep.mubr.f32.mxu0 0.0
      %2570 = vmatmul.mubr.f32.gmra.mxu0 %v2503
      %v2571 = vpop.f32.mrf.mxu0
      %v2572 = vadd.f32 %v2500, %v2571
      %v2573 = vpop.f32.mrf.mxu0
      %2574 = vdwg.mxu0
      %v2575 = vadd.f32 %v1604, %v2572
      %v2576 = vld [vmem:[%s15] sm:$0x1]
      %v2577 = vld [vmem:[%s16] sm:$0x1]
      %v2578 = vsel %vm731, %v2575, 0.0
      %2579 = vadd.xlane.f32.xlu0 %v2578
      %v2580 = vpop.xlane.xlu0 %2579
      %v2581 = vmul.f32 %v2580, %v1580
      %v2582 = vsub.f32 %v2575, %v2581
      %v2583 = vmul.f32 %v2582, %v2582
      %v2584 = vsel %vm731, %v2583, 0.0
      %2585 = vadd.xlane.f32.xlu0 %v2584
      %v2586 = vpop.xlane.xlu0 %2585
      %v2587 = vmul.f32 %v2586, %v1580
      %v2588 = vadd.f32 %v2587, 1e-05
      %v2589 = vrsqrt.pop %v2588
      %v2590 = vmul.f32 %v2582, %v2589
      %v2592 = vlaneseq
      %v2593 = vshrl.u32 %v2592, 7
      %v2594 = vsub.s32 0, %v2593
      %v2595 = vrot.slane %v2576, %v2594
      %v2597 = vmul.f32 %v2590, %v2595
      %v2599 = vlaneseq
      %v2600 = vshrl.u32 %v2599, 7
      %v2601 = vsub.s32 0, %v2600
      %v2602 = vrot.slane %v2577, %v2601
      %v2604 = vadd.f32 %v2597, %v2602
      %v2605 = vld [vmem:[%s17] sm:$0xff]
      %v2606 = vld [vmem:[%s17 + $0x8] sm:$0xff]
      %v2607 = vld [vmem:[%s17 + $0x10] sm:$0xff]
      %v2608 = vld [vmem:[%s17 + $0x18] sm:$0xff]
      %v2609 = vld [vmem:[%s18] sm:$0x1]
      %v2611 = vlaneseq
      %v2612 = vshrl.u32 %v2611, 7
      %v2613 = vsub.s32 0, %v2612
      %v2614 = vrot.slane %v2609, %v2613
      %v2617 = vsel %vm731, %v2604, 0
      %2619 = vmatprep.subr.mxu0 0.0
      %2620 = vmatpush1.msra.mxu0 0.0
      %2621 = vmatprep.subr.mxu0 0.0
      %2622 = vmatpush1.msra.mxu0 0.0
      %2623 = vmatprep.subr.mxu0 0.0
      %2624 = vmatpush1.msra.mxu0 0.0
      %2625 = vmatprep.subr.mxu0 0.0
      %2626 = vmatpush1.msra.mxu0 0.0
      %2627 = vmatprep.subr.mxu0 0.0
      %2628 = vmatpush1.msra.mxu0 0.0
      %2629 = vmatprep.subr.mxu0 0.0
      %2630 = vmatpush1.msra.mxu0 0.0
      %2631 = vmatprep.subr.mxu0 0.0
      %2632 = vmatpush1.msra.mxu0 0.0
      %2633 = vmatprep.subr.mxu0 0.0
      %2634 = vmatpush1.msra.mxu0 0.0
      %2635 = vmatprep.subr.mxu0 0.0
      %2636 = vmatpush1.msra.mxu0 0.0
      %2637 = vmatprep.subr.mxu0 0.0
      %2638 = vmatpush1.msra.mxu0 0.0
      %2639 = vmatprep.subr.mxu0 0.0
      %2640 = vmatpush1.msra.mxu0 0.0
      %2641 = vmatprep.subr.mxu0 0.0
      %2642 = vmatpush1.msra.mxu0 0.0
      %2643 = vmatprep.subr.mxu0 0.0
      %2644 = vmatpush1.msra.mxu0 %v2608
      %2645 = vmatprep.subr.mxu0 0.0
      %2646 = vmatpush1.msra.mxu0 %v2607
      %2647 = vmatprep.subr.mxu0 0.0
      %2648 = vmatpush1.msra.mxu0 %v2606
      %2649 = vmatprep.subr.mxu0 0.0
      %2650 = vmatpush1.msra.mxu0 %v2605
      %2651 = vmatprep.subr.mxu0 0.0
      %2652 = vmatpush2.msra.mxu0 0.0
      %2653 = vmatprep.subr.mxu0 0.0
      %2654 = vmatpush2.msra.mxu0 0.0
      %2655 = vmatprep.subr.mxu0 0.0
      %2656 = vmatpush2.msra.mxu0 0.0
      %2657 = vmatprep.subr.mxu0 0.0
      %2658 = vmatpush2.msra.mxu0 0.0
      %2659 = vmatprep.subr.mxu0 0.0
      %2660 = vmatpush2.msra.mxu0 0.0
      %2661 = vmatprep.subr.mxu0 0.0
      %2662 = vmatpush2.msra.mxu0 0.0
      %2663 = vmatprep.subr.mxu0 0.0
      %2664 = vmatpush2.msra.mxu0 0.0
      %2665 = vmatprep.subr.mxu0 0.0
      %2666 = vmatpush2.msra.mxu0 0.0
      %2667 = vmatprep.subr.mxu0 0.0
      %2668 = vmatpush2.msra.mxu0 0.0
      %2669 = vmatprep.subr.mxu0 0.0
      %2670 = vmatpush2.msra.mxu0 0.0
      %2671 = vmatprep.subr.mxu0 0.0
      %2672 = vmatpush2.msra.mxu0 0.0
      %2673 = vmatprep.subr.mxu0 0.0
      %2674 = vmatpush2.msra.mxu0 0.0
      %2675 = vmatprep.subr.mxu0 0.0
      %2676 = vmatpush2.msra.mxu0 0.0
      %2677 = vmatprep.subr.mxu0 0.0
      %2678 = vmatpush2.msra.mxu0 0.0
      %2679 = vmatprep.subr.mxu0 0.0
      %2680 = vmatpush2.msra.mxu0 0.0
      %2681 = vmatprep.subr.mxu0 0.0
      %2682 = vmatpush2.msra.mxu0 0.0
      %2683 = vmatprep.mubr.f32.mxu0 0.0
      %2684 = vmatmul.mubr.f32.gmra.mxu0 %v2617
      %v2685 = vpop.f32.mrf.mxu0
      %v2686 = vadd.f32 %v2614, %v2685
      %v2687 = vpop.f32.mrf.mxu0
      %2688 = vdwg.mxu0
      %v2689 = vmax.f32 %v2686, 0.0
      %v2690 = vld [vmem:[%s19] sm:$0xff]
      %v2691 = vld [vmem:[%s19 + $0x8] sm:$0xff]
      %v2692 = vld [vmem:[%s19 + $0x10] sm:$0xff]
      %v2693 = vld [vmem:[%s19 + $0x18] sm:$0xff]
      %v2694 = vld [vmem:[%s19 + $0x20] sm:$0xff]
      %v2695 = vld [vmem:[%s19 + $0x28] sm:$0xff]
      %v2696 = vld [vmem:[%s19 + $0x30] sm:$0xff]
      %v2697 = vld [vmem:[%s19 + $0x38] sm:$0xff]
      %v2698 = vld [vmem:[%s20] sm:$0x1]
      %v2700 = vlaneseq
      %v2701 = vshrl.u32 %v2700, 7
      %v2702 = vsub.s32 0, %v2701
      %v2703 = vrot.slane %v2698, %v2702
      %vm2705 = vcmask 523264
      %v2707 = vsel %vm2705, %v2689, 0
      %2709 = vmatprep.subr.mxu0 0.0
      %2710 = vmatpush1.msra.mxu0 0.0
      %2711 = vmatprep.subr.mxu0 0.0
      %2712 = vmatpush1.msra.mxu0 0.0
      %2713 = vmatprep.subr.mxu0 0.0
      %2714 = vmatpush1.msra.mxu0 0.0
      %2715 = vmatprep.subr.mxu0 0.0
      %2716 = vmatpush1.msra.mxu0 0.0
      %2717 = vmatprep.subr.mxu0 0.0
      %2718 = vmatpush1.msra.mxu0 0.0
      %2719 = vmatprep.subr.mxu0 0.0
      %2720 = vmatpush1.msra.mxu0 0.0
      %2721 = vmatprep.subr.mxu0 0.0
      %2722 = vmatpush1.msra.mxu0 0.0
      %2723 = vmatprep.subr.mxu0 0.0
      %2724 = vmatpush1.msra.mxu0 0.0
      %2725 = vmatprep.subr.mxu0 0.0
      %2726 = vmatpush1.msra.mxu0 %v2697
      %2727 = vmatprep.subr.mxu0 0.0
      %2728 = vmatpush1.msra.mxu0 %v2696
      %2729 = vmatprep.subr.mxu0 0.0
      %2730 = vmatpush1.msra.mxu0 %v2695
      %2731 = vmatprep.subr.mxu0 0.0
      %2732 = vmatpush1.msra.mxu0 %v2694
      %2733 = vmatprep.subr.mxu0 0.0
      %2734 = vmatpush1.msra.mxu0 %v2693
      %2735 = vmatprep.subr.mxu0 0.0
      %2736 = vmatpush1.msra.mxu0 %v2692
      %2737 = vmatprep.subr.mxu0 0.0
      %2738 = vmatpush1.msra.mxu0 %v2691
      %2739 = vmatprep.subr.mxu0 0.0
      %2740 = vmatpush1.msra.mxu0 %v2690
      %2741 = vmatprep.subr.mxu0 0.0
      %2742 = vmatpush2.msra.mxu0 0.0
      %2743 = vmatprep.subr.mxu0 0.0
      %2744 = vmatpush2.msra.mxu0 0.0
      %2745 = vmatprep.subr.mxu0 0.0
      %2746 = vmatpush2.msra.mxu0 0.0
      %2747 = vmatprep.subr.mxu0 0.0
      %2748 = vmatpush2.msra.mxu0 0.0
      %2749 = vmatprep.subr.mxu0 0.0
      %2750 = vmatpush2.msra.mxu0 0.0
      %2751 = vmatprep.subr.mxu0 0.0
      %2752 = vmatpush2.msra.mxu0 0.0
      %2753 = vmatprep.subr.mxu0 0.0
      %2754 = vmatpush2.msra.mxu0 0.0
      %2755 = vmatprep.subr.mxu0 0.0
      %2756 = vmatpush2.msra.mxu0 0.0
      %2757 = vmatprep.subr.mxu0 0.0
      %2758 = vmatpush2.msra.mxu0 0.0
      %2759 = vmatprep.subr.mxu0 0.0
      %2760 = vmatpush2.msra.mxu0 0.0
      %2761 = vmatprep.subr.mxu0 0.0
      %2762 = vmatpush2.msra.mxu0 0.0
      %2763 = vmatprep.subr.mxu0 0.0
      %2764 = vmatpush2.msra.mxu0 0.0
      %2765 = vmatprep.subr.mxu0 0.0
      %2766 = vmatpush2.msra.mxu0 0.0
      %2767 = vmatprep.subr.mxu0 0.0
      %2768 = vmatpush2.msra.mxu0 0.0
      %2769 = vmatprep.subr.mxu0 0.0
      %2770 = vmatpush2.msra.mxu0 0.0
      %2771 = vmatprep.subr.mxu0 0.0
      %2772 = vmatpush2.msra.mxu0 0.0
      %2773 = vmatprep.mubr.f32.mxu0 0.0
      %2774 = vmatmul.mubr.f32.gmra.mxu0 %v2707
      %v2775 = vpop.f32.mrf.mxu0
      %v2776 = vadd.f32 %v2703, %v2775
      %v2777 = vpop.f32.mrf.mxu0
      %2778 = vdwg.mxu0
      %v2779 = vadd.f32 %v2604, %v2776
      %v2780 = vld [vmem:[%s21] sm:$0x1]
      %v2781 = vld [vmem:[%s22] sm:$0x1]
      %v2782 = vsel %vm731, %v2779, 0.0
      %2783 = vadd.xlane.f32.xlu0 %v2782
      %v2784 = vpop.xlane.xlu0 %2783
      %v2785 = vmul.f32 %v2784, %v1580
      %v2786 = vsub.f32 %v2779, %v2785
      %v2787 = vmul.f32 %v2786, %v2786
      %v2788 = vsel %vm731, %v2787, 0.0
      %2789 = vadd.xlane.f32.xlu0 %v2788
      %v2790 = vpop.xlane.xlu0 %2789
      %v2791 = vmul.f32 %v2790, %v1580
      %v2792 = vadd.f32 %v2791, 1e-05
      %v2793 = vrsqrt.pop %v2792
      %v2794 = vmul.f32 %v2786, %v2793
      %v2796 = vlaneseq
      %v2797 = vshrl.u32 %v2796, 7
      %v2798 = vsub.s32 0, %v2797
      %v2799 = vrot.slane %v2780, %v2798
      %v2801 = vmul.f32 %v2794, %v2799
      %v2803 = vlaneseq
      %v2804 = vshrl.u32 %v2803, 7
      %v2805 = vsub.s32 0, %v2804
      %v2806 = vrot.slane %v2781, %v2805
      %v2808 = vadd.f32 %v2801, %v2806
      %2809 = vst.msk [vmem:[%s705] sm:$0xff] %vm731, %v2808
      %p2810 = scmp.lt.s32.totalorder %s40, 1
      %s2811 = scalar_select %p2810, %s40, 1
      %s2812 = smul.addr %s2811, 8
      %s2813 = scalar_lea.vmem %s23, %s2812
      // Predicated region
      $region109: #{forward_train.11} parent=107 // pred_check
        %p2814 = pneg %p530
      $region110: #{forward_train.11} parent=107 // pred_check_branch
        %2816 = sbr.rel (%p2814) target = $region112
      $region111: #{forward_train.11} parent=107 // pred_region
        _
      $region112: #{forward_train.11} parent=107 // pred_fallthru
        _
    $region108: #{forward_train.11} parent=5 // pred_fallthru
      _
    %p2817 = scmp.le.s32.totalorder 2, %s35
    // Predicated region
    $region113: #{forward_train.11} parent=5 // pred_check
      %p2818 = pneg %p2817
    $region114: #{forward_train.11} parent=5 // pred_check_branch
      %2820 = sbr.rel (%p2818) target = $region116
    $region115: #{forward_train.11} parent=5 // pred_region
      %s2821 = ssub.s32 %s35, 2
      // Predicated region
      $region117: #{forward_train.11} parent=115 // pred_check
        %p2822 = pneg %p536
      $region118: #{forward_train.11} parent=115 // pred_check_branch
        %2824 = sbr.rel (%p2822) target = $region120
      $region119: #{forward_train.11} parent=115 // pred_region
        %p2825 = scmp.lt.s32.totalorder %s41, 1
        %s2826 = scalar_select %p2825, %s41, 1
        %s2827 = smul.addr %s2826, 8
        %s2828 = scalar_lea.vmem %s23, %s2827
      $region120: #{forward_train.11} parent=115 // pred_fallthru
        _
    $region116: #{forward_train.11} parent=5 // pred_fallthru
      _
  $region6: #{forward_train.11} parent=0 // loop_footer
    %s39 = sadd.s32 1, %s35
  $region7: #{forward_train.11} parent=0 // loop_footer_branch
    %34 = sbr.rel target = $region3
  $region8: #{forward_train.11} parent=0 // loop_exit
    _

// kernel: forward_train.12
$region0: #{forward_train.12}
  #allocation0 [shape = 'u32[]', space=smem, size = 0x4, offset = 0x4, fixed_abs, tag = 'smem constant byte address 0x4 - core index']
  #allocation1 [shape = 'u32[144,128]{1,0:T(1,128)}', space=vmem, size = 0x12000, scoped, tag = 'internal scratch']
  #allocation2 [shape = 's32[1]{0}', space=sflag, size = 0x4, scoped, tag = 'scoped memory for forward_train.12']
  #allocation3 [shape = 'u8[512]{0}', space=smem, size = 0x200, scoped, tag = 'prefetched SMEM operand 0']
  %s0 = inlined_call_operand.vmem [shape: s32[2], index: 0, kind: input, shape index: {}]
  %s1 = inlined_call_operand.vmem [shape: f32[2,8,32], index: 1, kind: input, shape index: {}]
  %s2 = inlined_call_operand.vmem [shape: f32[2,12,32], index: 2, kind: input, shape index: {}]
  %s3 = inlined_call_operand.vmem [shape: f32[32,96], index: 3, kind: input, shape index: {}]
  %s4 = inlined_call_operand.vmem [shape: f32[1,96], index: 4, kind: input, shape index: {}]
  %s5 = inlined_call_operand.vmem [shape: f32[32,32], index: 5, kind: input, shape index: {}]
  %s6 = inlined_call_operand.vmem [shape: f32[1,32], index: 6, kind: input, shape index: {}]
  %s7 = inlined_call_operand.vmem [shape: f32[1,32], index: 7, kind: input, shape index: {}]
  %s8 = inlined_call_operand.vmem [shape: f32[1,32], index: 8, kind: input, shape index: {}]
  %s9 = inlined_call_operand.vmem [shape: f32[32,32], index: 9, kind: input, shape index: {}]
  %s10 = inlined_call_operand.vmem [shape: f32[1,32], index: 10, kind: input, shape index: {}]
  %s11 = inlined_call_operand.vmem [shape: f32[32,64], index: 11, kind: input, shape index: {}]
  %s12 = inlined_call_operand.vmem [shape: f32[1,64], index: 12, kind: input, shape index: {}]
  %s13 = inlined_call_operand.vmem [shape: f32[32,32], index: 13, kind: input, shape index: {}]
  %s14 = inlined_call_operand.vmem [shape: f32[1,32], index: 14, kind: input, shape index: {}]
  %s15 = inlined_call_operand.vmem [shape: f32[1,32], index: 15, kind: input, shape index: {}]
  %s16 = inlined_call_operand.vmem [shape: f32[1,32], index: 16, kind: input, shape index: {}]
  %s17 = inlined_call_operand.vmem [shape: f32[32,64], index: 17, kind: input, shape index: {}]
  %s18 = inlined_call_operand.vmem [shape: f32[1,64], index: 18, kind: input, shape index: {}]
  %s19 = inlined_call_operand.vmem [shape: f32[64,32], index: 19, kind: input, shape index: {}]
  %s20 = inlined_call_operand.vmem [shape: f32[1,32], index: 20, kind: input, shape index: {}]
  %s21 = inlined_call_operand.hbm [shape: f32[1,32], index: 21, kind: input, shape index: {}]
  %s22 = inlined_call_operand.hbm [shape: f32[1,32], index: 22, kind: input, shape index: {}]
  %s23 = inlined_call_operand.vmem [shape: f32[2,8,32], index: 23, kind: output, shape index: {}]
  %s24 = sld [smem:[#allocation0]]
  $region129: #{forward_train.12} parent=0
    _
  %s26 = ssub.s32 1, %s24
  %s27 = scalar_select 0, %s26, %s24
  %s28 = sshll.u32 %s0, 4
  %s29 = int_to_ptr.vmem [resolvable:$true] %s28
  %31 = dma.vmem_to_smem %s29, 16, [#allocation3], [#allocation2]
  %32 = dma.done [#allocation2], 16
  %33 = sfence
  $region1: #{forward_train.12} parent=0
    #allocation4 [shape = 'u8[512]{0}', space=vmem, size = 0x400, scoped, tag = 'input window, operand 21, single buffered']
    #allocation5 [shape = 's32[2]{0}', space=sflag, size = 0x8, scoped, tag = 'scoped memory for forward_train.12']
    #allocation6 [shape = 'u8[512]{0}', space=vmem, size = 0x400, scoped, tag = 'input window, operand 22, single buffered']
    #allocation7 [shape = 's32[1]{0}', space=sflag, size = 0x4, scoped, tag = 'scoped memory for forward_train.12']
    %34 = vsyncpa [#allocation5], 0
    %35 = vsyncpa [#allocation7], 0
    loop: start=0, step=1, limit=4
    $region2: #{forward_train.12} parent=1 // loop_pre_header
      _
    $region3: #{forward_train.12} parent=1 // loop_header
      %s37 = sphi 0, %s41
      %p38 = scmp.ge.s32.totalorder %s37, 4
      %s47 = sphi 0, %s49
      %s50 = sphi 0, %s47
      %s51 = sphi 0, %s50
      %s67 = sphi 0, %s51
      %s73 = sphi 0, %s75
      %s76 = sphi 0, %s73
      %s77 = sphi 0, %s76
      %s93 = sphi 0, %s77
      %s97 = sphi 0, %s97
      %s99 = sphi 0, %s97
      %s100 = sphi 0, %s99
      %s114 = sphi 0, %s100
      %s118 = sphi 0, %s118
      %s120 = sphi 0, %s118
      %s121 = sphi 0, %s120
      %s135 = sphi 0, %s121
      %s139 = sphi 0, %s139
      %s141 = sphi 0, %s139
      %s142 = sphi 0, %s141
      %s156 = sphi 0, %s142
      %s160 = sphi 0, %s160
      %s162 = sphi 0, %s160
      %s163 = sphi 0, %s162
      %s177 = sphi 0, %s163
      %s181 = sphi 0, %s181
      %s183 = sphi 0, %s181
      %s184 = sphi 0, %s183
      %s198 = sphi 0, %s184
      %s202 = sphi 0, %s202
      %s204 = sphi 0, %s202
      %s205 = sphi 0, %s204
      %s219 = sphi 0, %s205
      %s223 = sphi 0, %s223
      %s225 = sphi 0, %s223
      %s226 = sphi 0, %s225
      %s240 = sphi 0, %s226
      %s244 = sphi 0, %s244
      %s246 = sphi 0, %s244
      %s247 = sphi 0, %s246
      %s261 = sphi 0, %s247
      %s265 = sphi 0, %s265
      %s267 = sphi 0, %s265
      %s268 = sphi 0, %s267
      %s282 = sphi 0, %s268
      %s286 = sphi 0, %s286
      %s288 = sphi 0, %s286
      %s289 = sphi 0, %s288
      %s303 = sphi 0, %s289
      %s307 = sphi 0, %s307
      %s309 = sphi 0, %s307
      %s310 = sphi 0, %s309
      %s324 = sphi 0, %s310
      %s328 = sphi 0, %s328
      %s330 = sphi 0, %s328
      %s331 = sphi 0, %s330
      %s345 = sphi 0, %s331
      %s349 = sphi 0, %s349
      %s351 = sphi 0, %s349
      %s352 = sphi 0, %s351
      %s366 = sphi 0, %s352
      %s370 = sphi 0, %s370
      %s372 = sphi 0, %s370
      %s373 = sphi 0, %s372
      %s387 = sphi 0, %s373
      %s391 = sphi 0, %s391
      %s393 = sphi 0, %s391
      %s394 = sphi 0, %s393
      %s408 = sphi 0, %s394
      %s412 = sphi 0, %s412
      %s414 = sphi 0, %s412
      %s415 = sphi 0, %s414
      %s429 = sphi 0, %s415
      %s433 = sphi 0, %s433
      %s435 = sphi 0, %s433
      %s436 = sphi 0, %s435
      %s450 = sphi 0, %s436
      %s454 = sphi 0, %s454
      %s456 = sphi 0, %s454
      %s457 = sphi 0, %s456
      %s471 = sphi 0, %s457
      %s475 = sphi 0, %s475
      %s477 = sphi 0, %s475
      %s478 = sphi 0, %s477
      %s492 = sphi 0, %s478
      %s496 = sphi 0, %s496
      %s498 = sphi 0, %s496
      %s499 = sphi 0, %s498
      %s513 = sphi 0, %s499
      %s519 = sphi 0, %s521
      %s522 = sphi 0, %s519
      %s523 = sphi 0, %s522
      %s539 = sphi 0, %s523
    $region4: #{forward_train.12} parent=1 // loop_header_branch
      %40 = sbr.rel (%p38) target = $region8
    $region5: #{forward_train.12} parent=1 // loop_body
      %s42 = ssub.s32 %s37, 1
      %s43 = ssub.s32 %s37, 2
      %s44 = sadd.s32 %s37, 1
      %s45 = ssub.s32 %s37, %s44
      %p46 = scmp.eq.s32.totalorder %s45, 0
      %s48 = sadd.s32 %s47, 1
      %s49 = scalar_select %p46, %s47, %s48
      %p52 = pneg %p46
      %p53 = scmp.eq.s32.totalorder %s37, 1
      %p54 = por %p52, %p53
      %p55 = scmp.ne.s32.totalorder %s47, %s50
      %p56 = scmp.eq.s32.totalorder %s37, 0
      %p57 = por %p55, %p56
      %p58 = scmp.ne.s32.totalorder %s47, %s50
      %p59 = scmp.eq.s32.totalorder %s42, 1
      %p60 = por %p58, %p59
      %p61 = scmp.ne.s32.totalorder %s50, %s51
      %p62 = scmp.eq.s32.totalorder %s42, 0
      %p63 = por %p61, %p62
      %p64 = scmp.ne.s32.totalorder %s50, %s51
      %p65 = scmp.eq.s32.totalorder %s43, 1
      %p66 = por %p64, %p65
      %p68 = scmp.ne.s32.totalorder %s51, %s67
      %p69 = scmp.eq.s32.totalorder %s43, 0
      %p70 = por %p68, %p69
      %s71 = ssub.s32 %s37, %s44
      %p72 = scmp.eq.s32.totalorder %s71, 0
      %s74 = sadd.s32 %s73, 1
      %s75 = scalar_select %p72, %s73, %s74
      %p78 = pneg %p72
      %p79 = scmp.eq.s32.totalorder %s37, 1
      %p80 = por %p78, %p79
      %p81 = scmp.ne.s32.totalorder %s73, %s76
      %p82 = scmp.eq.s32.totalorder %s37, 0
      %p83 = por %p81, %p82
      %p84 = scmp.ne.s32.totalorder %s73, %s76
      %p85 = scmp.eq.s32.totalorder %s42, 1
      %p86 = por %p84, %p85
      %p87 = scmp.ne.s32.totalorder %s76, %s77
      %p88 = scmp.eq.s32.totalorder %s42, 0
      %p89 = por %p87, %p88
      %p90 = scmp.ne.s32.totalorder %s76, %s77
      %p91 = scmp.eq.s32.totalorder %s43, 1
      %p92 = por %p90, %p91
      %p94 = scmp.ne.s32.totalorder %s77, %s93
      %p95 = scmp.eq.s32.totalorder %s43, 0
      %p96 = por %p94, %p95
      %s98 = sadd.s32 %s97, 1
      %p101 = scmp.eq.s32.totalorder %s37, 1
      %p102 = scmp.ne.s32.totalorder %s97, %s99
      %p103 = scmp.eq.s32.totalorder %s37, 0
      %p104 = por %p102, %p103
      %p105 = scmp.ne.s32.totalorder %s97, %s99
      %p106 = scmp.eq.s32.totalorder %s42, 1
      %p107 = por %p105, %p106
      %p108 = scmp.ne.s32.totalorder %s99, %s100
      %p109 = scmp.eq.s32.totalorder %s42, 0
      %p110 = por %p108, %p109
      %p111 = scmp.ne.s32.totalorder %s99, %s100
      %p112 = scmp.eq.s32.totalorder %s43, 1
      %p113 = por %p111, %p112
      %p115 = scmp.ne.s32.totalorder %s100, %s114
      %p116 = scmp.eq.s32.totalorder %s43, 0
      %p117 = por %p115, %p116
      %s119 = sadd.s32 %s118, 1
      %p122 = scmp.eq.s32.totalorder %s37, 1
      %p123 = scmp.ne.s32.totalorder %s118, %s120
      %p124 = scmp.eq.s32.totalorder %s37, 0
      %p125 = por %p123, %p124
      %p126 = scmp.ne.s32.totalorder %s118, %s120
      %p127 = scmp.eq.s32.totalorder %s42, 1
      %p128 = por %p126, %p127
      %p129 = scmp.ne.s32.totalorder %s120, %s121
      %p130 = scmp.eq.s32.totalorder %s42, 0
      %p131 = por %p129, %p130
      %p132 = scmp.ne.s32.totalorder %s120, %s121
      %p133 = scmp.eq.s32.totalorder %s43, 1
      %p134 = por %p132, %p133
      %p136 = scmp.ne.s32.totalorder %s121, %s135
      %p137 = scmp.eq.s32.totalorder %s43, 0
      %p138 = por %p136, %p137
      %s140 = sadd.s32 %s139, 1
      %p143 = scmp.eq.s32.totalorder %s37, 1
      %p144 = scmp.ne.s32.totalorder %s139, %s141
      %p145 = scmp.eq.s32.totalorder %s37, 0
      %p146 = por %p144, %p145
      %p147 = scmp.ne.s32.totalorder %s139, %s141
      %p148 = scmp.eq.s32.totalorder %s42, 1
      %p149 = por %p147, %p148
      %p150 = scmp.ne.s32.totalorder %s141, %s142
      %p151 = scmp.eq.s32.totalorder %s42, 0
      %p152 = por %p150, %p151
      %p153 = scmp.ne.s32.totalorder %s141, %s142
      %p154 = scmp.eq.s32.totalorder %s43, 1
      %p155 = por %p153, %p154
      %p157 = scmp.ne.s32.totalorder %s142, %s156
      %p158 = scmp.eq.s32.totalorder %s43, 0
      %p159 = por %p157, %p158
      %s161 = sadd.s32 %s160, 1
      %p164 = scmp.eq.s32.totalorder %s37, 1
      %p165 = scmp.ne.s32.totalorder %s160, %s162
      %p166 = scmp.eq.s32.totalorder %s37, 0
      %p167 = por %p165, %p166
      %p168 = scmp.ne.s32.totalorder %s160, %s162
      %p169 = scmp.eq.s32.totalorder %s42, 1
      %p170 = por %p168, %p169
      %p171 = scmp.ne.s32.totalorder %s162, %s163
      %p172 = scmp.eq.s32.totalorder %s42, 0
      %p173 = por %p171, %p172
      %p174 = scmp.ne.s32.totalorder %s162, %s163
      %p175 = scmp.eq.s32.totalorder %s43, 1
      %p176 = por %p174, %p175
      %p178 = scmp.ne.s32.totalorder %s163, %s177
      %p179 = scmp.eq.s32.totalorder %s43, 0
      %p180 = por %p178, %p179
      %s182 = sadd.s32 %s181, 1
      %p185 = scmp.eq.s32.totalorder %s37, 1
      %p186 = scmp.ne.s32.totalorder %s181, %s183
      %p187 = scmp.eq.s32.totalorder %s37, 0
      %p188 = por %p186, %p187
      %p189 = scmp.ne.s32.totalorder %s181, %s183
      %p190 = scmp.eq.s32.totalorder %s42, 1
      %p191 = por %p189, %p190
      %p192 = scmp.ne.s32.totalorder %s183, %s184
      %p193 = scmp.eq.s32.totalorder %s42, 0
      %p194 = por %p192, %p193
      %p195 = scmp.ne.s32.totalorder %s183, %s184
      %p196 = scmp.eq.s32.totalorder %s43, 1
      %p197 = por %p195, %p196
      %p199 = scmp.ne.s32.totalorder %s184, %s198
      %p200 = scmp.eq.s32.totalorder %s43, 0
      %p201 = por %p199, %p200
      %s203 = sadd.s32 %s202, 1
      %p206 = scmp.eq.s32.totalorder %s37, 1
      %p207 = scmp.ne.s32.totalorder %s202, %s204
      %p208 = scmp.eq.s32.totalorder %s37, 0
      %p209 = por %p207, %p208
      %p210 = scmp.ne.s32.totalorder %s202, %s204
      %p211 = scmp.eq.s32.totalorder %s42, 1
      %p212 = por %p210, %p211
      %p213 = scmp.ne.s32.totalorder %s204, %s205
      %p214 = scmp.eq.s32.totalorder %s42, 0
      %p215 = por %p213, %p214
      %p216 = scmp.ne.s32.totalorder %s204, %s205
      %p217 = scmp.eq.s32.totalorder %s43, 1
      %p218 = por %p216, %p217
      %p220 = scmp.ne.s32.totalorder %s205, %s219
      %p221 = scmp.eq.s32.totalorder %s43, 0
      %p222 = por %p220, %p221
      %s224 = sadd.s32 %s223, 1
      %p227 = scmp.eq.s32.totalorder %s37, 1
      %p228 = scmp.ne.s32.totalorder %s223, %s225
      %p229 = scmp.eq.s32.totalorder %s37, 0
      %p230 = por %p228, %p229
      %p231 = scmp.ne.s32.totalorder %s223, %s225
      %p232 = scmp.eq.s32.totalorder %s42, 1
      %p233 = por %p231, %p232
      %p234 = scmp.ne.s32.totalorder %s225, %s226
      %p235 = scmp.eq.s32.totalorder %s42, 0
      %p236 = por %p234, %p235
      %p237 = scmp.ne.s32.totalorder %s225, %s226
      %p238 = scmp.eq.s32.totalorder %s43, 1
      %p239 = por %p237, %p238
      %p241 = scmp.ne.s32.totalorder %s226, %s240
      %p242 = scmp.eq.s32.totalorder %s43, 0
      %p243 = por %p241, %p242
      %s245 = sadd.s32 %s244, 1
      %p248 = scmp.eq.s32.totalorder %s37, 1
      %p249 = scmp.ne.s32.totalorder %s244, %s246
      %p250 = scmp.eq.s32.totalorder %s37, 0
      %p251 = por %p249, %p250
      %p252 = scmp.ne.s32.totalorder %s244, %s246
      %p253 = scmp.eq.s32.totalorder %s42, 1
      %p254 = por %p252, %p253
      %p255 = scmp.ne.s32.totalorder %s246, %s247
      %p256 = scmp.eq.s32.totalorder %s42, 0
      %p257 = por %p255, %p256
      %p258 = scmp.ne.s32.totalorder %s246, %s247
      %p259 = scmp.eq.s32.totalorder %s43, 1
      %p260 = por %p258, %p259
      %p262 = scmp.ne.s32.totalorder %s247, %s261
      %p263 = scmp.eq.s32.totalorder %s43, 0
      %p264 = por %p262, %p263
      %s266 = sadd.s32 %s265, 1
      %p269 = scmp.eq.s32.totalorder %s37, 1
      %p270 = scmp.ne.s32.totalorder %s265, %s267
      %p271 = scmp.eq.s32.totalorder %s37, 0
      %p272 = por %p270, %p271
      %p273 = scmp.ne.s32.totalorder %s265, %s267
      %p274 = scmp.eq.s32.totalorder %s42, 1
      %p275 = por %p273, %p274
      %p276 = scmp.ne.s32.totalorder %s267, %s268
      %p277 = scmp.eq.s32.totalorder %s42, 0
      %p278 = por %p276, %p277
      %p279 = scmp.ne.s32.totalorder %s267, %s268
      %p280 = scmp.eq.s32.totalorder %s43, 1
      %p281 = por %p279, %p280
      %p283 = scmp.ne.s32.totalorder %s268, %s282
      %p284 = scmp.eq.s32.totalorder %s43, 0
      %p285 = por %p283, %p284
      %s287 = sadd.s32 %s286, 1
      %p290 = scmp.eq.s32.totalorder %s37, 1
      %p291 = scmp.ne.s32.totalorder %s286, %s288
      %p292 = scmp.eq.s32.totalorder %s37, 0
      %p293 = por %p291, %p292
      %p294 = scmp.ne.s32.totalorder %s286, %s288
      %p295 = scmp.eq.s32.totalorder %s42, 1
      %p296 = por %p294, %p295
      %p297 = scmp.ne.s32.totalorder %s288, %s289
      %p298 = scmp.eq.s32.totalorder %s42, 0
      %p299 = por %p297, %p298
      %p300 = scmp.ne.s32.totalorder %s288, %s289
      %p301 = scmp.eq.s32.totalorder %s43, 1
      %p302 = por %p300, %p301
      %p304 = scmp.ne.s32.totalorder %s289, %s303
      %p305 = scmp.eq.s32.totalorder %s43, 0
      %p306 = por %p304, %p305
      %s308 = sadd.s32 %s307, 1
      %p311 = scmp.eq.s32.totalorder %s37, 1
      %p312 = scmp.ne.s32.totalorder %s307, %s309
      %p313 = scmp.eq.s32.totalorder %s37, 0
      %p314 = por %p312, %p313
      %p315 = scmp.ne.s32.totalorder %s307, %s309
      %p316 = scmp.eq.s32.totalorder %s42, 1
      %p317 = por %p315, %p316
      %p318 = scmp.ne.s32.totalorder %s309, %s310
      %p319 = scmp.eq.s32.totalorder %s42, 0
      %p320 = por %p318, %p319
      %p321 = scmp.ne.s32.totalorder %s309, %s310
      %p322 = scmp.eq.s32.totalorder %s43, 1
      %p323 = por %p321, %p322
      %p325 = scmp.ne.s32.totalorder %s310, %s324
      %p326 = scmp.eq.s32.totalorder %s43, 0
      %p327 = por %p325, %p326
      %s329 = sadd.s32 %s328, 1
      %p332 = scmp.eq.s32.totalorder %s37, 1
      %p333 = scmp.ne.s32.totalorder %s328, %s330
      %p334 = scmp.eq.s32.totalorder %s37, 0
      %p335 = por %p333, %p334
      %p336 = scmp.ne.s32.totalorder %s328, %s330
      %p337 = scmp.eq.s32.totalorder %s42, 1
      %p338 = por %p336, %p337
      %p339 = scmp.ne.s32.totalorder %s330, %s331
      %p340 = scmp.eq.s32.totalorder %s42, 0
      %p341 = por %p339, %p340
      %p342 = scmp.ne.s32.totalorder %s330, %s331
      %p343 = scmp.eq.s32.totalorder %s43, 1
      %p344 = por %p342, %p343
      %p346 = scmp.ne.s32.totalorder %s331, %s345
      %p347 = scmp.eq.s32.totalorder %s43, 0
      %p348 = por %p346, %p347
      %s350 = sadd.s32 %s349, 1
      %p353 = scmp.eq.s32.totalorder %s37, 1
      %p354 = scmp.ne.s32.totalorder %s349, %s351
      %p355 = scmp.eq.s32.totalorder %s37, 0
      %p356 = por %p354, %p355
      %p357 = scmp.ne.s32.totalorder %s349, %s351
      %p358 = scmp.eq.s32.totalorder %s42, 1
      %p359 = por %p357, %p358
      %p360 = scmp.ne.s32.totalorder %s351, %s352
      %p361 = scmp.eq.s32.totalorder %s42, 0
      %p362 = por %p360, %p361
      %p363 = scmp.ne.s32.totalorder %s351, %s352
      %p364 = scmp.eq.s32.totalorder %s43, 1
      %p365 = por %p363, %p364
      %p367 = scmp.ne.s32.totalorder %s352, %s366
      %p368 = scmp.eq.s32.totalorder %s43, 0
      %p369 = por %p367, %p368
      %s371 = sadd.s32 %s370, 1
      %p374 = scmp.eq.s32.totalorder %s37, 1
      %p375 = scmp.ne.s32.totalorder %s370, %s372
      %p376 = scmp.eq.s32.totalorder %s37, 0
      %p377 = por %p375, %p376
      %p378 = scmp.ne.s32.totalorder %s370, %s372
      %p379 = scmp.eq.s32.totalorder %s42, 1
      %p380 = por %p378, %p379
      %p381 = scmp.ne.s32.totalorder %s372, %s373
      %p382 = scmp.eq.s32.totalorder %s42, 0
      %p383 = por %p381, %p382
      %p384 = scmp.ne.s32.totalorder %s372, %s373
      %p385 = scmp.eq.s32.totalorder %s43, 1
      %p386 = por %p384, %p385
      %p388 = scmp.ne.s32.totalorder %s373, %s387
      %p389 = scmp.eq.s32.totalorder %s43, 0
      %p390 = por %p388, %p389
      %s392 = sadd.s32 %s391, 1
      %p395 = scmp.eq.s32.totalorder %s37, 1
      %p396 = scmp.ne.s32.totalorder %s391, %s393
      %p397 = scmp.eq.s32.totalorder %s37, 0
      %p398 = por %p396, %p397
      %p399 = scmp.ne.s32.totalorder %s391, %s393
      %p400 = scmp.eq.s32.totalorder %s42, 1
      %p401 = por %p399, %p400
      %p402 = scmp.ne.s32.totalorder %s393, %s394
      %p403 = scmp.eq.s32.totalorder %s42, 0
      %p404 = por %p402, %p403
      %p405 = scmp.ne.s32.totalorder %s393, %s394
      %p406 = scmp.eq.s32.totalorder %s43, 1
      %p407 = por %p405, %p406
      %p409 = scmp.ne.s32.totalorder %s394, %s408
      %p410 = scmp.eq.s32.totalorder %s43, 0
      %p411 = por %p409, %p410
      %s413 = sadd.s32 %s412, 1
      %p416 = scmp.eq.s32.totalorder %s37, 1
      %p417 = scmp.ne.s32.totalorder %s412, %s414
      %p418 = scmp.eq.s32.totalorder %s37, 0
      %p419 = por %p417, %p418
      %p420 = scmp.ne.s32.totalorder %s412, %s414
      %p421 = scmp.eq.s32.totalorder %s42, 1
      %p422 = por %p420, %p421
      %p423 = scmp.ne.s32.totalorder %s414, %s415
      %p424 = scmp.eq.s32.totalorder %s42, 0
      %p425 = por %p423, %p424
      %p426 = scmp.ne.s32.totalorder %s414, %s415
      %p427 = scmp.eq.s32.totalorder %s43, 1
      %p428 = por %p426, %p427
      %p430 = scmp.ne.s32.totalorder %s415, %s429
      %p431 = scmp.eq.s32.totalorder %s43, 0
      %p432 = por %p430, %p431
      %s434 = sadd.s32 %s433, 1
      %p437 = scmp.eq.s32.totalorder %s37, 1
      %p438 = scmp.ne.s32.totalorder %s433, %s435
      %p439 = scmp.eq.s32.totalorder %s37, 0
      %p440 = por %p438, %p439
      %p441 = scmp.ne.s32.totalorder %s433, %s435
      %p442 = scmp.eq.s32.totalorder %s42, 1
      %p443 = por %p441, %p442
      %p444 = scmp.ne.s32.totalorder %s435, %s436
      %p445 = scmp.eq.s32.totalorder %s42, 0
      %p446 = por %p444, %p445
      %p447 = scmp.ne.s32.totalorder %s435, %s436
      %p448 = scmp.eq.s32.totalorder %s43, 1
      %p449 = por %p447, %p448
      %p451 = scmp.ne.s32.totalorder %s436, %s450
      %p452 = scmp.eq.s32.totalorder %s43, 0
      %p453 = por %p451, %p452
      %s455 = sadd.s32 %s454, 1
      %p458 = scmp.eq.s32.totalorder %s37, 1
      %p459 = scmp.ne.s32.totalorder %s454, %s456
      %p460 = scmp.eq.s32.totalorder %s37, 0
      %p461 = por %p459, %p460
      %p462 = scmp.ne.s32.totalorder %s454, %s456
      %p463 = scmp.eq.s32.totalorder %s42, 1
      %p464 = por %p462, %p463
      %p465 = scmp.ne.s32.totalorder %s456, %s457
      %p466 = scmp.eq.s32.totalorder %s42, 0
      %p467 = por %p465, %p466
      %p468 = scmp.ne.s32.totalorder %s456, %s457
      %p469 = scmp.eq.s32.totalorder %s43, 1
      %p470 = por %p468, %p469
      %p472 = scmp.ne.s32.totalorder %s457, %s471
      %p473 = scmp.eq.s32.totalorder %s43, 0
      %p474 = por %p472, %p473
      %s476 = sadd.s32 %s475, 1
      %p479 = scmp.eq.s32.totalorder %s37, 1
      %p480 = scmp.ne.s32.totalorder %s475, %s477
      %p481 = scmp.eq.s32.totalorder %s37, 0
      %p482 = por %p480, %p481
      %p483 = scmp.ne.s32.totalorder %s475, %s477
      %p484 = scmp.eq.s32.totalorder %s42, 1
      %p485 = por %p483, %p484
      %p486 = scmp.ne.s32.totalorder %s477, %s478
      %p487 = scmp.eq.s32.totalorder %s42, 0
      %p488 = por %p486, %p487
      %p489 = scmp.ne.s32.totalorder %s477, %s478
      %p490 = scmp.eq.s32.totalorder %s43, 1
      %p491 = por %p489, %p490
      %p493 = scmp.ne.s32.totalorder %s478, %s492
      %p494 = scmp.eq.s32.totalorder %s43, 0
      %p495 = por %p493, %p494
      %s497 = sadd.s32 %s496, 1
      %p500 = scmp.eq.s32.totalorder %s37, 1
      %p501 = scmp.ne.s32.totalorder %s496, %s498
      %p502 = scmp.eq.s32.totalorder %s37, 0
      %p503 = por %p501, %p502
      %p504 = scmp.ne.s32.totalorder %s496, %s498
      %p505 = scmp.eq.s32.totalorder %s42, 1
      %p506 = por %p504, %p505
      %p507 = scmp.ne.s32.totalorder %s498, %s499
      %p508 = scmp.eq.s32.totalorder %s42, 0
      %p509 = por %p507, %p508
      %p510 = scmp.ne.s32.totalorder %s498, %s499
      %p511 = scmp.eq.s32.totalorder %s43, 1
      %p512 = por %p510, %p511
      %p514 = scmp.ne.s32.totalorder %s499, %s513
      %p515 = scmp.eq.s32.totalorder %s43, 0
      %p516 = por %p514, %p515
      %s517 = ssub.s32 %s37, %s44
      %p518 = scmp.eq.s32.totalorder %s517, 0
      %s520 = sadd.s32 %s519, 1
      %s521 = scalar_select %p518, %s519, %s520
      %p524 = pneg %p518
      %p525 = scmp.eq.s32.totalorder %s37, 1
      %p526 = por %p524, %p525
      %p527 = scmp.ne.s32.totalorder %s519, %s522
      %p528 = scmp.eq.s32.totalorder %s37, 0
      %p529 = por %p527, %p528
      %p530 = scmp.ne.s32.totalorder %s519, %s522
      %p531 = scmp.eq.s32.totalorder %s42, 1
      %p532 = por %p530, %p531
      %p533 = scmp.ne.s32.totalorder %s522, %s523
      %p534 = scmp.eq.s32.totalorder %s42, 0
      %p535 = por %p533, %p534
      %p536 = scmp.ne.s32.totalorder %s522, %s523
      %p537 = scmp.eq.s32.totalorder %s43, 1
      %p538 = por %p536, %p537
      %p540 = scmp.ne.s32.totalorder %s523, %s539
      %p541 = scmp.eq.s32.totalorder %s43, 0
      %p542 = por %p540, %p541
      %p543 = scmp.le.s32.totalorder 1, %s37
      %p544 = scmp.lt.s32.totalorder %s37, 3
      %p545 = pnand %p543, %p544
      %p546 = pneg %p545
      // Predicated region
      $region9: #{forward_train.12} parent=5 // pred_check
        _
      $region10: #{forward_train.12} parent=5 // pred_check_branch
        %548 = sbr.rel (%p545) target = $region12
      $region11: #{forward_train.12} parent=5 // pred_region
        %s549 = ssub.s32 %s37, 1
        // Predicated region
        $region13: #{forward_train.12} parent=11 // pred_check
          %p550 = pneg %p110
        $region14: #{forward_train.12} parent=11 // pred_check_branch
          %552 = sbr.rel (%p550) target = $region16
        $region15: #{forward_train.12} parent=11 // pred_region
          _
        $region16: #{forward_train.12} parent=11 // pred_fallthru
          _
        // Predicated region
        $region17: #{forward_train.12} parent=11 // pred_check
          %p553 = pneg %p131
        $region18: #{forward_train.12} parent=11 // pred_check_branch
          %555 = sbr.rel (%p553) target = $region20
        $region19: #{forward_train.12} parent=11 // pred_region
          _
        $region20: #{forward_train.12} parent=11 // pred_fallthru
          _
        // Predicated region
        $region21: #{forward_train.12} parent=11 // pred_check
          %p556 = pneg %p152
        $region22: #{forward_train.12} parent=11 // pred_check_branch
          %558 = sbr.rel (%p556) target = $region24
        $region23: #{forward_train.12} parent=11 // pred_region
          _
        $region24: #{forward_train.12} parent=11 // pred_fallthru
          _
        // Predicated region
        $region25: #{forward_train.12} parent=11 // pred_check
          %p559 = pneg %p173
        $region26: #{forward_train.12} parent=11 // pred_check_branch
          %561 = sbr.rel (%p559) target = $region28
        $region27: #{forward_train.12} parent=11 // pred_region
          _
        $region28: #{forward_train.12} parent=11 // pred_fallthru
          _
        // Predicated region
        $region29: #{forward_train.12} parent=11 // pred_check
          %p562 = pneg %p194
        $region30: #{forward_train.12} parent=11 // pred_check_branch
          %564 = sbr.rel (%p562) target = $region32
        $region31: #{forward_train.12} parent=11 // pred_region
          _
        $region32: #{forward_train.12} parent=11 // pred_fallthru
          _
        // Predicated region
        $region33: #{forward_train.12} parent=11 // pred_check
          %p565 = pneg %p215
        $region34: #{forward_train.12} parent=11 // pred_check_branch
          %567 = sbr.rel (%p565) target = $region36
        $region35: #{forward_train.12} parent=11 // pred_region
          _
        $region36: #{forward_train.12} parent=11 // pred_fallthru
          _
        // Predicated region
        $region37: #{forward_train.12} parent=11 // pred_check
          %p568 = pneg %p236
        $region38: #{forward_train.12} parent=11 // pred_check_branch
          %570 = sbr.rel (%p568) target = $region40
        $region39: #{forward_train.12} parent=11 // pred_region
          _
        $region40: #{forward_train.12} parent=11 // pred_fallthru
          _
        // Predicated region
        $region41: #{forward_train.12} parent=11 // pred_check
          %p571 = pneg %p257
        $region42: #{forward_train.12} parent=11 // pred_check_branch
          %573 = sbr.rel (%p571) target = $region44
        $region43: #{forward_train.12} parent=11 // pred_region
          _
        $region44: #{forward_train.12} parent=11 // pred_fallthru
          _
        // Predicated region
        $region45: #{forward_train.12} parent=11 // pred_check
          %p574 = pneg %p278
        $region46: #{forward_train.12} parent=11 // pred_check_branch
          %576 = sbr.rel (%p574) target = $region48
        $region47: #{forward_train.12} parent=11 // pred_region
          _
        $region48: #{forward_train.12} parent=11 // pred_fallthru
          _
        // Predicated region
        $region49: #{forward_train.12} parent=11 // pred_check
          %p577 = pneg %p299
        $region50: #{forward_train.12} parent=11 // pred_check_branch
          %579 = sbr.rel (%p577) target = $region52
        $region51: #{forward_train.12} parent=11 // pred_region
          _
        $region52: #{forward_train.12} parent=11 // pred_fallthru
          _
        // Predicated region
        $region53: #{forward_train.12} parent=11 // pred_check
          %p580 = pneg %p320
        $region54: #{forward_train.12} parent=11 // pred_check_branch
          %582 = sbr.rel (%p580) target = $region56
        $region55: #{forward_train.12} parent=11 // pred_region
          _
        $region56: #{forward_train.12} parent=11 // pred_fallthru
          _
        // Predicated region
        $region57: #{forward_train.12} parent=11 // pred_check
          %p583 = pneg %p341
        $region58: #{forward_train.12} parent=11 // pred_check_branch
          %585 = sbr.rel (%p583) target = $region60
        $region59: #{forward_train.12} parent=11 // pred_region
          _
        $region60: #{forward_train.12} parent=11 // pred_fallthru
          _
        // Predicated region
        $region61: #{forward_train.12} parent=11 // pred_check
          %p586 = pneg %p362
        $region62: #{forward_train.12} parent=11 // pred_check_branch
          %588 = sbr.rel (%p586) target = $region64
        $region63: #{forward_train.12} parent=11 // pred_region
          _
        $region64: #{forward_train.12} parent=11 // pred_fallthru
          _
        // Predicated region
        $region65: #{forward_train.12} parent=11 // pred_check
          %p589 = pneg %p383
        $region66: #{forward_train.12} parent=11 // pred_check_branch
          %591 = sbr.rel (%p589) target = $region68
        $region67: #{forward_train.12} parent=11 // pred_region
          _
        $region68: #{forward_train.12} parent=11 // pred_fallthru
          _
        // Predicated region
        $region69: #{forward_train.12} parent=11 // pred_check
          %p592 = pneg %p404
        $region70: #{forward_train.12} parent=11 // pred_check_branch
          %594 = sbr.rel (%p592) target = $region72
        $region71: #{forward_train.12} parent=11 // pred_region
          _
        $region72: #{forward_train.12} parent=11 // pred_fallthru
          _
        // Predicated region
        $region73: #{forward_train.12} parent=11 // pred_check
          %p595 = pneg %p425
        $region74: #{forward_train.12} parent=11 // pred_check_branch
          %597 = sbr.rel (%p595) target = $region76
        $region75: #{forward_train.12} parent=11 // pred_region
          _
        $region76: #{forward_train.12} parent=11 // pred_fallthru
          _
        // Predicated region
        $region77: #{forward_train.12} parent=11 // pred_check
          %p598 = pneg %p446
        $region78: #{forward_train.12} parent=11 // pred_check_branch
          %600 = sbr.rel (%p598) target = $region80
        $region79: #{forward_train.12} parent=11 // pred_region
          _
        $region80: #{forward_train.12} parent=11 // pred_fallthru
          _
        // Predicated region
        $region81: #{forward_train.12} parent=11 // pred_check
          %p601 = pneg %p467
        $region82: #{forward_train.12} parent=11 // pred_check_branch
          %603 = sbr.rel (%p601) target = $region84
        $region83: #{forward_train.12} parent=11 // pred_region
          _
        $region84: #{forward_train.12} parent=11 // pred_fallthru
          _
        // Predicated region
        $region85: #{forward_train.12} parent=11 // pred_check
          %p604 = pneg %p488
        $region86: #{forward_train.12} parent=11 // pred_check_branch
          %606 = sbr.rel (%p604) target = $region88
        $region87: #{forward_train.12} parent=11 // pred_region
          %s608 = ssub.s32 16, 16
          %609 = vsyncadd [#allocation5], %s608
          %s611 = sshll.u32 [#allocation4], 4
          %s612 = int_to_ptr.vmem [resolvable:$true] %s611
          %614 = dma.hbm_to_vmem [thread:$0]  %s21, 16, %s612, [#allocation5]
        $region88: #{forward_train.12} parent=11 // pred_fallthru
          _
        // Predicated region
        $region89: #{forward_train.12} parent=11 // pred_check
          %p615 = pneg %p509
        $region90: #{forward_train.12} parent=11 // pred_check_branch
          %617 = sbr.rel (%p615) target = $region92
        $region91: #{forward_train.12} parent=11 // pred_region
          %s619 = ssub.s32 16, 16
          %620 = vsyncadd [#allocation7], %s619
          %s622 = sshll.u32 [#allocation6], 4
          %s623 = int_to_ptr.vmem [resolvable:$true] %s622
          %625 = dma.hbm_to_vmem [thread:$0]  %s22, 16, %s623, [#allocation7]
        $region92: #{forward_train.12} parent=11 // pred_fallthru
          _
      $region12: #{forward_train.12} parent=5 // pred_fallthru
        _
      %p626 = scmp.lt.s32.totalorder %s37, 2
      // Predicated region
      $region93: #{forward_train.12} parent=5 // pred_check
        %p627 = pneg %p626
      $region94: #{forward_train.12} parent=5 // pred_check_branch
        %629 = sbr.rel (%p627) target = $region96
      $region95: #{forward_train.12} parent=5 // pred_region
        // Predicated region
        $region97: #{forward_train.12} parent=95 // pred_check
          %p630 = pneg %p57
        $region98: #{forward_train.12} parent=95 // pred_check_branch
          %632 = sbr.rel (%p630) target = $region100
        $region99: #{forward_train.12} parent=95 // pred_region
          %p633 = scmp.lt.s32.totalorder %s37, 1
          %s634 = scalar_select %p633, %s37, 1
          %s635 = smul.addr %s634, 8
          %s636 = scalar_lea.vmem %s1, %s635
        $region100: #{forward_train.12} parent=95 // pred_fallthru
          _
        // Predicated region
        $region101: #{forward_train.12} parent=95 // pred_check
          %p637 = pneg %p83
        $region102: #{forward_train.12} parent=95 // pred_check_branch
          %639 = sbr.rel (%p637) target = $region104
        $region103: #{forward_train.12} parent=95 // pred_region
          %p640 = scmp.lt.s32.totalorder %s37, 1
          %s641 = scalar_select %p640, %s37, 1
          %s642 = smul.addr %s641, 2
          %s643 = smul.addr %s642, 8
          %s644 = scalar_lea.vmem %s2, %s643
        $region104: #{forward_train.12} parent=95 // pred_fallthru
          _
      $region96: #{forward_train.12} parent=5 // pred_fallthru
        _
      %p645 = scmp.le.s32.totalorder 1, %s37
      %p646 = scmp.lt.s32.totalorder %s37, 3
      %p647 = pnand %p645, %p646
      %p648 = pneg %p647
      // Predicated region
      $region105: #{forward_train.12} parent=5 // pred_check
        _
      $region106: #{forward_train.12} parent=5 // pred_check_branch
        %650 = sbr.rel (%p647) target = $region108
      $region107: #{forward_train.12} parent=5 // pred_region
        %s651 = ssub.s32 %s37, 1
        // Predicated region
        $region109: #{forward_train.12} parent=107 // pred_check
          %p652 = pneg %p488
        $region110: #{forward_train.12} parent=107 // pred_check_branch
          %654 = sbr.rel (%p652) target = $region112
        $region111: #{forward_train.12} parent=107 // pred_region
          %655 = dma.done [#allocation5], 16
        $region112: #{forward_train.12} parent=107 // pred_fallthru
          _
        // Predicated region
        $region113: #{forward_train.12} parent=107 // pred_check
          %p656 = pneg %p509
        $region114: #{forward_train.12} parent=107 // pred_check_branch
          %658 = sbr.rel (%p656) target = $region116
        $region115: #{forward_train.12} parent=107 // pred_region
          %659 = dma.done [#allocation7], 16
        $region116: #{forward_train.12} parent=107 // pred_fallthru
          _
        %p660 = scmp.lt.s32.totalorder %s42, 1
        %s661 = scalar_select %p660, %s42, 1
        %s662 = smul.addr %s661, 8
        %s663 = scalar_lea.vmem %s1, %s662
        %p664 = pneg %p63
        %p665 = pneg %p60
        %p666 = scmp.lt.s32.totalorder %s42, 1
        %s667 = scalar_select %p666, %s42, 1
        %s668 = smul.addr %s667, 2
        %s669 = smul.addr %s668, 8
        %s670 = scalar_lea.vmem %s2, %s669
        %p671 = pneg %p89
        %p672 = pneg %p86
        %p673 = pneg %p110
        %p674 = pneg %p107
        %p675 = pneg %p131
        %p676 = pneg %p128
        %p677 = pneg %p152
        %p678 = pneg %p149
        %p679 = pneg %p173
        %p680 = pneg %p170
        %p681 = pneg %p194
        %p682 = pneg %p191
        %p683 = pneg %p215
        %p684 = pneg %p212
        %p685 = pneg %p236
        %p686 = pneg %p233
        %p687 = pneg %p257
        %p688 = pneg %p254
        %p689 = pneg %p278
        %p690 = pneg %p275
        %p691 = pneg %p299
        %p692 = pneg %p296
        %p693 = pneg %p320
        %p694 = pneg %p317
        %p695 = pneg %p341
        %p696 = pneg %p338
        %p697 = pneg %p362
        %p698 = pneg %p359
        %p699 = pneg %p383
        %p700 = pneg %p380
        %p701 = pneg %p404
        %p702 = pneg %p401
        %p703 = pneg %p425
        %p704 = pneg %p422
        %p705 = pneg %p446
        %p706 = pneg %p443
        %p707 = pneg %p467
        %p708 = pneg %p464
        %p709 = pneg %p488
        %p710 = pneg %p485
        %p711 = pneg %p509
        %p712 = pneg %p506
        %p713 = pneg %p535
        %p714 = pneg %p532
        %p715 = scmp.lt.s32.totalorder %s42, 1
        %s716 = scalar_select %p715, %s42, 1
        %s717 = smul.addr %s716, 8
        %s718 = scalar_lea.vmem %s23, %s717
        %p719 = scmp.lt.s32.totalorder %s42, 1
        %s720 = scalar_select %p719, %s42, 1
        %s721 = smul.addr %s720, 8
        %s722 = scalar_lea.vmem %s1, %s721
        %p723 = scmp.lt.s32.totalorder %s42, 1
        %s724 = scalar_select %p723, %s42, 1
        %s725 = smul.addr %s724, 2
        %s726 = smul.addr %s725, 8
        %s727 = scalar_lea.vmem %s2, %s726
        %p728 = scmp.lt.s32.totalorder %s42, 1
        %s729 = scalar_select %p728, %s42, 1
        %s730 = smul.addr %s729, 8
        %s731 = scalar_lea.vmem %s23, %s730
        %v732 = vld [vmem:[%s722] sm:$0xff]
        %v733 = vld [vmem:[%s727] sm:$0xff]
        %v734 = vld [vmem:[%s727 + $0x8] sm:$0xf]
        %v735 = vlaneseq
        %v736 = vshrl.u32 %v735, 7
        %v737 = vlaneseq
        %v738 = vand.u32 %v737, 127
        %vm739 = vcmp.le.s32.totalorder %v738, %v736
        %s740 = sld [smem:[#allocation3 + %s42]]
        %s741 = sadd.s32 %s740, 2
        %v742 = vstv %s741
        %vm743 = vcmp.lt.s32.totalorder %v738, %v742
        %vm744 = vmand %vm739, %vm743
        %v745 = vsel %vm744, 0.0, -1e+30
        %v746 = vld [vmem:[%s3] sm:$0xff]
        %v747 = vld [vmem:[%s3 + $0x8] sm:$0xff]
        %v748 = vld [vmem:[%s3 + $0x10] sm:$0xff]
        %v749 = vld [vmem:[%s3 + $0x18] sm:$0xff]
        %v750 = vld [vmem:[%s4] sm:$0x1]
        %v752 = vlaneseq
        %v753 = vshrl.u32 %v752, 7
        %v754 = vsub.s32 0, %v753
        %v755 = vrot.slane %v750, %v754
        %vm757 = vcmask 261120
        %v759 = vsel %vm757, %v732, 0
        %761 = vmatprep.subr.mxu0 0.0
        %762 = vmatpush1.msra.mxu0 0.0
        %763 = vmatprep.subr.mxu0 0.0
        %764 = vmatpush1.msra.mxu0 0.0
        %765 = vmatprep.subr.mxu0 0.0
        %766 = vmatpush1.msra.mxu0 0.0
        %767 = vmatprep.subr.mxu0 0.0
        %768 = vmatpush1.msra.mxu0 0.0
        %769 = vmatprep.subr.mxu0 0.0
        %770 = vmatpush1.msra.mxu0 0.0
        %771 = vmatprep.subr.mxu0 0.0
        %772 = vmatpush1.msra.mxu0 0.0
        %773 = vmatprep.subr.mxu0 0.0
        %774 = vmatpush1.msra.mxu0 0.0
        %775 = vmatprep.subr.mxu0 0.0
        %776 = vmatpush1.msra.mxu0 0.0
        %777 = vmatprep.subr.mxu0 0.0
        %778 = vmatpush1.msra.mxu0 0.0
        %779 = vmatprep.subr.mxu0 0.0
        %780 = vmatpush1.msra.mxu0 0.0
        %781 = vmatprep.subr.mxu0 0.0
        %782 = vmatpush1.msra.mxu0 0.0
        %783 = vmatprep.subr.mxu0 0.0
        %784 = vmatpush1.msra.mxu0 0.0
        %785 = vmatprep.subr.mxu0 0.0
        %786 = vmatpush1.msra.mxu0 %v749
        %787 = vmatprep.subr.mxu0 0.0
        %788 = vmatpush1.msra.mxu0 %v748
        %789 = vmatprep.subr.mxu0 0.0
        %790 = vmatpush1.msra.mxu0 %v747
        %791 = vmatprep.subr.mxu0 0.0
        %792 = vmatpush1.msra.mxu0 %v746
        %793 = vmatprep.subr.mxu0 0.0
        %794 = vmatpush2.msra.mxu0 0.0
        %795 = vmatprep.subr.mxu0 0.0
        %796 = vmatpush2.msra.mxu0 0.0
        %797 = vmatprep.subr.mxu0 0.0
        %798 = vmatpush2.msra.mxu0 0.0
        %799 = vmatprep.subr.mxu0 0.0
        %800 = vmatpush2.msra.mxu0 0.0
        %801 = vmatprep.subr.mxu0 0.0
        %802 = vmatpush2.msra.mxu0 0.0
        %803 = vmatprep.subr.mxu0 0.0
        %804 = vmatpush2.msra.mxu0 0.0
        %805 = vmatprep.subr.mxu0 0.0
        %806 = vmatpush2.msra.mxu0 0.0
        %807 = vmatprep.subr.mxu0 0.0
        %808 = vmatpush2.msra.mxu0 0.0
        %809 = vmatprep.subr.mxu0 0.0
        %810 = vmatpush2.msra.mxu0 0.0
        %811 = vmatprep.subr.mxu0 0.0
        %812 = vmatpush2.msra.mxu0 0.0
        %813 = vmatprep.subr.mxu0 0.0
        %814 = vmatpush2.msra.mxu0 0.0
        %815 = vmatprep.subr.mxu0 0.0
        %816 = vmatpush2.msra.mxu0 0.0
        %817 = vmatprep.subr.mxu0 0.0
        %818 = vmatpush2.msra.mxu0 0.0
        %819 = vmatprep.subr.mxu0 0.0
        %820 = vmatpush2.msra.mxu0 0.0
        %821 = vmatprep.subr.mxu0 0.0
        %822 = vmatpush2.msra.mxu0 0.0
        %823 = vmatprep.subr.mxu0 0.0
        %824 = vmatpush2.msra.mxu0 0.0
        %825 = vmatprep.mubr.f32.mxu0 0.0
        %826 = vmatmul.mubr.f32.gmra.mxu0 %v759
        %v827 = vpop.f32.mrf.mxu0
        %v828 = vadd.f32 %v755, %v827
        %v829 = vpop.f32.mrf.mxu0
        %830 = vdwg.mxu0
        %832 = vrot.lane.b32.xlu0 %v828, 96
        %v833 = vpop.permute.xlu0 %832
        %vm834 = vcmask 64512
        %v835 = vsel %vm834, %v828, 0
        %v837 = vsel %vm834, %v833, 0
        %839 = vmatprep.subr.mxu0 0.0
        %840 = vmatpush1.xpose.msra.mxu0 0.0
        %841 = vmatprep.subr.mxu0 0.0
        %842 = vmatpush1.xpose.msra.mxu0 0.0
        %843 = vmatprep.subr.mxu0 0.0
        %844 = vmatpush1.xpose.msra.mxu0 0.0
        %845 = vmatprep.subr.mxu0 0.0
        %846 = vmatpush1.xpose.msra.mxu0 0.0
        %847 = vmatprep.subr.mxu0 0.0
        %848 = vmatpush1.xpose.msra.mxu0 0.0
        %849 = vmatprep.subr.mxu0 0.0
        %850 = vmatpush1.xpose.msra.mxu0 0.0
        %851 = vmatprep.subr.mxu0 0.0
        %852 = vmatpush1.xpose.msra.mxu0 0.0
        %853 = vmatprep.subr.mxu0 0.0
        %854 = vmatpush1.xpose.msra.mxu0 0.0
        %855 = vmatprep.subr.mxu0 0.0
        %856 = vmatpush1.xpose.msra.mxu0 0.0
        %857 = vmatprep.subr.mxu0 0.0
        %858 = vmatpush1.xpose.msra.mxu0 0.0
        %859 = vmatprep.subr.mxu0 0.0
        %860 = vmatpush1.xpose.msra.mxu0 0.0
        %861 = vmatprep.subr.mxu0 0.0
        %862 = vmatpush1.xpose.msra.mxu0 0.0
        %863 = vmatprep.subr.mxu0 0.0
        %864 = vmatpush1.xpose.msra.mxu0 0.0
        %865 = vmatprep.subr.mxu0 0.0
        %866 = vmatpush1.xpose.msra.mxu0 0.0
        %867 = vmatprep.subr.mxu0 0.0
        %868 = vmatpush1.xpose.msra.mxu0 0.0
        %869 = vmatprep.subr.mxu0 0.0
        %870 = vmatpush1.xpose.msra.mxu0 %v837
        %871 = vmatprep.subr.mxu0 0.0
        %872 = vmatpush2.xpose.msra.mxu0 0.0
        %873 = vmatprep.subr.mxu0 0.0
        %874 = vmatpush2.xpose.msra.mxu0 0.0
        %875 = vmatprep.subr.mxu0 0.0
        %876 = vmatpush2.xpose.msra.mxu0 0.0
        %877 = vmatprep.subr.mxu0 0.0
        %878 = vmatpush2.xpose.msra.mxu0 0.0
        %879 = vmatprep.subr.mxu0 0.0
        %880 = vmatpush2.xpose.msra.mxu0 0.0
        %881 = vmatprep.subr.mxu0 0.0
        %882 = vmatpush2.xpose.msra.mxu0 0.0
        %883 = vmatprep.subr.mxu0 0.0
        %884 = vmatpush2.xpose.msra.mxu0 0.0
        %885 = vmatprep.subr.mxu0 0.0
        %886 = vmatpush2.xpose.msra.mxu0 0.0
        %887 = vmatprep.subr.mxu0 0.0
        %888 = vmatpush2.xpose.msra.mxu0 0.0
        %889 = vmatprep.subr.mxu0 0.0
        %890 = vmatpush2.xpose.msra.mxu0 0.0
        %891 = vmatprep.subr.mxu0 0.0
        %892 = vmatpush2.xpose.msra.mxu0 0.0
        %893 = vmatprep.subr.mxu0 0.0
        %894 = vmatpush2.xpose.msra.mxu0 0.0
        %895 = vmatprep.subr.mxu0 0.0
        %896 = vmatpush2.xpose.msra.mxu0 0.0
        %897 = vmatprep.subr.mxu0 0.0
        %898 = vmatpush2.xpose.msra.mxu0 0.0
        %899 = vmatprep.subr.mxu0 0.0
        %900 = vmatpush2.xpose.msra.mxu0 0.0
        %901 = vmatprep.subr.mxu0 0.0
        %902 = vmatpush2.xpose.msra.mxu0 0.0
        %903 = vmatprep.mubr.f32.mxu0 0.0
        %904 = vmatmul.mubr.f32.gmra.mxu0 %v835
        %v905 = vpop.f32.mrf.mxu0
        %v906 = vadd.f32 0.0, %v905
        %v907 = vpop.f32.mrf.mxu0
        %908 = vdwg.mxu0
        %v909 = vmul.f32 %v906, 0.35355338
        %v910 = vadd.f32 %v909, %v745
        %v911 = vsel %vm834, %v910, -inf
        %912 = vmax.xlane.f32.xlu0 %v911
        %v913 = vpop.xlane.xlu0 %912
        %v914 = vsub.f32 %v910, %v913
        %v915 = vmul.f32 %v914, 1.442695
        %v916 = vpow.pop %v915
        %v917 = vsel %vm834, %v916, 0.0
        %918 = vadd.xlane.f32.xlu0 %v917
        %v919 = vpop.xlane.xlu0 %918
        %v920 = vrcp.pop %v919
        %v921 = vmul.f32 %v916, %v920
        %922 = vrot.lane.b32.xlu0 %v828, 64
        %v923 = vpop.permute.xlu0 %922
        %v926 = vsel %vm834, %v921, 0
        %928 = vmatprep.subr.mxu0 0.0
        %929 = vmatpush1.msra.mxu0 0.0
        %930 = vmatprep.subr.mxu0 0.0
        %931 = vmatpush1.msra.mxu0 0.0
        %932 = vmatprep.subr.mxu0 0.0
        %933 = vmatpush1.msra.mxu0 0.0
        %934 = vmatprep.subr.mxu0 0.0
        %935 = vmatpush1.msra.mxu0 0.0
        %936 = vmatprep.subr.mxu0 0.0
        %937 = vmatpush1.msra.mxu0 0.0
        %938 = vmatprep.subr.mxu0 0.0
        %939 = vmatpush1.msra.mxu0 0.0
        %940 = vmatprep.subr.mxu0 0.0
        %941 = vmatpush1.msra.mxu0 0.0
        %942 = vmatprep.subr.mxu0 0.0
        %943 = vmatpush1.msra.mxu0 0.0
        %944 = vmatprep.subr.mxu0 0.0
        %945 = vmatpush1.msra.mxu0 0.0
        %946 = vmatprep.subr.mxu0 0.0
        %947 = vmatpush1.msra.mxu0 0.0
        %948 = vmatprep.subr.mxu0 0.0
        %949 = vmatpush1.msra.mxu0 0.0
        %950 = vmatprep.subr.mxu0 0.0
        %951 = vmatpush1.msra.mxu0 0.0
        %952 = vmatprep.subr.mxu0 0.0
        %953 = vmatpush1.msra.mxu0 0.0
        %954 = vmatprep.subr.mxu0 0.0
        %955 = vmatpush1.msra.mxu0 0.0
        %956 = vmatprep.subr.mxu0 0.0
        %957 = vmatpush1.msra.mxu0 0.0
        %958 = vmatprep.subr.mxu0 0.0
        %959 = vmatpush1.msra.mxu0 %v923
        %960 = vmatprep.subr.mxu0 0.0
        %961 = vmatpush2.msra.mxu0 0.0
        %962 = vmatprep.subr.mxu0 0.0
        %963 = vmatpush2.msra.mxu0 0.0
        %964 = vmatprep.subr.mxu0 0.0
        %965 = vmatpush2.msra.mxu0 0.0
        %966 = vmatprep.subr.mxu0 0.0
        %967 = vmatpush2.msra.mxu0 0.0
        %968 = vmatprep.subr.mxu0 0.0
        %969 = vmatpush2.msra.mxu0 0.0
        %970 = vmatprep.subr.mxu0 0.0
        %971 = vmatpush2.msra.mxu0 0.0
        %972 = vmatprep.subr.mxu0 0.0
        %973 = vmatpush2.msra.mxu0 0.0
        %974 = vmatprep.subr.mxu0 0.0
        %975 = vmatpush2.msra.mxu0 0.0
        %976 = vmatprep.subr.mxu0 0.0
        %977 = vmatpush2.msra.mxu0 0.0
        %978 = vmatprep.subr.mxu0 0.0
        %979 = vmatpush2.msra.mxu0 0.0
        %980 = vmatprep.subr.mxu0 0.0
        %981 = vmatpush2.msra.mxu0 0.0
        %982 = vmatprep.subr.mxu0 0.0
        %983 = vmatpush2.msra.mxu0 0.0
        %984 = vmatprep.subr.mxu0 0.0
        %985 = vmatpush2.msra.mxu0 0.0
        %986 = vmatprep.subr.mxu0 0.0
        %987 = vmatpush2.msra.mxu0 0.0
        %988 = vmatprep.subr.mxu0 0.0
        %989 = vmatpush2.msra.mxu0 0.0
        %990 = vmatprep.subr.mxu0 0.0
        %991 = vmatpush2.msra.mxu0 0.0
        %992 = vmatprep.mubr.f32.mxu0 0.0
        %993 = vmatmul.mubr.f32.gmra.mxu0 %v926
        %v994 = vpop.f32.mrf.mxu0
        %v995 = vadd.f32 0.0, %v994
        %v996 = vpop.f32.mrf.mxu0
        %997 = vdwg.mxu0
        %998 = vrot.lane.b32.xlu0 %v828, 120
        %v999 = vpop.permute.xlu0 %998
        %1000 = vrot.lane.b32.xlu0 %v828, 88
        %v1001 = vpop.permute.xlu0 %1000
        %v1002 = vsel %vm834, %v999, 0
        %v1004 = vsel %vm834, %v1001, 0
        %1006 = vmatprep.subr.mxu0 0.0
        %1007 = vmatpush1.xpose.msra.mxu0 0.0
        %1008 = vmatprep.subr.mxu0 0.0
        %1009 = vmatpush1.xpose.msra.mxu0 0.0
        %1010 = vmatprep.subr.mxu0 0.0
        %1011 = vmatpush1.xpose.msra.mxu0 0.0
        %1012 = vmatprep.subr.mxu0 0.0
        %1013 = vmatpush1.xpose.msra.mxu0 0.0
        %1014 = vmatprep.subr.mxu0 0.0
        %1015 = vmatpush1.xpose.msra.mxu0 0.0
        %1016 = vmatprep.subr.mxu0 0.0
        %1017 = vmatpush1.xpose.msra.mxu0 0.0
        %1018 = vmatprep.subr.mxu0 0.0
        %1019 = vmatpush1.xpose.msra.mxu0 0.0
        %1020 = vmatprep.subr.mxu0 0.0
        %1021 = vmatpush1.xpose.msra.mxu0 0.0
        %1022 = vmatprep.subr.mxu0 0.0
        %1023 = vmatpush1.xpose.msra.mxu0 0.0
        %1024 = vmatprep.subr.mxu0 0.0
        %1025 = vmatpush1.xpose.msra.mxu0 0.0
        %1026 = vmatprep.subr.mxu0 0.0
        %1027 = vmatpush1.xpose.msra.mxu0 0.0
        %1028 = vmatprep.subr.mxu0 0.0
        %1029 = vmatpush1.xpose.msra.mxu0 0.0
        %1030 = vmatprep.subr.mxu0 0.0
        %1031 = vmatpush1.xpose.msra.mxu0 0.0
        %1032 = vmatprep.subr.mxu0 0.0
        %1033 = vmatpush1.xpose.msra.mxu0 0.0
        %1034 = vmatprep.subr.mxu0 0.0
        %1035 = vmatpush1.xpose.msra.mxu0 0.0
        %1036 = vmatprep.subr.mxu0 0.0
        %1037 = vmatpush1.xpose.msra.mxu0 %v1004
        %1038 = vmatprep.subr.mxu0 0.0
        %1039 = vmatpush2.xpose.msra.mxu0 0.0
        %1040 = vmatprep.subr.mxu0 0.0
        %1041 = vmatpush2.xpose.msra.mxu0 0.0
        %1042 = vmatprep.subr.mxu0 0.0
        %1043 = vmatpush2.xpose.msra.mxu0 0.0
        %1044 = vmatprep.subr.mxu0 0.0
        %1045 = vmatpush2.xpose.msra.mxu0 0.0
        %1046 = vmatprep.subr.mxu0 0.0
        %1047 = vmatpush2.xpose.msra.mxu0 0.0
        %1048 = vmatprep.subr.mxu0 0.0
        %1049 = vmatpush2.xpose.msra.mxu0 0.0
        %1050 = vmatprep.subr.mxu0 0.0
        %1051 = vmatpush2.xpose.msra.mxu0 0.0
        %1052 = vmatprep.subr.mxu0 0.0
        %1053 = vmatpush2.xpose.msra.mxu0 0.0
        %1054 = vmatprep.subr.mxu0 0.0
        %1055 = vmatpush2.xpose.msra.mxu0 0.0
        %1056 = vmatprep.subr.mxu0 0.0
        %1057 = vmatpush2.xpose.msra.mxu0 0.0
        %1058 = vmatprep.subr.mxu0 0.0
        %1059 = vmatpush2.xpose.msra.mxu0 0.0
        %1060 = vmatprep.subr.mxu0 0.0
        %1061 = vmatpush2.xpose.msra.mxu0 0.0
        %1062 = vmatprep.subr.mxu0 0.0
        %1063 = vmatpush2.xpose.msra.mxu0 0.0
        %1064 = vmatprep.subr.mxu0 0.0
        %1065 = vmatpush2.xpose.msra.mxu0 0.0
        %1066 = vmatprep.subr.mxu0 0.0
        %1067 = vmatpush2.xpose.msra.mxu0 0.0
        %1068 = vmatprep.subr.mxu0 0.0
        %1069 = vmatpush2.xpose.msra.mxu0 0.0
        %1070 = vmatprep.mubr.f32.mxu0 0.0
        %1071 = vmatmul.mubr.f32.gmra.mxu0 %v1002
        %v1072 = vpop.f32.mrf.mxu0
        %v1073 = vadd.f32 0.0, %v1072
        %v1074 = vpop.f32.mrf.mxu0
        %1075 = vdwg.mxu0
        %v1076 = vmul.f32 %v1073, 0.35355338
        %v1077 = vadd.f32 %v1076, %v745
        %v1078 = vsel %vm834, %v1077, -inf
        %1079 = vmax.xlane.f32.xlu0 %v1078
        %v1080 = vpop.xlane.xlu0 %1079
        %v1081 = vsub.f32 %v1077, %v1080
        %v1082 = vmul.f32 %v1081, 1.442695
        %v1083 = vpow.pop %v1082
        %v1084 = vsel %vm834, %v1083, 0.0
        %1085 = vadd.xlane.f32.xlu0 %v1084
        %v1086 = vpop.xlane.xlu0 %1085
        %v1087 = vrcp.pop %v1086
        %v1088 = vmul.f32 %v1083, %v1087
        %1089 = vrot.lane.b32.xlu0 %v828, 56
        %v1090 = vpop.permute.xlu0 %1089
        %v1093 = vsel %vm834, %v1088, 0
        %1095 = vmatprep.subr.mxu0 0.0
        %1096 = vmatpush1.msra.mxu0 0.0
        %1097 = vmatprep.subr.mxu0 0.0
        %1098 = vmatpush1.msra.mxu0 0.0
        %1099 = vmatprep.subr.mxu0 0.0
        %1100 = vmatpush1.msra.mxu0 0.0
        %1101 = vmatprep.subr.mxu0 0.0
        %1102 = vmatpush1.msra.mxu0 0.0
        %1103 = vmatprep.subr.mxu0 0.0
        %1104 = vmatpush1.msra.mxu0 0.0
        %1105 = vmatprep.subr.mxu0 0.0
        %1106 = vmatpush1.msra.mxu0 0.0
        %1107 = vmatprep.subr.mxu0 0.0
        %1108 = vmatpush1.msra.mxu0 0.0
        %1109 = vmatprep.subr.mxu0 0.0
        %1110 = vmatpush1.msra.mxu0 0.0
        %1111 = vmatprep.subr.mxu0 0.0
        %1112 = vmatpush1.msra.mxu0 0.0
        %1113 = vmatprep.subr.mxu0 0.0
        %1114 = vmatpush1.msra.mxu0 0.0
        %1115 = vmatprep.subr.mxu0 0.0
        %1116 = vmatpush1.msra.mxu0 0.0
        %1117 = vmatprep.subr.mxu0 0.0
        %1118 = vmatpush1.msra.mxu0 0.0
        %1119 = vmatprep.subr.mxu0 0.0
        %1120 = vmatpush1.msra.mxu0 0.0
        %1121 = vmatprep.subr.mxu0 0.0
        %1122 = vmatpush1.msra.mxu0 0.0
        %1123 = vmatprep.subr.mxu0 0.0
        %1124 = vmatpush1.msra.mxu0 0.0
        %1125 = vmatprep.subr.mxu0 0.0
        %1126 = vmatpush1.msra.mxu0 %v1090
        %1127 = vmatprep.subr.mxu0 0.0
        %1128 = vmatpush2.msra.mxu0 0.0
        %1129 = vmatprep.subr.mxu0 0.0
        %1130 = vmatpush2.msra.mxu0 0.0
        %1131 = vmatprep.subr.mxu0 0.0
        %1132 = vmatpush2.msra.mxu0 0.0
        %1133 = vmatprep.subr.mxu0 0.0
        %1134 = vmatpush2.msra.mxu0 0.0
        %1135 = vmatprep.subr.mxu0 0.0
        %1136 = vmatpush2.msra.mxu0 0.0
        %1137 = vmatprep.subr.mxu0 0.0
        %1138 = vmatpush2.msra.mxu0 0.0
        %1139 = vmatprep.subr.mxu0 0.0
        %1140 = vmatpush2.msra.mxu0 0.0
        %1141 = vmatprep.subr.mxu0 0.0
        %1142 = vmatpush2.msra.mxu0 0.0
        %1143 = vmatprep.subr.mxu0 0.0
        %1144 = vmatpush2.msra.mxu0 0.0
        %1145 = vmatprep.subr.mxu0 0.0
        %1146 = vmatpush2.msra.mxu0 0.0
        %1147 = vmatprep.subr.mxu0 0.0
        %1148 = vmatpush2.msra.mxu0 0.0
        %1149 = vmatprep.subr.mxu0 0.0
        %1150 = vmatpush2.msra.mxu0 0.0
        %1151 = vmatprep.subr.mxu0 0.0
        %1152 = vmatpush2.msra.mxu0 0.0
        %1153 = vmatprep.subr.mxu0 0.0
        %1154 = vmatpush2.msra.mxu0 0.0
        %1155 = vmatprep.subr.mxu0 0.0
        %1156 = vmatpush2.msra.mxu0 0.0
        %1157 = vmatprep.subr.mxu0 0.0
        %1158 = vmatpush2.msra.mxu0 0.0
        %1159 = vmatprep.mubr.f32.mxu0 0.0
        %1160 = vmatmul.mubr.f32.gmra.mxu0 %v1093
        %v1161 = vpop.f32.mrf.mxu0
        %v1162 = vadd.f32 0.0, %v1161
        %v1163 = vpop.f32.mrf.mxu0
        %1164 = vdwg.mxu0
        %1165 = vrot.lane.b32.xlu0 %v828, 112
        %v1166 = vpop.permute.xlu0 %1165
        %1167 = vrot.lane.b32.xlu0 %v828, 80
        %v1168 = vpop.permute.xlu0 %1167
        %v1169 = vsel %vm834, %v1166, 0
        %v1171 = vsel %vm834, %v1168, 0
        %1173 = vmatprep.subr.mxu0 0.0
        %1174 = vmatpush1.xpose.msra.mxu0 0.0
        %1175 = vmatprep.subr.mxu0 0.0
        %1176 = vmatpush1.xpose.msra.mxu0 0.0
        %1177 = vmatprep.subr.mxu0 0.0
        %1178 = vmatpush1.xpose.msra.mxu0 0.0
        %1179 = vmatprep.subr.mxu0 0.0
        %1180 = vmatpush1.xpose.msra.mxu0 0.0
        %1181 = vmatprep.subr.mxu0 0.0
        %1182 = vmatpush1.xpose.msra.mxu0 0.0
        %1183 = vmatprep.subr.mxu0 0.0
        %1184 = vmatpush1.xpose.msra.mxu0 0.0
        %1185 = vmatprep.subr.mxu0 0.0
        %1186 = vmatpush1.xpose.msra.mxu0 0.0
        %1187 = vmatprep.subr.mxu0 0.0
        %1188 = vmatpush1.xpose.msra.mxu0 0.0
        %1189 = vmatprep.subr.mxu0 0.0
        %1190 = vmatpush1.xpose.msra.mxu0 0.0
        %1191 = vmatprep.subr.mxu0 0.0
        %1192 = vmatpush1.xpose.msra.mxu0 0.0
        %1193 = vmatprep.subr.mxu0 0.0
        %1194 = vmatpush1.xpose.msra.mxu0 0.0
        %1195 = vmatprep.subr.mxu0 0.0
        %1196 = vmatpush1.xpose.msra.mxu0 0.0
        %1197 = vmatprep.subr.mxu0 0.0
        %1198 = vmatpush1.xpose.msra.mxu0 0.0
        %1199 = vmatprep.subr.mxu0 0.0
        %1200 = vmatpush1.xpose.msra.mxu0 0.0
        %1201 = vmatprep.subr.mxu0 0.0
        %1202 = vmatpush1.xpose.msra.mxu0 0.0
        %1203 = vmatprep.subr.mxu0 0.0
        %1204 = vmatpush1.xpose.msra.mxu0 %v1171
        %1205 = vmatprep.subr.mxu0 0.0
        %1206 = vmatpush2.xpose.msra.mxu0 0.0
        %1207 = vmatprep.subr.mxu0 0.0
        %1208 = vmatpush2.xpose.msra.mxu0 0.0
        %1209 = vmatprep.subr.mxu0 0.0
        %1210 = vmatpush2.xpose.msra.mxu0 0.0
        %1211 = vmatprep.subr.mxu0 0.0
        %1212 = vmatpush2.xpose.msra.mxu0 0.0
        %1213 = vmatprep.subr.mxu0 0.0
        %1214 = vmatpush2.xpose.msra.mxu0 0.0
        %1215 = vmatprep.subr.mxu0 0.0
        %1216 = vmatpush2.xpose.msra.mxu0 0.0
        %1217 = vmatprep.subr.mxu0 0.0
        %1218 = vmatpush2.xpose.msra.mxu0 0.0
        %1219 = vmatprep.subr.mxu0 0.0
        %1220 = vmatpush2.xpose.msra.mxu0 0.0
        %1221 = vmatprep.subr.mxu0 0.0
        %1222 = vmatpush2.xpose.msra.mxu0 0.0
        %1223 = vmatprep.subr.mxu0 0.0
        %1224 = vmatpush2.xpose.msra.mxu0 0.0
        %1225 = vmatprep.subr.mxu0 0.0
        %1226 = vmatpush2.xpose.msra.mxu0 0.0
        %1227 = vmatprep.subr.mxu0 0.0
        %1228 = vmatpush2.xpose.msra.mxu0 0.0
        %1229 = vmatprep.subr.mxu0 0.0
        %1230 = vmatpush2.xpose.msra.mxu0 0.0
        %1231 = vmatprep.subr.mxu0 0.0
        %1232 = vmatpush2.xpose.msra.mxu0 0.0
        %1233 = vmatprep.subr.mxu0 0.0
        %1234 = vmatpush2.xpose.msra.mxu0 0.0
        %1235 = vmatprep.subr.mxu0 0.0
        %1236 = vmatpush2.xpose.msra.mxu0 0.0
        %1237 = vmatprep.mubr.f32.mxu0 0.0
        %1238 = vmatmul.mubr.f32.gmra.mxu0 %v1169
        %v1239 = vpop.f32.mrf.mxu0
        %v1240 = vadd.f32 0.0, %v1239
        %v1241 = vpop.f32.mrf.mxu0
        %1242 = vdwg.mxu0
        %v1243 = vmul.f32 %v1240, 0.35355338
        %v1244 = vadd.f32 %v1243, %v745
        %v1245 = vsel %vm834, %v1244, -inf
        %1246 = vmax.xlane.f32.xlu0 %v1245
        %v1247 = vpop.xlane.xlu0 %1246
        %v1248 = vsub.f32 %v1244, %v1247
        %v1249 = vmul.f32 %v1248, 1.442695
        %v1250 = vpow.pop %v1249
        %v1251 = vsel %vm834, %v1250, 0.0
        %1252 = vadd.xlane.f32.xlu0 %v1251
        %v1253 = vpop.xlane.xlu0 %1252
        %v1254 = vrcp.pop %v1253
        %v1255 = vmul.f32 %v1250, %v1254
        %1256 = vrot.lane.b32.xlu0 %v828, 48
        %v1257 = vpop.permute.xlu0 %1256
        %v1260 = vsel %vm834, %v1255, 0
        %1262 = vmatprep.subr.mxu0 0.0
        %1263 = vmatpush1.msra.mxu0 0.0
        %1264 = vmatprep.subr.mxu0 0.0
        %1265 = vmatpush1.msra.mxu0 0.0
        %1266 = vmatprep.subr.mxu0 0.0
        %1267 = vmatpush1.msra.mxu0 0.0
        %1268 = vmatprep.subr.mxu0 0.0
        %1269 = vmatpush1.msra.mxu0 0.0
        %1270 = vmatprep.subr.mxu0 0.0
        %1271 = vmatpush1.msra.mxu0 0.0
        %1272 = vmatprep.subr.mxu0 0.0
        %1273 = vmatpush1.msra.mxu0 0.0
        %1274 = vmatprep.subr.mxu0 0.0
        %1275 = vmatpush1.msra.mxu0 0.0
        %1276 = vmatprep.subr.mxu0 0.0
        %1277 = vmatpush1.msra.mxu0 0.0
        %1278 = vmatprep.subr.mxu0 0.0
        %1279 = vmatpush1.msra.mxu0 0.0
        %1280 = vmatprep.subr.mxu0 0.0
        %1281 = vmatpush1.msra.mxu0 0.0
        %1282 = vmatprep.subr.mxu0 0.0
        %1283 = vmatpush1.msra.mxu0 0.0
        %1284 = vmatprep.subr.mxu0 0.0
        %1285 = vmatpush1.msra.mxu0 0.0
        %1286 = vmatprep.subr.mxu0 0.0
        %1287 = vmatpush1.msra.mxu0 0.0
        %1288 = vmatprep.subr.mxu0 0.0
        %1289 = vmatpush1.msra.mxu0 0.0
        %1290 = vmatprep.subr.mxu0 0.0
        %1291 = vmatpush1.msra.mxu0 0.0
        %1292 = vmatprep.subr.mxu0 0.0
        %1293 = vmatpush1.msra.mxu0 %v1257
        %1294 = vmatprep.subr.mxu0 0.0
        %1295 = vmatpush2.msra.mxu0 0.0
        %1296 = vmatprep.subr.mxu0 0.0
        %1297 = vmatpush2.msra.mxu0 0.0
        %1298 = vmatprep.subr.mxu0 0.0
        %1299 = vmatpush2.msra.mxu0 0.0
        %1300 = vmatprep.subr.mxu0 0.0
        %1301 = vmatpush2.msra.mxu0 0.0
        %1302 = vmatprep.subr.mxu0 0.0
        %1303 = vmatpush2.msra.mxu0 0.0
        %1304 = vmatprep.subr.mxu0 0.0
        %1305 = vmatpush2.msra.mxu0 0.0
        %1306 = vmatprep.subr.mxu0 0.0
        %1307 = vmatpush2.msra.mxu0 0.0
        %1308 = vmatprep.subr.mxu0 0.0
        %1309 = vmatpush2.msra.mxu0 0.0
        %1310 = vmatprep.subr.mxu0 0.0
        %1311 = vmatpush2.msra.mxu0 0.0
        %1312 = vmatprep.subr.mxu0 0.0
        %1313 = vmatpush2.msra.mxu0 0.0
        %1314 = vmatprep.subr.mxu0 0.0
        %1315 = vmatpush2.msra.mxu0 0.0
        %1316 = vmatprep.subr.mxu0 0.0
        %1317 = vmatpush2.msra.mxu0 0.0
        %1318 = vmatprep.subr.mxu0 0.0
        %1319 = vmatpush2.msra.mxu0 0.0
        %1320 = vmatprep.subr.mxu0 0.0
        %1321 = vmatpush2.msra.mxu0 0.0
        %1322 = vmatprep.subr.mxu0 0.0
        %1323 = vmatpush2.msra.mxu0 0.0
        %1324 = vmatprep.subr.mxu0 0.0
        %1325 = vmatpush2.msra.mxu0 0.0
        %1326 = vmatprep.mubr.f32.mxu0 0.0
        %1327 = vmatmul.mubr.f32.gmra.mxu0 %v1260
        %v1328 = vpop.f32.mrf.mxu0
        %v1329 = vadd.f32 0.0, %v1328
        %v1330 = vpop.f32.mrf.mxu0
        %1331 = vdwg.mxu0
        %1332 = vrot.lane.b32.xlu0 %v828, 104
        %v1333 = vpop.permute.xlu0 %1332
        %1334 = vrot.lane.b32.xlu0 %v828, 72
        %v1335 = vpop.permute.xlu0 %1334
        %v1336 = vsel %vm834, %v1333, 0
        %v1338 = vsel %vm834, %v1335, 0
        %1340 = vmatprep.subr.mxu0 0.0
        %1341 = vmatpush1.xpose.msra.mxu0 0.0
        %1342 = vmatprep.subr.mxu0 0.0
        %1343 = vmatpush1.xpose.msra.mxu0 0.0
        %1344 = vmatprep.subr.mxu0 0.0
        %1345 = vmatpush1.xpose.msra.mxu0 0.0
        %1346 = vmatprep.subr.mxu0 0.0
        %1347 = vmatpush1.xpose.msra.mxu0 0.0
        %1348 = vmatprep.subr.mxu0 0.0
        %1349 = vmatpush1.xpose.msra.mxu0 0.0
        %1350 = vmatprep.subr.mxu0 0.0
        %1351 = vmatpush1.xpose.msra.mxu0 0.0
        %1352 = vmatprep.subr.mxu0 0.0
        %1353 = vmatpush1.xpose.msra.mxu0 0.0
        %1354 = vmatprep.subr.mxu0 0.0
        %1355 = vmatpush1.xpose.msra.mxu0 0.0
        %1356 = vmatprep.subr.mxu0 0.0
        %1357 = vmatpush1.xpose.msra.mxu0 0.0
        %1358 = vmatprep.subr.mxu0 0.0
        %1359 = vmatpush1.xpose.msra.mxu0 0.0
        %1360 = vmatprep.subr.mxu0 0.0
        %1361 = vmatpush1.xpose.msra.mxu0 0.0
        %1362 = vmatprep.subr.mxu0 0.0
        %1363 = vmatpush1.xpose.msra.mxu0 0.0
        %1364 = vmatprep.subr.mxu0 0.0
        %1365 = vmatpush1.xpose.msra.mxu0 0.0
        %1366 = vmatprep.subr.mxu0 0.0
        %1367 = vmatpush1.xpose.msra.mxu0 0.0
        %1368 = vmatprep.subr.mxu0 0.0
        %1369 = vmatpush1.xpose.msra.mxu0 0.0
        %1370 = vmatprep.subr.mxu0 0.0
        %1371 = vmatpush1.xpose.msra.mxu0 %v1338
        %1372 = vmatprep.subr.mxu0 0.0
        %1373 = vmatpush2.xpose.msra.mxu0 0.0
        %1374 = vmatprep.subr.mxu0 0.0
        %1375 = vmatpush2.xpose.msra.mxu0 0.0
        %1376 = vmatprep.subr.mxu0 0.0
        %1377 = vmatpush2.xpose.msra.mxu0 0.0
        %1378 = vmatprep.subr.mxu0 0.0
        %1379 = vmatpush2.xpose.msra.mxu0 0.0
        %1380 = vmatprep.subr.mxu0 0.0
        %1381 = vmatpush2.xpose.msra.mxu0 0.0
        %1382 = vmatprep.subr.mxu0 0.0
        %1383 = vmatpush2.xpose.msra.mxu0 0.0
        %1384 = vmatprep.subr.mxu0 0.0
        %1385 = vmatpush2.xpose.msra.mxu0 0.0
        %1386 = vmatprep.subr.mxu0 0.0
        %1387 = vmatpush2.xpose.msra.mxu0 0.0
        %1388 = vmatprep.subr.mxu0 0.0
        %1389 = vmatpush2.xpose.msra.mxu0 0.0
        %1390 = vmatprep.subr.mxu0 0.0
        %1391 = vmatpush2.xpose.msra.mxu0 0.0
        %1392 = vmatprep.subr.mxu0 0.0
        %1393 = vmatpush2.xpose.msra.mxu0 0.0
        %1394 = vmatprep.subr.mxu0 0.0
        %1395 = vmatpush2.xpose.msra.mxu0 0.0
        %1396 = vmatprep.subr.mxu0 0.0
        %1397 = vmatpush2.xpose.msra.mxu0 0.0
        %1398 = vmatprep.subr.mxu0 0.0
        %1399 = vmatpush2.xpose.msra.mxu0 0.0
        %1400 = vmatprep.subr.mxu0 0.0
        %1401 = vmatpush2.xpose.msra.mxu0 0.0
        %1402 = vmatprep.subr.mxu0 0.0
        %1403 = vmatpush2.xpose.msra.mxu0 0.0
        %1404 = vmatprep.mubr.f32.mxu0 0.0
        %1405 = vmatmul.mubr.f32.gmra.mxu0 %v1336
        %v1406 = vpop.f32.mrf.mxu0
        %v1407 = vadd.f32 0.0, %v1406
        %v1408 = vpop.f32.mrf.mxu0
        %1409 = vdwg.mxu0
        %v1410 = vmul.f32 %v1407, 0.35355338
        %v1411 = vadd.f32 %v1410, %v745
        %v1412 = vsel %vm834, %v1411, -inf
        %1413 = vmax.xlane.f32.xlu0 %v1412
        %v1414 = vpop.xlane.xlu0 %1413
        %v1415 = vsub.f32 %v1411, %v1414
        %v1416 = vmul.f32 %v1415, 1.442695
        %v1417 = vpow.pop %v1416
        %v1418 = vsel %vm834, %v1417, 0.0
        %1419 = vadd.xlane.f32.xlu0 %v1418
        %v1420 = vpop.xlane.xlu0 %1419
        %v1421 = vrcp.pop %v1420
        %v1422 = vmul.f32 %v1417, %v1421
        %1423 = vrot.lane.b32.xlu0 %v828, 40
        %v1424 = vpop.permute.xlu0 %1423
        %v1427 = vsel %vm834, %v1422, 0
        %1429 = vmatprep.subr.mxu0 0.0
        %1430 = vmatpush1.msra.mxu0 0.0
        %1431 = vmatprep.subr.mxu0 0.0
        %1432 = vmatpush1.msra.mxu0 0.0
        %1433 = vmatprep.subr.mxu0 0.0
        %1434 = vmatpush1.msra.mxu0 0.0
        %1435 = vmatprep.subr.mxu0 0.0
        %1436 = vmatpush1.msra.mxu0 0.0
        %1437 = vmatprep.subr.mxu0 0.0
        %1438 = vmatpush1.msra.mxu0 0.0
        %1439 = vmatprep.subr.mxu0 0.0
        %1440 = vmatpush1.msra.mxu0 0.0
        %1441 = vmatprep.subr.mxu0 0.0
        %1442 = vmatpush1.msra.mxu0 0.0
        %1443 = vmatprep.subr.mxu0 0.0
        %1444 = vmatpush1.msra.mxu0 0.0
        %1445 = vmatprep.subr.mxu0 0.0
        %1446 = vmatpush1.msra.mxu0 0.0
        %1447 = vmatprep.subr.mxu0 0.0
        %1448 = vmatpush1.msra.mxu0 0.0
        %1449 = vmatprep.subr.mxu0 0.0
        %1450 = vmatpush1.msra.mxu0 0.0
        %1451 = vmatprep.subr.mxu0 0.0
        %1452 = vmatpush1.msra.mxu0 0.0
        %1453 = vmatprep.subr.mxu0 0.0
        %1454 = vmatpush1.msra.mxu0 0.0
        %1455 = vmatprep.subr.mxu0 0.0
        %1456 = vmatpush1.msra.mxu0 0.0
        %1457 = vmatprep.subr.mxu0 0.0
        %1458 = vmatpush1.msra.mxu0 0.0
        %1459 = vmatprep.subr.mxu0 0.0
        %1460 = vmatpush1.msra.mxu0 %v1424
        %1461 = vmatprep.subr.mxu0 0.0
        %1462 = vmatpush2.msra.mxu0 0.0
        %1463 = vmatprep.subr.mxu0 0.0
        %1464 = vmatpush2.msra.mxu0 0.0
        %1465 = vmatprep.subr.mxu0 0.0
        %1466 = vmatpush2.msra.mxu0 0.0
        %1467 = vmatprep.subr.mxu0 0.0
        %1468 = vmatpush2.msra.mxu0 0.0
        %1469 = vmatprep.subr.mxu0 0.0
        %1470 = vmatpush2.msra.mxu0 0.0
        %1471 = vmatprep.subr.mxu0 0.0
        %1472 = vmatpush2.msra.mxu0 0.0
        %1473 = vmatprep.subr.mxu0 0.0
        %1474 = vmatpush2.msra.mxu0 0.0
        %1475 = vmatprep.subr.mxu0 0.0
        %1476 = vmatpush2.msra.mxu0 0.0
        %1477 = vmatprep.subr.mxu0 0.0
        %1478 = vmatpush2.msra.mxu0 0.0
        %1479 = vmatprep.subr.mxu0 0.0
        %1480 = vmatpush2.msra.mxu0 0.0
        %1481 = vmatprep.subr.mxu0 0.0
        %1482 = vmatpush2.msra.mxu0 0.0
        %1483 = vmatprep.subr.mxu0 0.0
        %1484 = vmatpush2.msra.mxu0 0.0
        %1485 = vmatprep.subr.mxu0 0.0
        %1486 = vmatpush2.msra.mxu0 0.0
        %1487 = vmatprep.subr.mxu0 0.0
        %1488 = vmatpush2.msra.mxu0 0.0
        %1489 = vmatprep.subr.mxu0 0.0
        %1490 = vmatpush2.msra.mxu0 0.0
        %1491 = vmatprep.subr.mxu0 0.0
        %1492 = vmatpush2.msra.mxu0 0.0
        %1493 = vmatprep.mubr.f32.mxu0 0.0
        %1494 = vmatmul.mubr.f32.gmra.mxu0 %v1427
        %v1495 = vpop.f32.mrf.mxu0
        %v1496 = vadd.f32 0.0, %v1495
        %v1497 = vpop.f32.mrf.mxu0
        %1498 = vdwg.mxu0
        %1500 = vrot.lane.b32.xlu0 %v1162, 8
        %v1501 = vpop.permute.xlu0 %1500
        %1504 = vrot.lane.b32.xlu0 %v1329, 16
        %v1505 = vpop.permute.xlu0 %1504
        %1508 = vrot.lane.b32.xlu0 %v1496, 24
        %v1509 = vpop.permute.xlu0 %1508
        %v1511 = vsel %vm834, %v995, %v1501
        %vm1512 = vcmask 130048
        %v1513 = vsel %vm1512, %v1511, %v1505
        %vm1514 = vcmask 195584
        %v1515 = vsel %vm1514, %v1513, %v1509
        %v1516 = vld [vmem:[%s5] sm:$0xff]
        %v1517 = vld [vmem:[%s5 + $0x8] sm:$0xff]
        %v1518 = vld [vmem:[%s5 + $0x10] sm:$0xff]
        %v1519 = vld [vmem:[%s5 + $0x18] sm:$0xff]
        %v1520 = vld [vmem:[%s6] sm:$0x1]
        %v1522 = vlaneseq
        %v1523 = vshrl.u32 %v1522, 7
        %v1524 = vsub.s32 0, %v1523
        %v1525 = vrot.slane %v1520, %v1524
        %v1528 = vsel %vm757, %v1515, 0
        %1530 = vmatprep.subr.mxu0 0.0
        %1531 = vmatpush1.msra.mxu0 0.0
        %1532 = vmatprep.subr.mxu0 0.0
        %1533 = vmatpush1.msra.mxu0 0.0
        %1534 = vmatprep.subr.mxu0 0.0
        %1535 = vmatpush1.msra.mxu0 0.0
        %1536 = vmatprep.subr.mxu0 0.0
        %1537 = vmatpush1.msra.mxu0 0.0
        %1538 = vmatprep.subr.mxu0 0.0
        %1539 = vmatpush1.msra.mxu0 0.0
        %1540 = vmatprep.subr.mxu0 0.0
        %1541 = vmatpush1.msra.mxu0 0.0
        %1542 = vmatprep.subr.mxu0 0.0
        %1543 = vmatpush1.msra.mxu0 0.0
        %1544 = vmatprep.subr.mxu0 0.0
        %1545 = vmatpush1.msra.mxu0 0.0
        %1546 = vmatprep.subr.mxu0 0.0
        %1547 = vmatpush1.msra.mxu0 0.0
        %1548 = vmatprep.subr.mxu0 0.0
        %1549 = vmatpush1.msra.mxu0 0.0
        %1550 = vmatprep.subr.mxu0 0.0
        %1551 = vmatpush1.msra.mxu0 0.0
        %1552 = vmatprep.subr.mxu0 0.0
        %1553 = vmatpush1.msra.mxu0 0.0
        %1554 = vmatprep.subr.mxu0 0.0
        %1555 = vmatpush1.msra.mxu0 %v1519
        %1556 = vmatprep.subr.mxu0 0.0
        %1557 = vmatpush1.msra.mxu0 %v1518
        %1558 = vmatprep.subr.mxu0 0.0
        %1559 = vmatpush1.msra.mxu0 %v1517
        %1560 = vmatprep.subr.mxu0 0.0
        %1561 = vmatpush1.msra.mxu0 %v1516
        %1562 = vmatprep.subr.mxu0 0.0
        %1563 = vmatpush2.msra.mxu0 0.0
        %1564 = vmatprep.subr.mxu0 0.0
        %1565 = vmatpush2.msra.mxu0 0.0
        %1566 = vmatprep.subr.mxu0 0.0
        %1567 = vmatpush2.msra.mxu0 0.0
        %1568 = vmatprep.subr.mxu0 0.0
        %1569 = vmatpush2.msra.mxu0 0.0
        %1570 = vmatprep.subr.mxu0 0.0
        %1571 = vmatpush2.msra.mxu0 0.0
        %1572 = vmatprep.subr.mxu0 0.0
        %1573 = vmatpush2.msra.mxu0 0.0
        %1574 = vmatprep.subr.mxu0 0.0
        %1575 = vmatpush2.msra.mxu0 0.0
        %1576 = vmatprep.subr.mxu0 0.0
        %1577 = vmatpush2.msra.mxu0 0.0
        %1578 = vmatprep.subr.mxu0 0.0
        %1579 = vmatpush2.msra.mxu0 0.0
        %1580 = vmatprep.subr.mxu0 0.0
        %1581 = vmatpush2.msra.mxu0 0.0
        %1582 = vmatprep.subr.mxu0 0.0
        %1583 = vmatpush2.msra.mxu0 0.0
        %1584 = vmatprep.subr.mxu0 0.0
        %1585 = vmatpush2.msra.mxu0 0.0
        %1586 = vmatprep.subr.mxu0 0.0
        %1587 = vmatpush2.msra.mxu0 0.0
        %1588 = vmatprep.subr.mxu0 0.0
        %1589 = vmatpush2.msra.mxu0 0.0
        %1590 = vmatprep.subr.mxu0 0.0
        %1591 = vmatpush2.msra.mxu0 0.0
        %1592 = vmatprep.subr.mxu0 0.0
        %1593 = vmatpush2.msra.mxu0 0.0
        %1594 = vmatprep.mubr.f32.mxu0 0.0
        %1595 = vmatmul.mubr.f32.gmra.mxu0 %v1528
        %v1596 = vpop.f32.mrf.mxu0
        %v1597 = vadd.f32 %v1525, %v1596
        %v1598 = vpop.f32.mrf.mxu0
        %1599 = vdwg.mxu0
        %v1600 = vadd.f32 %v732, %v1597
        %v1601 = vld [vmem:[%s7] sm:$0x1]
        %v1602 = vld [vmem:[%s8] sm:$0x1]
        %v1603 = vsel %vm757, %v1600, 0.0
        %1604 = vadd.xlane.f32.xlu0 %v1603
        %v1605 = vpop.xlane.xlu0 %1604
        %v1606 = vrcp.pop 32.0
        %v1607 = vmul.f32 %v1605, %v1606
        %v1608 = vsub.f32 %v1600, %v1607
        %v1609 = vmul.f32 %v1608, %v1608
        %v1610 = vsel %vm757, %v1609, 0.0
        %1611 = vadd.xlane.f32.xlu0 %v1610
        %v1612 = vpop.xlane.xlu0 %1611
        %v1613 = vmul.f32 %v1612, %v1606
        %v1614 = vadd.f32 %v1613, 1e-05
        %v1615 = vrsqrt.pop %v1614
        %v1616 = vmul.f32 %v1608, %v1615
        %v1618 = vlaneseq
        %v1619 = vshrl.u32 %v1618, 7
        %v1620 = vsub.s32 0, %v1619
        %v1621 = vrot.slane %v1601, %v1620
        %v1623 = vmul.f32 %v1616, %v1621
        %v1625 = vlaneseq
        %v1626 = vshrl.u32 %v1625, 7
        %v1627 = vsub.s32 0, %v1626
        %v1628 = vrot.slane %v1602, %v1627
        %v1630 = vadd.f32 %v1623, %v1628
        %v1631 = vld [vmem:[%s9] sm:$0xff]
        %v1632 = vld [vmem:[%s9 + $0x8] sm:$0xff]
        %v1633 = vld [vmem:[%s9 + $0x10] sm:$0xff]
        %v1634 = vld [vmem:[%s9 + $0x18] sm:$0xff]
        %v1635 = vld [vmem:[%s10] sm:$0x1]
        %v1637 = vlaneseq
        %v1638 = vshrl.u32 %v1637, 7
        %v1639 = vsub.s32 0, %v1638
        %v1640 = vrot.slane %v1635, %v1639
        %v1643 = vsel %vm757, %v1630, 0
        %1645 = vmatprep.subr.mxu0 0.0
        %1646 = vmatpush1.msra.mxu0 0.0
        %1647 = vmatprep.subr.mxu0 0.0
        %1648 = vmatpush1.msra.mxu0 0.0
        %1649 = vmatprep.subr.mxu0 0.0
        %1650 = vmatpush1.msra.mxu0 0.0
        %1651 = vmatprep.subr.mxu0 0.0
        %1652 = vmatpush1.msra.mxu0 0.0
        %1653 = vmatprep.subr.mxu0 0.0
        %1654 = vmatpush1.msra.mxu0 0.0
        %1655 = vmatprep.subr.mxu0 0.0
        %1656 = vmatpush1.msra.mxu0 0.0
        %1657 = vmatprep.subr.mxu0 0.0
        %1658 = vmatpush1.msra.mxu0 0.0
        %1659 = vmatprep.subr.mxu0 0.0
        %1660 = vmatpush1.msra.mxu0 0.0
        %1661 = vmatprep.subr.mxu0 0.0
        %1662 = vmatpush1.msra.mxu0 0.0
        %1663 = vmatprep.subr.mxu0 0.0
        %1664 = vmatpush1.msra.mxu0 0.0
        %1665 = vmatprep.subr.mxu0 0.0
        %1666 = vmatpush1.msra.mxu0 0.0
        %1667 = vmatprep.subr.mxu0 0.0
        %1668 = vmatpush1.msra.mxu0 0.0
        %1669 = vmatprep.subr.mxu0 0.0
        %1670 = vmatpush1.msra.mxu0 %v1634
        %1671 = vmatprep.subr.mxu0 0.0
        %1672 = vmatpush1.msra.mxu0 %v1633
        %1673 = vmatprep.subr.mxu0 0.0
        %1674 = vmatpush1.msra.mxu0 %v1632
        %1675 = vmatprep.subr.mxu0 0.0
        %1676 = vmatpush1.msra.mxu0 %v1631
        %1677 = vmatprep.subr.mxu0 0.0
        %1678 = vmatpush2.msra.mxu0 0.0
        %1679 = vmatprep.subr.mxu0 0.0
        %1680 = vmatpush2.msra.mxu0 0.0
        %1681 = vmatprep.subr.mxu0 0.0
        %1682 = vmatpush2.msra.mxu0 0.0
        %1683 = vmatprep.subr.mxu0 0.0
        %1684 = vmatpush2.msra.mxu0 0.0
        %1685 = vmatprep.subr.mxu0 0.0
        %1686 = vmatpush2.msra.mxu0 0.0
        %1687 = vmatprep.subr.mxu0 0.0
        %1688 = vmatpush2.msra.mxu0 0.0
        %1689 = vmatprep.subr.mxu0 0.0
        %1690 = vmatpush2.msra.mxu0 0.0
        %1691 = vmatprep.subr.mxu0 0.0
        %1692 = vmatpush2.msra.mxu0 0.0
        %1693 = vmatprep.subr.mxu0 0.0
        %1694 = vmatpush2.msra.mxu0 0.0
        %1695 = vmatprep.subr.mxu0 0.0
        %1696 = vmatpush2.msra.mxu0 0.0
        %1697 = vmatprep.subr.mxu0 0.0
        %1698 = vmatpush2.msra.mxu0 0.0
        %1699 = vmatprep.subr.mxu0 0.0
        %1700 = vmatpush2.msra.mxu0 0.0
        %1701 = vmatprep.subr.mxu0 0.0
        %1702 = vmatpush2.msra.mxu0 0.0
        %1703 = vmatprep.subr.mxu0 0.0
        %1704 = vmatpush2.msra.mxu0 0.0
        %1705 = vmatprep.subr.mxu0 0.0
        %1706 = vmatpush2.msra.mxu0 0.0
        %1707 = vmatprep.subr.mxu0 0.0
        %1708 = vmatpush2.msra.mxu0 0.0
        %1709 = vmatprep.mubr.f32.mxu0 0.0
        %1710 = vmatmul.mubr.f32.gmra.mxu0 %v1643
        %v1711 = vpop.f32.mrf.mxu0
        %v1712 = vadd.f32 %v1640, %v1711
        %v1713 = vpop.f32.mrf.mxu0
        %1714 = vdwg.mxu0
        %v1715 = vld [vmem:[%s11] sm:$0xff]
        %v1716 = vld [vmem:[%s11 + $0x8] sm:$0xff]
        %v1717 = vld [vmem:[%s11 + $0x10] sm:$0xff]
        %v1718 = vld [vmem:[%s11 + $0x18] sm:$0xff]
        %v1719 = vld [vmem:[%s12] sm:$0x1]
        %v1721 = vlaneseq
        %v1722 = vshrl.u32 %v1721, 7
        %v1723 = vsub.s32 0, %v1722
        %v1724 = vrot.slane %v1719, %v1723
        %v1727 = vsel %vm757, %v733, 0
        %v1730 = vsel %vm757, %v734, 0
        %1732 = vmatprep.subr.mxu0 0.0
        %1733 = vmatpush1.msra.mxu0 0.0
        %1734 = vmatprep.subr.mxu0 0.0
        %1735 = vmatpush1.msra.mxu0 0.0
        %1736 = vmatprep.subr.mxu0 0.0
        %1737 = vmatpush1.msra.mxu0 0.0
        %1738 = vmatprep.subr.mxu0 0.0
        %1739 = vmatpush1.msra.mxu0 0.0
        %1740 = vmatprep.subr.mxu0 0.0
        %1741 = vmatpush1.msra.mxu0 0.0
        %1742 = vmatprep.subr.mxu0 0.0
        %1743 = vmatpush1.msra.mxu0 0.0
        %1744 = vmatprep.subr.mxu0 0.0
        %1745 = vmatpush1.msra.mxu0 0.0
        %1746 = vmatprep.subr.mxu0 0.0
        %1747 = vmatpush1.msra.mxu0 0.0
        %1748 = vmatprep.subr.mxu0 0.0
        %1749 = vmatpush1.msra.mxu0 0.0
        %1750 = vmatprep.subr.mxu0 0.0
        %1751 = vmatpush1.msra.mxu0 0.0
        %1752 = vmatprep.subr.mxu0 0.0
        %1753 = vmatpush1.msra.mxu0 0.0
        %1754 = vmatprep.subr.mxu0 0.0
        %1755 = vmatpush1.msra.mxu0 0.0
        %1756 = vmatprep.subr.mxu0 0.0
        %1757 = vmatpush1.msra.mxu0 %v1718
        %1758 = vmatprep.subr.mxu0 0.0
        %1759 = vmatpush1.msra.mxu0 %v1717
        %1760 = vmatprep.subr.mxu0 0.0
        %1761 = vmatpush1.msra.mxu0 %v1716
        %1762 = vmatprep.subr.mxu0 0.0
        %1763 = vmatpush1.msra.mxu0 %v1715
        %1764 = vmatprep.subr.mxu0 0.0
        %1765 = vmatpush2.msra.mxu0 0.0
        %1766 = vmatprep.subr.mxu0 0.0
        %1767 = vmatpush2.msra.mxu0 0.0
        %1768 = vmatprep.subr.mxu0 0.0
        %1769 = vmatpush2.msra.mxu0 0.0
        %1770 = vmatprep.subr.mxu0 0.0
        %1771 = vmatpush2.msra.mxu0 0.0
        %1772 = vmatprep.subr.mxu0 0.0
        %1773 = vmatpush2.msra.mxu0 0.0
        %1774 = vmatprep.subr.mxu0 0.0
        %1775 = vmatpush2.msra.mxu0 0.0
        %1776 = vmatprep.subr.mxu0 0.0
        %1777 = vmatpush2.msra.mxu0 0.0
        %1778 = vmatprep.subr.mxu0 0.0
        %1779 = vmatpush2.msra.mxu0 0.0
        %1780 = vmatprep.subr.mxu0 0.0
        %1781 = vmatpush2.msra.mxu0 0.0
        %1782 = vmatprep.subr.mxu0 0.0
        %1783 = vmatpush2.msra.mxu0 0.0
        %1784 = vmatprep.subr.mxu0 0.0
        %1785 = vmatpush2.msra.mxu0 0.0
        %1786 = vmatprep.subr.mxu0 0.0
        %1787 = vmatpush2.msra.mxu0 0.0
        %1788 = vmatprep.subr.mxu0 0.0
        %1789 = vmatpush2.msra.mxu0 0.0
        %1790 = vmatprep.subr.mxu0 0.0
        %1791 = vmatpush2.msra.mxu0 0.0
        %1792 = vmatprep.subr.mxu0 0.0
        %1793 = vmatpush2.msra.mxu0 0.0
        %1794 = vmatprep.subr.mxu0 0.0
        %1795 = vmatpush2.msra.mxu0 0.0
        %1796 = vmatprep.mubr.f32.mxu0 0.0
        %1797 = vmatmul.mubr.f32.gmra.mxu0 %v1727
        %v1798 = vpop.f32.mrf.mxu0
        %v1799 = vadd.f32 %v1724, %v1798
        %v1800 = vpop.f32.mrf.mxu0
        %1801 = vmatprep.mubr.f32.mxu0 0.0
        %1802 = vmatmul.mubr.f32.gmra.mxu0 %v1730
        %v1803 = vpop.f32.mrf.mxu0
        %v1804 = vadd.f32 %v1724, %v1803
        %v1805 = vpop.f32.mrf.mxu0
        %1806 = vdwg.mxu0
        %v1808 = vsel %vm834, %v1712, 0
        %v1811 = vsel %vm834, %v1799, 0
        %v1814 = vsel %vm834, %v1804, 0
        %1816 = vmatprep.subr.mxu0 0.0
        %1817 = vmatpush1.xpose.msra.mxu0 0.0
        %1818 = vmatprep.subr.mxu0 0.0
        %1819 = vmatpush1.xpose.msra.mxu0 0.0
        %1820 = vmatprep.subr.mxu0 0.0
        %1821 = vmatpush1.xpose.msra.mxu0 0.0
        %1822 = vmatprep.subr.mxu0 0.0
        %1823 = vmatpush1.xpose.msra.mxu0 0.0
        %1824 = vmatprep.subr.mxu0 0.0
        %1825 = vmatpush1.xpose.msra.mxu0 0.0
        %1826 = vmatprep.subr.mxu0 0.0
        %1827 = vmatpush1.xpose.msra.mxu0 0.0
        %1828 = vmatprep.subr.mxu0 0.0
        %1829 = vmatpush1.xpose.msra.mxu0 0.0
        %1830 = vmatprep.subr.mxu0 0.0
        %1831 = vmatpush1.xpose.msra.mxu0 0.0
        %1832 = vmatprep.subr.mxu0 0.0
        %1833 = vmatpush1.xpose.msra.mxu0 0.0
        %1834 = vmatprep.subr.mxu0 0.0
        %1835 = vmatpush1.xpose.msra.mxu0 0.0
        %1836 = vmatprep.subr.mxu0 0.0
        %1837 = vmatpush1.xpose.msra.mxu0 0.0
        %1838 = vmatprep.subr.mxu0 0.0
        %1839 = vmatpush1.xpose.msra.mxu0 0.0
        %1840 = vmatprep.subr.mxu0 0.0
        %1841 = vmatpush1.xpose.msra.mxu0 0.0
        %1842 = vmatprep.subr.mxu0 0.0
        %1843 = vmatpush1.xpose.msra.mxu0 0.0
        %1844 = vmatprep.subr.mxu0 0.0
        %1845 = vmatpush1.xpose.msra.mxu0 %v1814
        %1846 = vmatprep.subr.mxu0 0.0
        %1847 = vmatpush1.xpose.msra.mxu0 %v1811
        %1848 = vmatprep.subr.mxu0 0.0
        %1849 = vmatpush2.xpose.msra.mxu0 0.0
        %1850 = vmatprep.subr.mxu0 0.0
        %1851 = vmatpush2.xpose.msra.mxu0 0.0
        %1852 = vmatprep.subr.mxu0 0.0
        %1853 = vmatpush2.xpose.msra.mxu0 0.0
        %1854 = vmatprep.subr.mxu0 0.0
        %1855 = vmatpush2.xpose.msra.mxu0 0.0
        %1856 = vmatprep.subr.mxu0 0.0
        %1857 = vmatpush2.xpose.msra.mxu0 0.0
        %1858 = vmatprep.subr.mxu0 0.0
        %1859 = vmatpush2.xpose.msra.mxu0 0.0
        %1860 = vmatprep.subr.mxu0 0.0
        %1861 = vmatpush2.xpose.msra.mxu0 0.0
        %1862 = vmatprep.subr.mxu0 0.0
        %1863 = vmatpush2.xpose.msra.mxu0 0.0
        %1864 = vmatprep.subr.mxu0 0.0
        %1865 = vmatpush2.xpose.msra.mxu0 0.0
        %1866 = vmatprep.subr.mxu0 0.0
        %1867 = vmatpush2.xpose.msra.mxu0 0.0
        %1868 = vmatprep.subr.mxu0 0.0
        %1869 = vmatpush2.xpose.msra.mxu0 0.0
        %1870 = vmatprep.subr.mxu0 0.0
        %1871 = vmatpush2.xpose.msra.mxu0 0.0
        %1872 = vmatprep.subr.mxu0 0.0
        %1873 = vmatpush2.xpose.msra.mxu0 0.0
        %1874 = vmatprep.subr.mxu0 0.0
        %1875 = vmatpush2.xpose.msra.mxu0 0.0
        %1876 = vmatprep.subr.mxu0 0.0
        %1877 = vmatpush2.xpose.msra.mxu0 0.0
        %1878 = vmatprep.subr.mxu0 0.0
        %1879 = vmatpush2.xpose.msra.mxu0 0.0
        %1880 = vmatprep.mubr.f32.mxu0 0.0
        %1881 = vmatmul.mubr.f32.gmra.mxu0 %v1808
        %v1882 = vpop.f32.mrf.mxu0
        %v1883 = vadd.f32 0.0, %v1882
        %v1884 = vpop.f32.mrf.mxu0
        %1885 = vdwg.mxu0
        %v1886 = vmul.f32 %v1883, 0.35355338
        %vm1887 = vcmask 97280
        %v1888 = vsel %vm1887, %v1886, -inf
        %1889 = vmax.xlane.f32.xlu0 %v1888
        %v1890 = vpop.xlane.xlu0 %1889
        %v1891 = vsub.f32 %v1886, %v1890
        %v1892 = vmul.f32 %v1891, 1.442695
        %v1893 = vpow.pop %v1892
        %v1894 = vsel %vm1887, %v1893, 0.0
        %1895 = vadd.xlane.f32.xlu0 %v1894
        %v1896 = vpop.xlane.xlu0 %1895
        %v1897 = vrcp.pop %v1896
        %v1898 = vmul.f32 %v1893, %v1897
        %1899 = vrot.lane.b32.xlu0 %v1799, 96
        %v1900 = vpop.permute.xlu0 %1899
        %1901 = vrot.lane.b32.xlu0 %v1804, 96
        %v1902 = vpop.permute.xlu0 %1901
        %v1905 = vsel %vm1887, %v1898, 0
        %vm1907 = vcmask 1043456
        %v1908 = vsel %vm1907, %v1902, 0
        %1910 = vmatprep.subr.mxu0 0.0
        %1911 = vmatpush1.msra.mxu0 0.0
        %1912 = vmatprep.subr.mxu0 0.0
        %1913 = vmatpush1.msra.mxu0 0.0
        %1914 = vmatprep.subr.mxu0 0.0
        %1915 = vmatpush1.msra.mxu0 0.0
        %1916 = vmatprep.subr.mxu0 0.0
        %1917 = vmatpush1.msra.mxu0 0.0
        %1918 = vmatprep.subr.mxu0 0.0
        %1919 = vmatpush1.msra.mxu0 0.0
        %1920 = vmatprep.subr.mxu0 0.0
        %1921 = vmatpush1.msra.mxu0 0.0
        %1922 = vmatprep.subr.mxu0 0.0
        %1923 = vmatpush1.msra.mxu0 0.0
        %1924 = vmatprep.subr.mxu0 0.0
        %1925 = vmatpush1.msra.mxu0 0.0
        %1926 = vmatprep.subr.mxu0 0.0
        %1927 = vmatpush1.msra.mxu0 0.0
        %1928 = vmatprep.subr.mxu0 0.0
        %1929 = vmatpush1.msra.mxu0 0.0
        %1930 = vmatprep.subr.mxu0 0.0
        %1931 = vmatpush1.msra.mxu0 0.0
        %1932 = vmatprep.subr.mxu0 0.0
        %1933 = vmatpush1.msra.mxu0 0.0
        %1934 = vmatprep.subr.mxu0 0.0
        %1935 = vmatpush1.msra.mxu0 0.0
        %1936 = vmatprep.subr.mxu0 0.0
        %1937 = vmatpush1.msra.mxu0 0.0
        %1938 = vmatprep.subr.mxu0 0.0
        %1939 = vmatpush1.msra.mxu0 %v1908
        %1940 = vmatprep.subr.mxu0 0.0
        %1941 = vmatpush1.msra.mxu0 %v1900
        %1942 = vmatprep.subr.mxu0 0.0
        %1943 = vmatpush2.msra.mxu0 0.0
        %1944 = vmatprep.subr.mxu0 0.0
        %1945 = vmatpush2.msra.mxu0 0.0
        %1946 = vmatprep.subr.mxu0 0.0
        %1947 = vmatpush2.msra.mxu0 0.0
        %1948 = vmatprep.subr.mxu0 0.0
        %1949 = vmatpush2.msra.mxu0 0.0
        %1950 = vmatprep.subr.mxu0 0.0
        %1951 = vmatpush2.msra.mxu0 0.0
        %1952 = vmatprep.subr.mxu0 0.0
        %1953 = vmatpush2.msra.mxu0 0.0
        %1954 = vmatprep.subr.mxu0 0.0
        %1955 = vmatpush2.msra.mxu0 0.0
        %1956 = vmatprep.subr.mxu0 0.0
        %1957 = vmatpush2.msra.mxu0 0.0
        %1958 = vmatprep.subr.mxu0 0.0
        %1959 = vmatpush2.msra.mxu0 0.0
        %1960 = vmatprep.subr.mxu0 0.0
        %1961 = vmatpush2.msra.mxu0 0.0
        %1962 = vmatprep.subr.mxu0 0.0
        %1963 = vmatpush2.msra.mxu0 0.0
        %1964 = vmatprep.subr.mxu0 0.0
        %1965 = vmatpush2.msra.mxu0 0.0
        %1966 = vmatprep.subr.mxu0 0.0
        %1967 = vmatpush2.msra.mxu0 0.0
        %1968 = vmatprep.subr.mxu0 0.0
        %1969 = vmatpush2.msra.mxu0 0.0
        %1970 = vmatprep.subr.mxu0 0.0
        %1971 = vmatpush2.msra.mxu0 0.0
        %1972 = vmatprep.subr.mxu0 0.0
        %1973 = vmatpush2.msra.mxu0 0.0
        %1974 = vmatprep.mubr.f32.mxu0 0.0
        %1975 = vmatmul.mubr.f32.gmra.mxu0 %v1905
        %v1976 = vpop.f32.mrf.mxu0
        %v1977 = vadd.f32 0.0, %v1976
        %v1978 = vpop.f32.mrf.mxu0
        %1979 = vdwg.mxu0
        %1980 = vrot.lane.b32.xlu0 %v1712, 120
        %v1981 = vpop.permute.xlu0 %1980
        %1982 = vrot.lane.b32.xlu0 %v1799, 120
        %v1983 = vpop.permute.xlu0 %1982
        %1984 = vrot.lane.b32.xlu0 %v1804, 120
        %v1985 = vpop.permute.xlu0 %1984
        %v1986 = vsel %vm834, %v1981, 0
        %v1988 = vsel %vm834, %v1983, 0
        %v1990 = vsel %vm834, %v1985, 0
        %1992 = vmatprep.subr.mxu0 0.0
        %1993 = vmatpush1.xpose.msra.mxu0 0.0
        %1994 = vmatprep.subr.mxu0 0.0
        %1995 = vmatpush1.xpose.msra.mxu0 0.0
        %1996 = vmatprep.subr.mxu0 0.0
        %1997 = vmatpush1.xpose.msra.mxu0 0.0
        %1998 = vmatprep.subr.mxu0 0.0
        %1999 = vmatpush1.xpose.msra.mxu0 0.0
        %2000 = vmatprep.subr.mxu0 0.0
        %2001 = vmatpush1.xpose.msra.mxu0 0.0
        %2002 = vmatprep.subr.mxu0 0.0
        %2003 = vmatpush1.xpose.msra.mxu0 0.0
        %2004 = vmatprep.subr.mxu0 0.0
        %2005 = vmatpush1.xpose.msra.mxu0 0.0
        %2006 = vmatprep.subr.mxu0 0.0
        %2007 = vmatpush1.xpose.msra.mxu0 0.0
        %2008 = vmatprep.subr.mxu0 0.0
        %2009 = vmatpush1.xpose.msra.mxu0 0.0
        %2010 = vmatprep.subr.mxu0 0.0
        %2011 = vmatpush1.xpose.msra.mxu0 0.0
        %2012 = vmatprep.subr.mxu0 0.0
        %2013 = vmatpush1.xpose.msra.mxu0 0.0
        %2014 = vmatprep.subr.mxu0 0.0
        %2015 = vmatpush1.xpose.msra.mxu0 0.0
        %2016 = vmatprep.subr.mxu0 0.0
        %2017 = vmatpush1.xpose.msra.mxu0 0.0
        %2018 = vmatprep.subr.mxu0 0.0
        %2019 = vmatpush1.xpose.msra.mxu0 0.0
        %2020 = vmatprep.subr.mxu0 0.0
        %2021 = vmatpush1.xpose.msra.mxu0 %v1990
        %2022 = vmatprep.subr.mxu0 0.0
        %2023 = vmatpush1.xpose.msra.mxu0 %v1988
        %2024 = vmatprep.subr.mxu0 0.0
        %2025 = vmatpush2.xpose.msra.mxu0 0.0
        %2026 = vmatprep.subr.mxu0 0.0
        %2027 = vmatpush2.xpose.msra.mxu0 0.0
        %2028 = vmatprep.subr.mxu0 0.0
        %2029 = vmatpush2.xpose.msra.mxu0 0.0
        %2030 = vmatprep.subr.mxu0 0.0
        %2031 = vmatpush2.xpose.msra.mxu0 0.0
        %2032 = vmatprep.subr.mxu0 0.0
        %2033 = vmatpush2.xpose.msra.mxu0 0.0
        %2034 = vmatprep.subr.mxu0 0.0
        %2035 = vmatpush2.xpose.msra.mxu0 0.0
        %2036 = vmatprep.subr.mxu0 0.0
        %2037 = vmatpush2.xpose.msra.mxu0 0.0
        %2038 = vmatprep.subr.mxu0 0.0
        %2039 = vmatpush2.xpose.msra.mxu0 0.0
        %2040 = vmatprep.subr.mxu0 0.0
        %2041 = vmatpush2.xpose.msra.mxu0 0.0
        %2042 = vmatprep.subr.mxu0 0.0
        %2043 = vmatpush2.xpose.msra.mxu0 0.0
        %2044 = vmatprep.subr.mxu0 0.0
        %2045 = vmatpush2.xpose.msra.mxu0 0.0
        %2046 = vmatprep.subr.mxu0 0.0
        %2047 = vmatpush2.xpose.msra.mxu0 0.0
        %2048 = vmatprep.subr.mxu0 0.0
        %2049 = vmatpush2.xpose.msra.mxu0 0.0
        %2050 = vmatprep.subr.mxu0 0.0
        %2051 = vmatpush2.xpose.msra.mxu0 0.0
        %2052 = vmatprep.subr.mxu0 0.0
        %2053 = vmatpush2.xpose.msra.mxu0 0.0
        %2054 = vmatprep.subr.mxu0 0.0
        %2055 = vmatpush2.xpose.msra.mxu0 0.0
        %2056 = vmatprep.mubr.f32.mxu0 0.0
        %2057 = vmatmul.mubr.f32.gmra.mxu0 %v1986
        %v2058 = vpop.f32.mrf.mxu0
        %v2059 = vadd.f32 0.0, %v2058
        %v2060 = vpop.f32.mrf.mxu0
        %2061 = vdwg.mxu0
        %v2062 = vmul.f32 %v2059, 0.35355338
        %v2063 = vsel %vm1887, %v2062, -inf
        %2064 = vmax.xlane.f32.xlu0 %v2063
        %v2065 = vpop.xlane.xlu0 %2064
        %v2066 = vsub.f32 %v2062, %v2065
        %v2067 = vmul.f32 %v2066, 1.442695
        %v2068 = vpow.pop %v2067
        %v2069 = vsel %vm1887, %v2068, 0.0
        %2070 = vadd.xlane.f32.xlu0 %v2069
        %v2071 = vpop.xlane.xlu0 %2070
        %v2072 = vrcp.pop %v2071
        %v2073 = vmul.f32 %v2068, %v2072
        %2074 = vrot.lane.b32.xlu0 %v1799, 88
        %v2075 = vpop.permute.xlu0 %2074
        %2076 = vrot.lane.b32.xlu0 %v1804, 88
        %v2077 = vpop.permute.xlu0 %2076
        %v2080 = vsel %vm1887, %v2073, 0
        %v2082 = vsel %vm1907, %v2077, 0
        %2084 = vmatprep.subr.mxu0 0.0
        %2085 = vmatpush1.msra.mxu0 0.0
        %2086 = vmatprep.subr.mxu0 0.0
        %2087 = vmatpush1.msra.mxu0 0.0
        %2088 = vmatprep.subr.mxu0 0.0
        %2089 = vmatpush1.msra.mxu0 0.0
        %2090 = vmatprep.subr.mxu0 0.0
        %2091 = vmatpush1.msra.mxu0 0.0
        %2092 = vmatprep.subr.mxu0 0.0
        %2093 = vmatpush1.msra.mxu0 0.0
        %2094 = vmatprep.subr.mxu0 0.0
        %2095 = vmatpush1.msra.mxu0 0.0
        %2096 = vmatprep.subr.mxu0 0.0
        %2097 = vmatpush1.msra.mxu0 0.0
        %2098 = vmatprep.subr.mxu0 0.0
        %2099 = vmatpush1.msra.mxu0 0.0
        %2100 = vmatprep.subr.mxu0 0.0
        %2101 = vmatpush1.msra.mxu0 0.0
        %2102 = vmatprep.subr.mxu0 0.0
        %2103 = vmatpush1.msra.mxu0 0.0
        %2104 = vmatprep.subr.mxu0 0.0
        %2105 = vmatpush1.msra.mxu0 0.0
        %2106 = vmatprep.subr.mxu0 0.0
        %2107 = vmatpush1.msra.mxu0 0.0
        %2108 = vmatprep.subr.mxu0 0.0
        %2109 = vmatpush1.msra.mxu0 0.0
        %2110 = vmatprep.subr.mxu0 0.0
        %2111 = vmatpush1.msra.mxu0 0.0
        %2112 = vmatprep.subr.mxu0 0.0
        %2113 = vmatpush1.msra.mxu0 %v2082
        %2114 = vmatprep.subr.mxu0 0.0
        %2115 = vmatpush1.msra.mxu0 %v2075
        %2116 = vmatprep.subr.mxu0 0.0
        %2117 = vmatpush2.msra.mxu0 0.0
        %2118 = vmatprep.subr.mxu0 0.0
        %2119 = vmatpush2.msra.mxu0 0.0
        %2120 = vmatprep.subr.mxu0 0.0
        %2121 = vmatpush2.msra.mxu0 0.0
        %2122 = vmatprep.subr.mxu0 0.0
        %2123 = vmatpush2.msra.mxu0 0.0
        %2124 = vmatprep.subr.mxu0 0.0
        %2125 = vmatpush2.msra.mxu0 0.0
        %2126 = vmatprep.subr.mxu0 0.0
        %2127 = vmatpush2.msra.mxu0 0.0
        %2128 = vmatprep.subr.mxu0 0.0
        %2129 = vmatpush2.msra.mxu0 0.0
        %2130 = vmatprep.subr.mxu0 0.0
        %2131 = vmatpush2.msra.mxu0 0.0
        %2132 = vmatprep.subr.mxu0 0.0
        %2133 = vmatpush2.msra.mxu0 0.0
        %2134 = vmatprep.subr.mxu0 0.0
        %2135 = vmatpush2.msra.mxu0 0.0
        %2136 = vmatprep.subr.mxu0 0.0
        %2137 = vmatpush2.msra.mxu0 0.0
        %2138 = vmatprep.subr.mxu0 0.0
        %2139 = vmatpush2.msra.mxu0 0.0
        %2140 = vmatprep.subr.mxu0 0.0
        %2141 = vmatpush2.msra.mxu0 0.0
        %2142 = vmatprep.subr.mxu0 0.0
        %2143 = vmatpush2.msra.mxu0 0.0
        %2144 = vmatprep.subr.mxu0 0.0
        %2145 = vmatpush2.msra.mxu0 0.0
        %2146 = vmatprep.subr.mxu0 0.0
        %2147 = vmatpush2.msra.mxu0 0.0
        %2148 = vmatprep.mubr.f32.mxu0 0.0
        %2149 = vmatmul.mubr.f32.gmra.mxu0 %v2080
        %v2150 = vpop.f32.mrf.mxu0
        %v2151 = vadd.f32 0.0, %v2150
        %v2152 = vpop.f32.mrf.mxu0
        %2153 = vdwg.mxu0
        %2154 = vrot.lane.b32.xlu0 %v1712, 112
        %v2155 = vpop.permute.xlu0 %2154
        %2156 = vrot.lane.b32.xlu0 %v1799, 112
        %v2157 = vpop.permute.xlu0 %2156
        %2158 = vrot.lane.b32.xlu0 %v1804, 112
        %v2159 = vpop.permute.xlu0 %2158
        %v2160 = vsel %vm834, %v2155, 0
        %v2162 = vsel %vm834, %v2157, 0
        %v2164 = vsel %vm834, %v2159, 0
        %2166 = vmatprep.subr.mxu0 0.0
        %2167 = vmatpush1.xpose.msra.mxu0 0.0
        %2168 = vmatprep.subr.mxu0 0.0
        %2169 = vmatpush1.xpose.msra.mxu0 0.0
        %2170 = vmatprep.subr.mxu0 0.0
        %2171 = vmatpush1.xpose.msra.mxu0 0.0
        %2172 = vmatprep.subr.mxu0 0.0
        %2173 = vmatpush1.xpose.msra.mxu0 0.0
        %2174 = vmatprep.subr.mxu0 0.0
        %2175 = vmatpush1.xpose.msra.mxu0 0.0
        %2176 = vmatprep.subr.mxu0 0.0
        %2177 = vmatpush1.xpose.msra.mxu0 0.0
        %2178 = vmatprep.subr.mxu0 0.0
        %2179 = vmatpush1.xpose.msra.mxu0 0.0
        %2180 = vmatprep.subr.mxu0 0.0
        %2181 = vmatpush1.xpose.msra.mxu0 0.0
        %2182 = vmatprep.subr.mxu0 0.0
        %2183 = vmatpush1.xpose.msra.mxu0 0.0
        %2184 = vmatprep.subr.mxu0 0.0
        %2185 = vmatpush1.xpose.msra.mxu0 0.0
        %2186 = vmatprep.subr.mxu0 0.0
        %2187 = vmatpush1.xpose.msra.mxu0 0.0
        %2188 = vmatprep.subr.mxu0 0.0
        %2189 = vmatpush1.xpose.msra.mxu0 0.0
        %2190 = vmatprep.subr.mxu0 0.0
        %2191 = vmatpush1.xpose.msra.mxu0 0.0
        %2192 = vmatprep.subr.mxu0 0.0
        %2193 = vmatpush1.xpose.msra.mxu0 0.0
        %2194 = vmatprep.subr.mxu0 0.0
        %2195 = vmatpush1.xpose.msra.mxu0 %v2164
        %2196 = vmatprep.subr.mxu0 0.0
        %2197 = vmatpush1.xpose.msra.mxu0 %v2162
        %2198 = vmatprep.subr.mxu0 0.0
        %2199 = vmatpush2.xpose.msra.mxu0 0.0
        %2200 = vmatprep.subr.mxu0 0.0
        %2201 = vmatpush2.xpose.msra.mxu0 0.0
        %2202 = vmatprep.subr.mxu0 0.0
        %2203 = vmatpush2.xpose.msra.mxu0 0.0
        %2204 = vmatprep.subr.mxu0 0.0
        %2205 = vmatpush2.xpose.msra.mxu0 0.0
        %2206 = vmatprep.subr.mxu0 0.0
        %2207 = vmatpush2.xpose.msra.mxu0 0.0
        %2208 = vmatprep.subr.mxu0 0.0
        %2209 = vmatpush2.xpose.msra.mxu0 0.0
        %2210 = vmatprep.subr.mxu0 0.0
        %2211 = vmatpush2.xpose.msra.mxu0 0.0
        %2212 = vmatprep.subr.mxu0 0.0
        %2213 = vmatpush2.xpose.msra.mxu0 0.0
        %2214 = vmatprep.subr.mxu0 0.0
        %2215 = vmatpush2.xpose.msra.mxu0 0.0
        %2216 = vmatprep.subr.mxu0 0.0
        %2217 = vmatpush2.xpose.msra.mxu0 0.0
        %2218 = vmatprep.subr.mxu0 0.0
        %2219 = vmatpush2.xpose.msra.mxu0 0.0
        %2220 = vmatprep.subr.mxu0 0.0
        %2221 = vmatpush2.xpose.msra.mxu0 0.0
        %2222 = vmatprep.subr.mxu0 0.0
        %2223 = vmatpush2.xpose.msra.mxu0 0.0
        %2224 = vmatprep.subr.mxu0 0.0
        %2225 = vmatpush2.xpose.msra.mxu0 0.0
        %2226 = vmatprep.subr.mxu0 0.0
        %2227 = vmatpush2.xpose.msra.mxu0 0.0
        %2228 = vmatprep.subr.mxu0 0.0
        %2229 = vmatpush2.xpose.msra.mxu0 0.0
        %2230 = vmatprep.mubr.f32.mxu0 0.0
        %2231 = vmatmul.mubr.f32.gmra.mxu0 %v2160
        %v2232 = vpop.f32.mrf.mxu0
        %v2233 = vadd.f32 0.0, %v2232
        %v2234 = vpop.f32.mrf.mxu0
        %2235 = vdwg.mxu0
        %v2236 = vmul.f32 %v2233, 0.35355338
        %v2237 = vsel %vm1887, %v2236, -inf
        %2238 = vmax.xlane.f32.xlu0 %v2237
        %v2239 = vpop.xlane.xlu0 %2238
        %v2240 = vsub.f32 %v2236, %v2239
        %v2241 = vmul.f32 %v2240, 1.442695
        %v2242 = vpow.pop %v2241
        %v2243 = vsel %vm1887, %v2242, 0.0
        %2244 = vadd.xlane.f32.xlu0 %v2243
        %v2245 = vpop.xlane.xlu0 %2244
        %v2246 = vrcp.pop %v2245
        %v2247 = vmul.f32 %v2242, %v2246
        %2248 = vrot.lane.b32.xlu0 %v1799, 80
        %v2249 = vpop.permute.xlu0 %2248
        %2250 = vrot.lane.b32.xlu0 %v1804, 80
        %v2251 = vpop.permute.xlu0 %2250
        %v2254 = vsel %vm1887, %v2247, 0
        %v2256 = vsel %vm1907, %v2251, 0
        %2258 = vmatprep.subr.mxu0 0.0
        %2259 = vmatpush1.msra.mxu0 0.0
        %2260 = vmatprep.subr.mxu0 0.0
        %2261 = vmatpush1.msra.mxu0 0.0
        %2262 = vmatprep.subr.mxu0 0.0
        %2263 = vmatpush1.msra.mxu0 0.0
        %2264 = vmatprep.subr.mxu0 0.0
        %2265 = vmatpush1.msra.mxu0 0.0
        %2266 = vmatprep.subr.mxu0 0.0
        %2267 = vmatpush1.msra.mxu0 0.0
        %2268 = vmatprep.subr.mxu0 0.0
        %2269 = vmatpush1.msra.mxu0 0.0
        %2270 = vmatprep.subr.mxu0 0.0
        %2271 = vmatpush1.msra.mxu0 0.0
        %2272 = vmatprep.subr.mxu0 0.0
        %2273 = vmatpush1.msra.mxu0 0.0
        %2274 = vmatprep.subr.mxu0 0.0
        %2275 = vmatpush1.msra.mxu0 0.0
        %2276 = vmatprep.subr.mxu0 0.0
        %2277 = vmatpush1.msra.mxu0 0.0
        %2278 = vmatprep.subr.mxu0 0.0
        %2279 = vmatpush1.msra.mxu0 0.0
        %2280 = vmatprep.subr.mxu0 0.0
        %2281 = vmatpush1.msra.mxu0 0.0
        %2282 = vmatprep.subr.mxu0 0.0
        %2283 = vmatpush1.msra.mxu0 0.0
        %2284 = vmatprep.subr.mxu0 0.0
        %2285 = vmatpush1.msra.mxu0 0.0
        %2286 = vmatprep.subr.mxu0 0.0
        %2287 = vmatpush1.msra.mxu0 %v2256
        %2288 = vmatprep.subr.mxu0 0.0
        %2289 = vmatpush1.msra.mxu0 %v2249
        %2290 = vmatprep.subr.mxu0 0.0
        %2291 = vmatpush2.msra.mxu0 0.0
        %2292 = vmatprep.subr.mxu0 0.0
        %2293 = vmatpush2.msra.mxu0 0.0
        %2294 = vmatprep.subr.mxu0 0.0
        %2295 = vmatpush2.msra.mxu0 0.0
        %2296 = vmatprep.subr.mxu0 0.0
        %2297 = vmatpush2.msra.mxu0 0.0
        %2298 = vmatprep.subr.mxu0 0.0
        %2299 = vmatpush2.msra.mxu0 0.0
        %2300 = vmatprep.subr.mxu0 0.0
        %2301 = vmatpush2.msra.mxu0 0.0
        %2302 = vmatprep.subr.mxu0 0.0
        %2303 = vmatpush2.msra.mxu0 0.0
        %2304 = vmatprep.subr.mxu0 0.0
        %2305 = vmatpush2.msra.mxu0 0.0
        %2306 = vmatprep.subr.mxu0 0.0
        %2307 = vmatpush2.msra.mxu0 0.0
        %2308 = vmatprep.subr.mxu0 0.0
        %2309 = vmatpush2.msra.mxu0 0.0
        %2310 = vmatprep.subr.mxu0 0.0
        %2311 = vmatpush2.msra.mxu0 0.0
        %2312 = vmatprep.subr.mxu0 0.0
        %2313 = vmatpush2.msra.mxu0 0.0
        %2314 = vmatprep.subr.mxu0 0.0
        %2315 = vmatpush2.msra.mxu0 0.0
        %2316 = vmatprep.subr.mxu0 0.0
        %2317 = vmatpush2.msra.mxu0 0.0
        %2318 = vmatprep.subr.mxu0 0.0
        %2319 = vmatpush2.msra.mxu0 0.0
        %2320 = vmatprep.subr.mxu0 0.0
        %2321 = vmatpush2.msra.mxu0 0.0
        %2322 = vmatprep.mubr.f32.mxu0 0.0
        %2323 = vmatmul.mubr.f32.gmra.mxu0 %v2254
        %v2324 = vpop.f32.mrf.mxu0
        %v2325 = vadd.f32 0.0, %v2324
        %v2326 = vpop.f32.mrf.mxu0
        %2327 = vdwg.mxu0
        %2328 = vrot.lane.b32.xlu0 %v1712, 104
        %v2329 = vpop.permute.xlu0 %2328
        %2330 = vrot.lane.b32.xlu0 %v1799, 104
        %v2331 = vpop.permute.xlu0 %2330
        %2332 = vrot.lane.b32.xlu0 %v1804, 104
        %v2333 = vpop.permute.xlu0 %2332
        %v2334 = vsel %vm834, %v2329, 0
        %v2336 = vsel %vm834, %v2331, 0
        %v2338 = vsel %vm834, %v2333, 0
        %2340 = vmatprep.subr.mxu0 0.0
        %2341 = vmatpush1.xpose.msra.mxu0 0.0
        %2342 = vmatprep.subr.mxu0 0.0
        %2343 = vmatpush1.xpose.msra.mxu0 0.0
        %2344 = vmatprep.subr.mxu0 0.0
        %2345 = vmatpush1.xpose.msra.mxu0 0.0
        %2346 = vmatprep.subr.mxu0 0.0
        %2347 = vmatpush1.xpose.msra.mxu0 0.0
        %2348 = vmatprep.subr.mxu0 0.0
        %2349 = vmatpush1.xpose.msra.mxu0 0.0
        %2350 = vmatprep.subr.mxu0 0.0
        %2351 = vmatpush1.xpose.msra.mxu0 0.0
        %2352 = vmatprep.subr.mxu0 0.0
        %2353 = vmatpush1.xpose.msra.mxu0 0.0
        %2354 = vmatprep.subr.mxu0 0.0
        %2355 = vmatpush1.xpose.msra.mxu0 0.0
        %2356 = vmatprep.subr.mxu0 0.0
        %2357 = vmatpush1.xpose.msra.mxu0 0.0
        %2358 = vmatprep.subr.mxu0 0.0
        %2359 = vmatpush1.xpose.msra.mxu0 0.0
        %2360 = vmatprep.subr.mxu0 0.0
        %2361 = vmatpush1.xpose.msra.mxu0 0.0
        %2362 = vmatprep.subr.mxu0 0.0
        %2363 = vmatpush1.xpose.msra.mxu0 0.0
        %2364 = vmatprep.subr.mxu0 0.0
        %2365 = vmatpush1.xpose.msra.mxu0 0.0
        %2366 = vmatprep.subr.mxu0 0.0
        %2367 = vmatpush1.xpose.msra.mxu0 0.0
        %2368 = vmatprep.subr.mxu0 0.0
        %2369 = vmatpush1.xpose.msra.mxu0 %v2338
        %2370 = vmatprep.subr.mxu0 0.0
        %2371 = vmatpush1.xpose.msra.mxu0 %v2336
        %2372 = vmatprep.subr.mxu0 0.0
        %2373 = vmatpush2.xpose.msra.mxu0 0.0
        %2374 = vmatprep.subr.mxu0 0.0
        %2375 = vmatpush2.xpose.msra.mxu0 0.0
        %2376 = vmatprep.subr.mxu0 0.0
        %2377 = vmatpush2.xpose.msra.mxu0 0.0
        %2378 = vmatprep.subr.mxu0 0.0
        %2379 = vmatpush2.xpose.msra.mxu0 0.0
        %2380 = vmatprep.subr.mxu0 0.0
        %2381 = vmatpush2.xpose.msra.mxu0 0.0
        %2382 = vmatprep.subr.mxu0 0.0
        %2383 = vmatpush2.xpose.msra.mxu0 0.0
        %2384 = vmatprep.subr.mxu0 0.0
        %2385 = vmatpush2.xpose.msra.mxu0 0.0
        %2386 = vmatprep.subr.mxu0 0.0
        %2387 = vmatpush2.xpose.msra.mxu0 0.0
        %2388 = vmatprep.subr.mxu0 0.0
        %2389 = vmatpush2.xpose.msra.mxu0 0.0
        %2390 = vmatprep.subr.mxu0 0.0
        %2391 = vmatpush2.xpose.msra.mxu0 0.0
        %2392 = vmatprep.subr.mxu0 0.0
        %2393 = vmatpush2.xpose.msra.mxu0 0.0
        %2394 = vmatprep.subr.mxu0 0.0
        %2395 = vmatpush2.xpose.msra.mxu0 0.0
        %2396 = vmatprep.subr.mxu0 0.0
        %2397 = vmatpush2.xpose.msra.mxu0 0.0
        %2398 = vmatprep.subr.mxu0 0.0
        %2399 = vmatpush2.xpose.msra.mxu0 0.0
        %2400 = vmatprep.subr.mxu0 0.0
        %2401 = vmatpush2.xpose.msra.mxu0 0.0
        %2402 = vmatprep.subr.mxu0 0.0
        %2403 = vmatpush2.xpose.msra.mxu0 0.0
        %2404 = vmatprep.mubr.f32.mxu0 0.0
        %2405 = vmatmul.mubr.f32.gmra.mxu0 %v2334
        %v2406 = vpop.f32.mrf.mxu0
        %v2407 = vadd.f32 0.0, %v2406
        %v2408 = vpop.f32.mrf.mxu0
        %2409 = vdwg.mxu0
        %v2410 = vmul.f32 %v2407, 0.35355338
        %v2411 = vsel %vm1887, %v2410, -inf
        %2412 = vmax.xlane.f32.xlu0 %v2411
        %v2413 = vpop.xlane.xlu0 %2412
        %v2414 = vsub.f32 %v2410, %v2413
        %v2415 = vmul.f32 %v2414, 1.442695
        %v2416 = vpow.pop %v2415
        %v2417 = vsel %vm1887, %v2416, 0.0
        %2418 = vadd.xlane.f32.xlu0 %v2417
        %v2419 = vpop.xlane.xlu0 %2418
        %v2420 = vrcp.pop %v2419
        %v2421 = vmul.f32 %v2416, %v2420
        %2422 = vrot.lane.b32.xlu0 %v1799, 72
        %v2423 = vpop.permute.xlu0 %2422
        %2424 = vrot.lane.b32.xlu0 %v1804, 72
        %v2425 = vpop.permute.xlu0 %2424
        %v2428 = vsel %vm1887, %v2421, 0
        %v2430 = vsel %vm1907, %v2425, 0
        %2432 = vmatprep.subr.mxu0 0.0
        %2433 = vmatpush1.msra.mxu0 0.0
        %2434 = vmatprep.subr.mxu0 0.0
        %2435 = vmatpush1.msra.mxu0 0.0
        %2436 = vmatprep.subr.mxu0 0.0
        %2437 = vmatpush1.msra.mxu0 0.0
        %2438 = vmatprep.subr.mxu0 0.0
        %2439 = vmatpush1.msra.mxu0 0.0
        %2440 = vmatprep.subr.mxu0 0.0
        %2441 = vmatpush1.msra.mxu0 0.0
        %2442 = vmatprep.subr.mxu0 0.0
        %2443 = vmatpush1.msra.mxu0 0.0
        %2444 = vmatprep.subr.mxu0 0.0
        %2445 = vmatpush1.msra.mxu0 0.0
        %2446 = vmatprep.subr.mxu0 0.0
        %2447 = vmatpush1.msra.mxu0 0.0
        %2448 = vmatprep.subr.mxu0 0.0
        %2449 = vmatpush1.msra.mxu0 0.0
        %2450 = vmatprep.subr.mxu0 0.0
        %2451 = vmatpush1.msra.mxu0 0.0
        %2452 = vmatprep.subr.mxu0 0.0
        %2453 = vmatpush1.msra.mxu0 0.0
        %2454 = vmatprep.subr.mxu0 0.0
        %2455 = vmatpush1.msra.mxu0 0.0
        %2456 = vmatprep.subr.mxu0 0.0
        %2457 = vmatpush1.msra.mxu0 0.0
        %2458 = vmatprep.subr.mxu0 0.0
        %2459 = vmatpush1.msra.mxu0 0.0
        %2460 = vmatprep.subr.mxu0 0.0
        %2461 = vmatpush1.msra.mxu0 %v2430
        %2462 = vmatprep.subr.mxu0 0.0
        %2463 = vmatpush1.msra.mxu0 %v2423
        %2464 = vmatprep.subr.mxu0 0.0
        %2465 = vmatpush2.msra.mxu0 0.0
        %2466 = vmatprep.subr.mxu0 0.0
        %2467 = vmatpush2.msra.mxu0 0.0
        %2468 = vmatprep.subr.mxu0 0.0
        %2469 = vmatpush2.msra.mxu0 0.0
        %2470 = vmatprep.subr.mxu0 0.0
        %2471 = vmatpush2.msra.mxu0 0.0
        %2472 = vmatprep.subr.mxu0 0.0
        %2473 = vmatpush2.msra.mxu0 0.0
        %2474 = vmatprep.subr.mxu0 0.0
        %2475 = vmatpush2.msra.mxu0 0.0
        %2476 = vmatprep.subr.mxu0 0.0
        %2477 = vmatpush2.msra.mxu0 0.0
        %2478 = vmatprep.subr.mxu0 0.0
        %2479 = vmatpush2.msra.mxu0 0.0
        %2480 = vmatprep.subr.mxu0 0.0
        %2481 = vmatpush2.msra.mxu0 0.0
        %2482 = vmatprep.subr.mxu0 0.0
        %2483 = vmatpush2.msra.mxu0 0.0
        %2484 = vmatprep.subr.mxu0 0.0
        %2485 = vmatpush2.msra.mxu0 0.0
        %2486 = vmatprep.subr.mxu0 0.0
        %2487 = vmatpush2.msra.mxu0 0.0
        %2488 = vmatprep.subr.mxu0 0.0
        %2489 = vmatpush2.msra.mxu0 0.0
        %2490 = vmatprep.subr.mxu0 0.0
        %2491 = vmatpush2.msra.mxu0 0.0
        %2492 = vmatprep.subr.mxu0 0.0
        %2493 = vmatpush2.msra.mxu0 0.0
        %2494 = vmatprep.subr.mxu0 0.0
        %2495 = vmatpush2.msra.mxu0 0.0
        %2496 = vmatprep.mubr.f32.mxu0 0.0
        %2497 = vmatmul.mubr.f32.gmra.mxu0 %v2428
        %v2498 = vpop.f32.mrf.mxu0
        %v2499 = vadd.f32 0.0, %v2498
        %v2500 = vpop.f32.mrf.mxu0
        %2501 = vdwg.mxu0
        %2503 = vrot.lane.b32.xlu0 %v2151, 8
        %v2504 = vpop.permute.xlu0 %2503
        %2507 = vrot.lane.b32.xlu0 %v2325, 16
        %v2508 = vpop.permute.xlu0 %2507
        %2511 = vrot.lane.b32.xlu0 %v2499, 24
        %v2512 = vpop.permute.xlu0 %2511
        %v2514 = vsel %vm834, %v1977, %v2504
        %v2515 = vsel %vm1512, %v2514, %v2508
        %v2516 = vsel %vm1514, %v2515, %v2512
        %v2517 = vld [vmem:[%s13] sm:$0xff]
        %v2518 = vld [vmem:[%s13 + $0x8] sm:$0xff]
        %v2519 = vld [vmem:[%s13 + $0x10] sm:$0xff]
        %v2520 = vld [vmem:[%s13 + $0x18] sm:$0xff]
        %v2521 = vld [vmem:[%s14] sm:$0x1]
        %v2523 = vlaneseq
        %v2524 = vshrl.u32 %v2523, 7
        %v2525 = vsub.s32 0, %v2524
        %v2526 = vrot.slane %v2521, %v2525
        %v2529 = vsel %vm757, %v2516, 0
        %2531 = vmatprep.subr.mxu0 0.0
        %2532 = vmatpush1.msra.mxu0 0.0
        %2533 = vmatprep.subr.mxu0 0.0
        %2534 = vmatpush1.msra.mxu0 0.0
        %2535 = vmatprep.subr.mxu0 0.0
        %2536 = vmatpush1.msra.mxu0 0.0
        %2537 = vmatprep.subr.mxu0 0.0
        %2538 = vmatpush1.msra.mxu0 0.0
        %2539 = vmatprep.subr.mxu0 0.0
        %2540 = vmatpush1.msra.mxu0 0.0
        %2541 = vmatprep.subr.mxu0 0.0
        %2542 = vmatpush1.msra.mxu0 0.0
        %2543 = vmatprep.subr.mxu0 0.0
        %2544 = vmatpush1.msra.mxu0 0.0
        %2545 = vmatprep.subr.mxu0 0.0
        %2546 = vmatpush1.msra.mxu0 0.0
        %2547 = vmatprep.subr.mxu0 0.0
        %2548 = vmatpush1.msra.mxu0 0.0
        %2549 = vmatprep.subr.mxu0 0.0
        %2550 = vmatpush1.msra.mxu0 0.0
        %2551 = vmatprep.subr.mxu0 0.0
        %2552 = vmatpush1.msra.mxu0 0.0
        %2553 = vmatprep.subr.mxu0 0.0
        %2554 = vmatpush1.msra.mxu0 0.0
        %2555 = vmatprep.subr.mxu0 0.0
        %2556 = vmatpush1.msra.mxu0 %v2520
        %2557 = vmatprep.subr.mxu0 0.0
        %2558 = vmatpush1.msra.mxu0 %v2519
        %2559 = vmatprep.subr.mxu0 0.0
        %2560 = vmatpush1.msra.mxu0 %v2518
        %2561 = vmatprep.subr.mxu0 0.0
        %2562 = vmatpush1.msra.mxu0 %v2517
        %2563 = vmatprep.subr.mxu0 0.0
        %2564 = vmatpush2.msra.mxu0 0.0
        %2565 = vmatprep.subr.mxu0 0.0
        %2566 = vmatpush2.msra.mxu0 0.0
        %2567 = vmatprep.subr.mxu0 0.0
        %2568 = vmatpush2.msra.mxu0 0.0
        %2569 = vmatprep.subr.mxu0 0.0
        %2570 = vmatpush2.msra.mxu0 0.0
        %2571 = vmatprep.subr.mxu0 0.0
        %2572 = vmatpush2.msra.mxu0 0.0
        %2573 = vmatprep.subr.mxu0 0.0
        %2574 = vmatpush2.msra.mxu0 0.0
        %2575 = vmatprep.subr.mxu0 0.0
        %2576 = vmatpush2.msra.mxu0 0.0
        %2577 = vmatprep.subr.mxu0 0.0
        %2578 = vmatpush2.msra.mxu0 0.0
        %2579 = vmatprep.subr.mxu0 0.0
        %2580 = vmatpush2.msra.mxu0 0.0
        %2581 = vmatprep.subr.mxu0 0.0
        %2582 = vmatpush2.msra.mxu0 0.0
        %2583 = vmatprep.subr.mxu0 0.0
        %2584 = vmatpush2.msra.mxu0 0.0
        %2585 = vmatprep.subr.mxu0 0.0
        %2586 = vmatpush2.msra.mxu0 0.0
        %2587 = vmatprep.subr.mxu0 0.0
        %2588 = vmatpush2.msra.mxu0 0.0
        %2589 = vmatprep.subr.mxu0 0.0
        %2590 = vmatpush2.msra.mxu0 0.0
        %2591 = vmatprep.subr.mxu0 0.0
        %2592 = vmatpush2.msra.mxu0 0.0
        %2593 = vmatprep.subr.mxu0 0.0
        %2594 = vmatpush2.msra.mxu0 0.0
        %2595 = vmatprep.mubr.f32.mxu0 0.0
        %2596 = vmatmul.mubr.f32.gmra.mxu0 %v2529
        %v2597 = vpop.f32.mrf.mxu0
        %v2598 = vadd.f32 %v2526, %v2597
        %v2599 = vpop.f32.mrf.mxu0
        %2600 = vdwg.mxu0
        %v2601 = vadd.f32 %v1630, %v2598
        %v2602 = vld [vmem:[%s15] sm:$0x1]
        %v2603 = vld [vmem:[%s16] sm:$0x1]
        %v2604 = vsel %vm757, %v2601, 0.0
        %2605 = vadd.xlane.f32.xlu0 %v2604
        %v2606 = vpop.xlane.xlu0 %2605
        %v2607 = vmul.f32 %v2606, %v1606
        %v2608 = vsub.f32 %v2601, %v2607
        %v2609 = vmul.f32 %v2608, %v2608
        %v2610 = vsel %vm757, %v2609, 0.0
        %2611 = vadd.xlane.f32.xlu0 %v2610
        %v2612 = vpop.xlane.xlu0 %2611
        %v2613 = vmul.f32 %v2612, %v1606
        %v2614 = vadd.f32 %v2613, 1e-05
        %v2615 = vrsqrt.pop %v2614
        %v2616 = vmul.f32 %v2608, %v2615
        %v2618 = vlaneseq
        %v2619 = vshrl.u32 %v2618, 7
        %v2620 = vsub.s32 0, %v2619
        %v2621 = vrot.slane %v2602, %v2620
        %v2623 = vmul.f32 %v2616, %v2621
        %v2625 = vlaneseq
        %v2626 = vshrl.u32 %v2625, 7
        %v2627 = vsub.s32 0, %v2626
        %v2628 = vrot.slane %v2603, %v2627
        %v2630 = vadd.f32 %v2623, %v2628
        %v2631 = vld [vmem:[%s17] sm:$0xff]
        %v2632 = vld [vmem:[%s17 + $0x8] sm:$0xff]
        %v2633 = vld [vmem:[%s17 + $0x10] sm:$0xff]
        %v2634 = vld [vmem:[%s17 + $0x18] sm:$0xff]
        %v2635 = vld [vmem:[%s18] sm:$0x1]
        %v2637 = vlaneseq
        %v2638 = vshrl.u32 %v2637, 7
        %v2639 = vsub.s32 0, %v2638
        %v2640 = vrot.slane %v2635, %v2639
        %v2643 = vsel %vm757, %v2630, 0
        %2645 = vmatprep.subr.mxu0 0.0
        %2646 = vmatpush1.msra.mxu0 0.0
        %2647 = vmatprep.subr.mxu0 0.0
        %2648 = vmatpush1.msra.mxu0 0.0
        %2649 = vmatprep.subr.mxu0 0.0
        %2650 = vmatpush1.msra.mxu0 0.0
        %2651 = vmatprep.subr.mxu0 0.0
        %2652 = vmatpush1.msra.mxu0 0.0
        %2653 = vmatprep.subr.mxu0 0.0
        %2654 = vmatpush1.msra.mxu0 0.0
        %2655 = vmatprep.subr.mxu0 0.0
        %2656 = vmatpush1.msra.mxu0 0.0
        %2657 = vmatprep.subr.mxu0 0.0
        %2658 = vmatpush1.msra.mxu0 0.0
        %2659 = vmatprep.subr.mxu0 0.0
        %2660 = vmatpush1.msra.mxu0 0.0
        %2661 = vmatprep.subr.mxu0 0.0
        %2662 = vmatpush1.msra.mxu0 0.0
        %2663 = vmatprep.subr.mxu0 0.0
        %2664 = vmatpush1.msra.mxu0 0.0
        %2665 = vmatprep.subr.mxu0 0.0
        %2666 = vmatpush1.msra.mxu0 0.0
        %2667 = vmatprep.subr.mxu0 0.0
        %2668 = vmatpush1.msra.mxu0 0.0
        %2669 = vmatprep.subr.mxu0 0.0
        %2670 = vmatpush1.msra.mxu0 %v2634
        %2671 = vmatprep.subr.mxu0 0.0
        %2672 = vmatpush1.msra.mxu0 %v2633
        %2673 = vmatprep.subr.mxu0 0.0
        %2674 = vmatpush1.msra.mxu0 %v2632
        %2675 = vmatprep.subr.mxu0 0.0
        %2676 = vmatpush1.msra.mxu0 %v2631
        %2677 = vmatprep.subr.mxu0 0.0
        %2678 = vmatpush2.msra.mxu0 0.0
        %2679 = vmatprep.subr.mxu0 0.0
        %2680 = vmatpush2.msra.mxu0 0.0
        %2681 = vmatprep.subr.mxu0 0.0
        %2682 = vmatpush2.msra.mxu0 0.0
        %2683 = vmatprep.subr.mxu0 0.0
        %2684 = vmatpush2.msra.mxu0 0.0
        %2685 = vmatprep.subr.mxu0 0.0
        %2686 = vmatpush2.msra.mxu0 0.0
        %2687 = vmatprep.subr.mxu0 0.0
        %2688 = vmatpush2.msra.mxu0 0.0
        %2689 = vmatprep.subr.mxu0 0.0
        %2690 = vmatpush2.msra.mxu0 0.0
        %2691 = vmatprep.subr.mxu0 0.0
        %2692 = vmatpush2.msra.mxu0 0.0
        %2693 = vmatprep.subr.mxu0 0.0
        %2694 = vmatpush2.msra.mxu0 0.0
        %2695 = vmatprep.subr.mxu0 0.0
        %2696 = vmatpush2.msra.mxu0 0.0
        %2697 = vmatprep.subr.mxu0 0.0
        %2698 = vmatpush2.msra.mxu0 0.0
        %2699 = vmatprep.subr.mxu0 0.0
        %2700 = vmatpush2.msra.mxu0 0.0
        %2701 = vmatprep.subr.mxu0 0.0
        %2702 = vmatpush2.msra.mxu0 0.0
        %2703 = vmatprep.subr.mxu0 0.0
        %2704 = vmatpush2.msra.mxu0 0.0
        %2705 = vmatprep.subr.mxu0 0.0
        %2706 = vmatpush2.msra.mxu0 0.0
        %2707 = vmatprep.subr.mxu0 0.0
        %2708 = vmatpush2.msra.mxu0 0.0
        %2709 = vmatprep.mubr.f32.mxu0 0.0
        %2710 = vmatmul.mubr.f32.gmra.mxu0 %v2643
        %v2711 = vpop.f32.mrf.mxu0
        %v2712 = vadd.f32 %v2640, %v2711
        %v2713 = vpop.f32.mrf.mxu0
        %2714 = vdwg.mxu0
        %v2715 = vmax.f32 %v2712, 0.0
        %v2716 = vld [vmem:[%s19] sm:$0xff]
        %v2717 = vld [vmem:[%s19 + $0x8] sm:$0xff]
        %v2718 = vld [vmem:[%s19 + $0x10] sm:$0xff]
        %v2719 = vld [vmem:[%s19 + $0x18] sm:$0xff]
        %v2720 = vld [vmem:[%s19 + $0x20] sm:$0xff]
        %v2721 = vld [vmem:[%s19 + $0x28] sm:$0xff]
        %v2722 = vld [vmem:[%s19 + $0x30] sm:$0xff]
        %v2723 = vld [vmem:[%s19 + $0x38] sm:$0xff]
        %v2724 = vld [vmem:[%s20] sm:$0x1]
        %v2726 = vlaneseq
        %v2727 = vshrl.u32 %v2726, 7
        %v2728 = vsub.s32 0, %v2727
        %v2729 = vrot.slane %v2724, %v2728
        %vm2731 = vcmask 523264
        %v2733 = vsel %vm2731, %v2715, 0
        %2735 = vmatprep.subr.mxu0 0.0
        %2736 = vmatpush1.msra.mxu0 0.0
        %2737 = vmatprep.subr.mxu0 0.0
        %2738 = vmatpush1.msra.mxu0 0.0
        %2739 = vmatprep.subr.mxu0 0.0
        %2740 = vmatpush1.msra.mxu0 0.0
        %2741 = vmatprep.subr.mxu0 0.0
        %2742 = vmatpush1.msra.mxu0 0.0
        %2743 = vmatprep.subr.mxu0 0.0
        %2744 = vmatpush1.msra.mxu0 0.0
        %2745 = vmatprep.subr.mxu0 0.0
        %2746 = vmatpush1.msra.mxu0 0.0
        %2747 = vmatprep.subr.mxu0 0.0
        %2748 = vmatpush1.msra.mxu0 0.0
        %2749 = vmatprep.subr.mxu0 0.0
        %2750 = vmatpush1.msra.mxu0 0.0
        %2751 = vmatprep.subr.mxu0 0.0
        %2752 = vmatpush1.msra.mxu0 %v2723
        %2753 = vmatprep.subr.mxu0 0.0
        %2754 = vmatpush1.msra.mxu0 %v2722
        %2755 = vmatprep.subr.mxu0 0.0
        %2756 = vmatpush1.msra.mxu0 %v2721
        %2757 = vmatprep.subr.mxu0 0.0
        %2758 = vmatpush1.msra.mxu0 %v2720
        %2759 = vmatprep.subr.mxu0 0.0
        %2760 = vmatpush1.msra.mxu0 %v2719
        %2761 = vmatprep.subr.mxu0 0.0
        %2762 = vmatpush1.msra.mxu0 %v2718
        %2763 = vmatprep.subr.mxu0 0.0
        %2764 = vmatpush1.msra.mxu0 %v2717
        %2765 = vmatprep.subr.mxu0 0.0
        %2766 = vmatpush1.msra.mxu0 %v2716
        %2767 = vmatprep.subr.mxu0 0.0
        %2768 = vmatpush2.msra.mxu0 0.0
        %2769 = vmatprep.subr.mxu0 0.0
        %2770 = vmatpush2.msra.mxu0 0.0
        %2771 = vmatprep.subr.mxu0 0.0
        %2772 = vmatpush2.msra.mxu0 0.0
        %2773 = vmatprep.subr.mxu0 0.0
        %2774 = vmatpush2.msra.mxu0 0.0
        %2775 = vmatprep.subr.mxu0 0.0
        %2776 = vmatpush2.msra.mxu0 0.0
        %2777 = vmatprep.subr.mxu0 0.0
        %2778 = vmatpush2.msra.mxu0 0.0
        %2779 = vmatprep.subr.mxu0 0.0
        %2780 = vmatpush2.msra.mxu0 0.0
        %2781 = vmatprep.subr.mxu0 0.0
        %2782 = vmatpush2.msra.mxu0 0.0
        %2783 = vmatprep.subr.mxu0 0.0
        %2784 = vmatpush2.msra.mxu0 0.0
        %2785 = vmatprep.subr.mxu0 0.0
        %2786 = vmatpush2.msra.mxu0 0.0
        %2787 = vmatprep.subr.mxu0 0.0
        %2788 = vmatpush2.msra.mxu0 0.0
        %2789 = vmatprep.subr.mxu0 0.0
        %2790 = vmatpush2.msra.mxu0 0.0
        %2791 = vmatprep.subr.mxu0 0.0
        %2792 = vmatpush2.msra.mxu0 0.0
        %2793 = vmatprep.subr.mxu0 0.0
        %2794 = vmatpush2.msra.mxu0 0.0
        %2795 = vmatprep.subr.mxu0 0.0
        %2796 = vmatpush2.msra.mxu0 0.0
        %2797 = vmatprep.subr.mxu0 0.0
        %2798 = vmatpush2.msra.mxu0 0.0
        %2799 = vmatprep.mubr.f32.mxu0 0.0
        %2800 = vmatmul.mubr.f32.gmra.mxu0 %v2733
        %v2801 = vpop.f32.mrf.mxu0
        %v2802 = vadd.f32 %v2729, %v2801
        %v2803 = vpop.f32.mrf.mxu0
        %2804 = vdwg.mxu0
        %v2805 = vadd.f32 %v2630, %v2802
        %v2806 = vld [vmem:[#allocation4] sm:$0x1]
        %v2807 = vld [vmem:[#allocation6] sm:$0x1]
        %v2808 = vsel %vm757, %v2805, 0.0
        %2809 = vadd.xlane.f32.xlu0 %v2808
        %v2810 = vpop.xlane.xlu0 %2809
        %v2811 = vmul.f32 %v2810, %v1606
        %v2812 = vsub.f32 %v2805, %v2811
        %v2813 = vmul.f32 %v2812, %v2812
        %v2814 = vsel %vm757, %v2813, 0.0
        %2815 = vadd.xlane.f32.xlu0 %v2814
        %v2816 = vpop.xlane.xlu0 %2815
        %v2817 = vmul.f32 %v2816, %v1606
        %v2818 = vadd.f32 %v2817, 1e-05
        %v2819 = vrsqrt.pop %v2818
        %v2820 = vmul.f32 %v2812, %v2819
        %v2822 = vlaneseq
        %v2823 = vshrl.u32 %v2822, 7
        %v2824 = vsub.s32 0, %v2823
        %v2825 = vrot.slane %v2806, %v2824
        %v2827 = vmul.f32 %v2820, %v2825
        %v2829 = vlaneseq
        %v2830 = vshrl.u32 %v2829, 7
        %v2831 = vsub.s32 0, %v2830
        %v2832 = vrot.slane %v2807, %v2831
        %v2834 = vadd.f32 %v2827, %v2832
        %2835 = vst.msk [vmem:[%s731] sm:$0xff] %vm757, %v2834
        %p2836 = scmp.lt.s32.totalorder %s42, 1
        %s2837 = scalar_select %p2836, %s42, 1
        %s2838 = smul.addr %s2837, 8
        %s2839 = scalar_lea.vmem %s23, %s2838
        // Predicated region
        $region117: #{forward_train.12} parent=107 // pred_check
          %p2840 = pneg %p532
        $region118: #{forward_train.12} parent=107 // pred_check_branch
          %2842 = sbr.rel (%p2840) target = $region120
        $region119: #{forward_train.12} parent=107 // pred_region
          _
        $region120: #{forward_train.12} parent=107 // pred_fallthru
          _
      $region108: #{forward_train.12} parent=5 // pred_fallthru
        _
      %p2843 = scmp.le.s32.totalorder 2, %s37
      // Predicated region
      $region121: #{forward_train.12} parent=5 // pred_check
        %p2844 = pneg %p2843
      $region122: #{forward_train.12} parent=5 // pred_check_branch
        %2846 = sbr.rel (%p2844) target = $region124
      $region123: #{forward_train.12} parent=5 // pred_region
        %s2847 = ssub.s32 %s37, 2
        // Predicated region
        $region125: #{forward_train.12} parent=123 // pred_check
          %p2848 = pneg %p538
        $region126: #{forward_train.12} parent=123 // pred_check_branch
          %2850 = sbr.rel (%p2848) target = $region128
        $region127: #{forward_train.12} parent=123 // pred_region
          %p2851 = scmp.lt.s32.totalorder %s43, 1
          %s2852 = scalar_select %p2851, %s43, 1
          %s2853 = smul.addr %s2852, 8
          %s2854 = scalar_lea.vmem %s23, %s2853
        $region128: #{forward_train.12} parent=123 // pred_fallthru
          _
      $region124: #{forward_train.12} parent=5 // pred_fallthru
        _
    $region6: #{forward_train.12} parent=1 // loop_footer
      %s41 = sadd.s32 1, %s37
    $region7: #{forward_train.12} parent=1 // loop_footer_branch
      %36 = sbr.rel target = $region3
    $region8: #{forward_train.12} parent=1 // loop_exit
      _
    %2855 = vsyncpa [#allocation5], 1
    %s2856 = scalar_lea.sflag [#allocation5], 1
    %2857 = vsyncpa %s2856, 1
    %2858 = vsyncpa [#allocation7], 1

</llo_original>
